<compile_context>
chip_gen: v6e
topology: v6e:2x2x1
jax: 0.10.0
libtpu: 0.0.40
codegen_flags: <defaults>
</compile_context>

<pallas_src>
import functools

import numpy as np
import jax
import jax.numpy as jnp
from jax.experimental import pallas as pl
from jax.experimental.pallas import tpu as pltpu

# ---------------------------------------------------------------------------
# Reduced MobileNetV2 configuration (t = expand ratio, c = out channels,
# n = repeats, s = stride of first repeat).
# ---------------------------------------------------------------------------
IN_CH = 3
STEM_C = 32
SETTINGS = [
    # t,  c, n, s
    (1, 16, 1, 1),
    (6, 24, 2, 2),
    (6, 32, 2, 2),
    (6, 64, 1, 2),
]
FEATURE_DIM = 128  # analogous to the 1280-dim head of full MobileNetV2


# ---------------------------------------------------------------------------
# Fused Pallas kernel (whole network, one grid step per image)
# ---------------------------------------------------------------------------
def _bn_relu6(y, sb, relu6=True):
    y = y * sb[0:1, :] + sb[1:2, :]
    return jnp.clip(y, 0.0, 6.0) if relu6 else y


def _invres_block(x, refs_it, pscr, meta):
    """One inverted-residual block on a VMEM-resident activation value `x`.

    expand 1x1 (MXU, bf16) -> depthwise 3x3 (VPU, f32) -> project 1x1 (MXU,
    bf16) [+ residual].  Stride-2 blocks first permute `x` into four parity
    planes with a constant 0/1 matrix on the MXU, so all depthwise taps are
    static shifted slices of a zero-halo padded flat VMEM scratch.
    """
    stride = meta["stride"]
    mo, wo, chid = meta["mo"], meta["wo"], meta["chid"]
    has_expand = meta["has_expand"]
    use_res = meta["use_res"]
    pad = wo + 1

    # ---- (stride 2 only) pixel-unshuffle via exact 0/1 permutation matmul ----
    if stride == 2:
        perm_ref = next(refs_it)
        base = jnp.dot(perm_ref[...], x.astype(jnp.bfloat16),
                       preferred_element_type=jnp.float32)      # (4*mo, cin)
    else:
        base = x                                                # (mo, cin) f32

    # ---- expand 1x1 conv + folded BN + ReLU6 (VMEM resident) ----
    if has_expand:
        we_ref, se_ref = next(refs_it), next(refs_it)
        y = jnp.dot(base.astype(jnp.bfloat16), we_ref[...],
                    preferred_element_type=jnp.float32)
        y = _bn_relu6(y, se_ref[...])
    else:
        y = base

    wd = next(refs_it)[...]          # (9, chid) f32 depthwise weights (hoisted)
    sd = next(refs_it)[...]
    wp_ref = next(refs_it)
    sp = next(refs_it)[...]

    # ---- scatter data rows; zero ONLY the halo rows (not the whole scratch) ----
    zero_halo = jnp.zeros((pad, chid), jnp.float32)
    if stride == 1:
        pscr[0:pad, :] = zero_halo
        pscr[pad:pad + mo, :] = y
        pscr[pad + mo:pad + mo + pad, :] = zero_halo
    else:
        plane = mo + pad
        for pq in range(4):
            b0 = pq * plane
            pscr[b0:b0 + pad, :] = zero_halo
            pscr[b0 + pad:b0 + pad + mo, :] = y[pq * mo:(pq + 1) * mo, :]

    # ---- column-edge masks, computed once per block (hoisted out of taps) ----
    col = jax.lax.broadcasted_iota(jnp.int32, (mo, chid), 0) % wo
    left_edge = col == 0
    right_edge = col == wo - 1

    # ---- depthwise 3x3 + BN + ReLU6: taps grouped by dx, <=1 select per group ----
    acc = jnp.zeros((mo, chid), jnp.float32)
    for dx in range(3):
        part = jnp.zeros((mo, chid), jnp.float32)
        for dy in range(3):
            if stride == 1:
                start = pad + (dy - 1) * wo + (dx - 1)
            else:
                p = 0 if dy == 1 else 1          # source-plane row parity
                q = 0 if dx == 1 else 1          # source-plane col parity
                a = -1 if dy == 0 else 0         # row offset inside the plane
                b = -1 if dx == 0 else 0         # col offset inside the plane
                start = (2 * p + q) * (mo + pad) + pad + a * wo + b
            part = part + pscr[start:start + mo, :] * wd[3 * dy + dx:3 * dy + dx + 1, :]
        if dx == 0:
            part = jnp.where(left_edge, 0.0, part)
        elif dx == 2 and stride == 1:
            part = jnp.where(right_edge, 0.0, part)
        acc = acc + part
    acc = _bn_relu6(acc, sd)

    # ---- project 1x1 conv + BN (+ residual, no activation) ----
    z = jnp.dot(acc.astype(jnp.bfloat16), wp_ref[...],
                preferred_element_type=jnp.float32)
    z = z * sp[0:1, :] + sp[1:2, :]
    if use_res:
        z = z + x
    return z


def mobilenet_fused_kernel(*refs, block_metas, n_inputs):
    in_refs = refs[:n_inputs]
    o_ref = refs[n_inputs]
    scratch_refs = refs[n_inputs + 1:]

    it = iter(in_refs)
    x_ref = next(it)
    stem_w_ref, stem_sb_ref = next(it), next(it)

    # ---- stem: im2col'd 3x3/s2 conv (27-wide) as one MXU matmul + BN + ReLU6 ----
    x = jnp.dot(x_ref[0], stem_w_ref[...], preferred_element_type=jnp.float32)
    x = _bn_relu6(x, stem_sb_ref[...])                         # (m0, 32) f32

    # ---- inverted-residual blocks, chained entirely through VMEM ----
    for bi, meta in enumerate(block_metas):
        x = _invres_block(x, it, scratch_refs[bi], meta)

    # ---- head 1x1 ConvBNReLU6 fused with adaptive_avg_pool2d((1,1)) ----
    head_w_ref, head_sb_ref = next(it), next(it)
    y = jnp.dot(x.astype(jnp.bfloat16), head_w_ref[...],
                preferred_element_type=jnp.float32)
    y = _bn_relu6(y, head_sb_ref[...])
    o_ref[0] = jnp.mean(y, axis=0, keepdims=True)              # (1, FEATURE_DIM)


# ---------------------------------------------------------------------------
# Wrapper: one pallas_call for the whole forward
# ---------------------------------------------------------------------------
def _unshuffle_perm(h, w):
    """Constant 0/1 matrix: flat row-major (h*w) -> 4 parity planes (4*ho*wo)."""
    ho, wo = h // 2, w // 2
    mo = ho * wo
    rows = np.arange(4 * mo)
    pq = rows // mo
    p, q = pq // 2, pq % 2
    rem = rows % mo
    r, s = rem // wo, rem % wo
    src = (2 * r + p) * w + (2 * s + q)
    P = np.zeros((4 * mo, h * w), np.float32)
    P[rows, src] = 1.0
    return jnp.asarray(P, jnp.bfloat16)


def _full_spec(arr):
    nd = arr.ndim
    return pl.BlockSpec(arr.shape, lambda i: (0,) * nd)


def mobilenet_backbone_forward(params, x_nchw):
    x = jnp.transpose(x_nchw, (0, 2, 3, 1)).astype(jnp.float32)   # NCHW -> NHWC
    n, h, w, c = x.shape
    assert h % 16 == 0 and w % 16 == 0
    ho, wo = h // 2, w // 2
    m0 = ho * wo

    # im2col only for the 3-channel stem (27-wide, negligible XLA traffic).
    xp = jnp.pad(x, ((0, 0), (1, 1), (1, 1), (0, 0)))
    cols = [xp[:, dy:dy + 2 * (ho - 1) + 1:2, dx:dx + 2 * (wo - 1) + 1:2, :]
            for dy in range(3) for dx in range(3)]
    patches = jnp.concatenate(cols, axis=-1).reshape(n, m0, 9 * c)
    patches = patches.astype(jnp.bfloat16)

    operands = [patches, params["stem"]["w"], params["stem"]["sb"]]
    in_specs = [pl.BlockSpec((1, m0, 9 * c), lambda i: (i, 0, 0)),
                _full_spec(params["stem"]["w"]),
                _full_spec(params["stem"]["sb"])]

    block_metas = []
    scratch_shapes = []
    cur_h, cur_w, cin = ho, wo, STEM_C
    for blk in params["blocks"]:
        stride = blk["stride"]
        has_expand = "expand" in blk
        chid = blk["dw"]["w"].shape[1]
        cout = blk["project"]["w"].shape[1]
        bho, bwo = cur_h // stride, cur_w // stride
        bmo = bho * bwo
        pad = bwo + 1
        use_res = (stride == 1 and cin == cout)

        if stride == 2:
            perm = _unshuffle_perm(cur_h, cur_w)
            operands.append(perm)
            in_specs.append(_full_spec(perm))
            scr_rows = 4 * (bmo + pad)          # 4 parity planes, top halo each
        else:
            scr_rows = bmo + 2 * pad            # top + bottom halo
        if has_expand:
            operands += [blk["expand"]["w"], blk["expand"]["sb"]]
            in_specs += [_full_spec(blk["expand"]["w"]),
                         _full_spec(blk["expand"]["sb"])]
        operands += [blk["dw"]["w"], blk["dw"]["sb"],
                     blk["project"]["w"], blk["project"]["sb"]]
        in_specs += [_full_spec(blk["dw"]["w"]), _full_spec(blk["dw"]["sb"]),
                     _full_spec(blk["project"]["w"]), _full_spec(blk["project"]["sb"])]

        scratch_shapes.append(pltpu.VMEM((scr_rows, chid), jnp.float32))
        block_metas.append(dict(stride=stride, has_expand=has_expand,
                                use_res=use_res, mo=bmo, wo=bwo, chid=chid))
        cur_h, cur_w, cin = bho, bwo, cout

    operands += [params["head"]["w"], params["head"]["sb"]]
    in_specs += [_full_spec(params["head"]["w"]), _full_spec(params["head"]["sb"])]

    kernel = functools.partial(mobilenet_fused_kernel,
                               block_metas=tuple(block_metas),
                               n_inputs=len(operands))
    out = pl.pallas_call(
        kernel,
        out_shape=jax.ShapeDtypeStruct((n, 1, FEATURE_DIM), jnp.float32),
        grid=(n,),
        in_specs=in_specs,
        out_specs=pl.BlockSpec((1, 1, FEATURE_DIM), lambda i: (i, 0, 0)),
        scratch_shapes=scratch_shapes,
        compiler_params=pltpu.CompilerParams(dimension_semantics=("parallel",)),
    )(*operands)
    return out.reshape(n, FEATURE_DIM)


# ---------------------------------------------------------------------------
# Deterministic synthetic parameters (BatchNorm folded into (2,C) scale/bias)
# ---------------------------------------------------------------------------
def _folded_bn(key, cout):
    k1, k2, k3, k4 = jax.random.split(key, 4)
    gamma = jax.random.uniform(k1, (cout,), jnp.float32, 0.8, 1.2)
    beta = jax.random.normal(k2, (cout,), jnp.float32) * 0.05
    mean = jax.random.normal(k3, (cout,), jnp.float32) * 0.05
    var = jax.random.uniform(k4, (cout,), jnp.float32, 0.8, 1.2)
    scale = gamma / jnp.sqrt(var + 1e-5)
    bias = beta - mean * scale
    return jnp.stack([scale, bias], axis=0)                  # (2, cout) f32


def _conv_bn(key, k_in, cout):
    kw, kb = jax.random.split(key)
    w = jax.random.normal(kw, (k_in, cout), jnp.float32) / jnp.sqrt(float(k_in))
    return {"w": w.astype(jnp.bfloat16), "sb": _folded_bn(kb, cout)}


def _dwconv_bn(key, c):
    kw, kb = jax.random.split(key)
    w = jax.random.normal(kw, (9, c), jnp.float32) / 3.0     # f32: VPU depthwise
    return {"w": w, "sb": _folded_bn(kb, c)}


def build_params(key):
    keys = iter(jax.random.split(key, 64))
    params = {"stem": _conv_bn(next(keys), 9 * IN_CH, STEM_C)}
    blocks = []
    cin = STEM_C
    for t, c, nrep, s in SETTINGS:
        for j in range(nrep):
            stride = s if j == 0 else 1
            hidden = cin * t
            blk = {"stride": stride}
            if t != 1:
                blk["expand"] = _conv_bn(next(keys), cin, hidden)
            blk["dw"] = _dwconv_bn(next(keys), hidden)
            blk["project"] = _conv_bn(next(keys), hidden, c)
            blocks.append(blk)
            cin = c
    params["blocks"] = blocks
    params["head"] = _conv_bn(next(keys), cin, FEATURE_DIM)
    return params


# ---------------------------------------------------------------------------
# Pure-JAX (XLA, f32) reference of the same network for a tolerance check
# ---------------------------------------------------------------------------
def _ref_conv1x1(x, p, relu6):
    y = jnp.einsum("nhwc,cd->nhwd", x, p["w"].astype(jnp.float32))
    y = y * p["sb"][0] + p["sb"][1]
    return jnp.clip(y, 0.0, 6.0) if relu6 else y


def _ref_dw3x3(x, p, stride):
    n, h, w, c = x.shape
    ho, wo = h // stride, w // stride
    xp = jnp.pad(x, ((0, 0), (1, 1), (1, 1), (0, 0)))
    acc = jnp.zeros((n, ho, wo, c), jnp.float32)
    for dy in range(3):
        for dx in range(3):
            tap = xp[:, dy:dy + stride * (ho - 1) + 1:stride,
                        dx:dx + stride * (wo - 1) + 1:stride, :]
            acc = acc + tap * p["w"][3 * dy + dx]
    return jnp.clip(acc * p["sb"][0] + p["sb"][1], 0.0, 6.0)


def _ref_stem(x, p):
    n, h, w, c = x.shape
    ho, wo = h // 2, w // 2
    xp = jnp.pad(x, ((0, 0), (1, 1), (1, 1), (0, 0)))
    cols = [xp[:, dy:dy + 2 * (ho - 1) + 1:2, dx:dx + 2 * (wo - 1) + 1:2, :]
            for dy in range(3) for dx in range(3)]
    patches = jnp.concatenate(cols, axis=-1)
    y = jnp.einsum("nhwk,kd->nhwd", patches, p["w"].astype(jnp.float32))
    return jnp.clip(y * p["sb"][0] + p["sb"][1], 0.0, 6.0)


def reference_forward(params, x_nchw):
    x = jnp.transpose(x_nchw, (0, 2, 3, 1)).astype(jnp.float32)
    x = _ref_stem(x, params["stem"])
    for blk in params["blocks"]:
        inp = x
        y = x
        if "expand" in blk:
            y = _ref_conv1x1(y, blk["expand"], True)
        y = _ref_dw3x3(y, blk["dw"], blk["stride"])
        y = _ref_conv1x1(y, blk["project"], False)
        if blk["stride"] == 1 and inp.shape[-1] == y.shape[-1]:
            y = y + inp
        x = y
    x = _ref_conv1x1(x, params["head"], True)
    return jnp.mean(x, axis=(1, 2))


if __name__ == "__main__":
    key = jax.random.PRNGKey(0)
    kparams, kx = jax.random.split(key)
    params = build_params(kparams)
    x = jax.random.normal(kx, (2, IN_CH, 32, 32), jnp.float32)

    fwd = jax.jit(lambda inp: mobilenet_backbone_forward(params, inp))
    feat = jax.block_until_ready(fwd(x))

    assert feat.shape == (2, FEATURE_DIM), feat.shape
    assert bool(jnp.all(jnp.isfinite(feat)))

    # bf16-tolerant check against the pure-JAX reference of the same network.
    ref = reference_forward(params, x)
    err = float(jnp.max(jnp.abs(feat - ref.astype(jnp.float32))))
    assert err < 0.25, f"max abs err vs reference: {err}"
    print("KERNEL_OK")
</pallas_src>

<mosaic_0001>
module attributes {stable_mosaic.version = 11 : i64} {
  func.func @mobilenet_fused_kernel(%arg0: i32, %arg1: memref<1x256x27xbf16, #tpu.memory_space<vmem>>, %arg2: memref<27x32xbf16, #tpu.memory_space<vmem>>, %arg3: memref<2x32xf32, #tpu.memory_space<vmem>>, %arg4: memref<9x32xf32, #tpu.memory_space<vmem>>, %arg5: memref<2x32xf32, #tpu.memory_space<vmem>>, %arg6: memref<32x16xbf16, #tpu.memory_space<vmem>>, %arg7: memref<2x16xf32, #tpu.memory_space<vmem>>, %arg8: memref<256x256xbf16, #tpu.memory_space<vmem>>, %arg9: memref<16x96xbf16, #tpu.memory_space<vmem>>, %arg10: memref<2x96xf32, #tpu.memory_space<vmem>>, %arg11: memref<9x96xf32, #tpu.memory_space<vmem>>, %arg12: memref<2x96xf32, #tpu.memory_space<vmem>>, %arg13: memref<96x24xbf16, #tpu.memory_space<vmem>>, %arg14: memref<2x24xf32, #tpu.memory_space<vmem>>, %arg15: memref<24x144xbf16, #tpu.memory_space<vmem>>, %arg16: memref<2x144xf32, #tpu.memory_space<vmem>>, %arg17: memref<9x144xf32, #tpu.memory_space<vmem>>, %arg18: memref<2x144xf32, #tpu.memory_space<vmem>>, %arg19: memref<144x24xbf16, #tpu.memory_space<vmem>>, %arg20: memref<2x24xf32, #tpu.memory_space<vmem>>, %arg21: memref<64x64xbf16, #tpu.memory_space<vmem>>, %arg22: memref<24x144xbf16, #tpu.memory_space<vmem>>, %arg23: memref<2x144xf32, #tpu.memory_space<vmem>>, %arg24: memref<9x144xf32, #tpu.memory_space<vmem>>, %arg25: memref<2x144xf32, #tpu.memory_space<vmem>>, %arg26: memref<144x32xbf16, #tpu.memory_space<vmem>>, %arg27: memref<2x32xf32, #tpu.memory_space<vmem>>, %arg28: memref<32x192xbf16, #tpu.memory_space<vmem>>, %arg29: memref<2x192xf32, #tpu.memory_space<vmem>>, %arg30: memref<9x192xf32, #tpu.memory_space<vmem>>, %arg31: memref<2x192xf32, #tpu.memory_space<vmem>>, %arg32: memref<192x32xbf16, #tpu.memory_space<vmem>>, %arg33: memref<2x32xf32, #tpu.memory_space<vmem>>, %arg34: memref<16x16xbf16, #tpu.memory_space<vmem>>, %arg35: memref<32x192xbf16, #tpu.memory_space<vmem>>, %arg36: memref<2x192xf32, #tpu.memory_space<vmem>>, %arg37: memref<9x192xf32, #tpu.memory_space<vmem>>, %arg38: memref<2x192xf32, #tpu.memory_space<vmem>>, %arg39: memref<192x64xbf16, #tpu.memory_space<vmem>>, %arg40: memref<2x64xf32, #tpu.memory_space<vmem>>, %arg41: memref<64x128xbf16, #tpu.memory_space<vmem>>, %arg42: memref<2x128xf32, #tpu.memory_space<vmem>>, %arg43: memref<1x1x128xf32, #tpu.memory_space<vmem>>, %arg44: memref<290x32xf32, #tpu.memory_space<vmem>>, %arg45: memref<292x96xf32, #tpu.memory_space<vmem>>, %arg46: memref<82x144xf32, #tpu.memory_space<vmem>>, %arg47: memref<84x144xf32, #tpu.memory_space<vmem>>, %arg48: memref<26x192xf32, #tpu.memory_space<vmem>>, %arg49: memref<28x192xf32, #tpu.memory_space<vmem>>) attributes {dimension_semantics = [#tpu.dimension_semantics<parallel>], iteration_bounds = array<i64: 2>, scalar_prefetch = 0 : i64, scratch_operands = 6 : i64, tpu.core_type = #tpu.core_type<tc>, window_params = [{transform_indices = @transform_0, window_bounds = array<i64: 1, 256, 27>}, {pipeline_mode = #tpu.pipeline_mode<synchronous>, transform_indices = @transform_1, window_bounds = array<i64: 27, 32>}, {pipeline_mode = #tpu.pipeline_mode<synchronous>, transform_indices = @transform_2, window_bounds = array<i64: 2, 32>}, {pipeline_mode = #tpu.pipeline_mode<synchronous>, transform_indices = @transform_3, window_bounds = array<i64: 9, 32>}, {pipeline_mode = #tpu.pipeline_mode<synchronous>, transform_indices = @transform_4, window_bounds = array<i64: 2, 32>}, {pipeline_mode = #tpu.pipeline_mode<synchronous>, transform_indices = @transform_5, window_bounds = array<i64: 32, 16>}, {pipeline_mode = #tpu.pipeline_mode<synchronous>, transform_indices = @transform_6, window_bounds = array<i64: 2, 16>}, {pipeline_mode = #tpu.pipeline_mode<synchronous>, transform_indices = @transform_7, window_bounds = array<i64: 256, 256>}, {pipeline_mode = #tpu.pipeline_mode<synchronous>, transform_indices = @transform_8, window_bounds = array<i64: 16, 96>}, {pipeline_mode = #tpu.pipeline_mode<synchronous>, transform_indices = @transform_9, window_bounds = array<i64: 2, 96>}, {pipeline_mode = #tpu.pipeline_mode<synchronous>, transform_indices = @transform_10, window_bounds = array<i64: 9, 96>}, {pipeline_mode = #tpu.pipeline_mode<synchronous>, transform_indices = @transform_11, window_bounds = array<i64: 2, 96>}, {pipeline_mode = #tpu.pipeline_mode<synchronous>, transform_indices = @transform_12, window_bounds = array<i64: 96, 24>}, {pipeline_mode = #tpu.pipeline_mode<synchronous>, transform_indices = @transform_13, window_bounds = array<i64: 2, 24>}, {pipeline_mode = #tpu.pipeline_mode<synchronous>, transform_indices = @transform_14, window_bounds = array<i64: 24, 144>}, {pipeline_mode = #tpu.pipeline_mode<synchronous>, transform_indices = @transform_15, window_bounds = array<i64: 2, 144>}, {pipeline_mode = #tpu.pipeline_mode<synchronous>, transform_indices = @transform_16, window_bounds = array<i64: 9, 144>}, {pipeline_mode = #tpu.pipeline_mode<synchronous>, transform_indices = @transform_17, window_bounds = array<i64: 2, 144>}, {pipeline_mode = #tpu.pipeline_mode<synchronous>, transform_indices = @transform_18, window_bounds = array<i64: 144, 24>}, {pipeline_mode = #tpu.pipeline_mode<synchronous>, transform_indices = @transform_19, window_bounds = array<i64: 2, 24>}, {pipeline_mode = #tpu.pipeline_mode<synchronous>, transform_indices = @transform_20, window_bounds = array<i64: 64, 64>}, {pipeline_mode = #tpu.pipeline_mode<synchronous>, transform_indices = @transform_21, window_bounds = array<i64: 24, 144>}, {pipeline_mode = #tpu.pipeline_mode<synchronous>, transform_indices = @transform_22, window_bounds = array<i64: 2, 144>}, {pipeline_mode = #tpu.pipeline_mode<synchronous>, transform_indices = @transform_23, window_bounds = array<i64: 9, 144>}, {pipeline_mode = #tpu.pipeline_mode<synchronous>, transform_indices = @transform_24, window_bounds = array<i64: 2, 144>}, {pipeline_mode = #tpu.pipeline_mode<synchronous>, transform_indices = @transform_25, window_bounds = array<i64: 144, 32>}, {pipeline_mode = #tpu.pipeline_mode<synchronous>, transform_indices = @transform_26, window_bounds = array<i64: 2, 32>}, {pipeline_mode = #tpu.pipeline_mode<synchronous>, transform_indices = @transform_27, window_bounds = array<i64: 32, 192>}, {pipeline_mode = #tpu.pipeline_mode<synchronous>, transform_indices = @transform_28, window_bounds = array<i64: 2, 192>}, {pipeline_mode = #tpu.pipeline_mode<synchronous>, transform_indices = @transform_29, window_bounds = array<i64: 9, 192>}, {pipeline_mode = #tpu.pipeline_mode<synchronous>, transform_indices = @transform_30, window_bounds = array<i64: 2, 192>}, {pipeline_mode = #tpu.pipeline_mode<synchronous>, transform_indices = @transform_31, window_bounds = array<i64: 192, 32>}, {pipeline_mode = #tpu.pipeline_mode<synchronous>, transform_indices = @transform_32, window_bounds = array<i64: 2, 32>}, {pipeline_mode = #tpu.pipeline_mode<synchronous>, transform_indices = @transform_33, window_bounds = array<i64: 16, 16>}, {pipeline_mode = #tpu.pipeline_mode<synchronous>, transform_indices = @transform_34, window_bounds = array<i64: 32, 192>}, {pipeline_mode = #tpu.pipeline_mode<synchronous>, transform_indices = @transform_35, window_bounds = array<i64: 2, 192>}, {pipeline_mode = #tpu.pipeline_mode<synchronous>, transform_indices = @transform_36, window_bounds = array<i64: 9, 192>}, {pipeline_mode = #tpu.pipeline_mode<synchronous>, transform_indices = @transform_37, window_bounds = array<i64: 2, 192>}, {pipeline_mode = #tpu.pipeline_mode<synchronous>, transform_indices = @transform_38, window_bounds = array<i64: 192, 64>}, {pipeline_mode = #tpu.pipeline_mode<synchronous>, transform_indices = @transform_39, window_bounds = array<i64: 2, 64>}, {pipeline_mode = #tpu.pipeline_mode<synchronous>, transform_indices = @transform_40, window_bounds = array<i64: 64, 128>}, {pipeline_mode = #tpu.pipeline_mode<synchronous>, transform_indices = @transform_41, window_bounds = array<i64: 2, 128>}, {transform_indices = @transform_42, window_bounds = array<i64: 1, 1, 128>}]} {
    %c0 = arith.constant 0 : index
    %c0_0 = arith.constant 0 : index
    %c0_1 = arith.constant 0 : index
    %0 = vector.load %arg1[%c0, %c0_0, %c0_1] : memref<1x256x27xbf16, #tpu.memory_space<vmem>>, vector<1x256x27xbf16>
    %1 = vector.shape_cast %0 : vector<1x256x27xbf16> to vector<256x27xbf16>
    %c0_2 = arith.constant 0 : index
    %c0_3 = arith.constant 0 : index
    %2 = vector.load %arg2[%c0_2, %c0_3] : memref<27x32xbf16, #tpu.memory_space<vmem>>, vector<27x32xbf16>
    %cst = arith.constant dense<0.000000e+00> : vector<256x32xf32>
    %3 = tpu.matmul %1, %2, %cst {dimension_numbers = #tpu.dot_dimension_numbers<[1], [0], [0], [1], [0, 0, 1, 1], [], []>} : vector<256x27xbf16>, vector<27x32xbf16>, vector<256x32xf32> -> vector<256x32xf32>
    %c0_4 = arith.constant 0 : index
    %c0_5 = arith.constant 0 : index
    %4 = vector.load %arg3[%c0_4, %c0_5] : memref<2x32xf32, #tpu.memory_space<vmem>>, vector<2x32xf32>
    %5 = vector.extract_strided_slice %4 {offsets = [0, 0], sizes = [1, 32], strides = [1, 1]} : vector<2x32xf32> to vector<1x32xf32>
    %6 = vector.broadcast %5 : vector<1x32xf32> to vector<256x32xf32>
    %7 = arith.mulf %3, %6 : vector<256x32xf32>
    %8 = vector.extract_strided_slice %4 {offsets = [1, 0], sizes = [1, 32], strides = [1, 1]} : vector<2x32xf32> to vector<1x32xf32>
    %9 = vector.broadcast %8 : vector<1x32xf32> to vector<256x32xf32>
    %10 = arith.addf %7, %9 : vector<256x32xf32>
    %cst_6 = arith.constant 0.000000e+00 : f32
    %cst_7 = arith.constant 6.000000e+00 : f32
    %11 = vector.broadcast %cst_6 : f32 to vector<256x32xf32>
    %12 = arith.maximumf %11, %10 : vector<256x32xf32>
    %13 = vector.broadcast %cst_7 : f32 to vector<256x32xf32>
    %14 = arith.minimumf %13, %12 : vector<256x32xf32>
    %c0_8 = arith.constant 0 : index
    %c0_9 = arith.constant 0 : index
    %15 = vector.load %arg4[%c0_8, %c0_9] : memref<9x32xf32, #tpu.memory_space<vmem>>, vector<9x32xf32>
    %c0_10 = arith.constant 0 : index
    %c0_11 = arith.constant 0 : index
    %16 = vector.load %arg5[%c0_10, %c0_11] : memref<2x32xf32, #tpu.memory_space<vmem>>, vector<2x32xf32>
    %c0_12 = arith.constant 0 : index
    %c0_13 = arith.constant 0 : index
    %17 = vector.load %arg7[%c0_12, %c0_13] : memref<2x16xf32, #tpu.memory_space<vmem>>, vector<2x16xf32>
    %cst_14 = arith.constant 0.000000e+00 : f32
    %18 = vector.broadcast %cst_14 : f32 to vector<17x32xf32>
    %c0_15 = arith.constant 0 : index
    %c0_16 = arith.constant 0 : index
    %19 = vector.load %arg44[%c0_15, %c0_16] : memref<290x32xf32, #tpu.memory_space<vmem>>, vector<17x32xf32>
    tpu.vector_store %arg44[%c0_15, %c0_16], %18 {strides = array<i32>} : memref<290x32xf32, #tpu.memory_space<vmem>>, vector<17x32xf32>,
    %c17 = arith.constant 17 : index
    %c0_17 = arith.constant 0 : index
    %20 = vector.load %arg44[%c17, %c0_17] : memref<290x32xf32, #tpu.memory_space<vmem>>, vector<256x32xf32>
    tpu.vector_store %arg44[%c17, %c0_17], %14 {strides = array<i32>} : memref<290x32xf32, #tpu.memory_space<vmem>>, vector<256x32xf32>,
    %c273 = arith.constant 273 : index
    %c0_18 = arith.constant 0 : index
    %21 = vector.load %arg44[%c273, %c0_18] : memref<290x32xf32, #tpu.memory_space<vmem>>, vector<17x32xf32>
    tpu.vector_store %arg44[%c273, %c0_18], %18 {strides = array<i32>} : memref<290x32xf32, #tpu.memory_space<vmem>>, vector<17x32xf32>,
    %22 = tpu.iota {dimensions = array<i32: 0>} : vector<256x32xi32>
    %c16_i32 = arith.constant 16 : i32
    %c0_i32 = arith.constant 0 : i32
    %23 = arith.cmpi eq, %c16_i32, %c0_i32 : i32
    %c1_i32 = arith.constant 1 : i32
    %24 = arith.select %23, %c1_i32, %c16_i32 : i32
    %25 = vector.broadcast %24 : i32 to vector<256x32xi32>
    %26 = arith.remsi %22, %25 : vector<256x32xi32>
    %c0_i32_19 = arith.constant 0 : i32
    %27 = vector.broadcast %c0_i32_19 : i32 to vector<256x32xi32>
    %28 = arith.cmpi ne, %26, %27 : vector<256x32xi32>
    %c0_i32_20 = arith.constant 0 : i32
    %29 = vector.broadcast %c0_i32_20 : i32 to vector<256x32xi32>
    %30 = arith.cmpi slt, %26, %29 : vector<256x32xi32>
    %c0_i32_21 = arith.constant 0 : i32
    %31 = arith.cmpi slt, %24, %c0_i32_21 : i32
    %32 = vector.broadcast %31 : i1 to vector<256x32xi1>
    %33 = vector.broadcast %32 : vector<256x32xi1> to vector<256x32xi1>
    %34 = arith.xori %30, %33 : vector<256x32xi1>
    %35 = arith.andi %34, %28 : vector<256x32xi1>
    %36 = vector.broadcast %24 : i32 to vector<256x32xi32>
    %37 = arith.addi %26, %36 : vector<256x32xi32>
    %38 = arith.select %35, %37, %26 : vector<256x32xi1>, vector<256x32xi32>
    %c0_i32_22 = arith.constant 0 : i32
    %39 = vector.broadcast %c0_i32_22 : i32 to vector<256x32xi32>
    %40 = arith.cmpi eq, %38, %39 : vector<256x32xi32>
    %c15_i32 = arith.constant 15 : i32
    %41 = vector.broadcast %c15_i32 : i32 to vector<256x32xi32>
    %42 = arith.cmpi eq, %38, %41 : vector<256x32xi32>
    %cst_23 = arith.constant 0.000000e+00 : f32
    %43 = vector.broadcast %cst_23 : f32 to vector<256x32xf32>
    %cst_24 = arith.constant 0.000000e+00 : f32
    %44 = vector.broadcast %cst_24 : f32 to vector<256x32xf32>
    %c0_25 = arith.constant 0 : index
    %c0_26 = arith.constant 0 : index
    %45 = vector.load %arg44[%c0_25, %c0_26] : memref<290x32xf32, #tpu.memory_space<vmem>>, vector<256x32xf32>
    %46 = vector.extract_strided_slice %15 {offsets = [0, 0], sizes = [1, 32], strides = [1, 1]} : vector<9x32xf32> to vector<1x32xf32>
    %47 = vector.broadcast %46 : vector<1x32xf32> to vector<256x32xf32>
    %48 = arith.mulf %45, %47 : vector<256x32xf32>
    %49 = arith.addf %44, %48 : vector<256x32xf32>
    %c16 = arith.constant 16 : index
    %c0_27 = arith.constant 0 : index
    %50 = vector.load %arg44[%c16, %c0_27] : memref<290x32xf32, #tpu.memory_space<vmem>>, vector<256x32xf32>
    %51 = vector.extract_strided_slice %15 {offsets = [3, 0], sizes = [1, 32], strides = [1, 1]} : vector<9x32xf32> to vector<1x32xf32>
    %52 = vector.broadcast %51 : vector<1x32xf32> to vector<256x32xf32>
    %53 = arith.mulf %50, %52 : vector<256x32xf32>
    %54 = arith.addf %49, %53 : vector<256x32xf32>
    %c32 = arith.constant 32 : index
    %c0_28 = arith.constant 0 : index
    %55 = vector.load %arg44[%c32, %c0_28] : memref<290x32xf32, #tpu.memory_space<vmem>>, vector<256x32xf32>
    %56 = vector.extract_strided_slice %15 {offsets = [6, 0], sizes = [1, 32], strides = [1, 1]} : vector<9x32xf32> to vector<1x32xf32>
    %57 = vector.broadcast %56 : vector<1x32xf32> to vector<256x32xf32>
    %58 = arith.mulf %55, %57 : vector<256x32xf32>
    %59 = arith.addf %54, %58 : vector<256x32xf32>
    %cst_29 = arith.constant 0.000000e+00 : f32
    %60 = vector.broadcast %cst_29 : f32 to vector<256x32xf32>
    %61 = arith.select %40, %60, %59 : vector<256x32xi1>, vector<256x32xf32>
    %62 = arith.addf %43, %61 : vector<256x32xf32>
    %cst_30 = arith.constant 0.000000e+00 : f32
    %63 = vector.broadcast %cst_30 : f32 to vector<256x32xf32>
    %c1 = arith.constant 1 : index
    %c0_31 = arith.constant 0 : index
    %64 = vector.load %arg44[%c1, %c0_31] : memref<290x32xf32, #tpu.memory_space<vmem>>, vector<256x32xf32>
    %65 = vector.extract_strided_slice %15 {offsets = [1, 0], sizes = [1, 32], strides = [1, 1]} : vector<9x32xf32> to vector<1x32xf32>
    %66 = vector.broadcast %65 : vector<1x32xf32> to vector<256x32xf32>
    %67 = arith.mulf %64, %66 : vector<256x32xf32>
    %68 = arith.addf %63, %67 : vector<256x32xf32>
    %c17_32 = arith.constant 17 : index
    %c0_33 = arith.constant 0 : index
    %69 = vector.load %arg44[%c17_32, %c0_33] : memref<290x32xf32, #tpu.memory_space<vmem>>, vector<256x32xf32>
    %70 = vector.extract_strided_slice %15 {offsets = [4, 0], sizes = [1, 32], strides = [1, 1]} : vector<9x32xf32> to vector<1x32xf32>
    %71 = vector.broadcast %70 : vector<1x32xf32> to vector<256x32xf32>
    %72 = arith.mulf %69, %71 : vector<256x32xf32>
    %73 = arith.addf %68, %72 : vector<256x32xf32>
    %c33 = arith.constant 33 : index
    %c0_34 = arith.constant 0 : index
    %74 = vector.load %arg44[%c33, %c0_34] : memref<290x32xf32, #tpu.memory_space<vmem>>, vector<256x32xf32>
    %75 = vector.extract_strided_slice %15 {offsets = [7, 0], sizes = [1, 32], strides = [1, 1]} : vector<9x32xf32> to vector<1x32xf32>
    %76 = vector.broadcast %75 : vector<1x32xf32> to vector<256x32xf32>
    %77 = arith.mulf %74, %76 : vector<256x32xf32>
    %78 = arith.addf %73, %77 : vector<256x32xf32>
    %79 = arith.addf %62, %78 : vector<256x32xf32>
    %cst_35 = arith.constant 0.000000e+00 : f32
    %80 = vector.broadcast %cst_35 : f32 to vector<256x32xf32>
    %c2 = arith.constant 2 : index
    %c0_36 = arith.constant 0 : index
    %81 = vector.load %arg44[%c2, %c0_36] : memref<290x32xf32, #tpu.memory_space<vmem>>, vector<256x32xf32>
    %82 = vector.extract_strided_slice %15 {offsets = [2, 0], sizes = [1, 32], strides = [1, 1]} : vector<9x32xf32> to vector<1x32xf32>
    %83 = vector.broadcast %82 : vector<1x32xf32> to vector<256x32xf32>
    %84 = arith.mulf %81, %83 : vector<256x32xf32>
    %85 = arith.addf %80, %84 : vector<256x32xf32>
    %c18 = arith.constant 18 : index
    %c0_37 = arith.constant 0 : index
    %86 = vector.load %arg44[%c18, %c0_37] : memref<290x32xf32, #tpu.memory_space<vmem>>, vector<256x32xf32>
    %87 = vector.extract_strided_slice %15 {offsets = [5, 0], sizes = [1, 32], strides = [1, 1]} : vector<9x32xf32> to vector<1x32xf32>
    %88 = vector.broadcast %87 : vector<1x32xf32> to vector<256x32xf32>
    %89 = arith.mulf %86, %88 : vector<256x32xf32>
    %90 = arith.addf %85, %89 : vector<256x32xf32>
    %c34 = arith.constant 34 : index
    %c0_38 = arith.constant 0 : index
    %91 = vector.load %arg44[%c34, %c0_38] : memref<290x32xf32, #tpu.memory_space<vmem>>, vector<256x32xf32>
    %92 = vector.extract_strided_slice %15 {offsets = [8, 0], sizes = [1, 32], strides = [1, 1]} : vector<9x32xf32> to vector<1x32xf32>
    %93 = vector.broadcast %92 : vector<1x32xf32> to vector<256x32xf32>
    %94 = arith.mulf %91, %93 : vector<256x32xf32>
    %95 = arith.addf %90, %94 : vector<256x32xf32>
    %cst_39 = arith.constant 0.000000e+00 : f32
    %96 = vector.broadcast %cst_39 : f32 to vector<256x32xf32>
    %97 = arith.select %42, %96, %95 : vector<256x32xi1>, vector<256x32xf32>
    %98 = arith.addf %79, %97 : vector<256x32xf32>
    %99 = vector.extract_strided_slice %16 {offsets = [0, 0], sizes = [1, 32], strides = [1, 1]} : vector<2x32xf32> to vector<1x32xf32>
    %100 = vector.broadcast %99 : vector<1x32xf32> to vector<256x32xf32>
    %101 = arith.mulf %98, %100 : vector<256x32xf32>
    %102 = vector.extract_strided_slice %16 {offsets = [1, 0], sizes = [1, 32], strides = [1, 1]} : vector<2x32xf32> to vector<1x32xf32>
    %103 = vector.broadcast %102 : vector<1x32xf32> to vector<256x32xf32>
    %104 = arith.addf %101, %103 : vector<256x32xf32>
    %cst_40 = arith.constant 0.000000e+00 : f32
    %cst_41 = arith.constant 6.000000e+00 : f32
    %105 = vector.broadcast %cst_40 : f32 to vector<256x32xf32>
    %106 = arith.maximumf %105, %104 : vector<256x32xf32>
    %107 = vector.broadcast %cst_41 : f32 to vector<256x32xf32>
    %108 = arith.minimumf %107, %106 : vector<256x32xf32>
    %109 = arith.truncf %108 : vector<256x32xf32> to vector<256x32xbf16>
    %c0_42 = arith.constant 0 : index
    %c0_43 = arith.constant 0 : index
    %110 = vector.load %arg6[%c0_42, %c0_43] : memref<32x16xbf16, #tpu.memory_space<vmem>>, vector<32x16xbf16>
    %cst_44 = arith.constant dense<0.000000e+00> : vector<256x16xf32>
    %111 = tpu.matmul %109, %110, %cst_44 {dimension_numbers = #tpu.dot_dimension_numbers<[1], [0], [0], [1], [0, 0, 1, 1], [], []>} : vector<256x32xbf16>, vector<32x16xbf16>, vector<256x16xf32> -> vector<256x16xf32>
    %112 = vector.extract_strided_slice %17 {offsets = [0, 0], sizes = [1, 16], strides = [1, 1]} : vector<2x16xf32> to vector<1x16xf32>
    %113 = vector.broadcast %112 : vector<1x16xf32> to vector<256x16xf32>
    %114 = arith.mulf %111, %113 : vector<256x16xf32>
    %115 = vector.extract_strided_slice %17 {offsets = [1, 0], sizes = [1, 16], strides = [1, 1]} : vector<2x16xf32> to vector<1x16xf32>
    %116 = vector.broadcast %115 : vector<1x16xf32> to vector<256x16xf32>
    %117 = arith.addf %114, %116 : vector<256x16xf32>
    %c0_45 = arith.constant 0 : index
    %c0_46 = arith.constant 0 : index
    %118 = vector.load %arg8[%c0_45, %c0_46] : memref<256x256xbf16, #tpu.memory_space<vmem>>, vector<256x256xbf16>
    %119 = arith.truncf %117 : vector<256x16xf32> to vector<256x16xbf16>
    %cst_47 = arith.constant dense<0.000000e+00> : vector<256x16xf32>
    %120 = tpu.matmul %118, %119, %cst_47 {dimension_numbers = #tpu.dot_dimension_numbers<[1], [0], [0], [1], [0, 0, 1, 1], [], []>} : vector<256x256xbf16>, vector<256x16xbf16>, vector<256x16xf32> -> vector<256x16xf32>
    %121 = arith.truncf %120 : vector<256x16xf32> to vector<256x16xbf16>
    %c0_48 = arith.constant 0 : index
    %c0_49 = arith.constant 0 : index
    %122 = vector.load %arg9[%c0_48, %c0_49] : memref<16x96xbf16, #tpu.memory_space<vmem>>, vector<16x96xbf16>
    %cst_50 = arith.constant dense<0.000000e+00> : vector<256x96xf32>
    %123 = tpu.matmul %121, %122, %cst_50 {dimension_numbers = #tpu.dot_dimension_numbers<[1], [0], [0], [1], [0, 0, 1, 1], [], []>} : vector<256x16xbf16>, vector<16x96xbf16>, vector<256x96xf32> -> vector<256x96xf32>
    %c0_51 = arith.constant 0 : index
    %c0_52 = arith.constant 0 : index
    %124 = vector.load %arg10[%c0_51, %c0_52] : memref<2x96xf32, #tpu.memory_space<vmem>>, vector<2x96xf32>
    %125 = vector.extract_strided_slice %124 {offsets = [0, 0], sizes = [1, 96], strides = [1, 1]} : vector<2x96xf32> to vector<1x96xf32>
    %126 = vector.broadcast %125 : vector<1x96xf32> to vector<256x96xf32>
    %127 = arith.mulf %123, %126 : vector<256x96xf32>
    %128 = vector.extract_strided_slice %124 {offsets = [1, 0], sizes = [1, 96], strides = [1, 1]} : vector<2x96xf32> to vector<1x96xf32>
    %129 = vector.broadcast %128 : vector<1x96xf32> to vector<256x96xf32>
    %130 = arith.addf %127, %129 : vector<256x96xf32>
    %cst_53 = arith.constant 0.000000e+00 : f32
    %cst_54 = arith.constant 6.000000e+00 : f32
    %131 = vector.broadcast %cst_53 : f32 to vector<256x96xf32>
    %132 = arith.maximumf %131, %130 : vector<256x96xf32>
    %133 = vector.broadcast %cst_54 : f32 to vector<256x96xf32>
    %134 = arith.minimumf %133, %132 : vector<256x96xf32>
    %c0_55 = arith.constant 0 : index
    %c0_56 = arith.constant 0 : index
    %135 = vector.load %arg11[%c0_55, %c0_56] : memref<9x96xf32, #tpu.memory_space<vmem>>, vector<9x96xf32>
    %c0_57 = arith.constant 0 : index
    %c0_58 = arith.constant 0 : index
    %136 = vector.load %arg12[%c0_57, %c0_58] : memref<2x96xf32, #tpu.memory_space<vmem>>, vector<2x96xf32>
    %c0_59 = arith.constant 0 : index
    %c0_60 = arith.constant 0 : index
    %137 = vector.load %arg14[%c0_59, %c0_60] : memref<2x24xf32, #tpu.memory_space<vmem>>, vector<2x24xf32>
    %cst_61 = arith.constant 0.000000e+00 : f32
    %138 = vector.broadcast %cst_61 : f32 to vector<9x96xf32>
    %c0_62 = arith.constant 0 : index
    %c0_63 = arith.constant 0 : index
    %139 = vector.load %arg45[%c0_62, %c0_63] : memref<292x96xf32, #tpu.memory_space<vmem>>, vector<9x96xf32>
    tpu.vector_store %arg45[%c0_62, %c0_63], %138 {strides = array<i32>} : memref<292x96xf32, #tpu.memory_space<vmem>>, vector<9x96xf32>,
    %140 = vector.extract_strided_slice %134 {offsets = [0, 0], sizes = [64, 96], strides = [1, 1]} : vector<256x96xf32> to vector<64x96xf32>
    %c9 = arith.constant 9 : index
    %c0_64 = arith.constant 0 : index
    %141 = vector.load %arg45[%c9, %c0_64] : memref<292x96xf32, #tpu.memory_space<vmem>>, vector<64x96xf32>
    tpu.vector_store %arg45[%c9, %c0_64], %140 {strides = array<i32>} : memref<292x96xf32, #tpu.memory_space<vmem>>, vector<64x96xf32>,
    %c73 = arith.constant 73 : index
    %c0_65 = arith.constant 0 : index
    %142 = vector.load %arg45[%c73, %c0_65] : memref<292x96xf32, #tpu.memory_space<vmem>>, vector<9x96xf32>
    tpu.vector_store %arg45[%c73, %c0_65], %138 {strides = array<i32>} : memref<292x96xf32, #tpu.memory_space<vmem>>, vector<9x96xf32>,
    %143 = vector.extract_strided_slice %134 {offsets = [64, 0], sizes = [64, 96], strides = [1, 1]} : vector<256x96xf32> to vector<64x96xf32>
    %c82 = arith.constant 82 : index
    %c0_66 = arith.constant 0 : index
    %144 = vector.load %arg45[%c82, %c0_66] : memref<292x96xf32, #tpu.memory_space<vmem>>, vector<64x96xf32>
    tpu.vector_store %arg45[%c82, %c0_66], %143 {strides = array<i32>} : memref<292x96xf32, #tpu.memory_space<vmem>>, vector<64x96xf32>,
    %c146 = arith.constant 146 : index
    %c0_67 = arith.constant 0 : index
    %145 = vector.load %arg45[%c146, %c0_67] : memref<292x96xf32, #tpu.memory_space<vmem>>, vector<9x96xf32>
    tpu.vector_store %arg45[%c146, %c0_67], %138 {strides = array<i32>} : memref<292x96xf32, #tpu.memory_space<vmem>>, vector<9x96xf32>,
    %146 = vector.extract_strided_slice %134 {offsets = [128, 0], sizes = [64, 96], strides = [1, 1]} : vector<256x96xf32> to vector<64x96xf32>
    %c155 = arith.constant 155 : index
    %c0_68 = arith.constant 0 : index
    %147 = vector.load %arg45[%c155, %c0_68] : memref<292x96xf32, #tpu.memory_space<vmem>>, vector<64x96xf32>
    tpu.vector_store %arg45[%c155, %c0_68], %146 {strides = array<i32>} : memref<292x96xf32, #tpu.memory_space<vmem>>, vector<64x96xf32>,
    %c219 = arith.constant 219 : index
    %c0_69 = arith.constant 0 : index
    %148 = vector.load %arg45[%c219, %c0_69] : memref<292x96xf32, #tpu.memory_space<vmem>>, vector<9x96xf32>
    tpu.vector_store %arg45[%c219, %c0_69], %138 {strides = array<i32>} : memref<292x96xf32, #tpu.memory_space<vmem>>, vector<9x96xf32>,
    %149 = vector.extract_strided_slice %134 {offsets = [192, 0], sizes = [64, 96], strides = [1, 1]} : vector<256x96xf32> to vector<64x96xf32>
    %c228 = arith.constant 228 : index
    %c0_70 = arith.constant 0 : index
    %150 = vector.load %arg45[%c228, %c0_70] : memref<292x96xf32, #tpu.memory_space<vmem>>, vector<64x96xf32>
    tpu.vector_store %arg45[%c228, %c0_70], %149 {strides = array<i32>} : memref<292x96xf32, #tpu.memory_space<vmem>>, vector<64x96xf32>,
    %151 = tpu.iota {dimensions = array<i32: 0>} : vector<64x96xi32>
    %c8_i32 = arith.constant 8 : i32
    %c0_i32_71 = arith.constant 0 : i32
    %152 = arith.cmpi eq, %c8_i32, %c0_i32_71 : i32
    %c1_i32_72 = arith.constant 1 : i32
    %153 = arith.select %152, %c1_i32_72, %c8_i32 : i32
    %154 = vector.broadcast %153 : i32 to vector<64x96xi32>
    %155 = arith.remsi %151, %154 : vector<64x96xi32>
    %c0_i32_73 = arith.constant 0 : i32
    %156 = vector.broadcast %c0_i32_73 : i32 to vector<64x96xi32>
    %157 = arith.cmpi ne, %155, %156 : vector<64x96xi32>
    %c0_i32_74 = arith.constant 0 : i32
    %158 = vector.broadcast %c0_i32_74 : i32 to vector<64x96xi32>
    %159 = arith.cmpi slt, %155, %158 : vector<64x96xi32>
    %c0_i32_75 = arith.constant 0 : i32
    %160 = arith.cmpi slt, %153, %c0_i32_75 : i32
    %161 = vector.broadcast %160 : i1 to vector<64x96xi1>
    %162 = vector.broadcast %161 : vector<64x96xi1> to vector<64x96xi1>
    %163 = arith.xori %159, %162 : vector<64x96xi1>
    %164 = arith.andi %163, %157 : vector<64x96xi1>
    %165 = vector.broadcast %153 : i32 to vector<64x96xi32>
    %166 = arith.addi %155, %165 : vector<64x96xi32>
    %167 = arith.select %164, %166, %155 : vector<64x96xi1>, vector<64x96xi32>
    %c0_i32_76 = arith.constant 0 : i32
    %168 = vector.broadcast %c0_i32_76 : i32 to vector<64x96xi32>
    %169 = arith.cmpi eq, %167, %168 : vector<64x96xi32>
    %cst_77 = arith.constant 0.000000e+00 : f32
    %170 = vector.broadcast %cst_77 : f32 to vector<64x96xf32>
    %cst_78 = arith.constant 0.000000e+00 : f32
    %171 = vector.broadcast %cst_78 : f32 to vector<64x96xf32>
    %c219_79 = arith.constant 219 : index
    %c0_80 = arith.constant 0 : index
    %172 = vector.load %arg45[%c219_79, %c0_80] : memref<292x96xf32, #tpu.memory_space<vmem>>, vector<64x96xf32>
    %173 = vector.extract_strided_slice %135 {offsets = [0, 0], sizes = [1, 96], strides = [1, 1]} : vector<9x96xf32> to vector<1x96xf32>
    %174 = vector.broadcast %173 : vector<1x96xf32> to vector<64x96xf32>
    %175 = arith.mulf %172, %174 : vector<64x96xf32>
    %176 = arith.addf %171, %175 : vector<64x96xf32>
    %c81 = arith.constant 81 : index
    %c0_81 = arith.constant 0 : index
    %177 = vector.load %arg45[%c81, %c0_81] : memref<292x96xf32, #tpu.memory_space<vmem>>, vector<64x96xf32>
    %178 = vector.extract_strided_slice %135 {offsets = [3, 0], sizes = [1, 96], strides = [1, 1]} : vector<9x96xf32> to vector<1x96xf32>
    %179 = vector.broadcast %178 : vector<1x96xf32> to vector<64x96xf32>
    %180 = arith.mulf %177, %179 : vector<64x96xf32>
    %181 = arith.addf %176, %180 : vector<64x96xf32>
    %c227 = arith.constant 227 : index
    %c0_82 = arith.constant 0 : index
    %182 = vector.load %arg45[%c227, %c0_82] : memref<292x96xf32, #tpu.memory_space<vmem>>, vector<64x96xf32>
    %183 = vector.extract_strided_slice %135 {offsets = [6, 0], sizes = [1, 96], strides = [1, 1]} : vector<9x96xf32> to vector<1x96xf32>
    %184 = vector.broadcast %183 : vector<1x96xf32> to vector<64x96xf32>
    %185 = arith.mulf %182, %184 : vector<64x96xf32>
    %186 = arith.addf %181, %185 : vector<64x96xf32>
    %cst_83 = arith.constant 0.000000e+00 : f32
    %187 = vector.broadcast %cst_83 : f32 to vector<64x96xf32>
    %188 = arith.select %169, %187, %186 : vector<64x96xi1>, vector<64x96xf32>
    %189 = arith.addf %170, %188 : vector<64x96xf32>
    %cst_84 = arith.constant 0.000000e+00 : f32
    %190 = vector.broadcast %cst_84 : f32 to vector<64x96xf32>
    %c147 = arith.constant 147 : index
    %c0_85 = arith.constant 0 : index
    %191 = vector.load %arg45[%c147, %c0_85] : memref<292x96xf32, #tpu.memory_space<vmem>>, vector<64x96xf32>
    %192 = vector.extract_strided_slice %135 {offsets = [1, 0], sizes = [1, 96], strides = [1, 1]} : vector<9x96xf32> to vector<1x96xf32>
    %193 = vector.broadcast %192 : vector<1x96xf32> to vector<64x96xf32>
    %194 = arith.mulf %191, %193 : vector<64x96xf32>
    %195 = arith.addf %190, %194 : vector<64x96xf32>
    %c9_86 = arith.constant 9 : index
    %c0_87 = arith.constant 0 : index
    %196 = vector.load %arg45[%c9_86, %c0_87] : memref<292x96xf32, #tpu.memory_space<vmem>>, vector<64x96xf32>
    %197 = vector.extract_strided_slice %135 {offsets = [4, 0], sizes = [1, 96], strides = [1, 1]} : vector<9x96xf32> to vector<1x96xf32>
    %198 = vector.broadcast %197 : vector<1x96xf32> to vector<64x96xf32>
    %199 = arith.mulf %196, %198 : vector<64x96xf32>
    %200 = arith.addf %195, %199 : vector<64x96xf32>
    %c155_88 = arith.constant 155 : index
    %c0_89 = arith.constant 0 : index
    %201 = vector.load %arg45[%c155_88, %c0_89] : memref<292x96xf32, #tpu.memory_space<vmem>>, vector<64x96xf32>
    %202 = vector.extract_strided_slice %135 {offsets = [7, 0], sizes = [1, 96], strides = [1, 1]} : vector<9x96xf32> to vector<1x96xf32>
    %203 = vector.broadcast %202 : vector<1x96xf32> to vector<64x96xf32>
    %204 = arith.mulf %201, %203 : vector<64x96xf32>
    %205 = arith.addf %200, %204 : vector<64x96xf32>
    %206 = arith.addf %189, %205 : vector<64x96xf32>
    %cst_90 = arith.constant 0.000000e+00 : f32
    %207 = vector.broadcast %cst_90 : f32 to vector<64x96xf32>
    %c220 = arith.constant 220 : index
    %c0_91 = arith.constant 0 : index
    %208 = vector.load %arg45[%c220, %c0_91] : memref<292x96xf32, #tpu.memory_space<vmem>>, vector<64x96xf32>
    %209 = vector.extract_strided_slice %135 {offsets = [2, 0], sizes = [1, 96], strides = [1, 1]} : vector<9x96xf32> to vector<1x96xf32>
    %210 = vector.broadcast %209 : vector<1x96xf32> to vector<64x96xf32>
    %211 = arith.mulf %208, %210 : vector<64x96xf32>
    %212 = arith.addf %207, %211 : vector<64x96xf32>
    %c82_92 = arith.constant 82 : index
    %c0_93 = arith.constant 0 : index
    %213 = vector.load %arg45[%c82_92, %c0_93] : memref<292x96xf32, #tpu.memory_space<vmem>>, vector<64x96xf32>
    %214 = vector.extract_strided_slice %135 {offsets = [5, 0], sizes = [1, 96], strides = [1, 1]} : vector<9x96xf32> to vector<1x96xf32>
    %215 = vector.broadcast %214 : vector<1x96xf32> to vector<64x96xf32>
    %216 = arith.mulf %213, %215 : vector<64x96xf32>
    %217 = arith.addf %212, %216 : vector<64x96xf32>
    %c228_94 = arith.constant 228 : index
    %c0_95 = arith.constant 0 : index
    %218 = vector.load %arg45[%c228_94, %c0_95] : memref<292x96xf32, #tpu.memory_space<vmem>>, vector<64x96xf32>
    %219 = vector.extract_strided_slice %135 {offsets = [8, 0], sizes = [1, 96], strides = [1, 1]} : vector<9x96xf32> to vector<1x96xf32>
    %220 = vector.broadcast %219 : vector<1x96xf32> to vector<64x96xf32>
    %221 = arith.mulf %218, %220 : vector<64x96xf32>
    %222 = arith.addf %217, %221 : vector<64x96xf32>
    %223 = arith.addf %206, %222 : vector<64x96xf32>
    %224 = vector.extract_strided_slice %136 {offsets = [0, 0], sizes = [1, 96], strides = [1, 1]} : vector<2x96xf32> to vector<1x96xf32>
    %225 = vector.broadcast %224 : vector<1x96xf32> to vector<64x96xf32>
    %226 = arith.mulf %223, %225 : vector<64x96xf32>
    %227 = vector.extract_strided_slice %136 {offsets = [1, 0], sizes = [1, 96], strides = [1, 1]} : vector<2x96xf32> to vector<1x96xf32>
    %228 = vector.broadcast %227 : vector<1x96xf32> to vector<64x96xf32>
    %229 = arith.addf %226, %228 : vector<64x96xf32>
    %cst_96 = arith.constant 0.000000e+00 : f32
    %cst_97 = arith.constant 6.000000e+00 : f32
    %230 = vector.broadcast %cst_96 : f32 to vector<64x96xf32>
    %231 = arith.maximumf %230, %229 : vector<64x96xf32>
    %232 = vector.broadcast %cst_97 : f32 to vector<64x96xf32>
    %233 = arith.minimumf %232, %231 : vector<64x96xf32>
    %234 = arith.truncf %233 : vector<64x96xf32> to vector<64x96xbf16>
    %c0_98 = arith.constant 0 : index
    %c0_99 = arith.constant 0 : index
    %235 = vector.load %arg13[%c0_98, %c0_99] : memref<96x24xbf16, #tpu.memory_space<vmem>>, vector<96x24xbf16>
    %cst_100 = arith.constant dense<0.000000e+00> : vector<64x24xf32>
    %236 = tpu.matmul %234, %235, %cst_100 {dimension_numbers = #tpu.dot_dimension_numbers<[1], [0], [0], [1], [0, 0, 1, 1], [], []>} : vector<64x96xbf16>, vector<96x24xbf16>, vector<64x24xf32> -> vector<64x24xf32>
    %237 = vector.extract_strided_slice %137 {offsets = [0, 0], sizes = [1, 24], strides = [1, 1]} : vector<2x24xf32> to vector<1x24xf32>
    %238 = vector.broadcast %237 : vector<1x24xf32> to vector<64x24xf32>
    %239 = arith.mulf %236, %238 : vector<64x24xf32>
    %240 = vector.extract_strided_slice %137 {offsets = [1, 0], sizes = [1, 24], strides = [1, 1]} : vector<2x24xf32> to vector<1x24xf32>
    %241 = vector.broadcast %240 : vector<1x24xf32> to vector<64x24xf32>
    %242 = arith.addf %239, %241 : vector<64x24xf32>
    %243 = arith.truncf %242 : vector<64x24xf32> to vector<64x24xbf16>
    %c0_101 = arith.constant 0 : index
    %c0_102 = arith.constant 0 : index
    %244 = vector.load %arg15[%c0_101, %c0_102] : memref<24x144xbf16, #tpu.memory_space<vmem>>, vector<24x144xbf16>
    %cst_103 = arith.constant dense<0.000000e+00> : vector<64x144xf32>
    %245 = tpu.matmul %243, %244, %cst_103 {dimension_numbers = #tpu.dot_dimension_numbers<[1], [0], [0], [1], [0, 0, 1, 1], [], []>} : vector<64x24xbf16>, vector<24x144xbf16>, vector<64x144xf32> -> vector<64x144xf32>
    %c0_104 = arith.constant 0 : index
    %c0_105 = arith.constant 0 : index
    %246 = vector.load %arg16[%c0_104, %c0_105] : memref<2x144xf32, #tpu.memory_space<vmem>>, vector<2x144xf32>
    %247 = vector.extract_strided_slice %246 {offsets = [0, 0], sizes = [1, 144], strides = [1, 1]} : vector<2x144xf32> to vector<1x144xf32>
    %248 = vector.broadcast %247 : vector<1x144xf32> to vector<64x144xf32>
    %249 = arith.mulf %245, %248 : vector<64x144xf32>
    %250 = vector.extract_strided_slice %246 {offsets = [1, 0], sizes = [1, 144], strides = [1, 1]} : vector<2x144xf32> to vector<1x144xf32>
    %251 = vector.broadcast %250 : vector<1x144xf32> to vector<64x144xf32>
    %252 = arith.addf %249, %251 : vector<64x144xf32>
    %cst_106 = arith.constant 0.000000e+00 : f32
    %cst_107 = arith.constant 6.000000e+00 : f32
    %253 = vector.broadcast %cst_106 : f32 to vector<64x144xf32>
    %254 = arith.maximumf %253, %252 : vector<64x144xf32>
    %255 = vector.broadcast %cst_107 : f32 to vector<64x144xf32>
    %256 = arith.minimumf %255, %254 : vector<64x144xf32>
    %c0_108 = arith.constant 0 : index
    %c0_109 = arith.constant 0 : index
    %257 = vector.load %arg17[%c0_108, %c0_109] : memref<9x144xf32, #tpu.memory_space<vmem>>, vector<9x144xf32>
    %c0_110 = arith.constant 0 : index
    %c0_111 = arith.constant 0 : index
    %258 = vector.load %arg18[%c0_110, %c0_111] : memref<2x144xf32, #tpu.memory_space<vmem>>, vector<2x144xf32>
    %c0_112 = arith.constant 0 : index
    %c0_113 = arith.constant 0 : index
    %259 = vector.load %arg20[%c0_112, %c0_113] : memref<2x24xf32, #tpu.memory_space<vmem>>, vector<2x24xf32>
    %cst_114 = arith.constant 0.000000e+00 : f32
    %260 = vector.broadcast %cst_114 : f32 to vector<9x144xf32>
    %c0_115 = arith.constant 0 : index
    %c0_116 = arith.constant 0 : index
    %261 = vector.load %arg46[%c0_115, %c0_116] : memref<82x144xf32, #tpu.memory_space<vmem>>, vector<9x144xf32>
    tpu.vector_store %arg46[%c0_115, %c0_116], %260 {strides = array<i32>} : memref<82x144xf32, #tpu.memory_space<vmem>>, vector<9x144xf32>,
    %c9_117 = arith.constant 9 : index
    %c0_118 = arith.constant 0 : index
    %262 = vector.load %arg46[%c9_117, %c0_118] : memref<82x144xf32, #tpu.memory_space<vmem>>, vector<64x144xf32>
    tpu.vector_store %arg46[%c9_117, %c0_118], %256 {strides = array<i32>} : memref<82x144xf32, #tpu.memory_space<vmem>>, vector<64x144xf32>,
    %c73_119 = arith.constant 73 : index
    %c0_120 = arith.constant 0 : index
    %263 = vector.load %arg46[%c73_119, %c0_120] : memref<82x144xf32, #tpu.memory_space<vmem>>, vector<9x144xf32>
    tpu.vector_store %arg46[%c73_119, %c0_120], %260 {strides = array<i32>} : memref<82x144xf32, #tpu.memory_space<vmem>>, vector<9x144xf32>,
    %264 = tpu.iota {dimensions = array<i32: 0>} : vector<64x144xi32>
    %c8_i32_121 = arith.constant 8 : i32
    %c0_i32_122 = arith.constant 0 : i32
    %265 = arith.cmpi eq, %c8_i32_121, %c0_i32_122 : i32
    %c1_i32_123 = arith.constant 1 : i32
    %266 = arith.select %265, %c1_i32_123, %c8_i32_121 : i32
    %267 = vector.broadcast %266 : i32 to vector<64x144xi32>
    %268 = arith.remsi %264, %267 : vector<64x144xi32>
    %c0_i32_124 = arith.constant 0 : i32
    %269 = vector.broadcast %c0_i32_124 : i32 to vector<64x144xi32>
    %270 = arith.cmpi ne, %268, %269 : vector<64x144xi32>
    %c0_i32_125 = arith.constant 0 : i32
    %271 = vector.broadcast %c0_i32_125 : i32 to vector<64x144xi32>
    %272 = arith.cmpi slt, %268, %271 : vector<64x144xi32>
    %c0_i32_126 = arith.constant 0 : i32
    %273 = arith.cmpi slt, %266, %c0_i32_126 : i32
    %274 = vector.broadcast %273 : i1 to vector<64x144xi1>
    %275 = vector.broadcast %274 : vector<64x144xi1> to vector<64x144xi1>
    %276 = arith.xori %272, %275 : vector<64x144xi1>
    %277 = arith.andi %276, %270 : vector<64x144xi1>
    %278 = vector.broadcast %266 : i32 to vector<64x144xi32>
    %279 = arith.addi %268, %278 : vector<64x144xi32>
    %280 = arith.select %277, %279, %268 : vector<64x144xi1>, vector<64x144xi32>
    %c0_i32_127 = arith.constant 0 : i32
    %281 = vector.broadcast %c0_i32_127 : i32 to vector<64x144xi32>
    %282 = arith.cmpi eq, %280, %281 : vector<64x144xi32>
    %c7_i32 = arith.constant 7 : i32
    %283 = vector.broadcast %c7_i32 : i32 to vector<64x144xi32>
    %284 = arith.cmpi eq, %280, %283 : vector<64x144xi32>
    %cst_128 = arith.constant 0.000000e+00 : f32
    %285 = vector.broadcast %cst_128 : f32 to vector<64x144xf32>
    %cst_129 = arith.constant 0.000000e+00 : f32
    %286 = vector.broadcast %cst_129 : f32 to vector<64x144xf32>
    %c0_130 = arith.constant 0 : index
    %c0_131 = arith.constant 0 : index
    %287 = vector.load %arg46[%c0_130, %c0_131] : memref<82x144xf32, #tpu.memory_space<vmem>>, vector<64x144xf32>
    %288 = vector.extract_strided_slice %257 {offsets = [0, 0], sizes = [1, 144], strides = [1, 1]} : vector<9x144xf32> to vector<1x144xf32>
    %289 = vector.broadcast %288 : vector<1x144xf32> to vector<64x144xf32>
    %290 = arith.mulf %287, %289 : vector<64x144xf32>
    %291 = arith.addf %286, %290 : vector<64x144xf32>
    %c8 = arith.constant 8 : index
    %c0_132 = arith.constant 0 : index
    %292 = vector.load %arg46[%c8, %c0_132] : memref<82x144xf32, #tpu.memory_space<vmem>>, vector<64x144xf32>
    %293 = vector.extract_strided_slice %257 {offsets = [3, 0], sizes = [1, 144], strides = [1, 1]} : vector<9x144xf32> to vector<1x144xf32>
    %294 = vector.broadcast %293 : vector<1x144xf32> to vector<64x144xf32>
    %295 = arith.mulf %292, %294 : vector<64x144xf32>
    %296 = arith.addf %291, %295 : vector<64x144xf32>
    %c16_133 = arith.constant 16 : index
    %c0_134 = arith.constant 0 : index
    %297 = vector.load %arg46[%c16_133, %c0_134] : memref<82x144xf32, #tpu.memory_space<vmem>>, vector<64x144xf32>
    %298 = vector.extract_strided_slice %257 {offsets = [6, 0], sizes = [1, 144], strides = [1, 1]} : vector<9x144xf32> to vector<1x144xf32>
    %299 = vector.broadcast %298 : vector<1x144xf32> to vector<64x144xf32>
    %300 = arith.mulf %297, %299 : vector<64x144xf32>
    %301 = arith.addf %296, %300 : vector<64x144xf32>
    %cst_135 = arith.constant 0.000000e+00 : f32
    %302 = vector.broadcast %cst_135 : f32 to vector<64x144xf32>
    %303 = arith.select %282, %302, %301 : vector<64x144xi1>, vector<64x144xf32>
    %304 = arith.addf %285, %303 : vector<64x144xf32>
    %cst_136 = arith.constant 0.000000e+00 : f32
    %305 = vector.broadcast %cst_136 : f32 to vector<64x144xf32>
    %c1_137 = arith.constant 1 : index
    %c0_138 = arith.constant 0 : index
    %306 = vector.load %arg46[%c1_137, %c0_138] : memref<82x144xf32, #tpu.memory_space<vmem>>, vector<64x144xf32>
    %307 = vector.extract_strided_slice %257 {offsets = [1, 0], sizes = [1, 144], strides = [1, 1]} : vector<9x144xf32> to vector<1x144xf32>
    %308 = vector.broadcast %307 : vector<1x144xf32> to vector<64x144xf32>
    %309 = arith.mulf %306, %308 : vector<64x144xf32>
    %310 = arith.addf %305, %309 : vector<64x144xf32>
    %c9_139 = arith.constant 9 : index
    %c0_140 = arith.constant 0 : index
    %311 = vector.load %arg46[%c9_139, %c0_140] : memref<82x144xf32, #tpu.memory_space<vmem>>, vector<64x144xf32>
    %312 = vector.extract_strided_slice %257 {offsets = [4, 0], sizes = [1, 144], strides = [1, 1]} : vector<9x144xf32> to vector<1x144xf32>
    %313 = vector.broadcast %312 : vector<1x144xf32> to vector<64x144xf32>
    %314 = arith.mulf %311, %313 : vector<64x144xf32>
    %315 = arith.addf %310, %314 : vector<64x144xf32>
    %c17_141 = arith.constant 17 : index
    %c0_142 = arith.constant 0 : index
    %316 = vector.load %arg46[%c17_141, %c0_142] : memref<82x144xf32, #tpu.memory_space<vmem>>, vector<64x144xf32>
    %317 = vector.extract_strided_slice %257 {offsets = [7, 0], sizes = [1, 144], strides = [1, 1]} : vector<9x144xf32> to vector<1x144xf32>
    %318 = vector.broadcast %317 : vector<1x144xf32> to vector<64x144xf32>
    %319 = arith.mulf %316, %318 : vector<64x144xf32>
    %320 = arith.addf %315, %319 : vector<64x144xf32>
    %321 = arith.addf %304, %320 : vector<64x144xf32>
    %cst_143 = arith.constant 0.000000e+00 : f32
    %322 = vector.broadcast %cst_143 : f32 to vector<64x144xf32>
    %c2_144 = arith.constant 2 : index
    %c0_145 = arith.constant 0 : index
    %323 = vector.load %arg46[%c2_144, %c0_145] : memref<82x144xf32, #tpu.memory_space<vmem>>, vector<64x144xf32>
    %324 = vector.extract_strided_slice %257 {offsets = [2, 0], sizes = [1, 144], strides = [1, 1]} : vector<9x144xf32> to vector<1x144xf32>
    %325 = vector.broadcast %324 : vector<1x144xf32> to vector<64x144xf32>
    %326 = arith.mulf %323, %325 : vector<64x144xf32>
    %327 = arith.addf %322, %326 : vector<64x144xf32>
    %c10 = arith.constant 10 : index
    %c0_146 = arith.constant 0 : index
    %328 = vector.load %arg46[%c10, %c0_146] : memref<82x144xf32, #tpu.memory_space<vmem>>, vector<64x144xf32>
    %329 = vector.extract_strided_slice %257 {offsets = [5, 0], sizes = [1, 144], strides = [1, 1]} : vector<9x144xf32> to vector<1x144xf32>
    %330 = vector.broadcast %329 : vector<1x144xf32> to vector<64x144xf32>
    %331 = arith.mulf %328, %330 : vector<64x144xf32>
    %332 = arith.addf %327, %331 : vector<64x144xf32>
    %c18_147 = arith.constant 18 : index
    %c0_148 = arith.constant 0 : index
    %333 = vector.load %arg46[%c18_147, %c0_148] : memref<82x144xf32, #tpu.memory_space<vmem>>, vector<64x144xf32>
    %334 = vector.extract_strided_slice %257 {offsets = [8, 0], sizes = [1, 144], strides = [1, 1]} : vector<9x144xf32> to vector<1x144xf32>
    %335 = vector.broadcast %334 : vector<1x144xf32> to vector<64x144xf32>
    %336 = arith.mulf %333, %335 : vector<64x144xf32>
    %337 = arith.addf %332, %336 : vector<64x144xf32>
    %cst_149 = arith.constant 0.000000e+00 : f32
    %338 = vector.broadcast %cst_149 : f32 to vector<64x144xf32>
    %339 = arith.select %284, %338, %337 : vector<64x144xi1>, vector<64x144xf32>
    %340 = arith.addf %321, %339 : vector<64x144xf32>
    %341 = vector.extract_strided_slice %258 {offsets = [0, 0], sizes = [1, 144], strides = [1, 1]} : vector<2x144xf32> to vector<1x144xf32>
    %342 = vector.broadcast %341 : vector<1x144xf32> to vector<64x144xf32>
    %343 = arith.mulf %340, %342 : vector<64x144xf32>
    %344 = vector.extract_strided_slice %258 {offsets = [1, 0], sizes = [1, 144], strides = [1, 1]} : vector<2x144xf32> to vector<1x144xf32>
    %345 = vector.broadcast %344 : vector<1x144xf32> to vector<64x144xf32>
    %346 = arith.addf %343, %345 : vector<64x144xf32>
    %cst_150 = arith.constant 0.000000e+00 : f32
    %cst_151 = arith.constant 6.000000e+00 : f32
    %347 = vector.broadcast %cst_150 : f32 to vector<64x144xf32>
    %348 = arith.maximumf %347, %346 : vector<64x144xf32>
    %349 = vector.broadcast %cst_151 : f32 to vector<64x144xf32>
    %350 = arith.minimumf %349, %348 : vector<64x144xf32>
    %351 = arith.truncf %350 : vector<64x144xf32> to vector<64x144xbf16>
    %c0_152 = arith.constant 0 : index
    %c0_153 = arith.constant 0 : index
    %352 = vector.load %arg19[%c0_152, %c0_153] : memref<144x24xbf16, #tpu.memory_space<vmem>>, vector<144x24xbf16>
    %cst_154 = arith.constant dense<0.000000e+00> : vector<64x24xf32>
    %353 = tpu.matmul %351, %352, %cst_154 {dimension_numbers = #tpu.dot_dimension_numbers<[1], [0], [0], [1], [0, 0, 1, 1], [], []>} : vector<64x144xbf16>, vector<144x24xbf16>, vector<64x24xf32> -> vector<64x24xf32>
    %354 = vector.extract_strided_slice %259 {offsets = [0, 0], sizes = [1, 24], strides = [1, 1]} : vector<2x24xf32> to vector<1x24xf32>
    %355 = vector.broadcast %354 : vector<1x24xf32> to vector<64x24xf32>
    %356 = arith.mulf %353, %355 : vector<64x24xf32>
    %357 = vector.extract_strided_slice %259 {offsets = [1, 0], sizes = [1, 24], strides = [1, 1]} : vector<2x24xf32> to vector<1x24xf32>
    %358 = vector.broadcast %357 : vector<1x24xf32> to vector<64x24xf32>
    %359 = arith.addf %356, %358 : vector<64x24xf32>
    %360 = arith.addf %359, %242 : vector<64x24xf32>
    %c0_155 = arith.constant 0 : index
    %c0_156 = arith.constant 0 : index
    %361 = vector.load %arg21[%c0_155, %c0_156] : memref<64x64xbf16, #tpu.memory_space<vmem>>, vector<64x64xbf16>
    %362 = arith.truncf %360 : vector<64x24xf32> to vector<64x24xbf16>
    %cst_157 = arith.constant dense<0.000000e+00> : vector<64x24xf32>
    %363 = tpu.matmul %361, %362, %cst_157 {dimension_numbers = #tpu.dot_dimension_numbers<[1], [0], [0], [1], [0, 0, 1, 1], [], []>} : vector<64x64xbf16>, vector<64x24xbf16>, vector<64x24xf32> -> vector<64x24xf32>
    %364 = arith.truncf %363 : vector<64x24xf32> to vector<64x24xbf16>
    %c0_158 = arith.constant 0 : index
    %c0_159 = arith.constant 0 : index
    %365 = vector.load %arg22[%c0_158, %c0_159] : memref<24x144xbf16, #tpu.memory_space<vmem>>, vector<24x144xbf16>
    %cst_160 = arith.constant dense<0.000000e+00> : vector<64x144xf32>
    %366 = tpu.matmul %364, %365, %cst_160 {dimension_numbers = #tpu.dot_dimension_numbers<[1], [0], [0], [1], [0, 0, 1, 1], [], []>} : vector<64x24xbf16>, vector<24x144xbf16>, vector<64x144xf32> -> vector<64x144xf32>
    %c0_161 = arith.constant 0 : index
    %c0_162 = arith.constant 0 : index
    %367 = vector.load %arg23[%c0_161, %c0_162] : memref<2x144xf32, #tpu.memory_space<vmem>>, vector<2x144xf32>
    %368 = vector.extract_strided_slice %367 {offsets = [0, 0], sizes = [1, 144], strides = [1, 1]} : vector<2x144xf32> to vector<1x144xf32>
    %369 = vector.broadcast %368 : vector<1x144xf32> to vector<64x144xf32>
    %370 = arith.mulf %366, %369 : vector<64x144xf32>
    %371 = vector.extract_strided_slice %367 {offsets = [1, 0], sizes = [1, 144], strides = [1, 1]} : vector<2x144xf32> to vector<1x144xf32>
    %372 = vector.broadcast %371 : vector<1x144xf32> to vector<64x144xf32>
    %373 = arith.addf %370, %372 : vector<64x144xf32>
    %cst_163 = arith.constant 0.000000e+00 : f32
    %cst_164 = arith.constant 6.000000e+00 : f32
    %374 = vector.broadcast %cst_163 : f32 to vector<64x144xf32>
    %375 = arith.maximumf %374, %373 : vector<64x144xf32>
    %376 = vector.broadcast %cst_164 : f32 to vector<64x144xf32>
    %377 = arith.minimumf %376, %375 : vector<64x144xf32>
    %c0_165 = arith.constant 0 : index
    %c0_166 = arith.constant 0 : index
    %378 = vector.load %arg24[%c0_165, %c0_166] : memref<9x144xf32, #tpu.memory_space<vmem>>, vector<9x144xf32>
    %c0_167 = arith.constant 0 : index
    %c0_168 = arith.constant 0 : index
    %379 = vector.load %arg25[%c0_167, %c0_168] : memref<2x144xf32, #tpu.memory_space<vmem>>, vector<2x144xf32>
    %c0_169 = arith.constant 0 : index
    %c0_170 = arith.constant 0 : index
    %380 = vector.load %arg27[%c0_169, %c0_170] : memref<2x32xf32, #tpu.memory_space<vmem>>, vector<2x32xf32>
    %cst_171 = arith.constant 0.000000e+00 : f32
    %381 = vector.broadcast %cst_171 : f32 to vector<5x144xf32>
    %c0_172 = arith.constant 0 : index
    %c0_173 = arith.constant 0 : index
    %382 = vector.load %arg47[%c0_172, %c0_173] : memref<84x144xf32, #tpu.memory_space<vmem>>, vector<5x144xf32>
    tpu.vector_store %arg47[%c0_172, %c0_173], %381 {strides = array<i32>} : memref<84x144xf32, #tpu.memory_space<vmem>>, vector<5x144xf32>,
    %383 = vector.extract_strided_slice %377 {offsets = [0, 0], sizes = [16, 144], strides = [1, 1]} : vector<64x144xf32> to vector<16x144xf32>
    %c5 = arith.constant 5 : index
    %c0_174 = arith.constant 0 : index
    %384 = vector.load %arg47[%c5, %c0_174] : memref<84x144xf32, #tpu.memory_space<vmem>>, vector<16x144xf32>
    tpu.vector_store %arg47[%c5, %c0_174], %383 {strides = array<i32>} : memref<84x144xf32, #tpu.memory_space<vmem>>, vector<16x144xf32>,
    %c21 = arith.constant 21 : index
    %c0_175 = arith.constant 0 : index
    %385 = vector.load %arg47[%c21, %c0_175] : memref<84x144xf32, #tpu.memory_space<vmem>>, vector<5x144xf32>
    tpu.vector_store %arg47[%c21, %c0_175], %381 {strides = array<i32>} : memref<84x144xf32, #tpu.memory_space<vmem>>, vector<5x144xf32>,
    %386 = vector.extract_strided_slice %377 {offsets = [16, 0], sizes = [16, 144], strides = [1, 1]} : vector<64x144xf32> to vector<16x144xf32>
    %c26 = arith.constant 26 : index
    %c0_176 = arith.constant 0 : index
    %387 = vector.load %arg47[%c26, %c0_176] : memref<84x144xf32, #tpu.memory_space<vmem>>, vector<16x144xf32>
    tpu.vector_store %arg47[%c26, %c0_176], %386 {strides = array<i32>} : memref<84x144xf32, #tpu.memory_space<vmem>>, vector<16x144xf32>,
    %c42 = arith.constant 42 : index
    %c0_177 = arith.constant 0 : index
    %388 = vector.load %arg47[%c42, %c0_177] : memref<84x144xf32, #tpu.memory_space<vmem>>, vector<5x144xf32>
    tpu.vector_store %arg47[%c42, %c0_177], %381 {strides = array<i32>} : memref<84x144xf32, #tpu.memory_space<vmem>>, vector<5x144xf32>,
    %389 = vector.extract_strided_slice %377 {offsets = [32, 0], sizes = [16, 144], strides = [1, 1]} : vector<64x144xf32> to vector<16x144xf32>
    %c47 = arith.constant 47 : index
    %c0_178 = arith.constant 0 : index
    %390 = vector.load %arg47[%c47, %c0_178] : memref<84x144xf32, #tpu.memory_space<vmem>>, vector<16x144xf32>
    tpu.vector_store %arg47[%c47, %c0_178], %389 {strides = array<i32>} : memref<84x144xf32, #tpu.memory_space<vmem>>, vector<16x144xf32>,
    %c63 = arith.constant 63 : index
    %c0_179 = arith.constant 0 : index
    %391 = vector.load %arg47[%c63, %c0_179] : memref<84x144xf32, #tpu.memory_space<vmem>>, vector<5x144xf32>
    tpu.vector_store %arg47[%c63, %c0_179], %381 {strides = array<i32>} : memref<84x144xf32, #tpu.memory_space<vmem>>, vector<5x144xf32>,
    %392 = vector.extract_strided_slice %377 {offsets = [48, 0], sizes = [16, 144], strides = [1, 1]} : vector<64x144xf32> to vector<16x144xf32>
    %c68 = arith.constant 68 : index
    %c0_180 = arith.constant 0 : index
    %393 = vector.load %arg47[%c68, %c0_180] : memref<84x144xf32, #tpu.memory_space<vmem>>, vector<16x144xf32>
    tpu.vector_store %arg47[%c68, %c0_180], %392 {strides = array<i32>} : memref<84x144xf32, #tpu.memory_space<vmem>>, vector<16x144xf32>,
    %394 = tpu.iota {dimensions = array<i32: 0>} : vector<16x144xi32>
    %c4_i32 = arith.constant 4 : i32
    %c0_i32_181 = arith.constant 0 : i32
    %395 = arith.cmpi eq, %c4_i32, %c0_i32_181 : i32
    %c1_i32_182 = arith.constant 1 : i32
    %396 = arith.select %395, %c1_i32_182, %c4_i32 : i32
    %397 = vector.broadcast %396 : i32 to vector<16x144xi32>
    %398 = arith.remsi %394, %397 : vector<16x144xi32>
    %c0_i32_183 = arith.constant 0 : i32
    %399 = vector.broadcast %c0_i32_183 : i32 to vector<16x144xi32>
    %400 = arith.cmpi ne, %398, %399 : vector<16x144xi32>
    %c0_i32_184 = arith.constant 0 : i32
    %401 = vector.broadcast %c0_i32_184 : i32 to vector<16x144xi32>
    %402 = arith.cmpi slt, %398, %401 : vector<16x144xi32>
    %c0_i32_185 = arith.constant 0 : i32
    %403 = arith.cmpi slt, %396, %c0_i32_185 : i32
    %404 = vector.broadcast %403 : i1 to vector<16x144xi1>
    %405 = vector.broadcast %404 : vector<16x144xi1> to vector<16x144xi1>
    %406 = arith.xori %402, %405 : vector<16x144xi1>
    %407 = arith.andi %406, %400 : vector<16x144xi1>
    %408 = vector.broadcast %396 : i32 to vector<16x144xi32>
    %409 = arith.addi %398, %408 : vector<16x144xi32>
    %410 = arith.select %407, %409, %398 : vector<16x144xi1>, vector<16x144xi32>
    %c0_i32_186 = arith.constant 0 : i32
    %411 = vector.broadcast %c0_i32_186 : i32 to vector<16x144xi32>
    %412 = arith.cmpi eq, %410, %411 : vector<16x144xi32>
    %cst_187 = arith.constant 0.000000e+00 : f32
    %413 = vector.broadcast %cst_187 : f32 to vector<16x144xf32>
    %cst_188 = arith.constant 0.000000e+00 : f32
    %414 = vector.broadcast %cst_188 : f32 to vector<16x144xf32>
    %c63_189 = arith.constant 63 : index
    %c0_190 = arith.constant 0 : index
    %415 = vector.load %arg47[%c63_189, %c0_190] : memref<84x144xf32, #tpu.memory_space<vmem>>, vector<16x144xf32>
    %416 = vector.extract_strided_slice %378 {offsets = [0, 0], sizes = [1, 144], strides = [1, 1]} : vector<9x144xf32> to vector<1x144xf32>
    %417 = vector.broadcast %416 : vector<1x144xf32> to vector<16x144xf32>
    %418 = arith.mulf %415, %417 : vector<16x144xf32>
    %419 = arith.addf %414, %418 : vector<16x144xf32>
    %c25 = arith.constant 25 : index
    %c0_191 = arith.constant 0 : index
    %420 = vector.load %arg47[%c25, %c0_191] : memref<84x144xf32, #tpu.memory_space<vmem>>, vector<16x144xf32>
    %421 = vector.extract_strided_slice %378 {offsets = [3, 0], sizes = [1, 144], strides = [1, 1]} : vector<9x144xf32> to vector<1x144xf32>
    %422 = vector.broadcast %421 : vector<1x144xf32> to vector<16x144xf32>
    %423 = arith.mulf %420, %422 : vector<16x144xf32>
    %424 = arith.addf %419, %423 : vector<16x144xf32>
    %c67 = arith.constant 67 : index
    %c0_192 = arith.constant 0 : index
    %425 = vector.load %arg47[%c67, %c0_192] : memref<84x144xf32, #tpu.memory_space<vmem>>, vector<16x144xf32>
    %426 = vector.extract_strided_slice %378 {offsets = [6, 0], sizes = [1, 144], strides = [1, 1]} : vector<9x144xf32> to vector<1x144xf32>
    %427 = vector.broadcast %426 : vector<1x144xf32> to vector<16x144xf32>
    %428 = arith.mulf %425, %427 : vector<16x144xf32>
    %429 = arith.addf %424, %428 : vector<16x144xf32>
    %cst_193 = arith.constant 0.000000e+00 : f32
    %430 = vector.broadcast %cst_193 : f32 to vector<16x144xf32>
    %431 = arith.select %412, %430, %429 : vector<16x144xi1>, vector<16x144xf32>
    %432 = arith.addf %413, %431 : vector<16x144xf32>
    %cst_194 = arith.constant 0.000000e+00 : f32
    %433 = vector.broadcast %cst_194 : f32 to vector<16x144xf32>
    %c43 = arith.constant 43 : index
    %c0_195 = arith.constant 0 : index
    %434 = vector.load %arg47[%c43, %c0_195] : memref<84x144xf32, #tpu.memory_space<vmem>>, vector<16x144xf32>
    %435 = vector.extract_strided_slice %378 {offsets = [1, 0], sizes = [1, 144], strides = [1, 1]} : vector<9x144xf32> to vector<1x144xf32>
    %436 = vector.broadcast %435 : vector<1x144xf32> to vector<16x144xf32>
    %437 = arith.mulf %434, %436 : vector<16x144xf32>
    %438 = arith.addf %433, %437 : vector<16x144xf32>
    %c5_196 = arith.constant 5 : index
    %c0_197 = arith.constant 0 : index
    %439 = vector.load %arg47[%c5_196, %c0_197] : memref<84x144xf32, #tpu.memory_space<vmem>>, vector<16x144xf32>
    %440 = vector.extract_strided_slice %378 {offsets = [4, 0], sizes = [1, 144], strides = [1, 1]} : vector<9x144xf32> to vector<1x144xf32>
    %441 = vector.broadcast %440 : vector<1x144xf32> to vector<16x144xf32>
    %442 = arith.mulf %439, %441 : vector<16x144xf32>
    %443 = arith.addf %438, %442 : vector<16x144xf32>
    %c47_198 = arith.constant 47 : index
    %c0_199 = arith.constant 0 : index
    %444 = vector.load %arg47[%c47_198, %c0_199] : memref<84x144xf32, #tpu.memory_space<vmem>>, vector<16x144xf32>
    %445 = vector.extract_strided_slice %378 {offsets = [7, 0], sizes = [1, 144], strides = [1, 1]} : vector<9x144xf32> to vector<1x144xf32>
    %446 = vector.broadcast %445 : vector<1x144xf32> to vector<16x144xf32>
    %447 = arith.mulf %444, %446 : vector<16x144xf32>
    %448 = arith.addf %443, %447 : vector<16x144xf32>
    %449 = arith.addf %432, %448 : vector<16x144xf32>
    %cst_200 = arith.constant 0.000000e+00 : f32
    %450 = vector.broadcast %cst_200 : f32 to vector<16x144xf32>
    %c64 = arith.constant 64 : index
    %c0_201 = arith.constant 0 : index
    %451 = vector.load %arg47[%c64, %c0_201] : memref<84x144xf32, #tpu.memory_space<vmem>>, vector<16x144xf32>
    %452 = vector.extract_strided_slice %378 {offsets = [2, 0], sizes = [1, 144], strides = [1, 1]} : vector<9x144xf32> to vector<1x144xf32>
    %453 = vector.broadcast %452 : vector<1x144xf32> to vector<16x144xf32>
    %454 = arith.mulf %451, %453 : vector<16x144xf32>
    %455 = arith.addf %450, %454 : vector<16x144xf32>
    %c26_202 = arith.constant 26 : index
    %c0_203 = arith.constant 0 : index
    %456 = vector.load %arg47[%c26_202, %c0_203] : memref<84x144xf32, #tpu.memory_space<vmem>>, vector<16x144xf32>
    %457 = vector.extract_strided_slice %378 {offsets = [5, 0], sizes = [1, 144], strides = [1, 1]} : vector<9x144xf32> to vector<1x144xf32>
    %458 = vector.broadcast %457 : vector<1x144xf32> to vector<16x144xf32>
    %459 = arith.mulf %456, %458 : vector<16x144xf32>
    %460 = arith.addf %455, %459 : vector<16x144xf32>
    %c68_204 = arith.constant 68 : index
    %c0_205 = arith.constant 0 : index
    %461 = vector.load %arg47[%c68_204, %c0_205] : memref<84x144xf32, #tpu.memory_space<vmem>>, vector<16x144xf32>
    %462 = vector.extract_strided_slice %378 {offsets = [8, 0], sizes = [1, 144], strides = [1, 1]} : vector<9x144xf32> to vector<1x144xf32>
    %463 = vector.broadcast %462 : vector<1x144xf32> to vector<16x144xf32>
    %464 = arith.mulf %461, %463 : vector<16x144xf32>
    %465 = arith.addf %460, %464 : vector<16x144xf32>
    %466 = arith.addf %449, %465 : vector<16x144xf32>
    %467 = vector.extract_strided_slice %379 {offsets = [0, 0], sizes = [1, 144], strides = [1, 1]} : vector<2x144xf32> to vector<1x144xf32>
    %468 = vector.broadcast %467 : vector<1x144xf32> to vector<16x144xf32>
    %469 = arith.mulf %466, %468 : vector<16x144xf32>
    %470 = vector.extract_strided_slice %379 {offsets = [1, 0], sizes = [1, 144], strides = [1, 1]} : vector<2x144xf32> to vector<1x144xf32>
    %471 = vector.broadcast %470 : vector<1x144xf32> to vector<16x144xf32>
    %472 = arith.addf %469, %471 : vector<16x144xf32>
    %cst_206 = arith.constant 0.000000e+00 : f32
    %cst_207 = arith.constant 6.000000e+00 : f32
    %473 = vector.broadcast %cst_206 : f32 to vector<16x144xf32>
    %474 = arith.maximumf %473, %472 : vector<16x144xf32>
    %475 = vector.broadcast %cst_207 : f32 to vector<16x144xf32>
    %476 = arith.minimumf %475, %474 : vector<16x144xf32>
    %477 = arith.truncf %476 : vector<16x144xf32> to vector<16x144xbf16>
    %c0_208 = arith.constant 0 : index
    %c0_209 = arith.constant 0 : index
    %478 = vector.load %arg26[%c0_208, %c0_209] : memref<144x32xbf16, #tpu.memory_space<vmem>>, vector<144x32xbf16>
    %cst_210 = arith.constant dense<0.000000e+00> : vector<16x32xf32>
    %479 = tpu.matmul %477, %478, %cst_210 {dimension_numbers = #tpu.dot_dimension_numbers<[1], [0], [0], [1], [0, 0, 1, 1], [], []>} : vector<16x144xbf16>, vector<144x32xbf16>, vector<16x32xf32> -> vector<16x32xf32>
    %480 = vector.extract_strided_slice %380 {offsets = [0, 0], sizes = [1, 32], strides = [1, 1]} : vector<2x32xf32> to vector<1x32xf32>
    %481 = vector.broadcast %480 : vector<1x32xf32> to vector<16x32xf32>
    %482 = arith.mulf %479, %481 : vector<16x32xf32>
    %483 = vector.extract_strided_slice %380 {offsets = [1, 0], sizes = [1, 32], strides = [1, 1]} : vector<2x32xf32> to vector<1x32xf32>
    %484 = vector.broadcast %483 : vector<1x32xf32> to vector<16x32xf32>
    %485 = arith.addf %482, %484 : vector<16x32xf32>
    %486 = arith.truncf %485 : vector<16x32xf32> to vector<16x32xbf16>
    %c0_211 = arith.constant 0 : index
    %c0_212 = arith.constant 0 : index
    %487 = vector.load %arg28[%c0_211, %c0_212] : memref<32x192xbf16, #tpu.memory_space<vmem>>, vector<32x192xbf16>
    %cst_213 = arith.constant dense<0.000000e+00> : vector<16x192xf32>
    %488 = tpu.matmul %486, %487, %cst_213 {dimension_numbers = #tpu.dot_dimension_numbers<[1], [0], [0], [1], [0, 0, 1, 1], [], []>} : vector<16x32xbf16>, vector<32x192xbf16>, vector<16x192xf32> -> vector<16x192xf32>
    %c0_214 = arith.constant 0 : index
    %c0_215 = arith.constant 0 : index
    %489 = vector.load %arg29[%c0_214, %c0_215] : memref<2x192xf32, #tpu.memory_space<vmem>>, vector<2x192xf32>
    %490 = vector.extract_strided_slice %489 {offsets = [0, 0], sizes = [1, 192], strides = [1, 1]} : vector<2x192xf32> to vector<1x192xf32>
    %491 = vector.broadcast %490 : vector<1x192xf32> to vector<16x192xf32>
    %492 = arith.mulf %488, %491 : vector<16x192xf32>
    %493 = vector.extract_strided_slice %489 {offsets = [1, 0], sizes = [1, 192], strides = [1, 1]} : vector<2x192xf32> to vector<1x192xf32>
    %494 = vector.broadcast %493 : vector<1x192xf32> to vector<16x192xf32>
    %495 = arith.addf %492, %494 : vector<16x192xf32>
    %cst_216 = arith.constant 0.000000e+00 : f32
    %cst_217 = arith.constant 6.000000e+00 : f32
    %496 = vector.broadcast %cst_216 : f32 to vector<16x192xf32>
    %497 = arith.maximumf %496, %495 : vector<16x192xf32>
    %498 = vector.broadcast %cst_217 : f32 to vector<16x192xf32>
    %499 = arith.minimumf %498, %497 : vector<16x192xf32>
    %c0_218 = arith.constant 0 : index
    %c0_219 = arith.constant 0 : index
    %500 = vector.load %arg30[%c0_218, %c0_219] : memref<9x192xf32, #tpu.memory_space<vmem>>, vector<9x192xf32>
    %c0_220 = arith.constant 0 : index
    %c0_221 = arith.constant 0 : index
    %501 = vector.load %arg31[%c0_220, %c0_221] : memref<2x192xf32, #tpu.memory_space<vmem>>, vector<2x192xf32>
    %c0_222 = arith.constant 0 : index
    %c0_223 = arith.constant 0 : index
    %502 = vector.load %arg33[%c0_222, %c0_223] : memref<2x32xf32, #tpu.memory_space<vmem>>, vector<2x32xf32>
    %cst_224 = arith.constant 0.000000e+00 : f32
    %503 = vector.broadcast %cst_224 : f32 to vector<5x192xf32>
    %c0_225 = arith.constant 0 : index
    %c0_226 = arith.constant 0 : index
    %504 = vector.load %arg48[%c0_225, %c0_226] : memref<26x192xf32, #tpu.memory_space<vmem>>, vector<5x192xf32>
    tpu.vector_store %arg48[%c0_225, %c0_226], %503 {strides = array<i32>} : memref<26x192xf32, #tpu.memory_space<vmem>>, vector<5x192xf32>,
    %c5_227 = arith.constant 5 : index
    %c0_228 = arith.constant 0 : index
    %505 = vector.load %arg48[%c5_227, %c0_228] : memref<26x192xf32, #tpu.memory_space<vmem>>, vector<16x192xf32>
    tpu.vector_store %arg48[%c5_227, %c0_228], %499 {strides = array<i32>} : memref<26x192xf32, #tpu.memory_space<vmem>>, vector<16x192xf32>,
    %c21_229 = arith.constant 21 : index
    %c0_230 = arith.constant 0 : index
    %506 = vector.load %arg48[%c21_229, %c0_230] : memref<26x192xf32, #tpu.memory_space<vmem>>, vector<5x192xf32>
    tpu.vector_store %arg48[%c21_229, %c0_230], %503 {strides = array<i32>} : memref<26x192xf32, #tpu.memory_space<vmem>>, vector<5x192xf32>,
    %507 = tpu.iota {dimensions = array<i32: 0>} : vector<16x192xi32>
    %c4_i32_231 = arith.constant 4 : i32
    %c0_i32_232 = arith.constant 0 : i32
    %508 = arith.cmpi eq, %c4_i32_231, %c0_i32_232 : i32
    %c1_i32_233 = arith.constant 1 : i32
    %509 = arith.select %508, %c1_i32_233, %c4_i32_231 : i32
    %510 = vector.broadcast %509 : i32 to vector<16x192xi32>
    %511 = arith.remsi %507, %510 : vector<16x192xi32>
    %c0_i32_234 = arith.constant 0 : i32
    %512 = vector.broadcast %c0_i32_234 : i32 to vector<16x192xi32>
    %513 = arith.cmpi ne, %511, %512 : vector<16x192xi32>
    %c0_i32_235 = arith.constant 0 : i32
    %514 = vector.broadcast %c0_i32_235 : i32 to vector<16x192xi32>
    %515 = arith.cmpi slt, %511, %514 : vector<16x192xi32>
    %c0_i32_236 = arith.constant 0 : i32
    %516 = arith.cmpi slt, %509, %c0_i32_236 : i32
    %517 = vector.broadcast %516 : i1 to vector<16x192xi1>
    %518 = vector.broadcast %517 : vector<16x192xi1> to vector<16x192xi1>
    %519 = arith.xori %515, %518 : vector<16x192xi1>
    %520 = arith.andi %519, %513 : vector<16x192xi1>
    %521 = vector.broadcast %509 : i32 to vector<16x192xi32>
    %522 = arith.addi %511, %521 : vector<16x192xi32>
    %523 = arith.select %520, %522, %511 : vector<16x192xi1>, vector<16x192xi32>
    %c0_i32_237 = arith.constant 0 : i32
    %524 = vector.broadcast %c0_i32_237 : i32 to vector<16x192xi32>
    %525 = arith.cmpi eq, %523, %524 : vector<16x192xi32>
    %c3_i32 = arith.constant 3 : i32
    %526 = vector.broadcast %c3_i32 : i32 to vector<16x192xi32>
    %527 = arith.cmpi eq, %523, %526 : vector<16x192xi32>
    %cst_238 = arith.constant 0.000000e+00 : f32
    %528 = vector.broadcast %cst_238 : f32 to vector<16x192xf32>
    %cst_239 = arith.constant 0.000000e+00 : f32
    %529 = vector.broadcast %cst_239 : f32 to vector<16x192xf32>
    %c0_240 = arith.constant 0 : index
    %c0_241 = arith.constant 0 : index
    %530 = vector.load %arg48[%c0_240, %c0_241] : memref<26x192xf32, #tpu.memory_space<vmem>>, vector<16x192xf32>
    %531 = vector.extract_strided_slice %500 {offsets = [0, 0], sizes = [1, 192], strides = [1, 1]} : vector<9x192xf32> to vector<1x192xf32>
    %532 = vector.broadcast %531 : vector<1x192xf32> to vector<16x192xf32>
    %533 = arith.mulf %530, %532 : vector<16x192xf32>
    %534 = arith.addf %529, %533 : vector<16x192xf32>
    %c4 = arith.constant 4 : index
    %c0_242 = arith.constant 0 : index
    %535 = vector.load %arg48[%c4, %c0_242] : memref<26x192xf32, #tpu.memory_space<vmem>>, vector<16x192xf32>
    %536 = vector.extract_strided_slice %500 {offsets = [3, 0], sizes = [1, 192], strides = [1, 1]} : vector<9x192xf32> to vector<1x192xf32>
    %537 = vector.broadcast %536 : vector<1x192xf32> to vector<16x192xf32>
    %538 = arith.mulf %535, %537 : vector<16x192xf32>
    %539 = arith.addf %534, %538 : vector<16x192xf32>
    %c8_243 = arith.constant 8 : index
    %c0_244 = arith.constant 0 : index
    %540 = vector.load %arg48[%c8_243, %c0_244] : memref<26x192xf32, #tpu.memory_space<vmem>>, vector<16x192xf32>
    %541 = vector.extract_strided_slice %500 {offsets = [6, 0], sizes = [1, 192], strides = [1, 1]} : vector<9x192xf32> to vector<1x192xf32>
    %542 = vector.broadcast %541 : vector<1x192xf32> to vector<16x192xf32>
    %543 = arith.mulf %540, %542 : vector<16x192xf32>
    %544 = arith.addf %539, %543 : vector<16x192xf32>
    %cst_245 = arith.constant 0.000000e+00 : f32
    %545 = vector.broadcast %cst_245 : f32 to vector<16x192xf32>
    %546 = arith.select %525, %545, %544 : vector<16x192xi1>, vector<16x192xf32>
    %547 = arith.addf %528, %546 : vector<16x192xf32>
    %cst_246 = arith.constant 0.000000e+00 : f32
    %548 = vector.broadcast %cst_246 : f32 to vector<16x192xf32>
    %c1_247 = arith.constant 1 : index
    %c0_248 = arith.constant 0 : index
    %549 = vector.load %arg48[%c1_247, %c0_248] : memref<26x192xf32, #tpu.memory_space<vmem>>, vector<16x192xf32>
    %550 = vector.extract_strided_slice %500 {offsets = [1, 0], sizes = [1, 192], strides = [1, 1]} : vector<9x192xf32> to vector<1x192xf32>
    %551 = vector.broadcast %550 : vector<1x192xf32> to vector<16x192xf32>
    %552 = arith.mulf %549, %551 : vector<16x192xf32>
    %553 = arith.addf %548, %552 : vector<16x192xf32>
    %c5_249 = arith.constant 5 : index
    %c0_250 = arith.constant 0 : index
    %554 = vector.load %arg48[%c5_249, %c0_250] : memref<26x192xf32, #tpu.memory_space<vmem>>, vector<16x192xf32>
    %555 = vector.extract_strided_slice %500 {offsets = [4, 0], sizes = [1, 192], strides = [1, 1]} : vector<9x192xf32> to vector<1x192xf32>
    %556 = vector.broadcast %555 : vector<1x192xf32> to vector<16x192xf32>
    %557 = arith.mulf %554, %556 : vector<16x192xf32>
    %558 = arith.addf %553, %557 : vector<16x192xf32>
    %c9_251 = arith.constant 9 : index
    %c0_252 = arith.constant 0 : index
    %559 = vector.load %arg48[%c9_251, %c0_252] : memref<26x192xf32, #tpu.memory_space<vmem>>, vector<16x192xf32>
    %560 = vector.extract_strided_slice %500 {offsets = [7, 0], sizes = [1, 192], strides = [1, 1]} : vector<9x192xf32> to vector<1x192xf32>
    %561 = vector.broadcast %560 : vector<1x192xf32> to vector<16x192xf32>
    %562 = arith.mulf %559, %561 : vector<16x192xf32>
    %563 = arith.addf %558, %562 : vector<16x192xf32>
    %564 = arith.addf %547, %563 : vector<16x192xf32>
    %cst_253 = arith.constant 0.000000e+00 : f32
    %565 = vector.broadcast %cst_253 : f32 to vector<16x192xf32>
    %c2_254 = arith.constant 2 : index
    %c0_255 = arith.constant 0 : index
    %566 = vector.load %arg48[%c2_254, %c0_255] : memref<26x192xf32, #tpu.memory_space<vmem>>, vector<16x192xf32>
    %567 = vector.extract_strided_slice %500 {offsets = [2, 0], sizes = [1, 192], strides = [1, 1]} : vector<9x192xf32> to vector<1x192xf32>
    %568 = vector.broadcast %567 : vector<1x192xf32> to vector<16x192xf32>
    %569 = arith.mulf %566, %568 : vector<16x192xf32>
    %570 = arith.addf %565, %569 : vector<16x192xf32>
    %c6 = arith.constant 6 : index
    %c0_256 = arith.constant 0 : index
    %571 = vector.load %arg48[%c6, %c0_256] : memref<26x192xf32, #tpu.memory_space<vmem>>, vector<16x192xf32>
    %572 = vector.extract_strided_slice %500 {offsets = [5, 0], sizes = [1, 192], strides = [1, 1]} : vector<9x192xf32> to vector<1x192xf32>
    %573 = vector.broadcast %572 : vector<1x192xf32> to vector<16x192xf32>
    %574 = arith.mulf %571, %573 : vector<16x192xf32>
    %575 = arith.addf %570, %574 : vector<16x192xf32>
    %c10_257 = arith.constant 10 : index
    %c0_258 = arith.constant 0 : index
    %576 = vector.load %arg48[%c10_257, %c0_258] : memref<26x192xf32, #tpu.memory_space<vmem>>, vector<16x192xf32>
    %577 = vector.extract_strided_slice %500 {offsets = [8, 0], sizes = [1, 192], strides = [1, 1]} : vector<9x192xf32> to vector<1x192xf32>
    %578 = vector.broadcast %577 : vector<1x192xf32> to vector<16x192xf32>
    %579 = arith.mulf %576, %578 : vector<16x192xf32>
    %580 = arith.addf %575, %579 : vector<16x192xf32>
    %cst_259 = arith.constant 0.000000e+00 : f32
    %581 = vector.broadcast %cst_259 : f32 to vector<16x192xf32>
    %582 = arith.select %527, %581, %580 : vector<16x192xi1>, vector<16x192xf32>
    %583 = arith.addf %564, %582 : vector<16x192xf32>
    %584 = vector.extract_strided_slice %501 {offsets = [0, 0], sizes = [1, 192], strides = [1, 1]} : vector<2x192xf32> to vector<1x192xf32>
    %585 = vector.broadcast %584 : vector<1x192xf32> to vector<16x192xf32>
    %586 = arith.mulf %583, %585 : vector<16x192xf32>
    %587 = vector.extract_strided_slice %501 {offsets = [1, 0], sizes = [1, 192], strides = [1, 1]} : vector<2x192xf32> to vector<1x192xf32>
    %588 = vector.broadcast %587 : vector<1x192xf32> to vector<16x192xf32>
    %589 = arith.addf %586, %588 : vector<16x192xf32>
    %cst_260 = arith.constant 0.000000e+00 : f32
    %cst_261 = arith.constant 6.000000e+00 : f32
    %590 = vector.broadcast %cst_260 : f32 to vector<16x192xf32>
    %591 = arith.maximumf %590, %589 : vector<16x192xf32>
    %592 = vector.broadcast %cst_261 : f32 to vector<16x192xf32>
    %593 = arith.minimumf %592, %591 : vector<16x192xf32>
    %594 = arith.truncf %593 : vector<16x192xf32> to vector<16x192xbf16>
    %c0_262 = arith.constant 0 : index
    %c0_263 = arith.constant 0 : index
    %595 = vector.load %arg32[%c0_262, %c0_263] : memref<192x32xbf16, #tpu.memory_space<vmem>>, vector<192x32xbf16>
    %cst_264 = arith.constant dense<0.000000e+00> : vector<16x32xf32>
    %596 = tpu.matmul %594, %595, %cst_264 {dimension_numbers = #tpu.dot_dimension_numbers<[1], [0], [0], [1], [0, 0, 1, 1], [], []>} : vector<16x192xbf16>, vector<192x32xbf16>, vector<16x32xf32> -> vector<16x32xf32>
    %597 = vector.extract_strided_slice %502 {offsets = [0, 0], sizes = [1, 32], strides = [1, 1]} : vector<2x32xf32> to vector<1x32xf32>
    %598 = vector.broadcast %597 : vector<1x32xf32> to vector<16x32xf32>
    %599 = arith.mulf %596, %598 : vector<16x32xf32>
    %600 = vector.extract_strided_slice %502 {offsets = [1, 0], sizes = [1, 32], strides = [1, 1]} : vector<2x32xf32> to vector<1x32xf32>
    %601 = vector.broadcast %600 : vector<1x32xf32> to vector<16x32xf32>
    %602 = arith.addf %599, %601 : vector<16x32xf32>
    %603 = arith.addf %602, %485 : vector<16x32xf32>
    %c0_265 = arith.constant 0 : index
    %c0_266 = arith.constant 0 : index
    %604 = vector.load %arg34[%c0_265, %c0_266] : memref<16x16xbf16, #tpu.memory_space<vmem>>, vector<16x16xbf16>
    %605 = arith.truncf %603 : vector<16x32xf32> to vector<16x32xbf16>
    %cst_267 = arith.constant dense<0.000000e+00> : vector<16x32xf32>
    %606 = tpu.matmul %604, %605, %cst_267 {dimension_numbers = #tpu.dot_dimension_numbers<[1], [0], [0], [1], [0, 0, 1, 1], [], []>} : vector<16x16xbf16>, vector<16x32xbf16>, vector<16x32xf32> -> vector<16x32xf32>
    %607 = arith.truncf %606 : vector<16x32xf32> to vector<16x32xbf16>
    %c0_268 = arith.constant 0 : index
    %c0_269 = arith.constant 0 : index
    %608 = vector.load %arg35[%c0_268, %c0_269] : memref<32x192xbf16, #tpu.memory_space<vmem>>, vector<32x192xbf16>
    %cst_270 = arith.constant dense<0.000000e+00> : vector<16x192xf32>
    %609 = tpu.matmul %607, %608, %cst_270 {dimension_numbers = #tpu.dot_dimension_numbers<[1], [0], [0], [1], [0, 0, 1, 1], [], []>} : vector<16x32xbf16>, vector<32x192xbf16>, vector<16x192xf32> -> vector<16x192xf32>
    %c0_271 = arith.constant 0 : index
    %c0_272 = arith.constant 0 : index
    %610 = vector.load %arg36[%c0_271, %c0_272] : memref<2x192xf32, #tpu.memory_space<vmem>>, vector<2x192xf32>
    %611 = vector.extract_strided_slice %610 {offsets = [0, 0], sizes = [1, 192], strides = [1, 1]} : vector<2x192xf32> to vector<1x192xf32>
    %612 = vector.broadcast %611 : vector<1x192xf32> to vector<16x192xf32>
    %613 = arith.mulf %609, %612 : vector<16x192xf32>
    %614 = vector.extract_strided_slice %610 {offsets = [1, 0], sizes = [1, 192], strides = [1, 1]} : vector<2x192xf32> to vector<1x192xf32>
    %615 = vector.broadcast %614 : vector<1x192xf32> to vector<16x192xf32>
    %616 = arith.addf %613, %615 : vector<16x192xf32>
    %cst_273 = arith.constant 0.000000e+00 : f32
    %cst_274 = arith.constant 6.000000e+00 : f32
    %617 = vector.broadcast %cst_273 : f32 to vector<16x192xf32>
    %618 = arith.maximumf %617, %616 : vector<16x192xf32>
    %619 = vector.broadcast %cst_274 : f32 to vector<16x192xf32>
    %620 = arith.minimumf %619, %618 : vector<16x192xf32>
    %c0_275 = arith.constant 0 : index
    %c0_276 = arith.constant 0 : index
    %621 = vector.load %arg37[%c0_275, %c0_276] : memref<9x192xf32, #tpu.memory_space<vmem>>, vector<9x192xf32>
    %c0_277 = arith.constant 0 : index
    %c0_278 = arith.constant 0 : index
    %622 = vector.load %arg38[%c0_277, %c0_278] : memref<2x192xf32, #tpu.memory_space<vmem>>, vector<2x192xf32>
    %c0_279 = arith.constant 0 : index
    %c0_280 = arith.constant 0 : index
    %623 = vector.load %arg40[%c0_279, %c0_280] : memref<2x64xf32, #tpu.memory_space<vmem>>, vector<2x64xf32>
    %cst_281 = arith.constant 0.000000e+00 : f32
    %624 = vector.broadcast %cst_281 : f32 to vector<3x192xf32>
    %c0_282 = arith.constant 0 : index
    %c0_283 = arith.constant 0 : index
    %625 = vector.load %arg49[%c0_282, %c0_283] : memref<28x192xf32, #tpu.memory_space<vmem>>, vector<3x192xf32>
    tpu.vector_store %arg49[%c0_282, %c0_283], %624 {strides = array<i32>} : memref<28x192xf32, #tpu.memory_space<vmem>>, vector<3x192xf32>,
    %626 = vector.extract_strided_slice %620 {offsets = [0, 0], sizes = [4, 192], strides = [1, 1]} : vector<16x192xf32> to vector<4x192xf32>
    %c3 = arith.constant 3 : index
    %c0_284 = arith.constant 0 : index
    %627 = vector.load %arg49[%c3, %c0_284] : memref<28x192xf32, #tpu.memory_space<vmem>>, vector<4x192xf32>
    tpu.vector_store %arg49[%c3, %c0_284], %626 {strides = array<i32>} : memref<28x192xf32, #tpu.memory_space<vmem>>, vector<4x192xf32>,
    %c7 = arith.constant 7 : index
    %c0_285 = arith.constant 0 : index
    %628 = vector.load %arg49[%c7, %c0_285] : memref<28x192xf32, #tpu.memory_space<vmem>>, vector<3x192xf32>
    tpu.vector_store %arg49[%c7, %c0_285], %624 {strides = array<i32>} : memref<28x192xf32, #tpu.memory_space<vmem>>, vector<3x192xf32>,
    %629 = vector.extract_strided_slice %620 {offsets = [4, 0], sizes = [4, 192], strides = [1, 1]} : vector<16x192xf32> to vector<4x192xf32>
    %c10_286 = arith.constant 10 : index
    %c0_287 = arith.constant 0 : index
    %630 = vector.load %arg49[%c10_286, %c0_287] : memref<28x192xf32, #tpu.memory_space<vmem>>, vector<4x192xf32>
    tpu.vector_store %arg49[%c10_286, %c0_287], %629 {strides = array<i32>} : memref<28x192xf32, #tpu.memory_space<vmem>>, vector<4x192xf32>,
    %c14 = arith.constant 14 : index
    %c0_288 = arith.constant 0 : index
    %631 = vector.load %arg49[%c14, %c0_288] : memref<28x192xf32, #tpu.memory_space<vmem>>, vector<3x192xf32>
    tpu.vector_store %arg49[%c14, %c0_288], %624 {strides = array<i32>} : memref<28x192xf32, #tpu.memory_space<vmem>>, vector<3x192xf32>,
    %632 = vector.extract_strided_slice %620 {offsets = [8, 0], sizes = [4, 192], strides = [1, 1]} : vector<16x192xf32> to vector<4x192xf32>
    %c17_289 = arith.constant 17 : index
    %c0_290 = arith.constant 0 : index
    %633 = vector.load %arg49[%c17_289, %c0_290] : memref<28x192xf32, #tpu.memory_space<vmem>>, vector<4x192xf32>
    tpu.vector_store %arg49[%c17_289, %c0_290], %632 {strides = array<i32>} : memref<28x192xf32, #tpu.memory_space<vmem>>, vector<4x192xf32>,
    %c21_291 = arith.constant 21 : index
    %c0_292 = arith.constant 0 : index
    %634 = vector.load %arg49[%c21_291, %c0_292] : memref<28x192xf32, #tpu.memory_space<vmem>>, vector<3x192xf32>
    tpu.vector_store %arg49[%c21_291, %c0_292], %624 {strides = array<i32>} : memref<28x192xf32, #tpu.memory_space<vmem>>, vector<3x192xf32>,
    %635 = vector.extract_strided_slice %620 {offsets = [12, 0], sizes = [4, 192], strides = [1, 1]} : vector<16x192xf32> to vector<4x192xf32>
    %c24 = arith.constant 24 : index
    %c0_293 = arith.constant 0 : index
    %636 = vector.load %arg49[%c24, %c0_293] : memref<28x192xf32, #tpu.memory_space<vmem>>, vector<4x192xf32>
    tpu.vector_store %arg49[%c24, %c0_293], %635 {strides = array<i32>} : memref<28x192xf32, #tpu.memory_space<vmem>>, vector<4x192xf32>,
    %637 = tpu.iota {dimensions = array<i32: 0>} : vector<4x192xi32>
    %c2_i32 = arith.constant 2 : i32
    %c0_i32_294 = arith.constant 0 : i32
    %638 = arith.cmpi eq, %c2_i32, %c0_i32_294 : i32
    %c1_i32_295 = arith.constant 1 : i32
    %639 = arith.select %638, %c1_i32_295, %c2_i32 : i32
    %640 = vector.broadcast %639 : i32 to vector<4x192xi32>
    %641 = arith.remsi %637, %640 : vector<4x192xi32>
    %c0_i32_296 = arith.constant 0 : i32
    %642 = vector.broadcast %c0_i32_296 : i32 to vector<4x192xi32>
    %643 = arith.cmpi ne, %641, %642 : vector<4x192xi32>
    %c0_i32_297 = arith.constant 0 : i32
    %644 = vector.broadcast %c0_i32_297 : i32 to vector<4x192xi32>
    %645 = arith.cmpi slt, %641, %644 : vector<4x192xi32>
    %c0_i32_298 = arith.constant 0 : i32
    %646 = arith.cmpi slt, %639, %c0_i32_298 : i32
    %647 = vector.broadcast %646 : i1 to vector<4x192xi1>
    %648 = vector.broadcast %647 : vector<4x192xi1> to vector<4x192xi1>
    %649 = arith.xori %645, %648 : vector<4x192xi1>
    %650 = arith.andi %649, %643 : vector<4x192xi1>
    %651 = vector.broadcast %639 : i32 to vector<4x192xi32>
    %652 = arith.addi %641, %651 : vector<4x192xi32>
    %653 = arith.select %650, %652, %641 : vector<4x192xi1>, vector<4x192xi32>
    %c0_i32_299 = arith.constant 0 : i32
    %654 = vector.broadcast %c0_i32_299 : i32 to vector<4x192xi32>
    %655 = arith.cmpi eq, %653, %654 : vector<4x192xi32>
    %cst_300 = arith.constant 0.000000e+00 : f32
    %656 = vector.broadcast %cst_300 : f32 to vector<4x192xf32>
    %cst_301 = arith.constant 0.000000e+00 : f32
    %657 = vector.broadcast %cst_301 : f32 to vector<4x192xf32>
    %c21_302 = arith.constant 21 : index
    %c0_303 = arith.constant 0 : index
    %658 = vector.load %arg49[%c21_302, %c0_303] : memref<28x192xf32, #tpu.memory_space<vmem>>, vector<4x192xf32>
    %659 = vector.extract_strided_slice %621 {offsets = [0, 0], sizes = [1, 192], strides = [1, 1]} : vector<9x192xf32> to vector<1x192xf32>
    %660 = vector.broadcast %659 : vector<1x192xf32> to vector<4x192xf32>
    %661 = arith.mulf %658, %660 : vector<4x192xf32>
    %662 = arith.addf %657, %661 : vector<4x192xf32>
    %c9_304 = arith.constant 9 : index
    %c0_305 = arith.constant 0 : index
    %663 = vector.load %arg49[%c9_304, %c0_305] : memref<28x192xf32, #tpu.memory_space<vmem>>, vector<4x192xf32>
    %664 = vector.extract_strided_slice %621 {offsets = [3, 0], sizes = [1, 192], strides = [1, 1]} : vector<9x192xf32> to vector<1x192xf32>
    %665 = vector.broadcast %664 : vector<1x192xf32> to vector<4x192xf32>
    %666 = arith.mulf %663, %665 : vector<4x192xf32>
    %667 = arith.addf %662, %666 : vector<4x192xf32>
    %c23 = arith.constant 23 : index
    %c0_306 = arith.constant 0 : index
    %668 = vector.load %arg49[%c23, %c0_306] : memref<28x192xf32, #tpu.memory_space<vmem>>, vector<4x192xf32>
    %669 = vector.extract_strided_slice %621 {offsets = [6, 0], sizes = [1, 192], strides = [1, 1]} : vector<9x192xf32> to vector<1x192xf32>
    %670 = vector.broadcast %669 : vector<1x192xf32> to vector<4x192xf32>
    %671 = arith.mulf %668, %670 : vector<4x192xf32>
    %672 = arith.addf %667, %671 : vector<4x192xf32>
    %cst_307 = arith.constant 0.000000e+00 : f32
    %673 = vector.broadcast %cst_307 : f32 to vector<4x192xf32>
    %674 = arith.select %655, %673, %672 : vector<4x192xi1>, vector<4x192xf32>
    %675 = arith.addf %656, %674 : vector<4x192xf32>
    %cst_308 = arith.constant 0.000000e+00 : f32
    %676 = vector.broadcast %cst_308 : f32 to vector<4x192xf32>
    %c15 = arith.constant 15 : index
    %c0_309 = arith.constant 0 : index
    %677 = vector.load %arg49[%c15, %c0_309] : memref<28x192xf32, #tpu.memory_space<vmem>>, vector<4x192xf32>
    %678 = vector.extract_strided_slice %621 {offsets = [1, 0], sizes = [1, 192], strides = [1, 1]} : vector<9x192xf32> to vector<1x192xf32>
    %679 = vector.broadcast %678 : vector<1x192xf32> to vector<4x192xf32>
    %680 = arith.mulf %677, %679 : vector<4x192xf32>
    %681 = arith.addf %676, %680 : vector<4x192xf32>
    %c3_310 = arith.constant 3 : index
    %c0_311 = arith.constant 0 : index
    %682 = vector.load %arg49[%c3_310, %c0_311] : memref<28x192xf32, #tpu.memory_space<vmem>>, vector<4x192xf32>
    %683 = vector.extract_strided_slice %621 {offsets = [4, 0], sizes = [1, 192], strides = [1, 1]} : vector<9x192xf32> to vector<1x192xf32>
    %684 = vector.broadcast %683 : vector<1x192xf32> to vector<4x192xf32>
    %685 = arith.mulf %682, %684 : vector<4x192xf32>
    %686 = arith.addf %681, %685 : vector<4x192xf32>
    %c17_312 = arith.constant 17 : index
    %c0_313 = arith.constant 0 : index
    %687 = vector.load %arg49[%c17_312, %c0_313] : memref<28x192xf32, #tpu.memory_space<vmem>>, vector<4x192xf32>
    %688 = vector.extract_strided_slice %621 {offsets = [7, 0], sizes = [1, 192], strides = [1, 1]} : vector<9x192xf32> to vector<1x192xf32>
    %689 = vector.broadcast %688 : vector<1x192xf32> to vector<4x192xf32>
    %690 = arith.mulf %687, %689 : vector<4x192xf32>
    %691 = arith.addf %686, %690 : vector<4x192xf32>
    %692 = arith.addf %675, %691 : vector<4x192xf32>
    %cst_314 = arith.constant 0.000000e+00 : f32
    %693 = vector.broadcast %cst_314 : f32 to vector<4x192xf32>
    %c22 = arith.constant 22 : index
    %c0_315 = arith.constant 0 : index
    %694 = vector.load %arg49[%c22, %c0_315] : memref<28x192xf32, #tpu.memory_space<vmem>>, vector<4x192xf32>
    %695 = vector.extract_strided_slice %621 {offsets = [2, 0], sizes = [1, 192], strides = [1, 1]} : vector<9x192xf32> to vector<1x192xf32>
    %696 = vector.broadcast %695 : vector<1x192xf32> to vector<4x192xf32>
    %697 = arith.mulf %694, %696 : vector<4x192xf32>
    %698 = arith.addf %693, %697 : vector<4x192xf32>
    %c10_316 = arith.constant 10 : index
    %c0_317 = arith.constant 0 : index
    %699 = vector.load %arg49[%c10_316, %c0_317] : memref<28x192xf32, #tpu.memory_space<vmem>>, vector<4x192xf32>
    %700 = vector.extract_strided_slice %621 {offsets = [5, 0], sizes = [1, 192], strides = [1, 1]} : vector<9x192xf32> to vector<1x192xf32>
    %701 = vector.broadcast %700 : vector<1x192xf32> to vector<4x192xf32>
    %702 = arith.mulf %699, %701 : vector<4x192xf32>
    %703 = arith.addf %698, %702 : vector<4x192xf32>
    %c24_318 = arith.constant 24 : index
    %c0_319 = arith.constant 0 : index
    %704 = vector.load %arg49[%c24_318, %c0_319] : memref<28x192xf32, #tpu.memory_space<vmem>>, vector<4x192xf32>
    %705 = vector.extract_strided_slice %621 {offsets = [8, 0], sizes = [1, 192], strides = [1, 1]} : vector<9x192xf32> to vector<1x192xf32>
    %706 = vector.broadcast %705 : vector<1x192xf32> to vector<4x192xf32>
    %707 = arith.mulf %704, %706 : vector<4x192xf32>
    %708 = arith.addf %703, %707 : vector<4x192xf32>
    %709 = arith.addf %692, %708 : vector<4x192xf32>
    %710 = vector.extract_strided_slice %622 {offsets = [0, 0], sizes = [1, 192], strides = [1, 1]} : vector<2x192xf32> to vector<1x192xf32>
    %711 = vector.broadcast %710 : vector<1x192xf32> to vector<4x192xf32>
    %712 = arith.mulf %709, %711 : vector<4x192xf32>
    %713 = vector.extract_strided_slice %622 {offsets = [1, 0], sizes = [1, 192], strides = [1, 1]} : vector<2x192xf32> to vector<1x192xf32>
    %714 = vector.broadcast %713 : vector<1x192xf32> to vector<4x192xf32>
    %715 = arith.addf %712, %714 : vector<4x192xf32>
    %cst_320 = arith.constant 0.000000e+00 : f32
    %cst_321 = arith.constant 6.000000e+00 : f32
    %716 = vector.broadcast %cst_320 : f32 to vector<4x192xf32>
    %717 = arith.maximumf %716, %715 : vector<4x192xf32>
    %718 = vector.broadcast %cst_321 : f32 to vector<4x192xf32>
    %719 = arith.minimumf %718, %717 : vector<4x192xf32>
    %720 = arith.truncf %719 : vector<4x192xf32> to vector<4x192xbf16>
    %c0_322 = arith.constant 0 : index
    %c0_323 = arith.constant 0 : index
    %721 = vector.load %arg39[%c0_322, %c0_323] : memref<192x64xbf16, #tpu.memory_space<vmem>>, vector<192x64xbf16>
    %cst_324 = arith.constant dense<0.000000e+00> : vector<4x64xf32>
    %722 = tpu.matmul %720, %721, %cst_324 {dimension_numbers = #tpu.dot_dimension_numbers<[1], [0], [0], [1], [0, 0, 1, 1], [], []>} : vector<4x192xbf16>, vector<192x64xbf16>, vector<4x64xf32> -> vector<4x64xf32>
    %723 = vector.extract_strided_slice %623 {offsets = [0, 0], sizes = [1, 64], strides = [1, 1]} : vector<2x64xf32> to vector<1x64xf32>
    %724 = vector.broadcast %723 : vector<1x64xf32> to vector<4x64xf32>
    %725 = arith.mulf %722, %724 : vector<4x64xf32>
    %726 = vector.extract_strided_slice %623 {offsets = [1, 0], sizes = [1, 64], strides = [1, 1]} : vector<2x64xf32> to vector<1x64xf32>
    %727 = vector.broadcast %726 : vector<1x64xf32> to vector<4x64xf32>
    %728 = arith.addf %725, %727 : vector<4x64xf32>
    %729 = arith.truncf %728 : vector<4x64xf32> to vector<4x64xbf16>
    %c0_325 = arith.constant 0 : index
    %c0_326 = arith.constant 0 : index
    %730 = vector.load %arg41[%c0_325, %c0_326] : memref<64x128xbf16, #tpu.memory_space<vmem>>, vector<64x128xbf16>
    %cst_327 = arith.constant dense<0.000000e+00> : vector<4x128xf32>
    %731 = tpu.matmul %729, %730, %cst_327 {dimension_numbers = #tpu.dot_dimension_numbers<[1], [0], [0], [1], [0, 0, 1, 1], [], []>} : vector<4x64xbf16>, vector<64x128xbf16>, vector<4x128xf32> -> vector<4x128xf32>
    %c0_328 = arith.constant 0 : index
    %c0_329 = arith.constant 0 : index
    %732 = vector.load %arg42[%c0_328, %c0_329] : memref<2x128xf32, #tpu.memory_space<vmem>>, vector<2x128xf32>
    %733 = vector.extract_strided_slice %732 {offsets = [0, 0], sizes = [1, 128], strides = [1, 1]} : vector<2x128xf32> to vector<1x128xf32>
    %734 = vector.broadcast %733 : vector<1x128xf32> to vector<4x128xf32>
    %735 = arith.mulf %731, %734 : vector<4x128xf32>
    %736 = vector.extract_strided_slice %732 {offsets = [1, 0], sizes = [1, 128], strides = [1, 1]} : vector<2x128xf32> to vector<1x128xf32>
    %737 = vector.broadcast %736 : vector<1x128xf32> to vector<4x128xf32>
    %738 = arith.addf %735, %737 : vector<4x128xf32>
    %cst_330 = arith.constant 0.000000e+00 : f32
    %cst_331 = arith.constant 6.000000e+00 : f32
    %739 = vector.broadcast %cst_330 : f32 to vector<4x128xf32>
    %740 = arith.maximumf %739, %738 : vector<4x128xf32>
    %741 = vector.broadcast %cst_331 : f32 to vector<4x128xf32>
    %742 = arith.minimumf %741, %740 : vector<4x128xf32>
    %cst_332 = arith.constant dense<0.000000e+00> : vector<128xf32>
    %743 = vector.multi_reduction <add>, %742, %cst_332 [0] : vector<4x128xf32> to vector<128xf32>
    %744 = vector.shape_cast %743 : vector<128xf32> to vector<1x128xf32>
    %cst_333 = arith.constant 4.000000e+00 : f32
    %745 = vector.broadcast %cst_333 : f32 to vector<1x128xf32>
    %746 = arith.divf %744, %745 : vector<1x128xf32>
    %c0_334 = arith.constant 0 : index
    %c0_335 = arith.constant 0 : index
    %c0_336 = arith.constant 0 : index
    %747 = vector.load %arg43[%c0_334, %c0_335, %c0_336] : memref<1x1x128xf32, #tpu.memory_space<vmem>>, vector<1x1x128xf32>
    %748 = vector.shape_cast %747 : vector<1x1x128xf32> to vector<1x128xf32>
    %749 = vector.shape_cast %746 : vector<1x128xf32> to vector<1x1x128xf32>
    tpu.vector_store %arg43[%c0_334, %c0_335, %c0_336], %749 {strides = array<i32>} : memref<1x1x128xf32, #tpu.memory_space<vmem>>, vector<1x1x128xf32>,
    return
  }
  func.func @transform_0(%arg0: i32) -> (i32, i32, i32) {
    %c0_i32 = arith.constant 0 : i32
    %c0_i32_0 = arith.constant 0 : i32
    %c0_i32_1 = arith.constant 0 : i32
    return %arg0, %c0_i32, %c0_i32_0 : i32, i32, i32
  }
  func.func @transform_1(%arg0: i32) -> (i32, i32) {
    %c0_i32 = arith.constant 0 : i32
    %c0_i32_0 = arith.constant 0 : i32
    %c0_i32_1 = arith.constant 0 : i32
    return %c0_i32, %c0_i32_0 : i32, i32
  }
  func.func @transform_2(%arg0: i32) -> (i32, i32) {
    %c0_i32 = arith.constant 0 : i32
    %c0_i32_0 = arith.constant 0 : i32
    %c0_i32_1 = arith.constant 0 : i32
    return %c0_i32, %c0_i32_0 : i32, i32
  }
  func.func @transform_3(%arg0: i32) -> (i32, i32) {
    %c0_i32 = arith.constant 0 : i32
    %c0_i32_0 = arith.constant 0 : i32
    %c0_i32_1 = arith.constant 0 : i32
    return %c0_i32, %c0_i32_0 : i32, i32
  }
  func.func @transform_4(%arg0: i32) -> (i32, i32) {
    %c0_i32 = arith.constant 0 : i32
    %c0_i32_0 = arith.constant 0 : i32
    %c0_i32_1 = arith.constant 0 : i32
    return %c0_i32, %c0_i32_0 : i32, i32
  }
  func.func @transform_5(%arg0: i32) -> (i32, i32) {
    %c0_i32 = arith.constant 0 : i32
    %c0_i32_0 = arith.constant 0 : i32
    %c0_i32_1 = arith.constant 0 : i32
    return %c0_i32, %c0_i32_0 : i32, i32
  }
  func.func @transform_6(%arg0: i32) -> (i32, i32) {
    %c0_i32 = arith.constant 0 : i32
    %c0_i32_0 = arith.constant 0 : i32
    %c0_i32_1 = arith.constant 0 : i32
    return %c0_i32, %c0_i32_0 : i32, i32
  }
  func.func @transform_7(%arg0: i32) -> (i32, i32) {
    %c0_i32 = arith.constant 0 : i32
    %c0_i32_0 = arith.constant 0 : i32
    %c0_i32_1 = arith.constant 0 : i32
    return %c0_i32, %c0_i32_0 : i32, i32
  }
  func.func @transform_8(%arg0: i32) -> (i32, i32) {
    %c0_i32 = arith.constant 0 : i32
    %c0_i32_0 = arith.constant 0 : i32
    %c0_i32_1 = arith.constant 0 : i32
    return %c0_i32, %c0_i32_0 : i32, i32
  }
  func.func @transform_9(%arg0: i32) -> (i32, i32) {
    %c0_i32 = arith.constant 0 : i32
    %c0_i32_0 = arith.constant 0 : i32
    %c0_i32_1 = arith.constant 0 : i32
    return %c0_i32, %c0_i32_0 : i32, i32
  }
  func.func @transform_10(%arg0: i32) -> (i32, i32) {
    %c0_i32 = arith.constant 0 : i32
    %c0_i32_0 = arith.constant 0 : i32
    %c0_i32_1 = arith.constant 0 : i32
    return %c0_i32, %c0_i32_0 : i32, i32
  }
  func.func @transform_11(%arg0: i32) -> (i32, i32) {
    %c0_i32 = arith.constant 0 : i32
    %c0_i32_0 = arith.constant 0 : i32
    %c0_i32_1 = arith.constant 0 : i32
    return %c0_i32, %c0_i32_0 : i32, i32
  }
  func.func @transform_12(%arg0: i32) -> (i32, i32) {
    %c0_i32 = arith.constant 0 : i32
    %c0_i32_0 = arith.constant 0 : i32
    %c0_i32_1 = arith.constant 0 : i32
    return %c0_i32, %c0_i32_0 : i32, i32
  }
  func.func @transform_13(%arg0: i32) -> (i32, i32) {
    %c0_i32 = arith.constant 0 : i32
    %c0_i32_0 = arith.constant 0 : i32
    %c0_i32_1 = arith.constant 0 : i32
    return %c0_i32, %c0_i32_0 : i32, i32
  }
  func.func @transform_14(%arg0: i32) -> (i32, i32) {
    %c0_i32 = arith.constant 0 : i32
    %c0_i32_0 = arith.constant 0 : i32
    %c0_i32_1 = arith.constant 0 : i32
    return %c0_i32, %c0_i32_0 : i32, i32
  }
  func.func @transform_15(%arg0: i32) -> (i32, i32) {
    %c0_i32 = arith.constant 0 : i32
    %c0_i32_0 = arith.constant 0 : i32
    %c0_i32_1 = arith.constant 0 : i32
    return %c0_i32, %c0_i32_0 : i32, i32
  }
  func.func @transform_16(%arg0: i32) -> (i32, i32) {
    %c0_i32 = arith.constant 0 : i32
    %c0_i32_0 = arith.constant 0 : i32
    %c0_i32_1 = arith.constant 0 : i32
    return %c0_i32, %c0_i32_0 : i32, i32
  }
  func.func @transform_17(%arg0: i32) -> (i32, i32) {
    %c0_i32 = arith.constant 0 : i32
    %c0_i32_0 = arith.constant 0 : i32
    %c0_i32_1 = arith.constant 0 : i32
    return %c0_i32, %c0_i32_0 : i32, i32
  }
  func.func @transform_18(%arg0: i32) -> (i32, i32) {
    %c0_i32 = arith.constant 0 : i32
    %c0_i32_0 = arith.constant 0 : i32
    %c0_i32_1 = arith.constant 0 : i32
    return %c0_i32, %c0_i32_0 : i32, i32
  }
  func.func @transform_19(%arg0: i32) -> (i32, i32) {
    %c0_i32 = arith.constant 0 : i32
    %c0_i32_0 = arith.constant 0 : i32
    %c0_i32_1 = arith.constant 0 : i32
    return %c0_i32, %c0_i32_0 : i32, i32
  }
  func.func @transform_20(%arg0: i32) -> (i32, i32) {
    %c0_i32 = arith.constant 0 : i32
    %c0_i32_0 = arith.constant 0 : i32
    %c0_i32_1 = arith.constant 0 : i32
    return %c0_i32, %c0_i32_0 : i32, i32
  }
  func.func @transform_21(%arg0: i32) -> (i32, i32) {
    %c0_i32 = arith.constant 0 : i32
    %c0_i32_0 = arith.constant 0 : i32
    %c0_i32_1 = arith.constant 0 : i32
    return %c0_i32, %c0_i32_0 : i32, i32
  }
  func.func @transform_22(%arg0: i32) -> (i32, i32) {
    %c0_i32 = arith.constant 0 : i32
    %c0_i32_0 = arith.constant 0 : i32
    %c0_i32_1 = arith.constant 0 : i32
    return %c0_i32, %c0_i32_0 : i32, i32
  }
  func.func @transform_23(%arg0: i32) -> (i32, i32) {
    %c0_i32 = arith.constant 0 : i32
    %c0_i32_0 = arith.constant 0 : i32
    %c0_i32_1 = arith.constant 0 : i32
    return %c0_i32, %c0_i32_0 : i32, i32
  }
  func.func @transform_24(%arg0: i32) -> (i32, i32) {
    %c0_i32 = arith.constant 0 : i32
    %c0_i32_0 = arith.constant 0 : i32
    %c0_i32_1 = arith.constant 0 : i32
    return %c0_i32, %c0_i32_0 : i32, i32
  }
  func.func @transform_25(%arg0: i32) -> (i32, i32) {
    %c0_i32 = arith.constant 0 : i32
    %c0_i32_0 = arith.constant 0 : i32
    %c0_i32_1 = arith.constant 0 : i32
    return %c0_i32, %c0_i32_0 : i32, i32
  }
  func.func @transform_26(%arg0: i32) -> (i32, i32) {
    %c0_i32 = arith.constant 0 : i32
    %c0_i32_0 = arith.constant 0 : i32
    %c0_i32_1 = arith.constant 0 : i32
    return %c0_i32, %c0_i32_0 : i32, i32
  }
  func.func @transform_27(%arg0: i32) -> (i32, i32) {
    %c0_i32 = arith.constant 0 : i32
    %c0_i32_0 = arith.constant 0 : i32
    %c0_i32_1 = arith.constant 0 : i32
    return %c0_i32, %c0_i32_0 : i32, i32
  }
  func.func @transform_28(%arg0: i32) -> (i32, i32) {
    %c0_i32 = arith.constant 0 : i32
    %c0_i32_0 = arith.constant 0 : i32
    %c0_i32_1 = arith.constant 0 : i32
    return %c0_i32, %c0_i32_0 : i32, i32
  }
  func.func @transform_29(%arg0: i32) -> (i32, i32) {
    %c0_i32 = arith.constant 0 : i32
    %c0_i32_0 = arith.constant 0 : i32
    %c0_i32_1 = arith.constant 0 : i32
    return %c0_i32, %c0_i32_0 : i32, i32
  }
  func.func @transform_30(%arg0: i32) -> (i32, i32) {
    %c0_i32 = arith.constant 0 : i32
    %c0_i32_0 = arith.constant 0 : i32
    %c0_i32_1 = arith.constant 0 : i32
    return %c0_i32, %c0_i32_0 : i32, i32
  }
  func.func @transform_31(%arg0: i32) -> (i32, i32) {
    %c0_i32 = arith.constant 0 : i32
    %c0_i32_0 = arith.constant 0 : i32
    %c0_i32_1 = arith.constant 0 : i32
    return %c0_i32, %c0_i32_0 : i32, i32
  }
  func.func @transform_32(%arg0: i32) -> (i32, i32) {
    %c0_i32 = arith.constant 0 : i32
    %c0_i32_0 = arith.constant 0 : i32
    %c0_i32_1 = arith.constant 0 : i32
    return %c0_i32, %c0_i32_0 : i32, i32
  }
  func.func @transform_33(%arg0: i32) -> (i32, i32) {
    %c0_i32 = arith.constant 0 : i32
    %c0_i32_0 = arith.constant 0 : i32
    %c0_i32_1 = arith.constant 0 : i32
    return %c0_i32, %c0_i32_0 : i32, i32
  }
  func.func @transform_34(%arg0: i32) -> (i32, i32) {
    %c0_i32 = arith.constant 0 : i32
    %c0_i32_0 = arith.constant 0 : i32
    %c0_i32_1 = arith.constant 0 : i32
    return %c0_i32, %c0_i32_0 : i32, i32
  }
  func.func @transform_35(%arg0: i32) -> (i32, i32) {
    %c0_i32 = arith.constant 0 : i32
    %c0_i32_0 = arith.constant 0 : i32
    %c0_i32_1 = arith.constant 0 : i32
    return %c0_i32, %c0_i32_0 : i32, i32
  }
  func.func @transform_36(%arg0: i32) -> (i32, i32) {
    %c0_i32 = arith.constant 0 : i32
    %c0_i32_0 = arith.constant 0 : i32
    %c0_i32_1 = arith.constant 0 : i32
    return %c0_i32, %c0_i32_0 : i32, i32
  }
  func.func @transform_37(%arg0: i32) -> (i32, i32) {
    %c0_i32 = arith.constant 0 : i32
    %c0_i32_0 = arith.constant 0 : i32
    %c0_i32_1 = arith.constant 0 : i32
    return %c0_i32, %c0_i32_0 : i32, i32
  }
  func.func @transform_38(%arg0: i32) -> (i32, i32) {
    %c0_i32 = arith.constant 0 : i32
    %c0_i32_0 = arith.constant 0 : i32
    %c0_i32_1 = arith.constant 0 : i32
    return %c0_i32, %c0_i32_0 : i32, i32
  }
  func.func @transform_39(%arg0: i32) -> (i32, i32) {
    %c0_i32 = arith.constant 0 : i32
    %c0_i32_0 = arith.constant 0 : i32
    %c0_i32_1 = arith.constant 0 : i32
    return %c0_i32, %c0_i32_0 : i32, i32
  }
  func.func @transform_40(%arg0: i32) -> (i32, i32) {
    %c0_i32 = arith.constant 0 : i32
    %c0_i32_0 = arith.constant 0 : i32
    %c0_i32_1 = arith.constant 0 : i32
    return %c0_i32, %c0_i32_0 : i32, i32
  }
  func.func @transform_41(%arg0: i32) -> (i32, i32) {
    %c0_i32 = arith.constant 0 : i32
    %c0_i32_0 = arith.constant 0 : i32
    %c0_i32_1 = arith.constant 0 : i32
    return %c0_i32, %c0_i32_0 : i32, i32
  }
  func.func @transform_42(%arg0: i32) -> (i32, i32, i32) {
    %c0_i32 = arith.constant 0 : i32
    %c0_i32_0 = arith.constant 0 : i32
    %c0_i32_1 = arith.constant 0 : i32
    return %arg0, %c0_i32, %c0_i32_0 : i32, i32, i32
  }
}

</mosaic_0001>

<llo_original>
// kernel: _lambda_.1
$region0: #{_lambda_.1}
  #allocation0 [shape = 'u32[]', space=smem, size = 0x4, offset = 0x4, fixed_abs, tag = 'smem constant byte address 0x4 - core index']
  #allocation1 [shape = 'u32[144,128]{1,0:T(1,128)}', space=vmem, size = 0x12000, scoped, tag = 'internal scratch']
  #allocation2 [shape = 'f32[290,32]{1,0:T(8,128)}', space=vmem, size = 0x25000, scoped, tag = 'scratch operand']
  #allocation3 [shape = 'f32[292,96]{1,0:T(8,128)}', space=vmem, size = 0x25000, scoped, tag = 'scratch operand']
  #allocation4 [shape = 'f32[82,144]{1,0:T(8,128)}', space=vmem, size = 0x16000, scoped, tag = 'scratch operand']
  #allocation5 [shape = 'f32[84,144]{1,0:T(8,128)}', space=vmem, size = 0x16000, scoped, tag = 'scratch operand']
  #allocation6 [shape = 'f32[26,192]{1,0:T(8,128)}', space=vmem, size = 0x8000, scoped, tag = 'scratch operand']
  #allocation7 [shape = 'f32[28,192]{1,0:T(8,128)}', space=vmem, size = 0x8000, scoped, tag = 'scratch operand']
  %s0 = inlined_call_operand.smem [shape: u32[43], index: -1, kind: input, shape index: {}]
  %s1 = sld [smem:[%s0]]
  %s2 = scalar_lea.smem %s0, 1
  %s3 = sld [smem:[%s2]]
  %s4 = scalar_lea.smem %s0, 2
  %s5 = sld [smem:[%s4]]
  %s6 = scalar_lea.smem %s0, 3
  %s7 = sld [smem:[%s6]]
  %s8 = scalar_lea.smem %s0, 4
  %s9 = sld [smem:[%s8]]
  %s10 = scalar_lea.smem %s0, 5
  %s11 = sld [smem:[%s10]]
  %s12 = scalar_lea.smem %s0, 6
  %s13 = sld [smem:[%s12]]
  %s14 = scalar_lea.smem %s0, 7
  %s15 = sld [smem:[%s14]]
  %s16 = scalar_lea.smem %s0, 8
  %s17 = sld [smem:[%s16]]
  %s18 = scalar_lea.smem %s0, 9
  %s19 = sld [smem:[%s18]]
  %s20 = scalar_lea.smem %s0, 10
  %s21 = sld [smem:[%s20]]
  %s22 = scalar_lea.smem %s0, 11
  %s23 = sld [smem:[%s22]]
  %s24 = scalar_lea.smem %s0, 12
  %s25 = sld [smem:[%s24]]
  %s26 = scalar_lea.smem %s0, 13
  %s27 = sld [smem:[%s26]]
  %s28 = scalar_lea.smem %s0, 14
  %s29 = sld [smem:[%s28]]
  %s30 = scalar_lea.smem %s0, 15
  %s31 = sld [smem:[%s30]]
  %s32 = scalar_lea.smem %s0, 16
  %s33 = sld [smem:[%s32]]
  %s34 = scalar_lea.smem %s0, 17
  %s35 = sld [smem:[%s34]]
  %s36 = scalar_lea.smem %s0, 18
  %s37 = sld [smem:[%s36]]
  %s38 = scalar_lea.smem %s0, 19
  %s39 = sld [smem:[%s38]]
  %s40 = scalar_lea.smem %s0, 20
  %s41 = sld [smem:[%s40]]
  %s42 = scalar_lea.smem %s0, 21
  %s43 = sld [smem:[%s42]]
  %s44 = scalar_lea.smem %s0, 22
  %s45 = sld [smem:[%s44]]
  %s46 = scalar_lea.smem %s0, 23
  %s47 = sld [smem:[%s46]]
  %s48 = scalar_lea.smem %s0, 24
  %s49 = sld [smem:[%s48]]
  %s50 = scalar_lea.smem %s0, 25
  %s51 = sld [smem:[%s50]]
  %s52 = scalar_lea.smem %s0, 26
  %s53 = sld [smem:[%s52]]
  %s54 = scalar_lea.smem %s0, 27
  %s55 = sld [smem:[%s54]]
  %s56 = scalar_lea.smem %s0, 28
  %s57 = sld [smem:[%s56]]
  %s58 = scalar_lea.smem %s0, 29
  %s59 = sld [smem:[%s58]]
  %s60 = scalar_lea.smem %s0, 30
  %s61 = sld [smem:[%s60]]
  %s62 = scalar_lea.smem %s0, 31
  %s63 = sld [smem:[%s62]]
  %s64 = scalar_lea.smem %s0, 32
  %s65 = sld [smem:[%s64]]
  %s66 = scalar_lea.smem %s0, 33
  %s67 = sld [smem:[%s66]]
  %s68 = scalar_lea.smem %s0, 34
  %s69 = sld [smem:[%s68]]
  %s70 = scalar_lea.smem %s0, 35
  %s71 = sld [smem:[%s70]]
  %s72 = scalar_lea.smem %s0, 36
  %s73 = sld [smem:[%s72]]
  %s74 = scalar_lea.smem %s0, 37
  %s75 = sld [smem:[%s74]]
  %s76 = scalar_lea.smem %s0, 38
  %s77 = sld [smem:[%s76]]
  %s78 = scalar_lea.smem %s0, 39
  %s79 = sld [smem:[%s78]]
  %s80 = scalar_lea.smem %s0, 40
  %s81 = sld [smem:[%s80]]
  %s82 = scalar_lea.smem %s0, 41
  %s83 = sld [smem:[%s82]]
  %s84 = scalar_lea.smem %s0, 42
  %s85 = sld [smem:[%s84]]
  %s86 = sld [smem:[#allocation0]]
  $region205: #{_lambda_.1} parent=0
    _
  %s88 = ssub.s32 1, %s86
  %s89 = scalar_select 0, %s88, %s86
  $region1: #{_lambda_.1} parent=0
    #allocation8 [shape = 'u8[1024]{0}', space=vmem, size = 0x400, scoped, tag = 'input window, operand 41, single buffered']
    #allocation9 [shape = 's32[2]{0}', space=sflag, size = 0x8, scoped, tag = 'scoped memory for _lambda_.1']
    #allocation10 [shape = 's32[2]{0}', space=sflag, size = 0x8, scoped, tag = 'scoped memory for _lambda_.1']
    #allocation11 [shape = 'u8[1024]{0}', space=vmem, size = 0x400, scoped, tag = 'output window, operand 0']
    %90 = vsyncpa [#allocation9], 0
    %91 = vsyncpa [#allocation10], 0
    %s92 = scalar_lea.sflag [#allocation10], 1
    %93 = vsyncpa %s92, 0
    loop: start=0, step=1, limit=4
    $region2: #{_lambda_.1} parent=1 // loop_pre_header
      _
    $region3: #{_lambda_.1} parent=1 // loop_header
      %s95 = sphi 0, %s99
      %p96 = scmp.ge.s32.totalorder %s95, 4
      %s105 = sphi 0, %s107
      %s108 = sphi 0, %s105
      %s109 = sphi 0, %s108
      %s125 = sphi 0, %s109
      %s129 = sphi 0, %s129
      %s131 = sphi 0, %s129
      %s132 = sphi 0, %s131
      %s146 = sphi 0, %s132
      %s150 = sphi 0, %s150
      %s152 = sphi 0, %s150
      %s153 = sphi 0, %s152
      %s167 = sphi 0, %s153
      %s171 = sphi 0, %s171
      %s173 = sphi 0, %s171
      %s174 = sphi 0, %s173
      %s188 = sphi 0, %s174
      %s192 = sphi 0, %s192
      %s194 = sphi 0, %s192
      %s195 = sphi 0, %s194
      %s209 = sphi 0, %s195
      %s213 = sphi 0, %s213
      %s215 = sphi 0, %s213
      %s216 = sphi 0, %s215
      %s230 = sphi 0, %s216
      %s234 = sphi 0, %s234
      %s236 = sphi 0, %s234
      %s237 = sphi 0, %s236
      %s251 = sphi 0, %s237
      %s255 = sphi 0, %s255
      %s257 = sphi 0, %s255
      %s258 = sphi 0, %s257
      %s272 = sphi 0, %s258
      %s276 = sphi 0, %s276
      %s278 = sphi 0, %s276
      %s279 = sphi 0, %s278
      %s293 = sphi 0, %s279
      %s297 = sphi 0, %s297
      %s299 = sphi 0, %s297
      %s300 = sphi 0, %s299
      %s314 = sphi 0, %s300
      %s318 = sphi 0, %s318
      %s320 = sphi 0, %s318
      %s321 = sphi 0, %s320
      %s335 = sphi 0, %s321
      %s339 = sphi 0, %s339
      %s341 = sphi 0, %s339
      %s342 = sphi 0, %s341
      %s356 = sphi 0, %s342
      %s360 = sphi 0, %s360
      %s362 = sphi 0, %s360
      %s363 = sphi 0, %s362
      %s377 = sphi 0, %s363
      %s381 = sphi 0, %s381
      %s383 = sphi 0, %s381
      %s384 = sphi 0, %s383
      %s398 = sphi 0, %s384
      %s402 = sphi 0, %s402
      %s404 = sphi 0, %s402
      %s405 = sphi 0, %s404
      %s419 = sphi 0, %s405
      %s423 = sphi 0, %s423
      %s425 = sphi 0, %s423
      %s426 = sphi 0, %s425
      %s440 = sphi 0, %s426
      %s444 = sphi 0, %s444
      %s446 = sphi 0, %s444
      %s447 = sphi 0, %s446
      %s461 = sphi 0, %s447
      %s465 = sphi 0, %s465
      %s467 = sphi 0, %s465
      %s468 = sphi 0, %s467
      %s482 = sphi 0, %s468
      %s486 = sphi 0, %s486
      %s488 = sphi 0, %s486
      %s489 = sphi 0, %s488
      %s503 = sphi 0, %s489
      %s507 = sphi 0, %s507
      %s509 = sphi 0, %s507
      %s510 = sphi 0, %s509
      %s524 = sphi 0, %s510
      %s528 = sphi 0, %s528
      %s530 = sphi 0, %s528
      %s531 = sphi 0, %s530
      %s545 = sphi 0, %s531
      %s549 = sphi 0, %s549
      %s551 = sphi 0, %s549
      %s552 = sphi 0, %s551
      %s566 = sphi 0, %s552
      %s570 = sphi 0, %s570
      %s572 = sphi 0, %s570
      %s573 = sphi 0, %s572
      %s587 = sphi 0, %s573
      %s591 = sphi 0, %s591
      %s593 = sphi 0, %s591
      %s594 = sphi 0, %s593
      %s608 = sphi 0, %s594
      %s612 = sphi 0, %s612
      %s614 = sphi 0, %s612
      %s615 = sphi 0, %s614
      %s629 = sphi 0, %s615
      %s633 = sphi 0, %s633
      %s635 = sphi 0, %s633
      %s636 = sphi 0, %s635
      %s650 = sphi 0, %s636
      %s654 = sphi 0, %s654
      %s656 = sphi 0, %s654
      %s657 = sphi 0, %s656
      %s671 = sphi 0, %s657
      %s675 = sphi 0, %s675
      %s677 = sphi 0, %s675
      %s678 = sphi 0, %s677
      %s692 = sphi 0, %s678
      %s696 = sphi 0, %s696
      %s698 = sphi 0, %s696
      %s699 = sphi 0, %s698
      %s713 = sphi 0, %s699
      %s717 = sphi 0, %s717
      %s719 = sphi 0, %s717
      %s720 = sphi 0, %s719
      %s734 = sphi 0, %s720
      %s738 = sphi 0, %s738
      %s740 = sphi 0, %s738
      %s741 = sphi 0, %s740
      %s755 = sphi 0, %s741
      %s759 = sphi 0, %s759
      %s761 = sphi 0, %s759
      %s762 = sphi 0, %s761
      %s776 = sphi 0, %s762
      %s780 = sphi 0, %s780
      %s782 = sphi 0, %s780
      %s783 = sphi 0, %s782
      %s797 = sphi 0, %s783
      %s801 = sphi 0, %s801
      %s803 = sphi 0, %s801
      %s804 = sphi 0, %s803
      %s818 = sphi 0, %s804
      %s822 = sphi 0, %s822
      %s824 = sphi 0, %s822
      %s825 = sphi 0, %s824
      %s839 = sphi 0, %s825
      %s843 = sphi 0, %s843
      %s845 = sphi 0, %s843
      %s846 = sphi 0, %s845
      %s860 = sphi 0, %s846
      %s864 = sphi 0, %s864
      %s866 = sphi 0, %s864
      %s867 = sphi 0, %s866
      %s881 = sphi 0, %s867
      %s885 = sphi 0, %s885
      %s887 = sphi 0, %s885
      %s888 = sphi 0, %s887
      %s902 = sphi 0, %s888
      %s906 = sphi 0, %s906
      %s908 = sphi 0, %s906
      %s909 = sphi 0, %s908
      %s923 = sphi 0, %s909
      %s927 = sphi 0, %s927
      %s929 = sphi 0, %s927
      %s930 = sphi 0, %s929
      %s944 = sphi 0, %s930
      %s948 = sphi 0, %s948
      %s950 = sphi 0, %s948
      %s951 = sphi 0, %s950
      %s965 = sphi 0, %s951
      %s969 = sphi 0, %s969
      %s971 = sphi 0, %s969
      %s972 = sphi 0, %s971
      %s986 = sphi 0, %s972
      %s992 = sphi 0, %s994
      %s995 = sphi 0, %s992
      %s996 = sphi 0, %s995
      %s1012 = sphi 0, %s996
    $region4: #{_lambda_.1} parent=1 // loop_header_branch
      %98 = sbr.rel (%p96) target = $region8
    $region5: #{_lambda_.1} parent=1 // loop_body
      %s100 = ssub.s32 %s95, 1
      %s101 = ssub.s32 %s95, 2
      %s102 = sadd.s32 %s95, 1
      %s103 = ssub.s32 %s95, %s102
      %p104 = scmp.eq.s32.totalorder %s103, 0
      %s106 = sadd.s32 %s105, 1
      %s107 = scalar_select %p104, %s105, %s106
      %p110 = pneg %p104
      %p111 = scmp.eq.s32.totalorder %s95, 1
      %p112 = por %p110, %p111
      %p113 = scmp.ne.s32.totalorder %s105, %s108
      %p114 = scmp.eq.s32.totalorder %s95, 0
      %p115 = por %p113, %p114
      %p116 = scmp.ne.s32.totalorder %s105, %s108
      %p117 = scmp.eq.s32.totalorder %s100, 1
      %p118 = por %p116, %p117
      %p119 = scmp.ne.s32.totalorder %s108, %s109
      %p120 = scmp.eq.s32.totalorder %s100, 0
      %p121 = por %p119, %p120
      %p122 = scmp.ne.s32.totalorder %s108, %s109
      %p123 = scmp.eq.s32.totalorder %s101, 1
      %p124 = por %p122, %p123
      %p126 = scmp.ne.s32.totalorder %s109, %s125
      %p127 = scmp.eq.s32.totalorder %s101, 0
      %p128 = por %p126, %p127
      %s130 = sadd.s32 %s129, 1
      %p133 = scmp.eq.s32.totalorder %s95, 1
      %p134 = scmp.ne.s32.totalorder %s129, %s131
      %p135 = scmp.eq.s32.totalorder %s95, 0
      %p136 = por %p134, %p135
      %p137 = scmp.ne.s32.totalorder %s129, %s131
      %p138 = scmp.eq.s32.totalorder %s100, 1
      %p139 = por %p137, %p138
      %p140 = scmp.ne.s32.totalorder %s131, %s132
      %p141 = scmp.eq.s32.totalorder %s100, 0
      %p142 = por %p140, %p141
      %p143 = scmp.ne.s32.totalorder %s131, %s132
      %p144 = scmp.eq.s32.totalorder %s101, 1
      %p145 = por %p143, %p144
      %p147 = scmp.ne.s32.totalorder %s132, %s146
      %p148 = scmp.eq.s32.totalorder %s101, 0
      %p149 = por %p147, %p148
      %s151 = sadd.s32 %s150, 1
      %p154 = scmp.eq.s32.totalorder %s95, 1
      %p155 = scmp.ne.s32.totalorder %s150, %s152
      %p156 = scmp.eq.s32.totalorder %s95, 0
      %p157 = por %p155, %p156
      %p158 = scmp.ne.s32.totalorder %s150, %s152
      %p159 = scmp.eq.s32.totalorder %s100, 1
      %p160 = por %p158, %p159
      %p161 = scmp.ne.s32.totalorder %s152, %s153
      %p162 = scmp.eq.s32.totalorder %s100, 0
      %p163 = por %p161, %p162
      %p164 = scmp.ne.s32.totalorder %s152, %s153
      %p165 = scmp.eq.s32.totalorder %s101, 1
      %p166 = por %p164, %p165
      %p168 = scmp.ne.s32.totalorder %s153, %s167
      %p169 = scmp.eq.s32.totalorder %s101, 0
      %p170 = por %p168, %p169
      %s172 = sadd.s32 %s171, 1
      %p175 = scmp.eq.s32.totalorder %s95, 1
      %p176 = scmp.ne.s32.totalorder %s171, %s173
      %p177 = scmp.eq.s32.totalorder %s95, 0
      %p178 = por %p176, %p177
      %p179 = scmp.ne.s32.totalorder %s171, %s173
      %p180 = scmp.eq.s32.totalorder %s100, 1
      %p181 = por %p179, %p180
      %p182 = scmp.ne.s32.totalorder %s173, %s174
      %p183 = scmp.eq.s32.totalorder %s100, 0
      %p184 = por %p182, %p183
      %p185 = scmp.ne.s32.totalorder %s173, %s174
      %p186 = scmp.eq.s32.totalorder %s101, 1
      %p187 = por %p185, %p186
      %p189 = scmp.ne.s32.totalorder %s174, %s188
      %p190 = scmp.eq.s32.totalorder %s101, 0
      %p191 = por %p189, %p190
      %s193 = sadd.s32 %s192, 1
      %p196 = scmp.eq.s32.totalorder %s95, 1
      %p197 = scmp.ne.s32.totalorder %s192, %s194
      %p198 = scmp.eq.s32.totalorder %s95, 0
      %p199 = por %p197, %p198
      %p200 = scmp.ne.s32.totalorder %s192, %s194
      %p201 = scmp.eq.s32.totalorder %s100, 1
      %p202 = por %p200, %p201
      %p203 = scmp.ne.s32.totalorder %s194, %s195
      %p204 = scmp.eq.s32.totalorder %s100, 0
      %p205 = por %p203, %p204
      %p206 = scmp.ne.s32.totalorder %s194, %s195
      %p207 = scmp.eq.s32.totalorder %s101, 1
      %p208 = por %p206, %p207
      %p210 = scmp.ne.s32.totalorder %s195, %s209
      %p211 = scmp.eq.s32.totalorder %s101, 0
      %p212 = por %p210, %p211
      %s214 = sadd.s32 %s213, 1
      %p217 = scmp.eq.s32.totalorder %s95, 1
      %p218 = scmp.ne.s32.totalorder %s213, %s215
      %p219 = scmp.eq.s32.totalorder %s95, 0
      %p220 = por %p218, %p219
      %p221 = scmp.ne.s32.totalorder %s213, %s215
      %p222 = scmp.eq.s32.totalorder %s100, 1
      %p223 = por %p221, %p222
      %p224 = scmp.ne.s32.totalorder %s215, %s216
      %p225 = scmp.eq.s32.totalorder %s100, 0
      %p226 = por %p224, %p225
      %p227 = scmp.ne.s32.totalorder %s215, %s216
      %p228 = scmp.eq.s32.totalorder %s101, 1
      %p229 = por %p227, %p228
      %p231 = scmp.ne.s32.totalorder %s216, %s230
      %p232 = scmp.eq.s32.totalorder %s101, 0
      %p233 = por %p231, %p232
      %s235 = sadd.s32 %s234, 1
      %p238 = scmp.eq.s32.totalorder %s95, 1
      %p239 = scmp.ne.s32.totalorder %s234, %s236
      %p240 = scmp.eq.s32.totalorder %s95, 0
      %p241 = por %p239, %p240
      %p242 = scmp.ne.s32.totalorder %s234, %s236
      %p243 = scmp.eq.s32.totalorder %s100, 1
      %p244 = por %p242, %p243
      %p245 = scmp.ne.s32.totalorder %s236, %s237
      %p246 = scmp.eq.s32.totalorder %s100, 0
      %p247 = por %p245, %p246
      %p248 = scmp.ne.s32.totalorder %s236, %s237
      %p249 = scmp.eq.s32.totalorder %s101, 1
      %p250 = por %p248, %p249
      %p252 = scmp.ne.s32.totalorder %s237, %s251
      %p253 = scmp.eq.s32.totalorder %s101, 0
      %p254 = por %p252, %p253
      %s256 = sadd.s32 %s255, 1
      %p259 = scmp.eq.s32.totalorder %s95, 1
      %p260 = scmp.ne.s32.totalorder %s255, %s257
      %p261 = scmp.eq.s32.totalorder %s95, 0
      %p262 = por %p260, %p261
      %p263 = scmp.ne.s32.totalorder %s255, %s257
      %p264 = scmp.eq.s32.totalorder %s100, 1
      %p265 = por %p263, %p264
      %p266 = scmp.ne.s32.totalorder %s257, %s258
      %p267 = scmp.eq.s32.totalorder %s100, 0
      %p268 = por %p266, %p267
      %p269 = scmp.ne.s32.totalorder %s257, %s258
      %p270 = scmp.eq.s32.totalorder %s101, 1
      %p271 = por %p269, %p270
      %p273 = scmp.ne.s32.totalorder %s258, %s272
      %p274 = scmp.eq.s32.totalorder %s101, 0
      %p275 = por %p273, %p274
      %s277 = sadd.s32 %s276, 1
      %p280 = scmp.eq.s32.totalorder %s95, 1
      %p281 = scmp.ne.s32.totalorder %s276, %s278
      %p282 = scmp.eq.s32.totalorder %s95, 0
      %p283 = por %p281, %p282
      %p284 = scmp.ne.s32.totalorder %s276, %s278
      %p285 = scmp.eq.s32.totalorder %s100, 1
      %p286 = por %p284, %p285
      %p287 = scmp.ne.s32.totalorder %s278, %s279
      %p288 = scmp.eq.s32.totalorder %s100, 0
      %p289 = por %p287, %p288
      %p290 = scmp.ne.s32.totalorder %s278, %s279
      %p291 = scmp.eq.s32.totalorder %s101, 1
      %p292 = por %p290, %p291
      %p294 = scmp.ne.s32.totalorder %s279, %s293
      %p295 = scmp.eq.s32.totalorder %s101, 0
      %p296 = por %p294, %p295
      %s298 = sadd.s32 %s297, 1
      %p301 = scmp.eq.s32.totalorder %s95, 1
      %p302 = scmp.ne.s32.totalorder %s297, %s299
      %p303 = scmp.eq.s32.totalorder %s95, 0
      %p304 = por %p302, %p303
      %p305 = scmp.ne.s32.totalorder %s297, %s299
      %p306 = scmp.eq.s32.totalorder %s100, 1
      %p307 = por %p305, %p306
      %p308 = scmp.ne.s32.totalorder %s299, %s300
      %p309 = scmp.eq.s32.totalorder %s100, 0
      %p310 = por %p308, %p309
      %p311 = scmp.ne.s32.totalorder %s299, %s300
      %p312 = scmp.eq.s32.totalorder %s101, 1
      %p313 = por %p311, %p312
      %p315 = scmp.ne.s32.totalorder %s300, %s314
      %p316 = scmp.eq.s32.totalorder %s101, 0
      %p317 = por %p315, %p316
      %s319 = sadd.s32 %s318, 1
      %p322 = scmp.eq.s32.totalorder %s95, 1
      %p323 = scmp.ne.s32.totalorder %s318, %s320
      %p324 = scmp.eq.s32.totalorder %s95, 0
      %p325 = por %p323, %p324
      %p326 = scmp.ne.s32.totalorder %s318, %s320
      %p327 = scmp.eq.s32.totalorder %s100, 1
      %p328 = por %p326, %p327
      %p329 = scmp.ne.s32.totalorder %s320, %s321
      %p330 = scmp.eq.s32.totalorder %s100, 0
      %p331 = por %p329, %p330
      %p332 = scmp.ne.s32.totalorder %s320, %s321
      %p333 = scmp.eq.s32.totalorder %s101, 1
      %p334 = por %p332, %p333
      %p336 = scmp.ne.s32.totalorder %s321, %s335
      %p337 = scmp.eq.s32.totalorder %s101, 0
      %p338 = por %p336, %p337
      %s340 = sadd.s32 %s339, 1
      %p343 = scmp.eq.s32.totalorder %s95, 1
      %p344 = scmp.ne.s32.totalorder %s339, %s341
      %p345 = scmp.eq.s32.totalorder %s95, 0
      %p346 = por %p344, %p345
      %p347 = scmp.ne.s32.totalorder %s339, %s341
      %p348 = scmp.eq.s32.totalorder %s100, 1
      %p349 = por %p347, %p348
      %p350 = scmp.ne.s32.totalorder %s341, %s342
      %p351 = scmp.eq.s32.totalorder %s100, 0
      %p352 = por %p350, %p351
      %p353 = scmp.ne.s32.totalorder %s341, %s342
      %p354 = scmp.eq.s32.totalorder %s101, 1
      %p355 = por %p353, %p354
      %p357 = scmp.ne.s32.totalorder %s342, %s356
      %p358 = scmp.eq.s32.totalorder %s101, 0
      %p359 = por %p357, %p358
      %s361 = sadd.s32 %s360, 1
      %p364 = scmp.eq.s32.totalorder %s95, 1
      %p365 = scmp.ne.s32.totalorder %s360, %s362
      %p366 = scmp.eq.s32.totalorder %s95, 0
      %p367 = por %p365, %p366
      %p368 = scmp.ne.s32.totalorder %s360, %s362
      %p369 = scmp.eq.s32.totalorder %s100, 1
      %p370 = por %p368, %p369
      %p371 = scmp.ne.s32.totalorder %s362, %s363
      %p372 = scmp.eq.s32.totalorder %s100, 0
      %p373 = por %p371, %p372
      %p374 = scmp.ne.s32.totalorder %s362, %s363
      %p375 = scmp.eq.s32.totalorder %s101, 1
      %p376 = por %p374, %p375
      %p378 = scmp.ne.s32.totalorder %s363, %s377
      %p379 = scmp.eq.s32.totalorder %s101, 0
      %p380 = por %p378, %p379
      %s382 = sadd.s32 %s381, 1
      %p385 = scmp.eq.s32.totalorder %s95, 1
      %p386 = scmp.ne.s32.totalorder %s381, %s383
      %p387 = scmp.eq.s32.totalorder %s95, 0
      %p388 = por %p386, %p387
      %p389 = scmp.ne.s32.totalorder %s381, %s383
      %p390 = scmp.eq.s32.totalorder %s100, 1
      %p391 = por %p389, %p390
      %p392 = scmp.ne.s32.totalorder %s383, %s384
      %p393 = scmp.eq.s32.totalorder %s100, 0
      %p394 = por %p392, %p393
      %p395 = scmp.ne.s32.totalorder %s383, %s384
      %p396 = scmp.eq.s32.totalorder %s101, 1
      %p397 = por %p395, %p396
      %p399 = scmp.ne.s32.totalorder %s384, %s398
      %p400 = scmp.eq.s32.totalorder %s101, 0
      %p401 = por %p399, %p400
      %s403 = sadd.s32 %s402, 1
      %p406 = scmp.eq.s32.totalorder %s95, 1
      %p407 = scmp.ne.s32.totalorder %s402, %s404
      %p408 = scmp.eq.s32.totalorder %s95, 0
      %p409 = por %p407, %p408
      %p410 = scmp.ne.s32.totalorder %s402, %s404
      %p411 = scmp.eq.s32.totalorder %s100, 1
      %p412 = por %p410, %p411
      %p413 = scmp.ne.s32.totalorder %s404, %s405
      %p414 = scmp.eq.s32.totalorder %s100, 0
      %p415 = por %p413, %p414
      %p416 = scmp.ne.s32.totalorder %s404, %s405
      %p417 = scmp.eq.s32.totalorder %s101, 1
      %p418 = por %p416, %p417
      %p420 = scmp.ne.s32.totalorder %s405, %s419
      %p421 = scmp.eq.s32.totalorder %s101, 0
      %p422 = por %p420, %p421
      %s424 = sadd.s32 %s423, 1
      %p427 = scmp.eq.s32.totalorder %s95, 1
      %p428 = scmp.ne.s32.totalorder %s423, %s425
      %p429 = scmp.eq.s32.totalorder %s95, 0
      %p430 = por %p428, %p429
      %p431 = scmp.ne.s32.totalorder %s423, %s425
      %p432 = scmp.eq.s32.totalorder %s100, 1
      %p433 = por %p431, %p432
      %p434 = scmp.ne.s32.totalorder %s425, %s426
      %p435 = scmp.eq.s32.totalorder %s100, 0
      %p436 = por %p434, %p435
      %p437 = scmp.ne.s32.totalorder %s425, %s426
      %p438 = scmp.eq.s32.totalorder %s101, 1
      %p439 = por %p437, %p438
      %p441 = scmp.ne.s32.totalorder %s426, %s440
      %p442 = scmp.eq.s32.totalorder %s101, 0
      %p443 = por %p441, %p442
      %s445 = sadd.s32 %s444, 1
      %p448 = scmp.eq.s32.totalorder %s95, 1
      %p449 = scmp.ne.s32.totalorder %s444, %s446
      %p450 = scmp.eq.s32.totalorder %s95, 0
      %p451 = por %p449, %p450
      %p452 = scmp.ne.s32.totalorder %s444, %s446
      %p453 = scmp.eq.s32.totalorder %s100, 1
      %p454 = por %p452, %p453
      %p455 = scmp.ne.s32.totalorder %s446, %s447
      %p456 = scmp.eq.s32.totalorder %s100, 0
      %p457 = por %p455, %p456
      %p458 = scmp.ne.s32.totalorder %s446, %s447
      %p459 = scmp.eq.s32.totalorder %s101, 1
      %p460 = por %p458, %p459
      %p462 = scmp.ne.s32.totalorder %s447, %s461
      %p463 = scmp.eq.s32.totalorder %s101, 0
      %p464 = por %p462, %p463
      %s466 = sadd.s32 %s465, 1
      %p469 = scmp.eq.s32.totalorder %s95, 1
      %p470 = scmp.ne.s32.totalorder %s465, %s467
      %p471 = scmp.eq.s32.totalorder %s95, 0
      %p472 = por %p470, %p471
      %p473 = scmp.ne.s32.totalorder %s465, %s467
      %p474 = scmp.eq.s32.totalorder %s100, 1
      %p475 = por %p473, %p474
      %p476 = scmp.ne.s32.totalorder %s467, %s468
      %p477 = scmp.eq.s32.totalorder %s100, 0
      %p478 = por %p476, %p477
      %p479 = scmp.ne.s32.totalorder %s467, %s468
      %p480 = scmp.eq.s32.totalorder %s101, 1
      %p481 = por %p479, %p480
      %p483 = scmp.ne.s32.totalorder %s468, %s482
      %p484 = scmp.eq.s32.totalorder %s101, 0
      %p485 = por %p483, %p484
      %s487 = sadd.s32 %s486, 1
      %p490 = scmp.eq.s32.totalorder %s95, 1
      %p491 = scmp.ne.s32.totalorder %s486, %s488
      %p492 = scmp.eq.s32.totalorder %s95, 0
      %p493 = por %p491, %p492
      %p494 = scmp.ne.s32.totalorder %s486, %s488
      %p495 = scmp.eq.s32.totalorder %s100, 1
      %p496 = por %p494, %p495
      %p497 = scmp.ne.s32.totalorder %s488, %s489
      %p498 = scmp.eq.s32.totalorder %s100, 0
      %p499 = por %p497, %p498
      %p500 = scmp.ne.s32.totalorder %s488, %s489
      %p501 = scmp.eq.s32.totalorder %s101, 1
      %p502 = por %p500, %p501
      %p504 = scmp.ne.s32.totalorder %s489, %s503
      %p505 = scmp.eq.s32.totalorder %s101, 0
      %p506 = por %p504, %p505
      %s508 = sadd.s32 %s507, 1
      %p511 = scmp.eq.s32.totalorder %s95, 1
      %p512 = scmp.ne.s32.totalorder %s507, %s509
      %p513 = scmp.eq.s32.totalorder %s95, 0
      %p514 = por %p512, %p513
      %p515 = scmp.ne.s32.totalorder %s507, %s509
      %p516 = scmp.eq.s32.totalorder %s100, 1
      %p517 = por %p515, %p516
      %p518 = scmp.ne.s32.totalorder %s509, %s510
      %p519 = scmp.eq.s32.totalorder %s100, 0
      %p520 = por %p518, %p519
      %p521 = scmp.ne.s32.totalorder %s509, %s510
      %p522 = scmp.eq.s32.totalorder %s101, 1
      %p523 = por %p521, %p522
      %p525 = scmp.ne.s32.totalorder %s510, %s524
      %p526 = scmp.eq.s32.totalorder %s101, 0
      %p527 = por %p525, %p526
      %s529 = sadd.s32 %s528, 1
      %p532 = scmp.eq.s32.totalorder %s95, 1
      %p533 = scmp.ne.s32.totalorder %s528, %s530
      %p534 = scmp.eq.s32.totalorder %s95, 0
      %p535 = por %p533, %p534
      %p536 = scmp.ne.s32.totalorder %s528, %s530
      %p537 = scmp.eq.s32.totalorder %s100, 1
      %p538 = por %p536, %p537
      %p539 = scmp.ne.s32.totalorder %s530, %s531
      %p540 = scmp.eq.s32.totalorder %s100, 0
      %p541 = por %p539, %p540
      %p542 = scmp.ne.s32.totalorder %s530, %s531
      %p543 = scmp.eq.s32.totalorder %s101, 1
      %p544 = por %p542, %p543
      %p546 = scmp.ne.s32.totalorder %s531, %s545
      %p547 = scmp.eq.s32.totalorder %s101, 0
      %p548 = por %p546, %p547
      %s550 = sadd.s32 %s549, 1
      %p553 = scmp.eq.s32.totalorder %s95, 1
      %p554 = scmp.ne.s32.totalorder %s549, %s551
      %p555 = scmp.eq.s32.totalorder %s95, 0
      %p556 = por %p554, %p555
      %p557 = scmp.ne.s32.totalorder %s549, %s551
      %p558 = scmp.eq.s32.totalorder %s100, 1
      %p559 = por %p557, %p558
      %p560 = scmp.ne.s32.totalorder %s551, %s552
      %p561 = scmp.eq.s32.totalorder %s100, 0
      %p562 = por %p560, %p561
      %p563 = scmp.ne.s32.totalorder %s551, %s552
      %p564 = scmp.eq.s32.totalorder %s101, 1
      %p565 = por %p563, %p564
      %p567 = scmp.ne.s32.totalorder %s552, %s566
      %p568 = scmp.eq.s32.totalorder %s101, 0
      %p569 = por %p567, %p568
      %s571 = sadd.s32 %s570, 1
      %p574 = scmp.eq.s32.totalorder %s95, 1
      %p575 = scmp.ne.s32.totalorder %s570, %s572
      %p576 = scmp.eq.s32.totalorder %s95, 0
      %p577 = por %p575, %p576
      %p578 = scmp.ne.s32.totalorder %s570, %s572
      %p579 = scmp.eq.s32.totalorder %s100, 1
      %p580 = por %p578, %p579
      %p581 = scmp.ne.s32.totalorder %s572, %s573
      %p582 = scmp.eq.s32.totalorder %s100, 0
      %p583 = por %p581, %p582
      %p584 = scmp.ne.s32.totalorder %s572, %s573
      %p585 = scmp.eq.s32.totalorder %s101, 1
      %p586 = por %p584, %p585
      %p588 = scmp.ne.s32.totalorder %s573, %s587
      %p589 = scmp.eq.s32.totalorder %s101, 0
      %p590 = por %p588, %p589
      %s592 = sadd.s32 %s591, 1
      %p595 = scmp.eq.s32.totalorder %s95, 1
      %p596 = scmp.ne.s32.totalorder %s591, %s593
      %p597 = scmp.eq.s32.totalorder %s95, 0
      %p598 = por %p596, %p597
      %p599 = scmp.ne.s32.totalorder %s591, %s593
      %p600 = scmp.eq.s32.totalorder %s100, 1
      %p601 = por %p599, %p600
      %p602 = scmp.ne.s32.totalorder %s593, %s594
      %p603 = scmp.eq.s32.totalorder %s100, 0
      %p604 = por %p602, %p603
      %p605 = scmp.ne.s32.totalorder %s593, %s594
      %p606 = scmp.eq.s32.totalorder %s101, 1
      %p607 = por %p605, %p606
      %p609 = scmp.ne.s32.totalorder %s594, %s608
      %p610 = scmp.eq.s32.totalorder %s101, 0
      %p611 = por %p609, %p610
      %s613 = sadd.s32 %s612, 1
      %p616 = scmp.eq.s32.totalorder %s95, 1
      %p617 = scmp.ne.s32.totalorder %s612, %s614
      %p618 = scmp.eq.s32.totalorder %s95, 0
      %p619 = por %p617, %p618
      %p620 = scmp.ne.s32.totalorder %s612, %s614
      %p621 = scmp.eq.s32.totalorder %s100, 1
      %p622 = por %p620, %p621
      %p623 = scmp.ne.s32.totalorder %s614, %s615
      %p624 = scmp.eq.s32.totalorder %s100, 0
      %p625 = por %p623, %p624
      %p626 = scmp.ne.s32.totalorder %s614, %s615
      %p627 = scmp.eq.s32.totalorder %s101, 1
      %p628 = por %p626, %p627
      %p630 = scmp.ne.s32.totalorder %s615, %s629
      %p631 = scmp.eq.s32.totalorder %s101, 0
      %p632 = por %p630, %p631
      %s634 = sadd.s32 %s633, 1
      %p637 = scmp.eq.s32.totalorder %s95, 1
      %p638 = scmp.ne.s32.totalorder %s633, %s635
      %p639 = scmp.eq.s32.totalorder %s95, 0
      %p640 = por %p638, %p639
      %p641 = scmp.ne.s32.totalorder %s633, %s635
      %p642 = scmp.eq.s32.totalorder %s100, 1
      %p643 = por %p641, %p642
      %p644 = scmp.ne.s32.totalorder %s635, %s636
      %p645 = scmp.eq.s32.totalorder %s100, 0
      %p646 = por %p644, %p645
      %p647 = scmp.ne.s32.totalorder %s635, %s636
      %p648 = scmp.eq.s32.totalorder %s101, 1
      %p649 = por %p647, %p648
      %p651 = scmp.ne.s32.totalorder %s636, %s650
      %p652 = scmp.eq.s32.totalorder %s101, 0
      %p653 = por %p651, %p652
      %s655 = sadd.s32 %s654, 1
      %p658 = scmp.eq.s32.totalorder %s95, 1
      %p659 = scmp.ne.s32.totalorder %s654, %s656
      %p660 = scmp.eq.s32.totalorder %s95, 0
      %p661 = por %p659, %p660
      %p662 = scmp.ne.s32.totalorder %s654, %s656
      %p663 = scmp.eq.s32.totalorder %s100, 1
      %p664 = por %p662, %p663
      %p665 = scmp.ne.s32.totalorder %s656, %s657
      %p666 = scmp.eq.s32.totalorder %s100, 0
      %p667 = por %p665, %p666
      %p668 = scmp.ne.s32.totalorder %s656, %s657
      %p669 = scmp.eq.s32.totalorder %s101, 1
      %p670 = por %p668, %p669
      %p672 = scmp.ne.s32.totalorder %s657, %s671
      %p673 = scmp.eq.s32.totalorder %s101, 0
      %p674 = por %p672, %p673
      %s676 = sadd.s32 %s675, 1
      %p679 = scmp.eq.s32.totalorder %s95, 1
      %p680 = scmp.ne.s32.totalorder %s675, %s677
      %p681 = scmp.eq.s32.totalorder %s95, 0
      %p682 = por %p680, %p681
      %p683 = scmp.ne.s32.totalorder %s675, %s677
      %p684 = scmp.eq.s32.totalorder %s100, 1
      %p685 = por %p683, %p684
      %p686 = scmp.ne.s32.totalorder %s677, %s678
      %p687 = scmp.eq.s32.totalorder %s100, 0
      %p688 = por %p686, %p687
      %p689 = scmp.ne.s32.totalorder %s677, %s678
      %p690 = scmp.eq.s32.totalorder %s101, 1
      %p691 = por %p689, %p690
      %p693 = scmp.ne.s32.totalorder %s678, %s692
      %p694 = scmp.eq.s32.totalorder %s101, 0
      %p695 = por %p693, %p694
      %s697 = sadd.s32 %s696, 1
      %p700 = scmp.eq.s32.totalorder %s95, 1
      %p701 = scmp.ne.s32.totalorder %s696, %s698
      %p702 = scmp.eq.s32.totalorder %s95, 0
      %p703 = por %p701, %p702
      %p704 = scmp.ne.s32.totalorder %s696, %s698
      %p705 = scmp.eq.s32.totalorder %s100, 1
      %p706 = por %p704, %p705
      %p707 = scmp.ne.s32.totalorder %s698, %s699
      %p708 = scmp.eq.s32.totalorder %s100, 0
      %p709 = por %p707, %p708
      %p710 = scmp.ne.s32.totalorder %s698, %s699
      %p711 = scmp.eq.s32.totalorder %s101, 1
      %p712 = por %p710, %p711
      %p714 = scmp.ne.s32.totalorder %s699, %s713
      %p715 = scmp.eq.s32.totalorder %s101, 0
      %p716 = por %p714, %p715
      %s718 = sadd.s32 %s717, 1
      %p721 = scmp.eq.s32.totalorder %s95, 1
      %p722 = scmp.ne.s32.totalorder %s717, %s719
      %p723 = scmp.eq.s32.totalorder %s95, 0
      %p724 = por %p722, %p723
      %p725 = scmp.ne.s32.totalorder %s717, %s719
      %p726 = scmp.eq.s32.totalorder %s100, 1
      %p727 = por %p725, %p726
      %p728 = scmp.ne.s32.totalorder %s719, %s720
      %p729 = scmp.eq.s32.totalorder %s100, 0
      %p730 = por %p728, %p729
      %p731 = scmp.ne.s32.totalorder %s719, %s720
      %p732 = scmp.eq.s32.totalorder %s101, 1
      %p733 = por %p731, %p732
      %p735 = scmp.ne.s32.totalorder %s720, %s734
      %p736 = scmp.eq.s32.totalorder %s101, 0
      %p737 = por %p735, %p736
      %s739 = sadd.s32 %s738, 1
      %p742 = scmp.eq.s32.totalorder %s95, 1
      %p743 = scmp.ne.s32.totalorder %s738, %s740
      %p744 = scmp.eq.s32.totalorder %s95, 0
      %p745 = por %p743, %p744
      %p746 = scmp.ne.s32.totalorder %s738, %s740
      %p747 = scmp.eq.s32.totalorder %s100, 1
      %p748 = por %p746, %p747
      %p749 = scmp.ne.s32.totalorder %s740, %s741
      %p750 = scmp.eq.s32.totalorder %s100, 0
      %p751 = por %p749, %p750
      %p752 = scmp.ne.s32.totalorder %s740, %s741
      %p753 = scmp.eq.s32.totalorder %s101, 1
      %p754 = por %p752, %p753
      %p756 = scmp.ne.s32.totalorder %s741, %s755
      %p757 = scmp.eq.s32.totalorder %s101, 0
      %p758 = por %p756, %p757
      %s760 = sadd.s32 %s759, 1
      %p763 = scmp.eq.s32.totalorder %s95, 1
      %p764 = scmp.ne.s32.totalorder %s759, %s761
      %p765 = scmp.eq.s32.totalorder %s95, 0
      %p766 = por %p764, %p765
      %p767 = scmp.ne.s32.totalorder %s759, %s761
      %p768 = scmp.eq.s32.totalorder %s100, 1
      %p769 = por %p767, %p768
      %p770 = scmp.ne.s32.totalorder %s761, %s762
      %p771 = scmp.eq.s32.totalorder %s100, 0
      %p772 = por %p770, %p771
      %p773 = scmp.ne.s32.totalorder %s761, %s762
      %p774 = scmp.eq.s32.totalorder %s101, 1
      %p775 = por %p773, %p774
      %p777 = scmp.ne.s32.totalorder %s762, %s776
      %p778 = scmp.eq.s32.totalorder %s101, 0
      %p779 = por %p777, %p778
      %s781 = sadd.s32 %s780, 1
      %p784 = scmp.eq.s32.totalorder %s95, 1
      %p785 = scmp.ne.s32.totalorder %s780, %s782
      %p786 = scmp.eq.s32.totalorder %s95, 0
      %p787 = por %p785, %p786
      %p788 = scmp.ne.s32.totalorder %s780, %s782
      %p789 = scmp.eq.s32.totalorder %s100, 1
      %p790 = por %p788, %p789
      %p791 = scmp.ne.s32.totalorder %s782, %s783
      %p792 = scmp.eq.s32.totalorder %s100, 0
      %p793 = por %p791, %p792
      %p794 = scmp.ne.s32.totalorder %s782, %s783
      %p795 = scmp.eq.s32.totalorder %s101, 1
      %p796 = por %p794, %p795
      %p798 = scmp.ne.s32.totalorder %s783, %s797
      %p799 = scmp.eq.s32.totalorder %s101, 0
      %p800 = por %p798, %p799
      %s802 = sadd.s32 %s801, 1
      %p805 = scmp.eq.s32.totalorder %s95, 1
      %p806 = scmp.ne.s32.totalorder %s801, %s803
      %p807 = scmp.eq.s32.totalorder %s95, 0
      %p808 = por %p806, %p807
      %p809 = scmp.ne.s32.totalorder %s801, %s803
      %p810 = scmp.eq.s32.totalorder %s100, 1
      %p811 = por %p809, %p810
      %p812 = scmp.ne.s32.totalorder %s803, %s804
      %p813 = scmp.eq.s32.totalorder %s100, 0
      %p814 = por %p812, %p813
      %p815 = scmp.ne.s32.totalorder %s803, %s804
      %p816 = scmp.eq.s32.totalorder %s101, 1
      %p817 = por %p815, %p816
      %p819 = scmp.ne.s32.totalorder %s804, %s818
      %p820 = scmp.eq.s32.totalorder %s101, 0
      %p821 = por %p819, %p820
      %s823 = sadd.s32 %s822, 1
      %p826 = scmp.eq.s32.totalorder %s95, 1
      %p827 = scmp.ne.s32.totalorder %s822, %s824
      %p828 = scmp.eq.s32.totalorder %s95, 0
      %p829 = por %p827, %p828
      %p830 = scmp.ne.s32.totalorder %s822, %s824
      %p831 = scmp.eq.s32.totalorder %s100, 1
      %p832 = por %p830, %p831
      %p833 = scmp.ne.s32.totalorder %s824, %s825
      %p834 = scmp.eq.s32.totalorder %s100, 0
      %p835 = por %p833, %p834
      %p836 = scmp.ne.s32.totalorder %s824, %s825
      %p837 = scmp.eq.s32.totalorder %s101, 1
      %p838 = por %p836, %p837
      %p840 = scmp.ne.s32.totalorder %s825, %s839
      %p841 = scmp.eq.s32.totalorder %s101, 0
      %p842 = por %p840, %p841
      %s844 = sadd.s32 %s843, 1
      %p847 = scmp.eq.s32.totalorder %s95, 1
      %p848 = scmp.ne.s32.totalorder %s843, %s845
      %p849 = scmp.eq.s32.totalorder %s95, 0
      %p850 = por %p848, %p849
      %p851 = scmp.ne.s32.totalorder %s843, %s845
      %p852 = scmp.eq.s32.totalorder %s100, 1
      %p853 = por %p851, %p852
      %p854 = scmp.ne.s32.totalorder %s845, %s846
      %p855 = scmp.eq.s32.totalorder %s100, 0
      %p856 = por %p854, %p855
      %p857 = scmp.ne.s32.totalorder %s845, %s846
      %p858 = scmp.eq.s32.totalorder %s101, 1
      %p859 = por %p857, %p858
      %p861 = scmp.ne.s32.totalorder %s846, %s860
      %p862 = scmp.eq.s32.totalorder %s101, 0
      %p863 = por %p861, %p862
      %s865 = sadd.s32 %s864, 1
      %p868 = scmp.eq.s32.totalorder %s95, 1
      %p869 = scmp.ne.s32.totalorder %s864, %s866
      %p870 = scmp.eq.s32.totalorder %s95, 0
      %p871 = por %p869, %p870
      %p872 = scmp.ne.s32.totalorder %s864, %s866
      %p873 = scmp.eq.s32.totalorder %s100, 1
      %p874 = por %p872, %p873
      %p875 = scmp.ne.s32.totalorder %s866, %s867
      %p876 = scmp.eq.s32.totalorder %s100, 0
      %p877 = por %p875, %p876
      %p878 = scmp.ne.s32.totalorder %s866, %s867
      %p879 = scmp.eq.s32.totalorder %s101, 1
      %p880 = por %p878, %p879
      %p882 = scmp.ne.s32.totalorder %s867, %s881
      %p883 = scmp.eq.s32.totalorder %s101, 0
      %p884 = por %p882, %p883
      %s886 = sadd.s32 %s885, 1
      %p889 = scmp.eq.s32.totalorder %s95, 1
      %p890 = scmp.ne.s32.totalorder %s885, %s887
      %p891 = scmp.eq.s32.totalorder %s95, 0
      %p892 = por %p890, %p891
      %p893 = scmp.ne.s32.totalorder %s885, %s887
      %p894 = scmp.eq.s32.totalorder %s100, 1
      %p895 = por %p893, %p894
      %p896 = scmp.ne.s32.totalorder %s887, %s888
      %p897 = scmp.eq.s32.totalorder %s100, 0
      %p898 = por %p896, %p897
      %p899 = scmp.ne.s32.totalorder %s887, %s888
      %p900 = scmp.eq.s32.totalorder %s101, 1
      %p901 = por %p899, %p900
      %p903 = scmp.ne.s32.totalorder %s888, %s902
      %p904 = scmp.eq.s32.totalorder %s101, 0
      %p905 = por %p903, %p904
      %s907 = sadd.s32 %s906, 1
      %p910 = scmp.eq.s32.totalorder %s95, 1
      %p911 = scmp.ne.s32.totalorder %s906, %s908
      %p912 = scmp.eq.s32.totalorder %s95, 0
      %p913 = por %p911, %p912
      %p914 = scmp.ne.s32.totalorder %s906, %s908
      %p915 = scmp.eq.s32.totalorder %s100, 1
      %p916 = por %p914, %p915
      %p917 = scmp.ne.s32.totalorder %s908, %s909
      %p918 = scmp.eq.s32.totalorder %s100, 0
      %p919 = por %p917, %p918
      %p920 = scmp.ne.s32.totalorder %s908, %s909
      %p921 = scmp.eq.s32.totalorder %s101, 1
      %p922 = por %p920, %p921
      %p924 = scmp.ne.s32.totalorder %s909, %s923
      %p925 = scmp.eq.s32.totalorder %s101, 0
      %p926 = por %p924, %p925
      %s928 = sadd.s32 %s927, 1
      %p931 = scmp.eq.s32.totalorder %s95, 1
      %p932 = scmp.ne.s32.totalorder %s927, %s929
      %p933 = scmp.eq.s32.totalorder %s95, 0
      %p934 = por %p932, %p933
      %p935 = scmp.ne.s32.totalorder %s927, %s929
      %p936 = scmp.eq.s32.totalorder %s100, 1
      %p937 = por %p935, %p936
      %p938 = scmp.ne.s32.totalorder %s929, %s930
      %p939 = scmp.eq.s32.totalorder %s100, 0
      %p940 = por %p938, %p939
      %p941 = scmp.ne.s32.totalorder %s929, %s930
      %p942 = scmp.eq.s32.totalorder %s101, 1
      %p943 = por %p941, %p942
      %p945 = scmp.ne.s32.totalorder %s930, %s944
      %p946 = scmp.eq.s32.totalorder %s101, 0
      %p947 = por %p945, %p946
      %s949 = sadd.s32 %s948, 1
      %p952 = scmp.eq.s32.totalorder %s95, 1
      %p953 = scmp.ne.s32.totalorder %s948, %s950
      %p954 = scmp.eq.s32.totalorder %s95, 0
      %p955 = por %p953, %p954
      %p956 = scmp.ne.s32.totalorder %s948, %s950
      %p957 = scmp.eq.s32.totalorder %s100, 1
      %p958 = por %p956, %p957
      %p959 = scmp.ne.s32.totalorder %s950, %s951
      %p960 = scmp.eq.s32.totalorder %s100, 0
      %p961 = por %p959, %p960
      %p962 = scmp.ne.s32.totalorder %s950, %s951
      %p963 = scmp.eq.s32.totalorder %s101, 1
      %p964 = por %p962, %p963
      %p966 = scmp.ne.s32.totalorder %s951, %s965
      %p967 = scmp.eq.s32.totalorder %s101, 0
      %p968 = por %p966, %p967
      %s970 = sadd.s32 %s969, 1
      %p973 = scmp.eq.s32.totalorder %s95, 1
      %p974 = scmp.ne.s32.totalorder %s969, %s971
      %p975 = scmp.eq.s32.totalorder %s95, 0
      %p976 = por %p974, %p975
      %p977 = scmp.ne.s32.totalorder %s969, %s971
      %p978 = scmp.eq.s32.totalorder %s100, 1
      %p979 = por %p977, %p978
      %p980 = scmp.ne.s32.totalorder %s971, %s972
      %p981 = scmp.eq.s32.totalorder %s100, 0
      %p982 = por %p980, %p981
      %p983 = scmp.ne.s32.totalorder %s971, %s972
      %p984 = scmp.eq.s32.totalorder %s101, 1
      %p985 = por %p983, %p984
      %p987 = scmp.ne.s32.totalorder %s972, %s986
      %p988 = scmp.eq.s32.totalorder %s101, 0
      %p989 = por %p987, %p988
      %s990 = ssub.s32 %s95, %s102
      %p991 = scmp.eq.s32.totalorder %s990, 0
      %s993 = sadd.s32 %s992, 1
      %s994 = scalar_select %p991, %s992, %s993
      %p997 = pneg %p991
      %p998 = scmp.eq.s32.totalorder %s95, 1
      %p999 = por %p997, %p998
      %p1000 = scmp.ne.s32.totalorder %s992, %s995
      %p1001 = scmp.eq.s32.totalorder %s95, 0
      %p1002 = por %p1000, %p1001
      %p1003 = scmp.ne.s32.totalorder %s992, %s995
      %p1004 = scmp.eq.s32.totalorder %s100, 1
      %p1005 = por %p1003, %p1004
      %p1006 = scmp.ne.s32.totalorder %s995, %s996
      %p1007 = scmp.eq.s32.totalorder %s100, 0
      %p1008 = por %p1006, %p1007
      %p1009 = scmp.ne.s32.totalorder %s995, %s996
      %p1010 = scmp.eq.s32.totalorder %s101, 1
      %p1011 = por %p1009, %p1010
      %p1013 = scmp.ne.s32.totalorder %s996, %s1012
      %p1014 = scmp.eq.s32.totalorder %s101, 0
      %p1015 = por %p1013, %p1014
      %p1016 = scmp.le.s32.totalorder 1, %s95
      %p1017 = scmp.lt.s32.totalorder %s95, 3
      %p1018 = pnand %p1016, %p1017
      %p1019 = pneg %p1018
      // Predicated region
      $region9: #{_lambda_.1} parent=5 // pred_check
        _
      $region10: #{_lambda_.1} parent=5 // pred_check_branch
        %1021 = sbr.rel (%p1018) target = $region12
      $region11: #{_lambda_.1} parent=5 // pred_region
        %s1022 = ssub.s32 %s95, 1
        // Predicated region
        $region13: #{_lambda_.1} parent=11 // pred_check
          %p1023 = pneg %p142
        $region14: #{_lambda_.1} parent=11 // pred_check_branch
          %1025 = sbr.rel (%p1023) target = $region16
        $region15: #{_lambda_.1} parent=11 // pred_region
          _
        $region16: #{_lambda_.1} parent=11 // pred_fallthru
          _
        // Predicated region
        $region17: #{_lambda_.1} parent=11 // pred_check
          %p1026 = pneg %p163
        $region18: #{_lambda_.1} parent=11 // pred_check_branch
          %1028 = sbr.rel (%p1026) target = $region20
        $region19: #{_lambda_.1} parent=11 // pred_region
          _
        $region20: #{_lambda_.1} parent=11 // pred_fallthru
          _
        // Predicated region
        $region21: #{_lambda_.1} parent=11 // pred_check
          %p1029 = pneg %p184
        $region22: #{_lambda_.1} parent=11 // pred_check_branch
          %1031 = sbr.rel (%p1029) target = $region24
        $region23: #{_lambda_.1} parent=11 // pred_region
          _
        $region24: #{_lambda_.1} parent=11 // pred_fallthru
          _
        // Predicated region
        $region25: #{_lambda_.1} parent=11 // pred_check
          %p1032 = pneg %p205
        $region26: #{_lambda_.1} parent=11 // pred_check_branch
          %1034 = sbr.rel (%p1032) target = $region28
        $region27: #{_lambda_.1} parent=11 // pred_region
          _
        $region28: #{_lambda_.1} parent=11 // pred_fallthru
          _
        // Predicated region
        $region29: #{_lambda_.1} parent=11 // pred_check
          %p1035 = pneg %p226
        $region30: #{_lambda_.1} parent=11 // pred_check_branch
          %1037 = sbr.rel (%p1035) target = $region32
        $region31: #{_lambda_.1} parent=11 // pred_region
          _
        $region32: #{_lambda_.1} parent=11 // pred_fallthru
          _
        // Predicated region
        $region33: #{_lambda_.1} parent=11 // pred_check
          %p1038 = pneg %p247
        $region34: #{_lambda_.1} parent=11 // pred_check_branch
          %1040 = sbr.rel (%p1038) target = $region36
        $region35: #{_lambda_.1} parent=11 // pred_region
          _
        $region36: #{_lambda_.1} parent=11 // pred_fallthru
          _
        // Predicated region
        $region37: #{_lambda_.1} parent=11 // pred_check
          %p1041 = pneg %p268
        $region38: #{_lambda_.1} parent=11 // pred_check_branch
          %1043 = sbr.rel (%p1041) target = $region40
        $region39: #{_lambda_.1} parent=11 // pred_region
          _
        $region40: #{_lambda_.1} parent=11 // pred_fallthru
          _
        // Predicated region
        $region41: #{_lambda_.1} parent=11 // pred_check
          %p1044 = pneg %p289
        $region42: #{_lambda_.1} parent=11 // pred_check_branch
          %1046 = sbr.rel (%p1044) target = $region44
        $region43: #{_lambda_.1} parent=11 // pred_region
          _
        $region44: #{_lambda_.1} parent=11 // pred_fallthru
          _
        // Predicated region
        $region45: #{_lambda_.1} parent=11 // pred_check
          %p1047 = pneg %p310
        $region46: #{_lambda_.1} parent=11 // pred_check_branch
          %1049 = sbr.rel (%p1047) target = $region48
        $region47: #{_lambda_.1} parent=11 // pred_region
          _
        $region48: #{_lambda_.1} parent=11 // pred_fallthru
          _
        // Predicated region
        $region49: #{_lambda_.1} parent=11 // pred_check
          %p1050 = pneg %p331
        $region50: #{_lambda_.1} parent=11 // pred_check_branch
          %1052 = sbr.rel (%p1050) target = $region52
        $region51: #{_lambda_.1} parent=11 // pred_region
          _
        $region52: #{_lambda_.1} parent=11 // pred_fallthru
          _
        // Predicated region
        $region53: #{_lambda_.1} parent=11 // pred_check
          %p1053 = pneg %p352
        $region54: #{_lambda_.1} parent=11 // pred_check_branch
          %1055 = sbr.rel (%p1053) target = $region56
        $region55: #{_lambda_.1} parent=11 // pred_region
          _
        $region56: #{_lambda_.1} parent=11 // pred_fallthru
          _
        // Predicated region
        $region57: #{_lambda_.1} parent=11 // pred_check
          %p1056 = pneg %p373
        $region58: #{_lambda_.1} parent=11 // pred_check_branch
          %1058 = sbr.rel (%p1056) target = $region60
        $region59: #{_lambda_.1} parent=11 // pred_region
          _
        $region60: #{_lambda_.1} parent=11 // pred_fallthru
          _
        // Predicated region
        $region61: #{_lambda_.1} parent=11 // pred_check
          %p1059 = pneg %p394
        $region62: #{_lambda_.1} parent=11 // pred_check_branch
          %1061 = sbr.rel (%p1059) target = $region64
        $region63: #{_lambda_.1} parent=11 // pred_region
          _
        $region64: #{_lambda_.1} parent=11 // pred_fallthru
          _
        // Predicated region
        $region65: #{_lambda_.1} parent=11 // pred_check
          %p1062 = pneg %p415
        $region66: #{_lambda_.1} parent=11 // pred_check_branch
          %1064 = sbr.rel (%p1062) target = $region68
        $region67: #{_lambda_.1} parent=11 // pred_region
          _
        $region68: #{_lambda_.1} parent=11 // pred_fallthru
          _
        // Predicated region
        $region69: #{_lambda_.1} parent=11 // pred_check
          %p1065 = pneg %p436
        $region70: #{_lambda_.1} parent=11 // pred_check_branch
          %1067 = sbr.rel (%p1065) target = $region72
        $region71: #{_lambda_.1} parent=11 // pred_region
          _
        $region72: #{_lambda_.1} parent=11 // pred_fallthru
          _
        // Predicated region
        $region73: #{_lambda_.1} parent=11 // pred_check
          %p1068 = pneg %p457
        $region74: #{_lambda_.1} parent=11 // pred_check_branch
          %1070 = sbr.rel (%p1068) target = $region76
        $region75: #{_lambda_.1} parent=11 // pred_region
          _
        $region76: #{_lambda_.1} parent=11 // pred_fallthru
          _
        // Predicated region
        $region77: #{_lambda_.1} parent=11 // pred_check
          %p1071 = pneg %p478
        $region78: #{_lambda_.1} parent=11 // pred_check_branch
          %1073 = sbr.rel (%p1071) target = $region80
        $region79: #{_lambda_.1} parent=11 // pred_region
          _
        $region80: #{_lambda_.1} parent=11 // pred_fallthru
          _
        // Predicated region
        $region81: #{_lambda_.1} parent=11 // pred_check
          %p1074 = pneg %p499
        $region82: #{_lambda_.1} parent=11 // pred_check_branch
          %1076 = sbr.rel (%p1074) target = $region84
        $region83: #{_lambda_.1} parent=11 // pred_region
          _
        $region84: #{_lambda_.1} parent=11 // pred_fallthru
          _
        // Predicated region
        $region85: #{_lambda_.1} parent=11 // pred_check
          %p1077 = pneg %p520
        $region86: #{_lambda_.1} parent=11 // pred_check_branch
          %1079 = sbr.rel (%p1077) target = $region88
        $region87: #{_lambda_.1} parent=11 // pred_region
          _
        $region88: #{_lambda_.1} parent=11 // pred_fallthru
          _
        // Predicated region
        $region89: #{_lambda_.1} parent=11 // pred_check
          %p1080 = pneg %p541
        $region90: #{_lambda_.1} parent=11 // pred_check_branch
          %1082 = sbr.rel (%p1080) target = $region92
        $region91: #{_lambda_.1} parent=11 // pred_region
          _
        $region92: #{_lambda_.1} parent=11 // pred_fallthru
          _
        // Predicated region
        $region93: #{_lambda_.1} parent=11 // pred_check
          %p1083 = pneg %p562
        $region94: #{_lambda_.1} parent=11 // pred_check_branch
          %1085 = sbr.rel (%p1083) target = $region96
        $region95: #{_lambda_.1} parent=11 // pred_region
          _
        $region96: #{_lambda_.1} parent=11 // pred_fallthru
          _
        // Predicated region
        $region97: #{_lambda_.1} parent=11 // pred_check
          %p1086 = pneg %p583
        $region98: #{_lambda_.1} parent=11 // pred_check_branch
          %1088 = sbr.rel (%p1086) target = $region100
        $region99: #{_lambda_.1} parent=11 // pred_region
          _
        $region100: #{_lambda_.1} parent=11 // pred_fallthru
          _
        // Predicated region
        $region101: #{_lambda_.1} parent=11 // pred_check
          %p1089 = pneg %p604
        $region102: #{_lambda_.1} parent=11 // pred_check_branch
          %1091 = sbr.rel (%p1089) target = $region104
        $region103: #{_lambda_.1} parent=11 // pred_region
          _
        $region104: #{_lambda_.1} parent=11 // pred_fallthru
          _
        // Predicated region
        $region105: #{_lambda_.1} parent=11 // pred_check
          %p1092 = pneg %p625
        $region106: #{_lambda_.1} parent=11 // pred_check_branch
          %1094 = sbr.rel (%p1092) target = $region108
        $region107: #{_lambda_.1} parent=11 // pred_region
          _
        $region108: #{_lambda_.1} parent=11 // pred_fallthru
          _
        // Predicated region
        $region109: #{_lambda_.1} parent=11 // pred_check
          %p1095 = pneg %p646
        $region110: #{_lambda_.1} parent=11 // pred_check_branch
          %1097 = sbr.rel (%p1095) target = $region112
        $region111: #{_lambda_.1} parent=11 // pred_region
          _
        $region112: #{_lambda_.1} parent=11 // pred_fallthru
          _
        // Predicated region
        $region113: #{_lambda_.1} parent=11 // pred_check
          %p1098 = pneg %p667
        $region114: #{_lambda_.1} parent=11 // pred_check_branch
          %1100 = sbr.rel (%p1098) target = $region116
        $region115: #{_lambda_.1} parent=11 // pred_region
          _
        $region116: #{_lambda_.1} parent=11 // pred_fallthru
          _
        // Predicated region
        $region117: #{_lambda_.1} parent=11 // pred_check
          %p1101 = pneg %p688
        $region118: #{_lambda_.1} parent=11 // pred_check_branch
          %1103 = sbr.rel (%p1101) target = $region120
        $region119: #{_lambda_.1} parent=11 // pred_region
          _
        $region120: #{_lambda_.1} parent=11 // pred_fallthru
          _
        // Predicated region
        $region121: #{_lambda_.1} parent=11 // pred_check
          %p1104 = pneg %p709
        $region122: #{_lambda_.1} parent=11 // pred_check_branch
          %1106 = sbr.rel (%p1104) target = $region124
        $region123: #{_lambda_.1} parent=11 // pred_region
          _
        $region124: #{_lambda_.1} parent=11 // pred_fallthru
          _
        // Predicated region
        $region125: #{_lambda_.1} parent=11 // pred_check
          %p1107 = pneg %p730
        $region126: #{_lambda_.1} parent=11 // pred_check_branch
          %1109 = sbr.rel (%p1107) target = $region128
        $region127: #{_lambda_.1} parent=11 // pred_region
          _
        $region128: #{_lambda_.1} parent=11 // pred_fallthru
          _
        // Predicated region
        $region129: #{_lambda_.1} parent=11 // pred_check
          %p1110 = pneg %p751
        $region130: #{_lambda_.1} parent=11 // pred_check_branch
          %1112 = sbr.rel (%p1110) target = $region132
        $region131: #{_lambda_.1} parent=11 // pred_region
          _
        $region132: #{_lambda_.1} parent=11 // pred_fallthru
          _
        // Predicated region
        $region133: #{_lambda_.1} parent=11 // pred_check
          %p1113 = pneg %p772
        $region134: #{_lambda_.1} parent=11 // pred_check_branch
          %1115 = sbr.rel (%p1113) target = $region136
        $region135: #{_lambda_.1} parent=11 // pred_region
          _
        $region136: #{_lambda_.1} parent=11 // pred_fallthru
          _
        // Predicated region
        $region137: #{_lambda_.1} parent=11 // pred_check
          %p1116 = pneg %p793
        $region138: #{_lambda_.1} parent=11 // pred_check_branch
          %1118 = sbr.rel (%p1116) target = $region140
        $region139: #{_lambda_.1} parent=11 // pred_region
          _
        $region140: #{_lambda_.1} parent=11 // pred_fallthru
          _
        // Predicated region
        $region141: #{_lambda_.1} parent=11 // pred_check
          %p1119 = pneg %p814
        $region142: #{_lambda_.1} parent=11 // pred_check_branch
          %1121 = sbr.rel (%p1119) target = $region144
        $region143: #{_lambda_.1} parent=11 // pred_region
          _
        $region144: #{_lambda_.1} parent=11 // pred_fallthru
          _
        // Predicated region
        $region145: #{_lambda_.1} parent=11 // pred_check
          %p1122 = pneg %p835
        $region146: #{_lambda_.1} parent=11 // pred_check_branch
          %1124 = sbr.rel (%p1122) target = $region148
        $region147: #{_lambda_.1} parent=11 // pred_region
          _
        $region148: #{_lambda_.1} parent=11 // pred_fallthru
          _
        // Predicated region
        $region149: #{_lambda_.1} parent=11 // pred_check
          %p1125 = pneg %p856
        $region150: #{_lambda_.1} parent=11 // pred_check_branch
          %1127 = sbr.rel (%p1125) target = $region152
        $region151: #{_lambda_.1} parent=11 // pred_region
          _
        $region152: #{_lambda_.1} parent=11 // pred_fallthru
          _
        // Predicated region
        $region153: #{_lambda_.1} parent=11 // pred_check
          %p1128 = pneg %p877
        $region154: #{_lambda_.1} parent=11 // pred_check_branch
          %1130 = sbr.rel (%p1128) target = $region156
        $region155: #{_lambda_.1} parent=11 // pred_region
          _
        $region156: #{_lambda_.1} parent=11 // pred_fallthru
          _
        // Predicated region
        $region157: #{_lambda_.1} parent=11 // pred_check
          %p1131 = pneg %p898
        $region158: #{_lambda_.1} parent=11 // pred_check_branch
          %1133 = sbr.rel (%p1131) target = $region160
        $region159: #{_lambda_.1} parent=11 // pred_region
          _
        $region160: #{_lambda_.1} parent=11 // pred_fallthru
          _
        // Predicated region
        $region161: #{_lambda_.1} parent=11 // pred_check
          %p1134 = pneg %p919
        $region162: #{_lambda_.1} parent=11 // pred_check_branch
          %1136 = sbr.rel (%p1134) target = $region164
        $region163: #{_lambda_.1} parent=11 // pred_region
          _
        $region164: #{_lambda_.1} parent=11 // pred_fallthru
          _
        // Predicated region
        $region165: #{_lambda_.1} parent=11 // pred_check
          %p1137 = pneg %p940
        $region166: #{_lambda_.1} parent=11 // pred_check_branch
          %1139 = sbr.rel (%p1137) target = $region168
        $region167: #{_lambda_.1} parent=11 // pred_region
          _
        $region168: #{_lambda_.1} parent=11 // pred_fallthru
          _
        // Predicated region
        $region169: #{_lambda_.1} parent=11 // pred_check
          %p1140 = pneg %p961
        $region170: #{_lambda_.1} parent=11 // pred_check_branch
          %1142 = sbr.rel (%p1140) target = $region172
        $region171: #{_lambda_.1} parent=11 // pred_region
          _
        $region172: #{_lambda_.1} parent=11 // pred_fallthru
          _
        // Predicated region
        $region173: #{_lambda_.1} parent=11 // pred_check
          %p1143 = pneg %p982
        $region174: #{_lambda_.1} parent=11 // pred_check_branch
          %1145 = sbr.rel (%p1143) target = $region176
        $region175: #{_lambda_.1} parent=11 // pred_region
          %s1147 = ssub.s32 32, 32
          %1148 = vsyncadd [#allocation9], %s1147
          %s1150 = sshll.u32 [#allocation8], 4
          %s1151 = int_to_ptr.vmem [resolvable:$true] %s1150
          %1153 = dma.hbm_to_vmem [thread:$0]  %s83, 32, %s1151, [#allocation9]
        $region176: #{_lambda_.1} parent=11 // pred_fallthru
          _
      $region12: #{_lambda_.1} parent=5 // pred_fallthru
        _
      %p1154 = scmp.lt.s32.totalorder %s95, 2
      // Predicated region
      $region177: #{_lambda_.1} parent=5 // pred_check
        %p1155 = pneg %p1154
      $region178: #{_lambda_.1} parent=5 // pred_check_branch
        %1157 = sbr.rel (%p1155) target = $region180
      $region179: #{_lambda_.1} parent=5 // pred_region
        // Predicated region
        $region181: #{_lambda_.1} parent=179 // pred_check
          %p1158 = pneg %p115
        $region182: #{_lambda_.1} parent=179 // pred_check_branch
          %1160 = sbr.rel (%p1158) target = $region184
        $region183: #{_lambda_.1} parent=179 // pred_region
          %p1161 = scmp.lt.s32.totalorder %s95, 1
          %s1162 = scalar_select %p1161, %s95, 1
          %s1163 = smul.addr %s1162, 32
          %s1164 = smul.addr %s1163, 4
          %s1165 = scalar_lea.vmem %s1, %s1164
        $region184: #{_lambda_.1} parent=179 // pred_fallthru
          _
      $region180: #{_lambda_.1} parent=5 // pred_fallthru
        _
      %p1166 = scmp.le.s32.totalorder 1, %s95
      %p1167 = scmp.lt.s32.totalorder %s95, 3
      %p1168 = pnand %p1166, %p1167
      %p1169 = pneg %p1168
      // Predicated region
      $region185: #{_lambda_.1} parent=5 // pred_check
        _
      $region186: #{_lambda_.1} parent=5 // pred_check_branch
        %1171 = sbr.rel (%p1168) target = $region188
      $region187: #{_lambda_.1} parent=5 // pred_region
        %s1172 = ssub.s32 %s95, 1
        // Predicated region
        $region189: #{_lambda_.1} parent=187 // pred_check
          %p1173 = pneg %p982
        $region190: #{_lambda_.1} parent=187 // pred_check_branch
          %1175 = sbr.rel (%p1173) target = $region192
        $region191: #{_lambda_.1} parent=187 // pred_region
          %1176 = dma.done [#allocation9], 32
        $region192: #{_lambda_.1} parent=187 // pred_fallthru
          _
        %p1177 = scmp.lt.s32.totalorder %s100, 1
        %s1178 = scalar_select %p1177, %s100, 1
        %s1179 = smul.addr %s1178, 32
        %s1180 = smul.addr %s1179, 4
        %s1181 = scalar_lea.vmem %s1, %s1180
        %p1182 = pneg %p121
        %p1183 = pneg %p118
        %p1184 = pneg %p142
        %p1185 = pneg %p139
        %p1186 = pneg %p163
        %p1187 = pneg %p160
        %p1188 = pneg %p184
        %p1189 = pneg %p181
        %p1190 = pneg %p205
        %p1191 = pneg %p202
        %p1192 = pneg %p226
        %p1193 = pneg %p223
        %p1194 = pneg %p247
        %p1195 = pneg %p244
        %p1196 = pneg %p268
        %p1197 = pneg %p265
        %p1198 = pneg %p289
        %p1199 = pneg %p286
        %p1200 = pneg %p310
        %p1201 = pneg %p307
        %p1202 = pneg %p331
        %p1203 = pneg %p328
        %p1204 = pneg %p352
        %p1205 = pneg %p349
        %p1206 = pneg %p373
        %p1207 = pneg %p370
        %p1208 = pneg %p394
        %p1209 = pneg %p391
        %p1210 = pneg %p415
        %p1211 = pneg %p412
        %p1212 = pneg %p436
        %p1213 = pneg %p433
        %p1214 = pneg %p457
        %p1215 = pneg %p454
        %p1216 = pneg %p478
        %p1217 = pneg %p475
        %p1218 = pneg %p499
        %p1219 = pneg %p496
        %p1220 = pneg %p520
        %p1221 = pneg %p517
        %p1222 = pneg %p541
        %p1223 = pneg %p538
        %p1224 = pneg %p562
        %p1225 = pneg %p559
        %p1226 = pneg %p583
        %p1227 = pneg %p580
        %p1228 = pneg %p604
        %p1229 = pneg %p601
        %p1230 = pneg %p625
        %p1231 = pneg %p622
        %p1232 = pneg %p646
        %p1233 = pneg %p643
        %p1234 = pneg %p667
        %p1235 = pneg %p664
        %p1236 = pneg %p688
        %p1237 = pneg %p685
        %p1238 = pneg %p709
        %p1239 = pneg %p706
        %p1240 = pneg %p730
        %p1241 = pneg %p727
        %p1242 = pneg %p751
        %p1243 = pneg %p748
        %p1244 = pneg %p772
        %p1245 = pneg %p769
        %p1246 = pneg %p793
        %p1247 = pneg %p790
        %p1248 = pneg %p814
        %p1249 = pneg %p811
        %p1250 = pneg %p835
        %p1251 = pneg %p832
        %p1252 = pneg %p856
        %p1253 = pneg %p853
        %p1254 = pneg %p877
        %p1255 = pneg %p874
        %p1256 = pneg %p898
        %p1257 = pneg %p895
        %p1258 = pneg %p919
        %p1259 = pneg %p916
        %p1260 = pneg %p940
        %p1261 = pneg %p937
        %p1262 = pneg %p961
        %p1263 = pneg %p958
        %p1264 = pneg %p982
        %p1265 = pneg %p979
        %p1266 = pneg %p1008
        %p1267 = pneg %p1005
        %s1268 = sand.u32 %s995, 1
        %s1269 = scalar_lea.sflag [#allocation10], %s1268
        %s1270 = sand.u32 %s995, 1
        %s1271 = scalar_lea.vmem [#allocation11], %s1270
        %p1272 = scmp.lt.s32.totalorder %s100, 1
        %s1273 = scalar_select %p1272, %s100, 1
        %s1274 = smul.addr %s1273, 32
        %s1275 = smul.addr %s1274, 4
        %s1276 = scalar_lea.vmem %s1, %s1275
        %v1278 = vld [vmem:[%s1276] sm:$0xf]
        %v1279 = vld [vmem:[%s1276 + $0x4] sm:$0xf]
        %v1280 = vld [vmem:[%s1276 + $0x8] sm:$0xf]
        %v1281 = vld [vmem:[%s1276 + $0xc] sm:$0xf]
        %v1282 = vld [vmem:[%s1276 + $0x10] sm:$0xf]
        %v1283 = vld [vmem:[%s1276 + $0x14] sm:$0xf]
        %v1284 = vld [vmem:[%s1276 + $0x18] sm:$0xf]
        %v1285 = vld [vmem:[%s1276 + $0x1c] sm:$0xf]
        %v1286 = vld [vmem:[%s1276 + $0x20] sm:$0xf]
        %v1287 = vld [vmem:[%s1276 + $0x24] sm:$0xf]
        %v1288 = vld [vmem:[%s1276 + $0x28] sm:$0xf]
        %v1289 = vld [vmem:[%s1276 + $0x2c] sm:$0xf]
        %v1290 = vld [vmem:[%s1276 + $0x30] sm:$0xf]
        %v1291 = vld [vmem:[%s1276 + $0x34] sm:$0xf]
        %v1292 = vld [vmem:[%s1276 + $0x38] sm:$0xf]
        %v1293 = vld [vmem:[%s1276 + $0x3c] sm:$0xf]
        %v1294 = vld [vmem:[%s1276 + $0x40] sm:$0xf]
        %v1295 = vld [vmem:[%s1276 + $0x44] sm:$0xf]
        %v1296 = vld [vmem:[%s1276 + $0x48] sm:$0xf]
        %v1297 = vld [vmem:[%s1276 + $0x4c] sm:$0xf]
        %v1298 = vld [vmem:[%s1276 + $0x50] sm:$0xf]
        %v1299 = vld [vmem:[%s1276 + $0x54] sm:$0xf]
        %v1300 = vld [vmem:[%s1276 + $0x58] sm:$0xf]
        %v1301 = vld [vmem:[%s1276 + $0x5c] sm:$0xf]
        %v1302 = vld [vmem:[%s1276 + $0x60] sm:$0xf]
        %v1303 = vld [vmem:[%s1276 + $0x64] sm:$0xf]
        %v1304 = vld [vmem:[%s1276 + $0x68] sm:$0xf]
        %v1305 = vld [vmem:[%s1276 + $0x6c] sm:$0xf]
        %v1306 = vld [vmem:[%s1276 + $0x70] sm:$0xf]
        %v1307 = vld [vmem:[%s1276 + $0x74] sm:$0xf]
        %v1308 = vld [vmem:[%s1276 + $0x78] sm:$0xf]
        %v1309 = vld [vmem:[%s1276 + $0x7c] sm:$0xf]
        %v1310 = vld [vmem:[%s3] sm:$0xf]
        %v1311 = vld [vmem:[%s3 + $0x4] sm:$0xf]
        %v1312 = vld [vmem:[%s3 + $0x8] sm:$0xf]
        %v1313 = vld [vmem:[%s3 + $0xc] sm:$0x3]
        %v1346 = vunpack.c.l.b16 %v1278
        %v1347 = vunpack.c.l.b16 %v1279
        %v1348 = vunpack.c.l.b16 %v1280
        %v1349 = vunpack.c.l.b16 %v1281
        %v1350 = vunpack.c.l.b16 %v1282
        %v1351 = vunpack.c.l.b16 %v1283
        %v1352 = vunpack.c.l.b16 %v1284
        %v1353 = vunpack.c.l.b16 %v1285
        %v1354 = vunpack.c.l.b16 %v1286
        %v1355 = vunpack.c.l.b16 %v1287
        %v1356 = vunpack.c.l.b16 %v1288
        %v1357 = vunpack.c.l.b16 %v1289
        %v1358 = vunpack.c.l.b16 %v1290
        %v1359 = vunpack.c.l.b16 %v1291
        %v1360 = vunpack.c.l.b16 %v1292
        %v1361 = vunpack.c.l.b16 %v1293
        %v1362 = vunpack.c.l.b16 %v1294
        %v1363 = vunpack.c.l.b16 %v1295
        %v1364 = vunpack.c.l.b16 %v1296
        %v1365 = vunpack.c.l.b16 %v1297
        %v1366 = vunpack.c.l.b16 %v1298
        %v1367 = vunpack.c.l.b16 %v1299
        %v1368 = vunpack.c.l.b16 %v1300
        %v1369 = vunpack.c.l.b16 %v1301
        %v1370 = vunpack.c.l.b16 %v1302
        %v1371 = vunpack.c.l.b16 %v1303
        %v1372 = vunpack.c.l.b16 %v1304
        %v1373 = vunpack.c.l.b16 %v1305
        %v1374 = vunpack.c.l.b16 %v1306
        %v1375 = vunpack.c.l.b16 %v1307
        %v1376 = vunpack.c.l.b16 %v1308
        %v1377 = vunpack.c.l.b16 %v1309
        %v1378 = vpack.c.b16 %v1347, %v1346
        %v1379 = vpack.c.b16 %v1349, %v1348
        %v1380 = vpack.c.b16 %v1351, %v1350
        %v1381 = vpack.c.b16 %v1353, %v1352
        %v1382 = vpack.c.b16 %v1355, %v1354
        %v1383 = vpack.c.b16 %v1357, %v1356
        %v1384 = vpack.c.b16 %v1359, %v1358
        %v1385 = vpack.c.b16 %v1361, %v1360
        %v1386 = vpack.c.b16 %v1363, %v1362
        %v1387 = vpack.c.b16 %v1365, %v1364
        %v1388 = vpack.c.b16 %v1367, %v1366
        %v1389 = vpack.c.b16 %v1369, %v1368
        %v1390 = vpack.c.b16 %v1371, %v1370
        %v1391 = vpack.c.b16 %v1373, %v1372
        %v1392 = vpack.c.b16 %v1375, %v1374
        %v1393 = vpack.c.b16 %v1377, %v1376
        %v1398 = vunpack.c.l.b16 %v1310
        %v1399 = vunpack.c.l.b16 %v1311
        %v1400 = vunpack.c.l.b16 %v1312
        %v1401 = vunpack.c.l.b16 %v1313
        %v1402 = vpack.c.b16 %v1399, %v1398
        %v1403 = vpack.c.b16 %v1401, %v1400
        %vm1405 = vcmask 220160
        %v1407 = vsel %vm1405, %v1378, 0
        %v1410 = vsel %vm1405, %v1379, 0
        %v1413 = vsel %vm1405, %v1380, 0
        %v1416 = vsel %vm1405, %v1381, 0
        %v1419 = vsel %vm1405, %v1382, 0
        %v1422 = vsel %vm1405, %v1383, 0
        %v1425 = vsel %vm1405, %v1384, 0
        %v1428 = vsel %vm1405, %v1385, 0
        %v1431 = vsel %vm1405, %v1386, 0
        %v1434 = vsel %vm1405, %v1387, 0
        %v1437 = vsel %vm1405, %v1388, 0
        %v1440 = vsel %vm1405, %v1389, 0
        %v1443 = vsel %vm1405, %v1390, 0
        %v1446 = vsel %vm1405, %v1391, 0
        %v1449 = vsel %vm1405, %v1392, 0
        %v1452 = vsel %vm1405, %v1393, 0
        %vm1454 = vcmask 1044480
        %vm1455 = vcmask 1045504
        %v1456 = vsel %vm1454, 4294967295, 65535
        %v1457 = vsel %vm1455, %v1456, 0
        %v1459 = vand.u32 %v1403, %v1457
        %1461 = vmatprep.subr.bf16.mxu0 0
        %1462 = vmatpush1.bf16.msra.mxu0 0
        %1463 = vmatprep.subr.bf16.mxu0 0
        %1464 = vmatpush1.bf16.msra.mxu0 0
        %1465 = vmatprep.subr.bf16.mxu0 0
        %1466 = vmatpush1.bf16.msra.mxu0 0
        %1467 = vmatprep.subr.bf16.mxu0 0
        %1468 = vmatpush1.bf16.msra.mxu0 0
        %1469 = vmatprep.subr.bf16.mxu0 0
        %1470 = vmatpush1.bf16.msra.mxu0 0
        %1471 = vmatprep.subr.bf16.mxu0 0
        %1472 = vmatpush1.bf16.msra.mxu0 0
        %1473 = vmatprep.subr.bf16.mxu0 0
        %1474 = vmatpush1.bf16.msra.mxu0 %v1459
        %1475 = vmatprep.subr.bf16.mxu0 0
        %1476 = vmatpush1.bf16.msra.mxu0 %v1402
        %1477 = vmatprep.subr.bf16.mxu0 0
        %1478 = vmatpush2.bf16.msra.mxu0 0
        %1479 = vmatprep.subr.bf16.mxu0 0
        %1480 = vmatpush2.bf16.msra.mxu0 0
        %1481 = vmatprep.subr.bf16.mxu0 0
        %1482 = vmatpush2.bf16.msra.mxu0 0
        %1483 = vmatprep.subr.bf16.mxu0 0
        %1484 = vmatpush2.bf16.msra.mxu0 0
        %1485 = vmatprep.subr.bf16.mxu0 0
        %1486 = vmatpush2.bf16.msra.mxu0 0
        %1487 = vmatprep.subr.bf16.mxu0 0
        %1488 = vmatpush2.bf16.msra.mxu0 0
        %1489 = vmatprep.subr.bf16.mxu0 0
        %1490 = vmatpush2.bf16.msra.mxu0 0
        %1491 = vmatprep.subr.bf16.mxu0 0
        %1492 = vmatpush2.bf16.msra.mxu0 0
        %1493 = vmatprep.mubr.bf16.mxu0 0
        %1494 = vmatmul.mubr.bf16.gmra.mxu0 %v1407
        %v1495 = vpop.f32.mrf.mxu0
        %v1496 = vadd.f32 0.0, %v1495
        %v1497 = vpop.f32.mrf.mxu0
        %v1498 = vpop.f32.mrf.mxu0
        %v1499 = vadd.f32 0.0, %v1498
        %v1500 = vpop.f32.mrf.mxu0
        %1501 = vmatprep.mubr.bf16.mxu0 0
        %1502 = vmatmul.mubr.bf16.gmra.mxu0 %v1410
        %v1503 = vpop.f32.mrf.mxu0
        %v1504 = vadd.f32 0.0, %v1503
        %v1505 = vpop.f32.mrf.mxu0
        %v1506 = vpop.f32.mrf.mxu0
        %v1507 = vadd.f32 0.0, %v1506
        %v1508 = vpop.f32.mrf.mxu0
        %1509 = vmatprep.mubr.bf16.mxu0 0
        %1510 = vmatmul.mubr.bf16.gmra.mxu0 %v1413
        %v1511 = vpop.f32.mrf.mxu0
        %v1512 = vadd.f32 0.0, %v1511
        %v1513 = vpop.f32.mrf.mxu0
        %v1514 = vpop.f32.mrf.mxu0
        %v1515 = vadd.f32 0.0, %v1514
        %v1516 = vpop.f32.mrf.mxu0
        %1517 = vmatprep.mubr.bf16.mxu0 0
        %1518 = vmatmul.mubr.bf16.gmra.mxu0 %v1416
        %v1519 = vpop.f32.mrf.mxu0
        %v1520 = vadd.f32 0.0, %v1519
        %v1521 = vpop.f32.mrf.mxu0
        %v1522 = vpop.f32.mrf.mxu0
        %v1523 = vadd.f32 0.0, %v1522
        %v1524 = vpop.f32.mrf.mxu0
        %1525 = vmatprep.mubr.bf16.mxu0 0
        %1526 = vmatmul.mubr.bf16.gmra.mxu0 %v1419
        %v1527 = vpop.f32.mrf.mxu0
        %v1528 = vadd.f32 0.0, %v1527
        %v1529 = vpop.f32.mrf.mxu0
        %v1530 = vpop.f32.mrf.mxu0
        %v1531 = vadd.f32 0.0, %v1530
        %v1532 = vpop.f32.mrf.mxu0
        %1533 = vmatprep.mubr.bf16.mxu0 0
        %1534 = vmatmul.mubr.bf16.gmra.mxu0 %v1422
        %v1535 = vpop.f32.mrf.mxu0
        %v1536 = vadd.f32 0.0, %v1535
        %v1537 = vpop.f32.mrf.mxu0
        %v1538 = vpop.f32.mrf.mxu0
        %v1539 = vadd.f32 0.0, %v1538
        %v1540 = vpop.f32.mrf.mxu0
        %1541 = vmatprep.mubr.bf16.mxu0 0
        %1542 = vmatmul.mubr.bf16.gmra.mxu0 %v1425
        %v1543 = vpop.f32.mrf.mxu0
        %v1544 = vadd.f32 0.0, %v1543
        %v1545 = vpop.f32.mrf.mxu0
        %v1546 = vpop.f32.mrf.mxu0
        %v1547 = vadd.f32 0.0, %v1546
        %v1548 = vpop.f32.mrf.mxu0
        %1549 = vmatprep.mubr.bf16.mxu0 0
        %1550 = vmatmul.mubr.bf16.gmra.mxu0 %v1428
        %v1551 = vpop.f32.mrf.mxu0
        %v1552 = vadd.f32 0.0, %v1551
        %v1553 = vpop.f32.mrf.mxu0
        %v1554 = vpop.f32.mrf.mxu0
        %v1555 = vadd.f32 0.0, %v1554
        %v1556 = vpop.f32.mrf.mxu0
        %1557 = vmatprep.mubr.bf16.mxu0 0
        %1558 = vmatmul.mubr.bf16.gmra.mxu0 %v1431
        %v1559 = vpop.f32.mrf.mxu0
        %v1560 = vadd.f32 0.0, %v1559
        %v1561 = vpop.f32.mrf.mxu0
        %v1562 = vpop.f32.mrf.mxu0
        %v1563 = vadd.f32 0.0, %v1562
        %v1564 = vpop.f32.mrf.mxu0
        %1565 = vmatprep.mubr.bf16.mxu0 0
        %1566 = vmatmul.mubr.bf16.gmra.mxu0 %v1434
        %v1567 = vpop.f32.mrf.mxu0
        %v1568 = vadd.f32 0.0, %v1567
        %v1569 = vpop.f32.mrf.mxu0
        %v1570 = vpop.f32.mrf.mxu0
        %v1571 = vadd.f32 0.0, %v1570
        %v1572 = vpop.f32.mrf.mxu0
        %1573 = vmatprep.mubr.bf16.mxu0 0
        %1574 = vmatmul.mubr.bf16.gmra.mxu0 %v1437
        %v1575 = vpop.f32.mrf.mxu0
        %v1576 = vadd.f32 0.0, %v1575
        %v1577 = vpop.f32.mrf.mxu0
        %v1578 = vpop.f32.mrf.mxu0
        %v1579 = vadd.f32 0.0, %v1578
        %v1580 = vpop.f32.mrf.mxu0
        %1581 = vmatprep.mubr.bf16.mxu0 0
        %1582 = vmatmul.mubr.bf16.gmra.mxu0 %v1440
        %v1583 = vpop.f32.mrf.mxu0
        %v1584 = vadd.f32 0.0, %v1583
        %v1585 = vpop.f32.mrf.mxu0
        %v1586 = vpop.f32.mrf.mxu0
        %v1587 = vadd.f32 0.0, %v1586
        %v1588 = vpop.f32.mrf.mxu0
        %1589 = vmatprep.mubr.bf16.mxu0 0
        %1590 = vmatmul.mubr.bf16.gmra.mxu0 %v1443
        %v1591 = vpop.f32.mrf.mxu0
        %v1592 = vadd.f32 0.0, %v1591
        %v1593 = vpop.f32.mrf.mxu0
        %v1594 = vpop.f32.mrf.mxu0
        %v1595 = vadd.f32 0.0, %v1594
        %v1596 = vpop.f32.mrf.mxu0
        %1597 = vmatprep.mubr.bf16.mxu0 0
        %1598 = vmatmul.mubr.bf16.gmra.mxu0 %v1446
        %v1599 = vpop.f32.mrf.mxu0
        %v1600 = vadd.f32 0.0, %v1599
        %v1601 = vpop.f32.mrf.mxu0
        %v1602 = vpop.f32.mrf.mxu0
        %v1603 = vadd.f32 0.0, %v1602
        %v1604 = vpop.f32.mrf.mxu0
        %1605 = vmatprep.mubr.bf16.mxu0 0
        %1606 = vmatmul.mubr.bf16.gmra.mxu0 %v1449
        %v1607 = vpop.f32.mrf.mxu0
        %v1608 = vadd.f32 0.0, %v1607
        %v1609 = vpop.f32.mrf.mxu0
        %v1610 = vpop.f32.mrf.mxu0
        %v1611 = vadd.f32 0.0, %v1610
        %v1612 = vpop.f32.mrf.mxu0
        %1613 = vmatprep.mubr.bf16.mxu0 0
        %1614 = vmatmul.mubr.bf16.gmra.mxu0 %v1452
        %v1615 = vpop.f32.mrf.mxu0
        %v1616 = vadd.f32 0.0, %v1615
        %v1617 = vpop.f32.mrf.mxu0
        %v1618 = vpop.f32.mrf.mxu0
        %v1619 = vadd.f32 0.0, %v1618
        %v1620 = vpop.f32.mrf.mxu0
        %1621 = vdwg.mxu0
        %v1622 = vld [vmem:[%s5] sm:$0x3]
        %v1623 = vlaneseq
        %v1624 = vshrl.u32 %v1623, 7
        %v1625 = vsub.s32 0, %v1624
        %v1626 = vrot.slane %v1622, %v1625
        %v1627 = vmul.f32 %v1496, %v1626
        %v1628 = vmul.f32 %v1499, %v1626
        %v1629 = vmul.f32 %v1504, %v1626
        %v1630 = vmul.f32 %v1507, %v1626
        %v1631 = vmul.f32 %v1512, %v1626
        %v1632 = vmul.f32 %v1515, %v1626
        %v1633 = vmul.f32 %v1520, %v1626
        %v1634 = vmul.f32 %v1523, %v1626
        %v1635 = vmul.f32 %v1528, %v1626
        %v1636 = vmul.f32 %v1531, %v1626
        %v1637 = vmul.f32 %v1536, %v1626
        %v1638 = vmul.f32 %v1539, %v1626
        %v1639 = vmul.f32 %v1544, %v1626
        %v1640 = vmul.f32 %v1547, %v1626
        %v1641 = vmul.f32 %v1552, %v1626
        %v1642 = vmul.f32 %v1555, %v1626
        %v1643 = vmul.f32 %v1560, %v1626
        %v1644 = vmul.f32 %v1563, %v1626
        %v1645 = vmul.f32 %v1568, %v1626
        %v1646 = vmul.f32 %v1571, %v1626
        %v1647 = vmul.f32 %v1576, %v1626
        %v1648 = vmul.f32 %v1579, %v1626
        %v1649 = vmul.f32 %v1584, %v1626
        %v1650 = vmul.f32 %v1587, %v1626
        %v1651 = vmul.f32 %v1592, %v1626
        %v1652 = vmul.f32 %v1595, %v1626
        %v1653 = vmul.f32 %v1600, %v1626
        %v1654 = vmul.f32 %v1603, %v1626
        %v1655 = vmul.f32 %v1608, %v1626
        %v1656 = vmul.f32 %v1611, %v1626
        %v1657 = vmul.f32 %v1616, %v1626
        %v1658 = vmul.f32 %v1619, %v1626
        %v1659 = vlaneseq
        %v1660 = vshrl.u32 %v1659, 7
        %v1661 = vsub.s32 1, %v1660
        %v1662 = vrot.slane %v1622, %v1661
        %v1663 = vadd.f32 %v1627, %v1662
        %v1664 = vadd.f32 %v1628, %v1662
        %v1665 = vadd.f32 %v1629, %v1662
        %v1666 = vadd.f32 %v1630, %v1662
        %v1667 = vadd.f32 %v1631, %v1662
        %v1668 = vadd.f32 %v1632, %v1662
        %v1669 = vadd.f32 %v1633, %v1662
        %v1670 = vadd.f32 %v1634, %v1662
        %v1671 = vadd.f32 %v1635, %v1662
        %v1672 = vadd.f32 %v1636, %v1662
        %v1673 = vadd.f32 %v1637, %v1662
        %v1674 = vadd.f32 %v1638, %v1662
        %v1675 = vadd.f32 %v1639, %v1662
        %v1676 = vadd.f32 %v1640, %v1662
        %v1677 = vadd.f32 %v1641, %v1662
        %v1678 = vadd.f32 %v1642, %v1662
        %v1679 = vadd.f32 %v1643, %v1662
        %v1680 = vadd.f32 %v1644, %v1662
        %v1681 = vadd.f32 %v1645, %v1662
        %v1682 = vadd.f32 %v1646, %v1662
        %v1683 = vadd.f32 %v1647, %v1662
        %v1684 = vadd.f32 %v1648, %v1662
        %v1685 = vadd.f32 %v1649, %v1662
        %v1686 = vadd.f32 %v1650, %v1662
        %v1687 = vadd.f32 %v1651, %v1662
        %v1688 = vadd.f32 %v1652, %v1662
        %v1689 = vadd.f32 %v1653, %v1662
        %v1690 = vadd.f32 %v1654, %v1662
        %v1691 = vadd.f32 %v1655, %v1662
        %v1692 = vadd.f32 %v1656, %v1662
        %v1693 = vadd.f32 %v1657, %v1662
        %v1694 = vadd.f32 %v1658, %v1662
        %v1695 = vmax.f32 %v1663, 0.0
        %v1696 = vmax.f32 %v1664, 0.0
        %v1697 = vmax.f32 %v1665, 0.0
        %v1698 = vmax.f32 %v1666, 0.0
        %v1699 = vmax.f32 %v1667, 0.0
        %v1700 = vmax.f32 %v1668, 0.0
        %v1701 = vmax.f32 %v1669, 0.0
        %v1702 = vmax.f32 %v1670, 0.0
        %v1703 = vmax.f32 %v1671, 0.0
        %v1704 = vmax.f32 %v1672, 0.0
        %v1705 = vmax.f32 %v1673, 0.0
        %v1706 = vmax.f32 %v1674, 0.0
        %v1707 = vmax.f32 %v1675, 0.0
        %v1708 = vmax.f32 %v1676, 0.0
        %v1709 = vmax.f32 %v1677, 0.0
        %v1710 = vmax.f32 %v1678, 0.0
        %v1711 = vmax.f32 %v1679, 0.0
        %v1712 = vmax.f32 %v1680, 0.0
        %v1713 = vmax.f32 %v1681, 0.0
        %v1714 = vmax.f32 %v1682, 0.0
        %v1715 = vmax.f32 %v1683, 0.0
        %v1716 = vmax.f32 %v1684, 0.0
        %v1717 = vmax.f32 %v1685, 0.0
        %v1718 = vmax.f32 %v1686, 0.0
        %v1719 = vmax.f32 %v1687, 0.0
        %v1720 = vmax.f32 %v1688, 0.0
        %v1721 = vmax.f32 %v1689, 0.0
        %v1722 = vmax.f32 %v1690, 0.0
        %v1723 = vmax.f32 %v1691, 0.0
        %v1724 = vmax.f32 %v1692, 0.0
        %v1725 = vmax.f32 %v1693, 0.0
        %v1726 = vmax.f32 %v1694, 0.0
        %v1727 = vmin.f32 %v1695, 6.0
        %v1728 = vmin.f32 %v1696, 6.0
        %v1729 = vmin.f32 %v1697, 6.0
        %v1730 = vmin.f32 %v1698, 6.0
        %v1731 = vmin.f32 %v1699, 6.0
        %v1732 = vmin.f32 %v1700, 6.0
        %v1733 = vmin.f32 %v1701, 6.0
        %v1734 = vmin.f32 %v1702, 6.0
        %v1735 = vmin.f32 %v1703, 6.0
        %v1736 = vmin.f32 %v1704, 6.0
        %v1737 = vmin.f32 %v1705, 6.0
        %v1738 = vmin.f32 %v1706, 6.0
        %v1739 = vmin.f32 %v1707, 6.0
        %v1740 = vmin.f32 %v1708, 6.0
        %v1741 = vmin.f32 %v1709, 6.0
        %v1742 = vmin.f32 %v1710, 6.0
        %v1743 = vmin.f32 %v1711, 6.0
        %v1744 = vmin.f32 %v1712, 6.0
        %v1745 = vmin.f32 %v1713, 6.0
        %v1746 = vmin.f32 %v1714, 6.0
        %v1747 = vmin.f32 %v1715, 6.0
        %v1748 = vmin.f32 %v1716, 6.0
        %v1749 = vmin.f32 %v1717, 6.0
        %v1750 = vmin.f32 %v1718, 6.0
        %v1751 = vmin.f32 %v1719, 6.0
        %v1752 = vmin.f32 %v1720, 6.0
        %v1753 = vmin.f32 %v1721, 6.0
        %v1754 = vmin.f32 %v1722, 6.0
        %v1755 = vmin.f32 %v1723, 6.0
        %v1756 = vmin.f32 %v1724, 6.0
        %v1757 = vmin.f32 %v1725, 6.0
        %v1758 = vmin.f32 %v1726, 6.0
        %v1759 = vld [vmem:[%s7] sm:$0xff]
        %v1760 = vld [vmem:[%s7 + $0x8] sm:$0x1]
        %v1761 = vld [vmem:[%s9] sm:$0x3]
        %v1762 = vld [vmem:[%s13] sm:$0x3]
        %vm1763 = vcmask 261120
        %1764 = vst.msk [vmem:[#allocation2] sm:$0xff] %vm1763, 0.0
        %1765 = vst.msk [vmem:[#allocation2 + $0x8] sm:$0xff] %vm1763, 0.0
        %vm1766 = vcmask 253952
        %1767 = vst.msk [vmem:[#allocation2 + $0x10] sm:$0x1] %vm1766, 0.0
        %1768 = vst.msk [vmem:[#allocation2 + $0x11] sm:$0xff] %vm1763, %v1727
        %1769 = vst.msk [vmem:[#allocation2 + $0x19] sm:$0xff] %vm1763, %v1728
        %1770 = vst.msk [vmem:[#allocation2 + $0x21] sm:$0xff] %vm1763, %v1729
        %1771 = vst.msk [vmem:[#allocation2 + $0x29] sm:$0xff] %vm1763, %v1730
        %1772 = vst.msk [vmem:[#allocation2 + $0x31] sm:$0xff] %vm1763, %v1731
        %1773 = vst.msk [vmem:[#allocation2 + $0x39] sm:$0xff] %vm1763, %v1732
        %1774 = vst.msk [vmem:[#allocation2 + $0x41] sm:$0xff] %vm1763, %v1733
        %1775 = vst.msk [vmem:[#allocation2 + $0x49] sm:$0xff] %vm1763, %v1734
        %1776 = vst.msk [vmem:[#allocation2 + $0x51] sm:$0xff] %vm1763, %v1735
        %1777 = vst.msk [vmem:[#allocation2 + $0x59] sm:$0xff] %vm1763, %v1736
        %1778 = vst.msk [vmem:[#allocation2 + $0x61] sm:$0xff] %vm1763, %v1737
        %1779 = vst.msk [vmem:[#allocation2 + $0x69] sm:$0xff] %vm1763, %v1738
        %1780 = vst.msk [vmem:[#allocation2 + $0x71] sm:$0xff] %vm1763, %v1739
        %1781 = vst.msk [vmem:[#allocation2 + $0x79] sm:$0xff] %vm1763, %v1740
        %1782 = vst.msk [vmem:[#allocation2 + $0x81] sm:$0xff] %vm1763, %v1741
        %1783 = vst.msk [vmem:[#allocation2 + $0x89] sm:$0xff] %vm1763, %v1742
        %1784 = vst.msk [vmem:[#allocation2 + $0x91] sm:$0xff] %vm1763, %v1743
        %1785 = vst.msk [vmem:[#allocation2 + $0x99] sm:$0xff] %vm1763, %v1744
        %1786 = vst.msk [vmem:[#allocation2 + $0xa1] sm:$0xff] %vm1763, %v1745
        %1787 = vst.msk [vmem:[#allocation2 + $0xa9] sm:$0xff] %vm1763, %v1746
        %1788 = vst.msk [vmem:[#allocation2 + $0xb1] sm:$0xff] %vm1763, %v1747
        %1789 = vst.msk [vmem:[#allocation2 + $0xb9] sm:$0xff] %vm1763, %v1748
        %1790 = vst.msk [vmem:[#allocation2 + $0xc1] sm:$0xff] %vm1763, %v1749
        %1791 = vst.msk [vmem:[#allocation2 + $0xc9] sm:$0xff] %vm1763, %v1750
        %1792 = vst.msk [vmem:[#allocation2 + $0xd1] sm:$0xff] %vm1763, %v1751
        %1793 = vst.msk [vmem:[#allocation2 + $0xd9] sm:$0xff] %vm1763, %v1752
        %1794 = vst.msk [vmem:[#allocation2 + $0xe1] sm:$0xff] %vm1763, %v1753
        %1795 = vst.msk [vmem:[#allocation2 + $0xe9] sm:$0xff] %vm1763, %v1754
        %1796 = vst.msk [vmem:[#allocation2 + $0xf1] sm:$0xff] %vm1763, %v1755
        %1797 = vst.msk [vmem:[#allocation2 + $0xf9] sm:$0xff] %vm1763, %v1756
        %1798 = vst.msk [vmem:[#allocation2 + $0x101] sm:$0xff] %vm1763, %v1757
        %1799 = vst.msk [vmem:[#allocation2 + $0x109] sm:$0xff] %vm1763, %v1758
        %1800 = vst.msk [vmem:[#allocation2 + $0x111] sm:$0xff] %vm1763, 0.0
        %1801 = vst.msk [vmem:[#allocation2 + $0x119] sm:$0xff] %vm1763, 0.0
        %1802 = vst.msk [vmem:[#allocation2 + $0x121] sm:$0x1] %vm1766, 0.0
        %v1803 = vlaneseq
        %v1804 = vshrl.u32 %v1803, 7
        %v1805 = vadd.s32 %v1804, 8
        %v1806 = vadd.s32 %v1804, 16
        %v1807 = vadd.s32 %v1804, 24
        %v1808 = vadd.s32 %v1804, 32
        %v1809 = vadd.s32 %v1804, 40
        %v1810 = vadd.s32 %v1804, 48
        %v1811 = vadd.s32 %v1804, 56
        %v1812 = vadd.s32 %v1804, 64
        %v1813 = vadd.s32 %v1804, 72
        %v1814 = vadd.s32 %v1804, 80
        %v1815 = vadd.s32 %v1804, 88
        %v1816 = vadd.s32 %v1804, 96
        %v1817 = vadd.s32 %v1804, 104
        %v1818 = vadd.s32 %v1804, 112
        %v1819 = vadd.s32 %v1804, 120
        %v1820 = vadd.s32 %v1804, 128
        %v1821 = vadd.s32 %v1804, 136
        %v1822 = vadd.s32 %v1804, 144
        %v1823 = vadd.s32 %v1804, 152
        %v1824 = vadd.s32 %v1804, 160
        %v1825 = vadd.s32 %v1804, 168
        %v1826 = vadd.s32 %v1804, 176
        %v1827 = vadd.s32 %v1804, 184
        %v1828 = vadd.s32 %v1804, 192
        %v1829 = vadd.s32 %v1804, 200
        %v1830 = vadd.s32 %v1804, 208
        %v1831 = vadd.s32 %v1804, 216
        %v1832 = vadd.s32 %v1804, 224
        %v1833 = vadd.s32 %v1804, 232
        %v1834 = vadd.s32 %v1804, 240
        %v1835 = vadd.s32 %v1804, 248
        %vm1836 = vcmp.lt.s32.totalorder %v1804, 0
        %v1837 = vsub.s32 0, %v1804
        %v1838 = vsel %vm1836, %v1837, %v1804
        %v1839 = vshrl.u32 %v1838, 4
        %v1840 = vand.u32 %v1838, 15
        %v1841 = vsub.s32 0, %v1840
        %v1842 = vsel %vm1836, %v1841, %v1840
        %vm1843 = vcmp.lt.s32.totalorder %v1805, 0
        %v1844 = vsub.s32 0, %v1805
        %v1845 = vsel %vm1843, %v1844, %v1805
        %v1846 = vshrl.u32 %v1845, 4
        %v1847 = vand.u32 %v1845, 15
        %v1848 = vsub.s32 0, %v1847
        %v1849 = vsel %vm1843, %v1848, %v1847
        %vm1850 = vcmp.lt.s32.totalorder %v1806, 0
        %v1851 = vsub.s32 0, %v1806
        %v1852 = vsel %vm1850, %v1851, %v1806
        %v1853 = vshrl.u32 %v1852, 4
        %v1854 = vand.u32 %v1852, 15
        %v1855 = vsub.s32 0, %v1854
        %v1856 = vsel %vm1850, %v1855, %v1854
        %vm1857 = vcmp.lt.s32.totalorder %v1807, 0
        %v1858 = vsub.s32 0, %v1807
        %v1859 = vsel %vm1857, %v1858, %v1807
        %v1860 = vshrl.u32 %v1859, 4
        %v1861 = vand.u32 %v1859, 15
        %v1862 = vsub.s32 0, %v1861
        %v1863 = vsel %vm1857, %v1862, %v1861
        %vm1864 = vcmp.lt.s32.totalorder %v1808, 0
        %v1865 = vsub.s32 0, %v1808
        %v1866 = vsel %vm1864, %v1865, %v1808
        %v1867 = vshrl.u32 %v1866, 4
        %v1868 = vand.u32 %v1866, 15
        %v1869 = vsub.s32 0, %v1868
        %v1870 = vsel %vm1864, %v1869, %v1868
        %vm1871 = vcmp.lt.s32.totalorder %v1809, 0
        %v1872 = vsub.s32 0, %v1809
        %v1873 = vsel %vm1871, %v1872, %v1809
        %v1874 = vshrl.u32 %v1873, 4
        %v1875 = vand.u32 %v1873, 15
        %v1876 = vsub.s32 0, %v1875
        %v1877 = vsel %vm1871, %v1876, %v1875
        %vm1878 = vcmp.lt.s32.totalorder %v1810, 0
        %v1879 = vsub.s32 0, %v1810
        %v1880 = vsel %vm1878, %v1879, %v1810
        %v1881 = vshrl.u32 %v1880, 4
        %v1882 = vand.u32 %v1880, 15
        %v1883 = vsub.s32 0, %v1882
        %v1884 = vsel %vm1878, %v1883, %v1882
        %vm1885 = vcmp.lt.s32.totalorder %v1811, 0
        %v1886 = vsub.s32 0, %v1811
        %v1887 = vsel %vm1885, %v1886, %v1811
        %v1888 = vshrl.u32 %v1887, 4
        %v1889 = vand.u32 %v1887, 15
        %v1890 = vsub.s32 0, %v1889
        %v1891 = vsel %vm1885, %v1890, %v1889
        %vm1892 = vcmp.lt.s32.totalorder %v1812, 0
        %v1893 = vsub.s32 0, %v1812
        %v1894 = vsel %vm1892, %v1893, %v1812
        %v1895 = vshrl.u32 %v1894, 4
        %v1896 = vand.u32 %v1894, 15
        %v1897 = vsub.s32 0, %v1896
        %v1898 = vsel %vm1892, %v1897, %v1896
        %vm1899 = vcmp.lt.s32.totalorder %v1813, 0
        %v1900 = vsub.s32 0, %v1813
        %v1901 = vsel %vm1899, %v1900, %v1813
        %v1902 = vshrl.u32 %v1901, 4
        %v1903 = vand.u32 %v1901, 15
        %v1904 = vsub.s32 0, %v1903
        %v1905 = vsel %vm1899, %v1904, %v1903
        %vm1906 = vcmp.lt.s32.totalorder %v1814, 0
        %v1907 = vsub.s32 0, %v1814
        %v1908 = vsel %vm1906, %v1907, %v1814
        %v1909 = vshrl.u32 %v1908, 4
        %v1910 = vand.u32 %v1908, 15
        %v1911 = vsub.s32 0, %v1910
        %v1912 = vsel %vm1906, %v1911, %v1910
        %vm1913 = vcmp.lt.s32.totalorder %v1815, 0
        %v1914 = vsub.s32 0, %v1815
        %v1915 = vsel %vm1913, %v1914, %v1815
        %v1916 = vshrl.u32 %v1915, 4
        %v1917 = vand.u32 %v1915, 15
        %v1918 = vsub.s32 0, %v1917
        %v1919 = vsel %vm1913, %v1918, %v1917
        %vm1920 = vcmp.lt.s32.totalorder %v1816, 0
        %v1921 = vsub.s32 0, %v1816
        %v1922 = vsel %vm1920, %v1921, %v1816
        %v1923 = vshrl.u32 %v1922, 4
        %v1924 = vand.u32 %v1922, 15
        %v1925 = vsub.s32 0, %v1924
        %v1926 = vsel %vm1920, %v1925, %v1924
        %vm1927 = vcmp.lt.s32.totalorder %v1817, 0
        %v1928 = vsub.s32 0, %v1817
        %v1929 = vsel %vm1927, %v1928, %v1817
        %v1930 = vshrl.u32 %v1929, 4
        %v1931 = vand.u32 %v1929, 15
        %v1932 = vsub.s32 0, %v1931
        %v1933 = vsel %vm1927, %v1932, %v1931
        %vm1934 = vcmp.lt.s32.totalorder %v1818, 0
        %v1935 = vsub.s32 0, %v1818
        %v1936 = vsel %vm1934, %v1935, %v1818
        %v1937 = vshrl.u32 %v1936, 4
        %v1938 = vand.u32 %v1936, 15
        %v1939 = vsub.s32 0, %v1938
        %v1940 = vsel %vm1934, %v1939, %v1938
        %vm1941 = vcmp.lt.s32.totalorder %v1819, 0
        %v1942 = vsub.s32 0, %v1819
        %v1943 = vsel %vm1941, %v1942, %v1819
        %v1944 = vshrl.u32 %v1943, 4
        %v1945 = vand.u32 %v1943, 15
        %v1946 = vsub.s32 0, %v1945
        %v1947 = vsel %vm1941, %v1946, %v1945
        %vm1948 = vcmp.lt.s32.totalorder %v1820, 0
        %v1949 = vsub.s32 0, %v1820
        %v1950 = vsel %vm1948, %v1949, %v1820
        %v1951 = vshrl.u32 %v1950, 4
        %v1952 = vand.u32 %v1950, 15
        %v1953 = vsub.s32 0, %v1952
        %v1954 = vsel %vm1948, %v1953, %v1952
        %vm1955 = vcmp.lt.s32.totalorder %v1821, 0
        %v1956 = vsub.s32 0, %v1821
        %v1957 = vsel %vm1955, %v1956, %v1821
        %v1958 = vshrl.u32 %v1957, 4
        %v1959 = vand.u32 %v1957, 15
        %v1960 = vsub.s32 0, %v1959
        %v1961 = vsel %vm1955, %v1960, %v1959
        %vm1962 = vcmp.lt.s32.totalorder %v1822, 0
        %v1963 = vsub.s32 0, %v1822
        %v1964 = vsel %vm1962, %v1963, %v1822
        %v1965 = vshrl.u32 %v1964, 4
        %v1966 = vand.u32 %v1964, 15
        %v1967 = vsub.s32 0, %v1966
        %v1968 = vsel %vm1962, %v1967, %v1966
        %vm1969 = vcmp.lt.s32.totalorder %v1823, 0
        %v1970 = vsub.s32 0, %v1823
        %v1971 = vsel %vm1969, %v1970, %v1823
        %v1972 = vshrl.u32 %v1971, 4
        %v1973 = vand.u32 %v1971, 15
        %v1974 = vsub.s32 0, %v1973
        %v1975 = vsel %vm1969, %v1974, %v1973
        %vm1976 = vcmp.lt.s32.totalorder %v1824, 0
        %v1977 = vsub.s32 0, %v1824
        %v1978 = vsel %vm1976, %v1977, %v1824
        %v1979 = vshrl.u32 %v1978, 4
        %v1980 = vand.u32 %v1978, 15
        %v1981 = vsub.s32 0, %v1980
        %v1982 = vsel %vm1976, %v1981, %v1980
        %vm1983 = vcmp.lt.s32.totalorder %v1825, 0
        %v1984 = vsub.s32 0, %v1825
        %v1985 = vsel %vm1983, %v1984, %v1825
        %v1986 = vshrl.u32 %v1985, 4
        %v1987 = vand.u32 %v1985, 15
        %v1988 = vsub.s32 0, %v1987
        %v1989 = vsel %vm1983, %v1988, %v1987
        %vm1990 = vcmp.lt.s32.totalorder %v1826, 0
        %v1991 = vsub.s32 0, %v1826
        %v1992 = vsel %vm1990, %v1991, %v1826
        %v1993 = vshrl.u32 %v1992, 4
        %v1994 = vand.u32 %v1992, 15
        %v1995 = vsub.s32 0, %v1994
        %v1996 = vsel %vm1990, %v1995, %v1994
        %vm1997 = vcmp.lt.s32.totalorder %v1827, 0
        %v1998 = vsub.s32 0, %v1827
        %v1999 = vsel %vm1997, %v1998, %v1827
        %v2000 = vshrl.u32 %v1999, 4
        %v2001 = vand.u32 %v1999, 15
        %v2002 = vsub.s32 0, %v2001
        %v2003 = vsel %vm1997, %v2002, %v2001
        %vm2004 = vcmp.lt.s32.totalorder %v1828, 0
        %v2005 = vsub.s32 0, %v1828
        %v2006 = vsel %vm2004, %v2005, %v1828
        %v2007 = vshrl.u32 %v2006, 4
        %v2008 = vand.u32 %v2006, 15
        %v2009 = vsub.s32 0, %v2008
        %v2010 = vsel %vm2004, %v2009, %v2008
        %vm2011 = vcmp.lt.s32.totalorder %v1829, 0
        %v2012 = vsub.s32 0, %v1829
        %v2013 = vsel %vm2011, %v2012, %v1829
        %v2014 = vshrl.u32 %v2013, 4
        %v2015 = vand.u32 %v2013, 15
        %v2016 = vsub.s32 0, %v2015
        %v2017 = vsel %vm2011, %v2016, %v2015
        %vm2018 = vcmp.lt.s32.totalorder %v1830, 0
        %v2019 = vsub.s32 0, %v1830
        %v2020 = vsel %vm2018, %v2019, %v1830
        %v2021 = vshrl.u32 %v2020, 4
        %v2022 = vand.u32 %v2020, 15
        %v2023 = vsub.s32 0, %v2022
        %v2024 = vsel %vm2018, %v2023, %v2022
        %vm2025 = vcmp.lt.s32.totalorder %v1831, 0
        %v2026 = vsub.s32 0, %v1831
        %v2027 = vsel %vm2025, %v2026, %v1831
        %v2028 = vshrl.u32 %v2027, 4
        %v2029 = vand.u32 %v2027, 15
        %v2030 = vsub.s32 0, %v2029
        %v2031 = vsel %vm2025, %v2030, %v2029
        %vm2032 = vcmp.lt.s32.totalorder %v1832, 0
        %v2033 = vsub.s32 0, %v1832
        %v2034 = vsel %vm2032, %v2033, %v1832
        %v2035 = vshrl.u32 %v2034, 4
        %v2036 = vand.u32 %v2034, 15
        %v2037 = vsub.s32 0, %v2036
        %v2038 = vsel %vm2032, %v2037, %v2036
        %vm2039 = vcmp.lt.s32.totalorder %v1833, 0
        %v2040 = vsub.s32 0, %v1833
        %v2041 = vsel %vm2039, %v2040, %v1833
        %v2042 = vshrl.u32 %v2041, 4
        %v2043 = vand.u32 %v2041, 15
        %v2044 = vsub.s32 0, %v2043
        %v2045 = vsel %vm2039, %v2044, %v2043
        %vm2046 = vcmp.lt.s32.totalorder %v1834, 0
        %v2047 = vsub.s32 0, %v1834
        %v2048 = vsel %vm2046, %v2047, %v1834
        %v2049 = vshrl.u32 %v2048, 4
        %v2050 = vand.u32 %v2048, 15
        %v2051 = vsub.s32 0, %v2050
        %v2052 = vsel %vm2046, %v2051, %v2050
        %vm2053 = vcmp.lt.s32.totalorder %v1835, 0
        %v2054 = vsub.s32 0, %v1835
        %v2055 = vsel %vm2053, %v2054, %v1835
        %v2056 = vshrl.u32 %v2055, 4
        %v2057 = vand.u32 %v2055, 15
        %v2058 = vsub.s32 0, %v2057
        %v2059 = vsel %vm2053, %v2058, %v2057
        %vm2060 = vcmp.ne.s32.totalorder %v1842, 0
        %vm2061 = vcmp.ne.s32.totalorder %v1849, 0
        %vm2062 = vcmp.ne.s32.totalorder %v1856, 0
        %vm2063 = vcmp.ne.s32.totalorder %v1863, 0
        %vm2064 = vcmp.ne.s32.totalorder %v1870, 0
        %vm2065 = vcmp.ne.s32.totalorder %v1877, 0
        %vm2066 = vcmp.ne.s32.totalorder %v1884, 0
        %vm2067 = vcmp.ne.s32.totalorder %v1891, 0
        %vm2068 = vcmp.ne.s32.totalorder %v1898, 0
        %vm2069 = vcmp.ne.s32.totalorder %v1905, 0
        %vm2070 = vcmp.ne.s32.totalorder %v1912, 0
        %vm2071 = vcmp.ne.s32.totalorder %v1919, 0
        %vm2072 = vcmp.ne.s32.totalorder %v1926, 0
        %vm2073 = vcmp.ne.s32.totalorder %v1933, 0
        %vm2074 = vcmp.ne.s32.totalorder %v1940, 0
        %vm2075 = vcmp.ne.s32.totalorder %v1947, 0
        %vm2076 = vcmp.ne.s32.totalorder %v1954, 0
        %vm2077 = vcmp.ne.s32.totalorder %v1961, 0
        %vm2078 = vcmp.ne.s32.totalorder %v1968, 0
        %vm2079 = vcmp.ne.s32.totalorder %v1975, 0
        %vm2080 = vcmp.ne.s32.totalorder %v1982, 0
        %vm2081 = vcmp.ne.s32.totalorder %v1989, 0
        %vm2082 = vcmp.ne.s32.totalorder %v1996, 0
        %vm2083 = vcmp.ne.s32.totalorder %v2003, 0
        %vm2084 = vcmp.ne.s32.totalorder %v2010, 0
        %vm2085 = vcmp.ne.s32.totalorder %v2017, 0
        %vm2086 = vcmp.ne.s32.totalorder %v2024, 0
        %vm2087 = vcmp.ne.s32.totalorder %v2031, 0
        %vm2088 = vcmp.ne.s32.totalorder %v2038, 0
        %vm2089 = vcmp.ne.s32.totalorder %v2045, 0
        %vm2090 = vcmp.ne.s32.totalorder %v2052, 0
        %vm2091 = vcmp.ne.s32.totalorder %v2059, 0
        %vm2092 = vcmp.lt.s32.totalorder %v1842, 0
        %vm2093 = vcmp.lt.s32.totalorder %v1849, 0
        %vm2094 = vcmp.lt.s32.totalorder %v1856, 0
        %vm2095 = vcmp.lt.s32.totalorder %v1863, 0
        %vm2096 = vcmp.lt.s32.totalorder %v1870, 0
        %vm2097 = vcmp.lt.s32.totalorder %v1877, 0
        %vm2098 = vcmp.lt.s32.totalorder %v1884, 0
        %vm2099 = vcmp.lt.s32.totalorder %v1891, 0
        %vm2100 = vcmp.lt.s32.totalorder %v1898, 0
        %vm2101 = vcmp.lt.s32.totalorder %v1905, 0
        %vm2102 = vcmp.lt.s32.totalorder %v1912, 0
        %vm2103 = vcmp.lt.s32.totalorder %v1919, 0
        %vm2104 = vcmp.lt.s32.totalorder %v1926, 0
        %vm2105 = vcmp.lt.s32.totalorder %v1933, 0
        %vm2106 = vcmp.lt.s32.totalorder %v1940, 0
        %vm2107 = vcmp.lt.s32.totalorder %v1947, 0
        %vm2108 = vcmp.lt.s32.totalorder %v1954, 0
        %vm2109 = vcmp.lt.s32.totalorder %v1961, 0
        %vm2110 = vcmp.lt.s32.totalorder %v1968, 0
        %vm2111 = vcmp.lt.s32.totalorder %v1975, 0
        %vm2112 = vcmp.lt.s32.totalorder %v1982, 0
        %vm2113 = vcmp.lt.s32.totalorder %v1989, 0
        %vm2114 = vcmp.lt.s32.totalorder %v1996, 0
        %vm2115 = vcmp.lt.s32.totalorder %v2003, 0
        %vm2116 = vcmp.lt.s32.totalorder %v2010, 0
        %vm2117 = vcmp.lt.s32.totalorder %v2017, 0
        %vm2118 = vcmp.lt.s32.totalorder %v2024, 0
        %vm2119 = vcmp.lt.s32.totalorder %v2031, 0
        %vm2120 = vcmp.lt.s32.totalorder %v2038, 0
        %vm2121 = vcmp.lt.s32.totalorder %v2045, 0
        %vm2122 = vcmp.lt.s32.totalorder %v2052, 0
        %vm2123 = vcmp.lt.s32.totalorder %v2059, 0
        %vm2124 = vmand %vm2092, %vm2060
        %vm2125 = vmand %vm2093, %vm2061
        %vm2126 = vmand %vm2094, %vm2062
        %vm2127 = vmand %vm2095, %vm2063
        %vm2128 = vmand %vm2096, %vm2064
        %vm2129 = vmand %vm2097, %vm2065
        %vm2130 = vmand %vm2098, %vm2066
        %vm2131 = vmand %vm2099, %vm2067
        %vm2132 = vmand %vm2100, %vm2068
        %vm2133 = vmand %vm2101, %vm2069
        %vm2134 = vmand %vm2102, %vm2070
        %vm2135 = vmand %vm2103, %vm2071
        %vm2136 = vmand %vm2104, %vm2072
        %vm2137 = vmand %vm2105, %vm2073
        %vm2138 = vmand %vm2106, %vm2074
        %vm2139 = vmand %vm2107, %vm2075
        %vm2140 = vmand %vm2108, %vm2076
        %vm2141 = vmand %vm2109, %vm2077
        %vm2142 = vmand %vm2110, %vm2078
        %vm2143 = vmand %vm2111, %vm2079
        %vm2144 = vmand %vm2112, %vm2080
        %vm2145 = vmand %vm2113, %vm2081
        %vm2146 = vmand %vm2114, %vm2082
        %vm2147 = vmand %vm2115, %vm2083
        %vm2148 = vmand %vm2116, %vm2084
        %vm2149 = vmand %vm2117, %vm2085
        %vm2150 = vmand %vm2118, %vm2086
        %vm2151 = vmand %vm2119, %vm2087
        %vm2152 = vmand %vm2120, %vm2088
        %vm2153 = vmand %vm2121, %vm2089
        %vm2154 = vmand %vm2122, %vm2090
        %vm2155 = vmand %vm2123, %vm2091
        %v2156 = vadd.s32 %v1842, 16
        %v2157 = vadd.s32 %v1849, 16
        %v2158 = vadd.s32 %v1856, 16
        %v2159 = vadd.s32 %v1863, 16
        %v2160 = vadd.s32 %v1870, 16
        %v2161 = vadd.s32 %v1877, 16
        %v2162 = vadd.s32 %v1884, 16
        %v2163 = vadd.s32 %v1891, 16
        %v2164 = vadd.s32 %v1898, 16
        %v2165 = vadd.s32 %v1905, 16
        %v2166 = vadd.s32 %v1912, 16
        %v2167 = vadd.s32 %v1919, 16
        %v2168 = vadd.s32 %v1926, 16
        %v2169 = vadd.s32 %v1933, 16
        %v2170 = vadd.s32 %v1940, 16
        %v2171 = vadd.s32 %v1947, 16
        %v2172 = vadd.s32 %v1954, 16
        %v2173 = vadd.s32 %v1961, 16
        %v2174 = vadd.s32 %v1968, 16
        %v2175 = vadd.s32 %v1975, 16
        %v2176 = vadd.s32 %v1982, 16
        %v2177 = vadd.s32 %v1989, 16
        %v2178 = vadd.s32 %v1996, 16
        %v2179 = vadd.s32 %v2003, 16
        %v2180 = vadd.s32 %v2010, 16
        %v2181 = vadd.s32 %v2017, 16
        %v2182 = vadd.s32 %v2024, 16
        %v2183 = vadd.s32 %v2031, 16
        %v2184 = vadd.s32 %v2038, 16
        %v2185 = vadd.s32 %v2045, 16
        %v2186 = vadd.s32 %v2052, 16
        %v2187 = vadd.s32 %v2059, 16
        %v2188 = vsel %vm2124, %v2156, %v1842
        %v2189 = vsel %vm2125, %v2157, %v1849
        %v2190 = vsel %vm2126, %v2158, %v1856
        %v2191 = vsel %vm2127, %v2159, %v1863
        %v2192 = vsel %vm2128, %v2160, %v1870
        %v2193 = vsel %vm2129, %v2161, %v1877
        %v2194 = vsel %vm2130, %v2162, %v1884
        %v2195 = vsel %vm2131, %v2163, %v1891
        %v2196 = vsel %vm2132, %v2164, %v1898
        %v2197 = vsel %vm2133, %v2165, %v1905
        %v2198 = vsel %vm2134, %v2166, %v1912
        %v2199 = vsel %vm2135, %v2167, %v1919
        %v2200 = vsel %vm2136, %v2168, %v1926
        %v2201 = vsel %vm2137, %v2169, %v1933
        %v2202 = vsel %vm2138, %v2170, %v1940
        %v2203 = vsel %vm2139, %v2171, %v1947
        %v2204 = vsel %vm2140, %v2172, %v1954
        %v2205 = vsel %vm2141, %v2173, %v1961
        %v2206 = vsel %vm2142, %v2174, %v1968
        %v2207 = vsel %vm2143, %v2175, %v1975
        %v2208 = vsel %vm2144, %v2176, %v1982
        %v2209 = vsel %vm2145, %v2177, %v1989
        %v2210 = vsel %vm2146, %v2178, %v1996
        %v2211 = vsel %vm2147, %v2179, %v2003
        %v2212 = vsel %vm2148, %v2180, %v2010
        %v2213 = vsel %vm2149, %v2181, %v2017
        %v2214 = vsel %vm2150, %v2182, %v2024
        %v2215 = vsel %vm2151, %v2183, %v2031
        %v2216 = vsel %vm2152, %v2184, %v2038
        %v2217 = vsel %vm2153, %v2185, %v2045
        %v2218 = vsel %vm2154, %v2186, %v2052
        %v2219 = vsel %vm2155, %v2187, %v2059
        %vm2220 = vcmp.eq.s32.totalorder %v2188, 0
        %vm2221 = vcmp.eq.s32.totalorder %v2189, 0
        %vm2222 = vcmp.eq.s32.totalorder %v2190, 0
        %vm2223 = vcmp.eq.s32.totalorder %v2191, 0
        %vm2224 = vcmp.eq.s32.totalorder %v2192, 0
        %vm2225 = vcmp.eq.s32.totalorder %v2193, 0
        %vm2226 = vcmp.eq.s32.totalorder %v2194, 0
        %vm2227 = vcmp.eq.s32.totalorder %v2195, 0
        %vm2228 = vcmp.eq.s32.totalorder %v2196, 0
        %vm2229 = vcmp.eq.s32.totalorder %v2197, 0
        %vm2230 = vcmp.eq.s32.totalorder %v2198, 0
        %vm2231 = vcmp.eq.s32.totalorder %v2199, 0
        %vm2232 = vcmp.eq.s32.totalorder %v2200, 0
        %vm2233 = vcmp.eq.s32.totalorder %v2201, 0
        %vm2234 = vcmp.eq.s32.totalorder %v2202, 0
        %vm2235 = vcmp.eq.s32.totalorder %v2203, 0
        %vm2236 = vcmp.eq.s32.totalorder %v2204, 0
        %vm2237 = vcmp.eq.s32.totalorder %v2205, 0
        %vm2238 = vcmp.eq.s32.totalorder %v2206, 0
        %vm2239 = vcmp.eq.s32.totalorder %v2207, 0
        %vm2240 = vcmp.eq.s32.totalorder %v2208, 0
        %vm2241 = vcmp.eq.s32.totalorder %v2209, 0
        %vm2242 = vcmp.eq.s32.totalorder %v2210, 0
        %vm2243 = vcmp.eq.s32.totalorder %v2211, 0
        %vm2244 = vcmp.eq.s32.totalorder %v2212, 0
        %vm2245 = vcmp.eq.s32.totalorder %v2213, 0
        %vm2246 = vcmp.eq.s32.totalorder %v2214, 0
        %vm2247 = vcmp.eq.s32.totalorder %v2215, 0
        %vm2248 = vcmp.eq.s32.totalorder %v2216, 0
        %vm2249 = vcmp.eq.s32.totalorder %v2217, 0
        %vm2250 = vcmp.eq.s32.totalorder %v2218, 0
        %vm2251 = vcmp.eq.s32.totalorder %v2219, 0
        %vm2252 = vcmp.eq.s32.totalorder %v2188, 15
        %vm2253 = vcmp.eq.s32.totalorder %v2189, 15
        %vm2254 = vcmp.eq.s32.totalorder %v2190, 15
        %vm2255 = vcmp.eq.s32.totalorder %v2191, 15
        %vm2256 = vcmp.eq.s32.totalorder %v2192, 15
        %vm2257 = vcmp.eq.s32.totalorder %v2193, 15
        %vm2258 = vcmp.eq.s32.totalorder %v2194, 15
        %vm2259 = vcmp.eq.s32.totalorder %v2195, 15
        %vm2260 = vcmp.eq.s32.totalorder %v2196, 15
        %vm2261 = vcmp.eq.s32.totalorder %v2197, 15
        %vm2262 = vcmp.eq.s32.totalorder %v2198, 15
        %vm2263 = vcmp.eq.s32.totalorder %v2199, 15
        %vm2264 = vcmp.eq.s32.totalorder %v2200, 15
        %vm2265 = vcmp.eq.s32.totalorder %v2201, 15
        %vm2266 = vcmp.eq.s32.totalorder %v2202, 15
        %vm2267 = vcmp.eq.s32.totalorder %v2203, 15
        %vm2268 = vcmp.eq.s32.totalorder %v2204, 15
        %vm2269 = vcmp.eq.s32.totalorder %v2205, 15
        %vm2270 = vcmp.eq.s32.totalorder %v2206, 15
        %vm2271 = vcmp.eq.s32.totalorder %v2207, 15
        %vm2272 = vcmp.eq.s32.totalorder %v2208, 15
        %vm2273 = vcmp.eq.s32.totalorder %v2209, 15
        %vm2274 = vcmp.eq.s32.totalorder %v2210, 15
        %vm2275 = vcmp.eq.s32.totalorder %v2211, 15
        %vm2276 = vcmp.eq.s32.totalorder %v2212, 15
        %vm2277 = vcmp.eq.s32.totalorder %v2213, 15
        %vm2278 = vcmp.eq.s32.totalorder %v2214, 15
        %vm2279 = vcmp.eq.s32.totalorder %v2215, 15
        %vm2280 = vcmp.eq.s32.totalorder %v2216, 15
        %vm2281 = vcmp.eq.s32.totalorder %v2217, 15
        %vm2282 = vcmp.eq.s32.totalorder %v2218, 15
        %vm2283 = vcmp.eq.s32.totalorder %v2219, 15
        %v2284 = vld [vmem:[#allocation2] sm:$0xff]
        %v2285 = vld [vmem:[#allocation2 + $0x8] sm:$0xff]
        %v2286 = vld [vmem:[#allocation2 + $0x10] sm:$0xff]
        %v2287 = vld [vmem:[#allocation2 + $0x18] sm:$0xff]
        %v2288 = vld [vmem:[#allocation2 + $0x20] sm:$0xff]
        %v2289 = vld [vmem:[#allocation2 + $0x28] sm:$0xff]
        %v2290 = vld [vmem:[#allocation2 + $0x30] sm:$0xff]
        %v2291 = vld [vmem:[#allocation2 + $0x38] sm:$0xff]
        %v2292 = vld [vmem:[#allocation2 + $0x40] sm:$0xff]
        %v2293 = vld [vmem:[#allocation2 + $0x48] sm:$0xff]
        %v2294 = vld [vmem:[#allocation2 + $0x50] sm:$0xff]
        %v2295 = vld [vmem:[#allocation2 + $0x58] sm:$0xff]
        %v2296 = vld [vmem:[#allocation2 + $0x60] sm:$0xff]
        %v2297 = vld [vmem:[#allocation2 + $0x68] sm:$0xff]
        %v2298 = vld [vmem:[#allocation2 + $0x70] sm:$0xff]
        %v2299 = vld [vmem:[#allocation2 + $0x78] sm:$0xff]
        %v2300 = vld [vmem:[#allocation2 + $0x80] sm:$0xff]
        %v2301 = vld [vmem:[#allocation2 + $0x88] sm:$0xff]
        %v2302 = vld [vmem:[#allocation2 + $0x90] sm:$0xff]
        %v2303 = vld [vmem:[#allocation2 + $0x98] sm:$0xff]
        %v2304 = vld [vmem:[#allocation2 + $0xa0] sm:$0xff]
        %v2305 = vld [vmem:[#allocation2 + $0xa8] sm:$0xff]
        %v2306 = vld [vmem:[#allocation2 + $0xb0] sm:$0xff]
        %v2307 = vld [vmem:[#allocation2 + $0xb8] sm:$0xff]
        %v2308 = vld [vmem:[#allocation2 + $0xc0] sm:$0xff]
        %v2309 = vld [vmem:[#allocation2 + $0xc8] sm:$0xff]
        %v2310 = vld [vmem:[#allocation2 + $0xd0] sm:$0xff]
        %v2311 = vld [vmem:[#allocation2 + $0xd8] sm:$0xff]
        %v2312 = vld [vmem:[#allocation2 + $0xe0] sm:$0xff]
        %v2313 = vld [vmem:[#allocation2 + $0xe8] sm:$0xff]
        %v2314 = vld [vmem:[#allocation2 + $0xf0] sm:$0xff]
        %v2315 = vld [vmem:[#allocation2 + $0xf8] sm:$0xff]
        %v2316 = vlaneseq
        %v2317 = vshrl.u32 %v2316, 7
        %v2318 = vsub.s32 0, %v2317
        %v2319 = vrot.slane %v1759, %v2318
        %v2320 = vmul.f32 %v2284, %v2319
        %v2321 = vmul.f32 %v2285, %v2319
        %v2322 = vmul.f32 %v2286, %v2319
        %v2323 = vmul.f32 %v2287, %v2319
        %v2324 = vmul.f32 %v2288, %v2319
        %v2325 = vmul.f32 %v2289, %v2319
        %v2326 = vmul.f32 %v2290, %v2319
        %v2327 = vmul.f32 %v2291, %v2319
        %v2328 = vmul.f32 %v2292, %v2319
        %v2329 = vmul.f32 %v2293, %v2319
        %v2330 = vmul.f32 %v2294, %v2319
        %v2331 = vmul.f32 %v2295, %v2319
        %v2332 = vmul.f32 %v2296, %v2319
        %v2333 = vmul.f32 %v2297, %v2319
        %v2334 = vmul.f32 %v2298, %v2319
        %v2335 = vmul.f32 %v2299, %v2319
        %v2336 = vmul.f32 %v2300, %v2319
        %v2337 = vmul.f32 %v2301, %v2319
        %v2338 = vmul.f32 %v2302, %v2319
        %v2339 = vmul.f32 %v2303, %v2319
        %v2340 = vmul.f32 %v2304, %v2319
        %v2341 = vmul.f32 %v2305, %v2319
        %v2342 = vmul.f32 %v2306, %v2319
        %v2343 = vmul.f32 %v2307, %v2319
        %v2344 = vmul.f32 %v2308, %v2319
        %v2345 = vmul.f32 %v2309, %v2319
        %v2346 = vmul.f32 %v2310, %v2319
        %v2347 = vmul.f32 %v2311, %v2319
        %v2348 = vmul.f32 %v2312, %v2319
        %v2349 = vmul.f32 %v2313, %v2319
        %v2350 = vmul.f32 %v2314, %v2319
        %v2351 = vmul.f32 %v2315, %v2319
        %v2352 = vadd.f32 %v2320, 0.0
        %v2353 = vadd.f32 %v2321, 0.0
        %v2354 = vadd.f32 %v2322, 0.0
        %v2355 = vadd.f32 %v2323, 0.0
        %v2356 = vadd.f32 %v2324, 0.0
        %v2357 = vadd.f32 %v2325, 0.0
        %v2358 = vadd.f32 %v2326, 0.0
        %v2359 = vadd.f32 %v2327, 0.0
        %v2360 = vadd.f32 %v2328, 0.0
        %v2361 = vadd.f32 %v2329, 0.0
        %v2362 = vadd.f32 %v2330, 0.0
        %v2363 = vadd.f32 %v2331, 0.0
        %v2364 = vadd.f32 %v2332, 0.0
        %v2365 = vadd.f32 %v2333, 0.0
        %v2366 = vadd.f32 %v2334, 0.0
        %v2367 = vadd.f32 %v2335, 0.0
        %v2368 = vadd.f32 %v2336, 0.0
        %v2369 = vadd.f32 %v2337, 0.0
        %v2370 = vadd.f32 %v2338, 0.0
        %v2371 = vadd.f32 %v2339, 0.0
        %v2372 = vadd.f32 %v2340, 0.0
        %v2373 = vadd.f32 %v2341, 0.0
        %v2374 = vadd.f32 %v2342, 0.0
        %v2375 = vadd.f32 %v2343, 0.0
        %v2376 = vadd.f32 %v2344, 0.0
        %v2377 = vadd.f32 %v2345, 0.0
        %v2378 = vadd.f32 %v2346, 0.0
        %v2379 = vadd.f32 %v2347, 0.0
        %v2380 = vadd.f32 %v2348, 0.0
        %v2381 = vadd.f32 %v2349, 0.0
        %v2382 = vadd.f32 %v2350, 0.0
        %v2383 = vadd.f32 %v2351, 0.0
        %v2384 = vld [vmem:[#allocation2 + $0x100] sm:$0xff]
        %v2385 = vld [vmem:[#allocation2 + $0x108] sm:$0xff]
        %v2386 = vlaneseq
        %v2387 = vshrl.u32 %v2386, 7
        %v2388 = vsub.s32 3, %v2387
        %v2389 = vrot.slane %v1759, %v2388
        %v2390 = vmul.f32 %v2286, %v2389
        %v2391 = vmul.f32 %v2287, %v2389
        %v2392 = vmul.f32 %v2288, %v2389
        %v2393 = vmul.f32 %v2289, %v2389
        %v2394 = vmul.f32 %v2290, %v2389
        %v2395 = vmul.f32 %v2291, %v2389
        %v2396 = vmul.f32 %v2292, %v2389
        %v2397 = vmul.f32 %v2293, %v2389
        %v2398 = vmul.f32 %v2294, %v2389
        %v2399 = vmul.f32 %v2295, %v2389
        %v2400 = vmul.f32 %v2296, %v2389
        %v2401 = vmul.f32 %v2297, %v2389
        %v2402 = vmul.f32 %v2298, %v2389
        %v2403 = vmul.f32 %v2299, %v2389
        %v2404 = vmul.f32 %v2300, %v2389
        %v2405 = vmul.f32 %v2301, %v2389
        %v2406 = vmul.f32 %v2302, %v2389
        %v2407 = vmul.f32 %v2303, %v2389
        %v2408 = vmul.f32 %v2304, %v2389
        %v2409 = vmul.f32 %v2305, %v2389
        %v2410 = vmul.f32 %v2306, %v2389
        %v2411 = vmul.f32 %v2307, %v2389
        %v2412 = vmul.f32 %v2308, %v2389
        %v2413 = vmul.f32 %v2309, %v2389
        %v2414 = vmul.f32 %v2310, %v2389
        %v2415 = vmul.f32 %v2311, %v2389
        %v2416 = vmul.f32 %v2312, %v2389
        %v2417 = vmul.f32 %v2313, %v2389
        %v2418 = vmul.f32 %v2314, %v2389
        %v2419 = vmul.f32 %v2315, %v2389
        %v2420 = vmul.f32 %v2384, %v2389
        %v2421 = vmul.f32 %v2385, %v2389
        %v2422 = vadd.f32 %v2352, %v2390
        %v2423 = vadd.f32 %v2353, %v2391
        %v2424 = vadd.f32 %v2354, %v2392
        %v2425 = vadd.f32 %v2355, %v2393
        %v2426 = vadd.f32 %v2356, %v2394
        %v2427 = vadd.f32 %v2357, %v2395
        %v2428 = vadd.f32 %v2358, %v2396
        %v2429 = vadd.f32 %v2359, %v2397
        %v2430 = vadd.f32 %v2360, %v2398
        %v2431 = vadd.f32 %v2361, %v2399
        %v2432 = vadd.f32 %v2362, %v2400
        %v2433 = vadd.f32 %v2363, %v2401
        %v2434 = vadd.f32 %v2364, %v2402
        %v2435 = vadd.f32 %v2365, %v2403
        %v2436 = vadd.f32 %v2366, %v2404
        %v2437 = vadd.f32 %v2367, %v2405
        %v2438 = vadd.f32 %v2368, %v2406
        %v2439 = vadd.f32 %v2369, %v2407
        %v2440 = vadd.f32 %v2370, %v2408
        %v2441 = vadd.f32 %v2371, %v2409
        %v2442 = vadd.f32 %v2372, %v2410
        %v2443 = vadd.f32 %v2373, %v2411
        %v2444 = vadd.f32 %v2374, %v2412
        %v2445 = vadd.f32 %v2375, %v2413
        %v2446 = vadd.f32 %v2376, %v2414
        %v2447 = vadd.f32 %v2377, %v2415
        %v2448 = vadd.f32 %v2378, %v2416
        %v2449 = vadd.f32 %v2379, %v2417
        %v2450 = vadd.f32 %v2380, %v2418
        %v2451 = vadd.f32 %v2381, %v2419
        %v2452 = vadd.f32 %v2382, %v2420
        %v2453 = vadd.f32 %v2383, %v2421
        %v2454 = vld [vmem:[#allocation2 + $0x110] sm:$0xff]
        %v2455 = vld [vmem:[#allocation2 + $0x118] sm:$0xff]
        %v2456 = vlaneseq
        %v2457 = vshrl.u32 %v2456, 7
        %v2458 = vsub.s32 6, %v2457
        %v2459 = vrot.slane %v1759, %v2458
        %v2460 = vmul.f32 %v2288, %v2459
        %v2461 = vmul.f32 %v2289, %v2459
        %v2462 = vmul.f32 %v2290, %v2459
        %v2463 = vmul.f32 %v2291, %v2459
        %v2464 = vmul.f32 %v2292, %v2459
        %v2465 = vmul.f32 %v2293, %v2459
        %v2466 = vmul.f32 %v2294, %v2459
        %v2467 = vmul.f32 %v2295, %v2459
        %v2468 = vmul.f32 %v2296, %v2459
        %v2469 = vmul.f32 %v2297, %v2459
        %v2470 = vmul.f32 %v2298, %v2459
        %v2471 = vmul.f32 %v2299, %v2459
        %v2472 = vmul.f32 %v2300, %v2459
        %v2473 = vmul.f32 %v2301, %v2459
        %v2474 = vmul.f32 %v2302, %v2459
        %v2475 = vmul.f32 %v2303, %v2459
        %v2476 = vmul.f32 %v2304, %v2459
        %v2477 = vmul.f32 %v2305, %v2459
        %v2478 = vmul.f32 %v2306, %v2459
        %v2479 = vmul.f32 %v2307, %v2459
        %v2480 = vmul.f32 %v2308, %v2459
        %v2481 = vmul.f32 %v2309, %v2459
        %v2482 = vmul.f32 %v2310, %v2459
        %v2483 = vmul.f32 %v2311, %v2459
        %v2484 = vmul.f32 %v2312, %v2459
        %v2485 = vmul.f32 %v2313, %v2459
        %v2486 = vmul.f32 %v2314, %v2459
        %v2487 = vmul.f32 %v2315, %v2459
        %v2488 = vmul.f32 %v2384, %v2459
        %v2489 = vmul.f32 %v2385, %v2459
        %v2490 = vmul.f32 %v2454, %v2459
        %v2491 = vmul.f32 %v2455, %v2459
        %v2492 = vadd.f32 %v2422, %v2460
        %v2493 = vadd.f32 %v2423, %v2461
        %v2494 = vadd.f32 %v2424, %v2462
        %v2495 = vadd.f32 %v2425, %v2463
        %v2496 = vadd.f32 %v2426, %v2464
        %v2497 = vadd.f32 %v2427, %v2465
        %v2498 = vadd.f32 %v2428, %v2466
        %v2499 = vadd.f32 %v2429, %v2467
        %v2500 = vadd.f32 %v2430, %v2468
        %v2501 = vadd.f32 %v2431, %v2469
        %v2502 = vadd.f32 %v2432, %v2470
        %v2503 = vadd.f32 %v2433, %v2471
        %v2504 = vadd.f32 %v2434, %v2472
        %v2505 = vadd.f32 %v2435, %v2473
        %v2506 = vadd.f32 %v2436, %v2474
        %v2507 = vadd.f32 %v2437, %v2475
        %v2508 = vadd.f32 %v2438, %v2476
        %v2509 = vadd.f32 %v2439, %v2477
        %v2510 = vadd.f32 %v2440, %v2478
        %v2511 = vadd.f32 %v2441, %v2479
        %v2512 = vadd.f32 %v2442, %v2480
        %v2513 = vadd.f32 %v2443, %v2481
        %v2514 = vadd.f32 %v2444, %v2482
        %v2515 = vadd.f32 %v2445, %v2483
        %v2516 = vadd.f32 %v2446, %v2484
        %v2517 = vadd.f32 %v2447, %v2485
        %v2518 = vadd.f32 %v2448, %v2486
        %v2519 = vadd.f32 %v2449, %v2487
        %v2520 = vadd.f32 %v2450, %v2488
        %v2521 = vadd.f32 %v2451, %v2489
        %v2522 = vadd.f32 %v2452, %v2490
        %v2523 = vadd.f32 %v2453, %v2491
        %v2524 = vsel %vm2220, 0.0, %v2492
        %v2525 = vsel %vm2221, 0.0, %v2493
        %v2526 = vsel %vm2222, 0.0, %v2494
        %v2527 = vsel %vm2223, 0.0, %v2495
        %v2528 = vsel %vm2224, 0.0, %v2496
        %v2529 = vsel %vm2225, 0.0, %v2497
        %v2530 = vsel %vm2226, 0.0, %v2498
        %v2531 = vsel %vm2227, 0.0, %v2499
        %v2532 = vsel %vm2228, 0.0, %v2500
        %v2533 = vsel %vm2229, 0.0, %v2501
        %v2534 = vsel %vm2230, 0.0, %v2502
        %v2535 = vsel %vm2231, 0.0, %v2503
        %v2536 = vsel %vm2232, 0.0, %v2504
        %v2537 = vsel %vm2233, 0.0, %v2505
        %v2538 = vsel %vm2234, 0.0, %v2506
        %v2539 = vsel %vm2235, 0.0, %v2507
        %v2540 = vsel %vm2236, 0.0, %v2508
        %v2541 = vsel %vm2237, 0.0, %v2509
        %v2542 = vsel %vm2238, 0.0, %v2510
        %v2543 = vsel %vm2239, 0.0, %v2511
        %v2544 = vsel %vm2240, 0.0, %v2512
        %v2545 = vsel %vm2241, 0.0, %v2513
        %v2546 = vsel %vm2242, 0.0, %v2514
        %v2547 = vsel %vm2243, 0.0, %v2515
        %v2548 = vsel %vm2244, 0.0, %v2516
        %v2549 = vsel %vm2245, 0.0, %v2517
        %v2550 = vsel %vm2246, 0.0, %v2518
        %v2551 = vsel %vm2247, 0.0, %v2519
        %v2552 = vsel %vm2248, 0.0, %v2520
        %v2553 = vsel %vm2249, 0.0, %v2521
        %v2554 = vsel %vm2250, 0.0, %v2522
        %v2555 = vsel %vm2251, 0.0, %v2523
        %v2556 = vadd.f32 %v2524, 0.0
        %v2557 = vadd.f32 %v2525, 0.0
        %v2558 = vadd.f32 %v2526, 0.0
        %v2559 = vadd.f32 %v2527, 0.0
        %v2560 = vadd.f32 %v2528, 0.0
        %v2561 = vadd.f32 %v2529, 0.0
        %v2562 = vadd.f32 %v2530, 0.0
        %v2563 = vadd.f32 %v2531, 0.0
        %v2564 = vadd.f32 %v2532, 0.0
        %v2565 = vadd.f32 %v2533, 0.0
        %v2566 = vadd.f32 %v2534, 0.0
        %v2567 = vadd.f32 %v2535, 0.0
        %v2568 = vadd.f32 %v2536, 0.0
        %v2569 = vadd.f32 %v2537, 0.0
        %v2570 = vadd.f32 %v2538, 0.0
        %v2571 = vadd.f32 %v2539, 0.0
        %v2572 = vadd.f32 %v2540, 0.0
        %v2573 = vadd.f32 %v2541, 0.0
        %v2574 = vadd.f32 %v2542, 0.0
        %v2575 = vadd.f32 %v2543, 0.0
        %v2576 = vadd.f32 %v2544, 0.0
        %v2577 = vadd.f32 %v2545, 0.0
        %v2578 = vadd.f32 %v2546, 0.0
        %v2579 = vadd.f32 %v2547, 0.0
        %v2580 = vadd.f32 %v2548, 0.0
        %v2581 = vadd.f32 %v2549, 0.0
        %v2582 = vadd.f32 %v2550, 0.0
        %v2583 = vadd.f32 %v2551, 0.0
        %v2584 = vadd.f32 %v2552, 0.0
        %v2585 = vadd.f32 %v2553, 0.0
        %v2586 = vadd.f32 %v2554, 0.0
        %v2587 = vadd.f32 %v2555, 0.0
        %v2588 = vld [vmem:[#allocation2 + $0x1] sm:$0xff]
        %v2589 = vld [vmem:[#allocation2 + $0x9] sm:$0xff]
        %v2590 = vld [vmem:[#allocation2 + $0x11] sm:$0xff]
        %v2591 = vld [vmem:[#allocation2 + $0x19] sm:$0xff]
        %v2592 = vld [vmem:[#allocation2 + $0x21] sm:$0xff]
        %v2593 = vld [vmem:[#allocation2 + $0x29] sm:$0xff]
        %v2594 = vld [vmem:[#allocation2 + $0x31] sm:$0xff]
        %v2595 = vld [vmem:[#allocation2 + $0x39] sm:$0xff]
        %v2596 = vld [vmem:[#allocation2 + $0x41] sm:$0xff]
        %v2597 = vld [vmem:[#allocation2 + $0x49] sm:$0xff]
        %v2598 = vld [vmem:[#allocation2 + $0x51] sm:$0xff]
        %v2599 = vld [vmem:[#allocation2 + $0x59] sm:$0xff]
        %v2600 = vld [vmem:[#allocation2 + $0x61] sm:$0xff]
        %v2601 = vld [vmem:[#allocation2 + $0x69] sm:$0xff]
        %v2602 = vld [vmem:[#allocation2 + $0x71] sm:$0xff]
        %v2603 = vld [vmem:[#allocation2 + $0x79] sm:$0xff]
        %v2604 = vld [vmem:[#allocation2 + $0x81] sm:$0xff]
        %v2605 = vld [vmem:[#allocation2 + $0x89] sm:$0xff]
        %v2606 = vld [vmem:[#allocation2 + $0x91] sm:$0xff]
        %v2607 = vld [vmem:[#allocation2 + $0x99] sm:$0xff]
        %v2608 = vld [vmem:[#allocation2 + $0xa1] sm:$0xff]
        %v2609 = vld [vmem:[#allocation2 + $0xa9] sm:$0xff]
        %v2610 = vld [vmem:[#allocation2 + $0xb1] sm:$0xff]
        %v2611 = vld [vmem:[#allocation2 + $0xb9] sm:$0xff]
        %v2612 = vld [vmem:[#allocation2 + $0xc1] sm:$0xff]
        %v2613 = vld [vmem:[#allocation2 + $0xc9] sm:$0xff]
        %v2614 = vld [vmem:[#allocation2 + $0xd1] sm:$0xff]
        %v2615 = vld [vmem:[#allocation2 + $0xd9] sm:$0xff]
        %v2616 = vld [vmem:[#allocation2 + $0xe1] sm:$0xff]
        %v2617 = vld [vmem:[#allocation2 + $0xe9] sm:$0xff]
        %v2618 = vld [vmem:[#allocation2 + $0xf1] sm:$0xff]
        %v2619 = vld [vmem:[#allocation2 + $0xf9] sm:$0xff]
        %v2620 = vlaneseq
        %v2621 = vshrl.u32 %v2620, 7
        %v2622 = vsub.s32 1, %v2621
        %v2623 = vrot.slane %v1759, %v2622
        %v2624 = vmul.f32 %v2588, %v2623
        %v2625 = vmul.f32 %v2589, %v2623
        %v2626 = vmul.f32 %v2590, %v2623
        %v2627 = vmul.f32 %v2591, %v2623
        %v2628 = vmul.f32 %v2592, %v2623
        %v2629 = vmul.f32 %v2593, %v2623
        %v2630 = vmul.f32 %v2594, %v2623
        %v2631 = vmul.f32 %v2595, %v2623
        %v2632 = vmul.f32 %v2596, %v2623
        %v2633 = vmul.f32 %v2597, %v2623
        %v2634 = vmul.f32 %v2598, %v2623
        %v2635 = vmul.f32 %v2599, %v2623
        %v2636 = vmul.f32 %v2600, %v2623
        %v2637 = vmul.f32 %v2601, %v2623
        %v2638 = vmul.f32 %v2602, %v2623
        %v2639 = vmul.f32 %v2603, %v2623
        %v2640 = vmul.f32 %v2604, %v2623
        %v2641 = vmul.f32 %v2605, %v2623
        %v2642 = vmul.f32 %v2606, %v2623
        %v2643 = vmul.f32 %v2607, %v2623
        %v2644 = vmul.f32 %v2608, %v2623
        %v2645 = vmul.f32 %v2609, %v2623
        %v2646 = vmul.f32 %v2610, %v2623
        %v2647 = vmul.f32 %v2611, %v2623
        %v2648 = vmul.f32 %v2612, %v2623
        %v2649 = vmul.f32 %v2613, %v2623
        %v2650 = vmul.f32 %v2614, %v2623
        %v2651 = vmul.f32 %v2615, %v2623
        %v2652 = vmul.f32 %v2616, %v2623
        %v2653 = vmul.f32 %v2617, %v2623
        %v2654 = vmul.f32 %v2618, %v2623
        %v2655 = vmul.f32 %v2619, %v2623
        %v2656 = vadd.f32 %v2624, 0.0
        %v2657 = vadd.f32 %v2625, 0.0
        %v2658 = vadd.f32 %v2626, 0.0
        %v2659 = vadd.f32 %v2627, 0.0
        %v2660 = vadd.f32 %v2628, 0.0
        %v2661 = vadd.f32 %v2629, 0.0
        %v2662 = vadd.f32 %v2630, 0.0
        %v2663 = vadd.f32 %v2631, 0.0
        %v2664 = vadd.f32 %v2632, 0.0
        %v2665 = vadd.f32 %v2633, 0.0
        %v2666 = vadd.f32 %v2634, 0.0
        %v2667 = vadd.f32 %v2635, 0.0
        %v2668 = vadd.f32 %v2636, 0.0
        %v2669 = vadd.f32 %v2637, 0.0
        %v2670 = vadd.f32 %v2638, 0.0
        %v2671 = vadd.f32 %v2639, 0.0
        %v2672 = vadd.f32 %v2640, 0.0
        %v2673 = vadd.f32 %v2641, 0.0
        %v2674 = vadd.f32 %v2642, 0.0
        %v2675 = vadd.f32 %v2643, 0.0
        %v2676 = vadd.f32 %v2644, 0.0
        %v2677 = vadd.f32 %v2645, 0.0
        %v2678 = vadd.f32 %v2646, 0.0
        %v2679 = vadd.f32 %v2647, 0.0
        %v2680 = vadd.f32 %v2648, 0.0
        %v2681 = vadd.f32 %v2649, 0.0
        %v2682 = vadd.f32 %v2650, 0.0
        %v2683 = vadd.f32 %v2651, 0.0
        %v2684 = vadd.f32 %v2652, 0.0
        %v2685 = vadd.f32 %v2653, 0.0
        %v2686 = vadd.f32 %v2654, 0.0
        %v2687 = vadd.f32 %v2655, 0.0
        %v2688 = vld [vmem:[#allocation2 + $0x101] sm:$0xff]
        %v2689 = vld [vmem:[#allocation2 + $0x109] sm:$0xff]
        %v2690 = vlaneseq
        %v2691 = vshrl.u32 %v2690, 7
        %v2692 = vsub.s32 4, %v2691
        %v2693 = vrot.slane %v1759, %v2692
        %v2694 = vmul.f32 %v2590, %v2693
        %v2695 = vmul.f32 %v2591, %v2693
        %v2696 = vmul.f32 %v2592, %v2693
        %v2697 = vmul.f32 %v2593, %v2693
        %v2698 = vmul.f32 %v2594, %v2693
        %v2699 = vmul.f32 %v2595, %v2693
        %v2700 = vmul.f32 %v2596, %v2693
        %v2701 = vmul.f32 %v2597, %v2693
        %v2702 = vmul.f32 %v2598, %v2693
        %v2703 = vmul.f32 %v2599, %v2693
        %v2704 = vmul.f32 %v2600, %v2693
        %v2705 = vmul.f32 %v2601, %v2693
        %v2706 = vmul.f32 %v2602, %v2693
        %v2707 = vmul.f32 %v2603, %v2693
        %v2708 = vmul.f32 %v2604, %v2693
        %v2709 = vmul.f32 %v2605, %v2693
        %v2710 = vmul.f32 %v2606, %v2693
        %v2711 = vmul.f32 %v2607, %v2693
        %v2712 = vmul.f32 %v2608, %v2693
        %v2713 = vmul.f32 %v2609, %v2693
        %v2714 = vmul.f32 %v2610, %v2693
        %v2715 = vmul.f32 %v2611, %v2693
        %v2716 = vmul.f32 %v2612, %v2693
        %v2717 = vmul.f32 %v2613, %v2693
        %v2718 = vmul.f32 %v2614, %v2693
        %v2719 = vmul.f32 %v2615, %v2693
        %v2720 = vmul.f32 %v2616, %v2693
        %v2721 = vmul.f32 %v2617, %v2693
        %v2722 = vmul.f32 %v2618, %v2693
        %v2723 = vmul.f32 %v2619, %v2693
        %v2724 = vmul.f32 %v2688, %v2693
        %v2725 = vmul.f32 %v2689, %v2693
        %v2726 = vadd.f32 %v2656, %v2694
        %v2727 = vadd.f32 %v2657, %v2695
        %v2728 = vadd.f32 %v2658, %v2696
        %v2729 = vadd.f32 %v2659, %v2697
        %v2730 = vadd.f32 %v2660, %v2698
        %v2731 = vadd.f32 %v2661, %v2699
        %v2732 = vadd.f32 %v2662, %v2700
        %v2733 = vadd.f32 %v2663, %v2701
        %v2734 = vadd.f32 %v2664, %v2702
        %v2735 = vadd.f32 %v2665, %v2703
        %v2736 = vadd.f32 %v2666, %v2704
        %v2737 = vadd.f32 %v2667, %v2705
        %v2738 = vadd.f32 %v2668, %v2706
        %v2739 = vadd.f32 %v2669, %v2707
        %v2740 = vadd.f32 %v2670, %v2708
        %v2741 = vadd.f32 %v2671, %v2709
        %v2742 = vadd.f32 %v2672, %v2710
        %v2743 = vadd.f32 %v2673, %v2711
        %v2744 = vadd.f32 %v2674, %v2712
        %v2745 = vadd.f32 %v2675, %v2713
        %v2746 = vadd.f32 %v2676, %v2714
        %v2747 = vadd.f32 %v2677, %v2715
        %v2748 = vadd.f32 %v2678, %v2716
        %v2749 = vadd.f32 %v2679, %v2717
        %v2750 = vadd.f32 %v2680, %v2718
        %v2751 = vadd.f32 %v2681, %v2719
        %v2752 = vadd.f32 %v2682, %v2720
        %v2753 = vadd.f32 %v2683, %v2721
        %v2754 = vadd.f32 %v2684, %v2722
        %v2755 = vadd.f32 %v2685, %v2723
        %v2756 = vadd.f32 %v2686, %v2724
        %v2757 = vadd.f32 %v2687, %v2725
        %v2758 = vld [vmem:[#allocation2 + $0x111] sm:$0xff]
        %v2759 = vld [vmem:[#allocation2 + $0x119] sm:$0xff]
        %v2760 = vlaneseq
        %v2761 = vshrl.u32 %v2760, 7
        %v2762 = vsub.s32 7, %v2761
        %v2763 = vrot.slane %v1759, %v2762
        %v2764 = vmul.f32 %v2592, %v2763
        %v2765 = vmul.f32 %v2593, %v2763
        %v2766 = vmul.f32 %v2594, %v2763
        %v2767 = vmul.f32 %v2595, %v2763
        %v2768 = vmul.f32 %v2596, %v2763
        %v2769 = vmul.f32 %v2597, %v2763
        %v2770 = vmul.f32 %v2598, %v2763
        %v2771 = vmul.f32 %v2599, %v2763
        %v2772 = vmul.f32 %v2600, %v2763
        %v2773 = vmul.f32 %v2601, %v2763
        %v2774 = vmul.f32 %v2602, %v2763
        %v2775 = vmul.f32 %v2603, %v2763
        %v2776 = vmul.f32 %v2604, %v2763
        %v2777 = vmul.f32 %v2605, %v2763
        %v2778 = vmul.f32 %v2606, %v2763
        %v2779 = vmul.f32 %v2607, %v2763
        %v2780 = vmul.f32 %v2608, %v2763
        %v2781 = vmul.f32 %v2609, %v2763
        %v2782 = vmul.f32 %v2610, %v2763
        %v2783 = vmul.f32 %v2611, %v2763
        %v2784 = vmul.f32 %v2612, %v2763
        %v2785 = vmul.f32 %v2613, %v2763
        %v2786 = vmul.f32 %v2614, %v2763
        %v2787 = vmul.f32 %v2615, %v2763
        %v2788 = vmul.f32 %v2616, %v2763
        %v2789 = vmul.f32 %v2617, %v2763
        %v2790 = vmul.f32 %v2618, %v2763
        %v2791 = vmul.f32 %v2619, %v2763
        %v2792 = vmul.f32 %v2688, %v2763
        %v2793 = vmul.f32 %v2689, %v2763
        %v2794 = vmul.f32 %v2758, %v2763
        %v2795 = vmul.f32 %v2759, %v2763
        %v2796 = vadd.f32 %v2726, %v2764
        %v2797 = vadd.f32 %v2727, %v2765
        %v2798 = vadd.f32 %v2728, %v2766
        %v2799 = vadd.f32 %v2729, %v2767
        %v2800 = vadd.f32 %v2730, %v2768
        %v2801 = vadd.f32 %v2731, %v2769
        %v2802 = vadd.f32 %v2732, %v2770
        %v2803 = vadd.f32 %v2733, %v2771
        %v2804 = vadd.f32 %v2734, %v2772
        %v2805 = vadd.f32 %v2735, %v2773
        %v2806 = vadd.f32 %v2736, %v2774
        %v2807 = vadd.f32 %v2737, %v2775
        %v2808 = vadd.f32 %v2738, %v2776
        %v2809 = vadd.f32 %v2739, %v2777
        %v2810 = vadd.f32 %v2740, %v2778
        %v2811 = vadd.f32 %v2741, %v2779
        %v2812 = vadd.f32 %v2742, %v2780
        %v2813 = vadd.f32 %v2743, %v2781
        %v2814 = vadd.f32 %v2744, %v2782
        %v2815 = vadd.f32 %v2745, %v2783
        %v2816 = vadd.f32 %v2746, %v2784
        %v2817 = vadd.f32 %v2747, %v2785
        %v2818 = vadd.f32 %v2748, %v2786
        %v2819 = vadd.f32 %v2749, %v2787
        %v2820 = vadd.f32 %v2750, %v2788
        %v2821 = vadd.f32 %v2751, %v2789
        %v2822 = vadd.f32 %v2752, %v2790
        %v2823 = vadd.f32 %v2753, %v2791
        %v2824 = vadd.f32 %v2754, %v2792
        %v2825 = vadd.f32 %v2755, %v2793
        %v2826 = vadd.f32 %v2756, %v2794
        %v2827 = vadd.f32 %v2757, %v2795
        %v2828 = vadd.f32 %v2556, %v2796
        %v2829 = vadd.f32 %v2557, %v2797
        %v2830 = vadd.f32 %v2558, %v2798
        %v2831 = vadd.f32 %v2559, %v2799
        %v2832 = vadd.f32 %v2560, %v2800
        %v2833 = vadd.f32 %v2561, %v2801
        %v2834 = vadd.f32 %v2562, %v2802
        %v2835 = vadd.f32 %v2563, %v2803
        %v2836 = vadd.f32 %v2564, %v2804
        %v2837 = vadd.f32 %v2565, %v2805
        %v2838 = vadd.f32 %v2566, %v2806
        %v2839 = vadd.f32 %v2567, %v2807
        %v2840 = vadd.f32 %v2568, %v2808
        %v2841 = vadd.f32 %v2569, %v2809
        %v2842 = vadd.f32 %v2570, %v2810
        %v2843 = vadd.f32 %v2571, %v2811
        %v2844 = vadd.f32 %v2572, %v2812
        %v2845 = vadd.f32 %v2573, %v2813
        %v2846 = vadd.f32 %v2574, %v2814
        %v2847 = vadd.f32 %v2575, %v2815
        %v2848 = vadd.f32 %v2576, %v2816
        %v2849 = vadd.f32 %v2577, %v2817
        %v2850 = vadd.f32 %v2578, %v2818
        %v2851 = vadd.f32 %v2579, %v2819
        %v2852 = vadd.f32 %v2580, %v2820
        %v2853 = vadd.f32 %v2581, %v2821
        %v2854 = vadd.f32 %v2582, %v2822
        %v2855 = vadd.f32 %v2583, %v2823
        %v2856 = vadd.f32 %v2584, %v2824
        %v2857 = vadd.f32 %v2585, %v2825
        %v2858 = vadd.f32 %v2586, %v2826
        %v2859 = vadd.f32 %v2587, %v2827
        %v2860 = vld [vmem:[#allocation2 + $0x2] sm:$0xff]
        %v2861 = vld [vmem:[#allocation2 + $0xa] sm:$0xff]
        %v2862 = vld [vmem:[#allocation2 + $0x12] sm:$0xff]
        %v2863 = vld [vmem:[#allocation2 + $0x1a] sm:$0xff]
        %v2864 = vld [vmem:[#allocation2 + $0x22] sm:$0xff]
        %v2865 = vld [vmem:[#allocation2 + $0x2a] sm:$0xff]
        %v2866 = vld [vmem:[#allocation2 + $0x32] sm:$0xff]
        %v2867 = vld [vmem:[#allocation2 + $0x3a] sm:$0xff]
        %v2868 = vld [vmem:[#allocation2 + $0x42] sm:$0xff]
        %v2869 = vld [vmem:[#allocation2 + $0x4a] sm:$0xff]
        %v2870 = vld [vmem:[#allocation2 + $0x52] sm:$0xff]
        %v2871 = vld [vmem:[#allocation2 + $0x5a] sm:$0xff]
        %v2872 = vld [vmem:[#allocation2 + $0x62] sm:$0xff]
        %v2873 = vld [vmem:[#allocation2 + $0x6a] sm:$0xff]
        %v2874 = vld [vmem:[#allocation2 + $0x72] sm:$0xff]
        %v2875 = vld [vmem:[#allocation2 + $0x7a] sm:$0xff]
        %v2876 = vld [vmem:[#allocation2 + $0x82] sm:$0xff]
        %v2877 = vld [vmem:[#allocation2 + $0x8a] sm:$0xff]
        %v2878 = vld [vmem:[#allocation2 + $0x92] sm:$0xff]
        %v2879 = vld [vmem:[#allocation2 + $0x9a] sm:$0xff]
        %v2880 = vld [vmem:[#allocation2 + $0xa2] sm:$0xff]
        %v2881 = vld [vmem:[#allocation2 + $0xaa] sm:$0xff]
        %v2882 = vld [vmem:[#allocation2 + $0xb2] sm:$0xff]
        %v2883 = vld [vmem:[#allocation2 + $0xba] sm:$0xff]
        %v2884 = vld [vmem:[#allocation2 + $0xc2] sm:$0xff]
        %v2885 = vld [vmem:[#allocation2 + $0xca] sm:$0xff]
        %v2886 = vld [vmem:[#allocation2 + $0xd2] sm:$0xff]
        %v2887 = vld [vmem:[#allocation2 + $0xda] sm:$0xff]
        %v2888 = vld [vmem:[#allocation2 + $0xe2] sm:$0xff]
        %v2889 = vld [vmem:[#allocation2 + $0xea] sm:$0xff]
        %v2890 = vld [vmem:[#allocation2 + $0xf2] sm:$0xff]
        %v2891 = vld [vmem:[#allocation2 + $0xfa] sm:$0xff]
        %v2892 = vlaneseq
        %v2893 = vshrl.u32 %v2892, 7
        %v2894 = vsub.s32 2, %v2893
        %v2895 = vrot.slane %v1759, %v2894
        %v2896 = vmul.f32 %v2860, %v2895
        %v2897 = vmul.f32 %v2861, %v2895
        %v2898 = vmul.f32 %v2862, %v2895
        %v2899 = vmul.f32 %v2863, %v2895
        %v2900 = vmul.f32 %v2864, %v2895
        %v2901 = vmul.f32 %v2865, %v2895
        %v2902 = vmul.f32 %v2866, %v2895
        %v2903 = vmul.f32 %v2867, %v2895
        %v2904 = vmul.f32 %v2868, %v2895
        %v2905 = vmul.f32 %v2869, %v2895
        %v2906 = vmul.f32 %v2870, %v2895
        %v2907 = vmul.f32 %v2871, %v2895
        %v2908 = vmul.f32 %v2872, %v2895
        %v2909 = vmul.f32 %v2873, %v2895
        %v2910 = vmul.f32 %v2874, %v2895
        %v2911 = vmul.f32 %v2875, %v2895
        %v2912 = vmul.f32 %v2876, %v2895
        %v2913 = vmul.f32 %v2877, %v2895
        %v2914 = vmul.f32 %v2878, %v2895
        %v2915 = vmul.f32 %v2879, %v2895
        %v2916 = vmul.f32 %v2880, %v2895
        %v2917 = vmul.f32 %v2881, %v2895
        %v2918 = vmul.f32 %v2882, %v2895
        %v2919 = vmul.f32 %v2883, %v2895
        %v2920 = vmul.f32 %v2884, %v2895
        %v2921 = vmul.f32 %v2885, %v2895
        %v2922 = vmul.f32 %v2886, %v2895
        %v2923 = vmul.f32 %v2887, %v2895
        %v2924 = vmul.f32 %v2888, %v2895
        %v2925 = vmul.f32 %v2889, %v2895
        %v2926 = vmul.f32 %v2890, %v2895
        %v2927 = vmul.f32 %v2891, %v2895
        %v2928 = vadd.f32 %v2896, 0.0
        %v2929 = vadd.f32 %v2897, 0.0
        %v2930 = vadd.f32 %v2898, 0.0
        %v2931 = vadd.f32 %v2899, 0.0
        %v2932 = vadd.f32 %v2900, 0.0
        %v2933 = vadd.f32 %v2901, 0.0
        %v2934 = vadd.f32 %v2902, 0.0
        %v2935 = vadd.f32 %v2903, 0.0
        %v2936 = vadd.f32 %v2904, 0.0
        %v2937 = vadd.f32 %v2905, 0.0
        %v2938 = vadd.f32 %v2906, 0.0
        %v2939 = vadd.f32 %v2907, 0.0
        %v2940 = vadd.f32 %v2908, 0.0
        %v2941 = vadd.f32 %v2909, 0.0
        %v2942 = vadd.f32 %v2910, 0.0
        %v2943 = vadd.f32 %v2911, 0.0
        %v2944 = vadd.f32 %v2912, 0.0
        %v2945 = vadd.f32 %v2913, 0.0
        %v2946 = vadd.f32 %v2914, 0.0
        %v2947 = vadd.f32 %v2915, 0.0
        %v2948 = vadd.f32 %v2916, 0.0
        %v2949 = vadd.f32 %v2917, 0.0
        %v2950 = vadd.f32 %v2918, 0.0
        %v2951 = vadd.f32 %v2919, 0.0
        %v2952 = vadd.f32 %v2920, 0.0
        %v2953 = vadd.f32 %v2921, 0.0
        %v2954 = vadd.f32 %v2922, 0.0
        %v2955 = vadd.f32 %v2923, 0.0
        %v2956 = vadd.f32 %v2924, 0.0
        %v2957 = vadd.f32 %v2925, 0.0
        %v2958 = vadd.f32 %v2926, 0.0
        %v2959 = vadd.f32 %v2927, 0.0
        %v2960 = vld [vmem:[#allocation2 + $0x102] sm:$0xff]
        %v2961 = vld [vmem:[#allocation2 + $0x10a] sm:$0xff]
        %v2962 = vlaneseq
        %v2963 = vshrl.u32 %v2962, 7
        %v2964 = vsub.s32 5, %v2963
        %v2965 = vrot.slane %v1759, %v2964
        %v2966 = vmul.f32 %v2862, %v2965
        %v2967 = vmul.f32 %v2863, %v2965
        %v2968 = vmul.f32 %v2864, %v2965
        %v2969 = vmul.f32 %v2865, %v2965
        %v2970 = vmul.f32 %v2866, %v2965
        %v2971 = vmul.f32 %v2867, %v2965
        %v2972 = vmul.f32 %v2868, %v2965
        %v2973 = vmul.f32 %v2869, %v2965
        %v2974 = vmul.f32 %v2870, %v2965
        %v2975 = vmul.f32 %v2871, %v2965
        %v2976 = vmul.f32 %v2872, %v2965
        %v2977 = vmul.f32 %v2873, %v2965
        %v2978 = vmul.f32 %v2874, %v2965
        %v2979 = vmul.f32 %v2875, %v2965
        %v2980 = vmul.f32 %v2876, %v2965
        %v2981 = vmul.f32 %v2877, %v2965
        %v2982 = vmul.f32 %v2878, %v2965
        %v2983 = vmul.f32 %v2879, %v2965
        %v2984 = vmul.f32 %v2880, %v2965
        %v2985 = vmul.f32 %v2881, %v2965
        %v2986 = vmul.f32 %v2882, %v2965
        %v2987 = vmul.f32 %v2883, %v2965
        %v2988 = vmul.f32 %v2884, %v2965
        %v2989 = vmul.f32 %v2885, %v2965
        %v2990 = vmul.f32 %v2886, %v2965
        %v2991 = vmul.f32 %v2887, %v2965
        %v2992 = vmul.f32 %v2888, %v2965
        %v2993 = vmul.f32 %v2889, %v2965
        %v2994 = vmul.f32 %v2890, %v2965
        %v2995 = vmul.f32 %v2891, %v2965
        %v2996 = vmul.f32 %v2960, %v2965
        %v2997 = vmul.f32 %v2961, %v2965
        %v2998 = vadd.f32 %v2928, %v2966
        %v2999 = vadd.f32 %v2929, %v2967
        %v3000 = vadd.f32 %v2930, %v2968
        %v3001 = vadd.f32 %v2931, %v2969
        %v3002 = vadd.f32 %v2932, %v2970
        %v3003 = vadd.f32 %v2933, %v2971
        %v3004 = vadd.f32 %v2934, %v2972
        %v3005 = vadd.f32 %v2935, %v2973
        %v3006 = vadd.f32 %v2936, %v2974
        %v3007 = vadd.f32 %v2937, %v2975
        %v3008 = vadd.f32 %v2938, %v2976
        %v3009 = vadd.f32 %v2939, %v2977
        %v3010 = vadd.f32 %v2940, %v2978
        %v3011 = vadd.f32 %v2941, %v2979
        %v3012 = vadd.f32 %v2942, %v2980
        %v3013 = vadd.f32 %v2943, %v2981
        %v3014 = vadd.f32 %v2944, %v2982
        %v3015 = vadd.f32 %v2945, %v2983
        %v3016 = vadd.f32 %v2946, %v2984
        %v3017 = vadd.f32 %v2947, %v2985
        %v3018 = vadd.f32 %v2948, %v2986
        %v3019 = vadd.f32 %v2949, %v2987
        %v3020 = vadd.f32 %v2950, %v2988
        %v3021 = vadd.f32 %v2951, %v2989
        %v3022 = vadd.f32 %v2952, %v2990
        %v3023 = vadd.f32 %v2953, %v2991
        %v3024 = vadd.f32 %v2954, %v2992
        %v3025 = vadd.f32 %v2955, %v2993
        %v3026 = vadd.f32 %v2956, %v2994
        %v3027 = vadd.f32 %v2957, %v2995
        %v3028 = vadd.f32 %v2958, %v2996
        %v3029 = vadd.f32 %v2959, %v2997
        %v3030 = vld [vmem:[#allocation2 + $0x112] sm:$0xff]
        %v3031 = vld [vmem:[#allocation2 + $0x11a] sm:$0xff]
        %v3032 = vlaneseq
        %v3033 = vshrl.u32 %v3032, 7
        %v3034 = vsub.s32 0, %v3033
        %v3035 = vrot.slane %v1760, %v3034
        %v3036 = vmul.f32 %v2864, %v3035
        %v3037 = vmul.f32 %v2865, %v3035
        %v3038 = vmul.f32 %v2866, %v3035
        %v3039 = vmul.f32 %v2867, %v3035
        %v3040 = vmul.f32 %v2868, %v3035
        %v3041 = vmul.f32 %v2869, %v3035
        %v3042 = vmul.f32 %v2870, %v3035
        %v3043 = vmul.f32 %v2871, %v3035
        %v3044 = vmul.f32 %v2872, %v3035
        %v3045 = vmul.f32 %v2873, %v3035
        %v3046 = vmul.f32 %v2874, %v3035
        %v3047 = vmul.f32 %v2875, %v3035
        %v3048 = vmul.f32 %v2876, %v3035
        %v3049 = vmul.f32 %v2877, %v3035
        %v3050 = vmul.f32 %v2878, %v3035
        %v3051 = vmul.f32 %v2879, %v3035
        %v3052 = vmul.f32 %v2880, %v3035
        %v3053 = vmul.f32 %v2881, %v3035
        %v3054 = vmul.f32 %v2882, %v3035
        %v3055 = vmul.f32 %v2883, %v3035
        %v3056 = vmul.f32 %v2884, %v3035
        %v3057 = vmul.f32 %v2885, %v3035
        %v3058 = vmul.f32 %v2886, %v3035
        %v3059 = vmul.f32 %v2887, %v3035
        %v3060 = vmul.f32 %v2888, %v3035
        %v3061 = vmul.f32 %v2889, %v3035
        %v3062 = vmul.f32 %v2890, %v3035
        %v3063 = vmul.f32 %v2891, %v3035
        %v3064 = vmul.f32 %v2960, %v3035
        %v3065 = vmul.f32 %v2961, %v3035
        %v3066 = vmul.f32 %v3030, %v3035
        %v3067 = vmul.f32 %v3031, %v3035
        %v3068 = vadd.f32 %v2998, %v3036
        %v3069 = vadd.f32 %v2999, %v3037
        %v3070 = vadd.f32 %v3000, %v3038
        %v3071 = vadd.f32 %v3001, %v3039
        %v3072 = vadd.f32 %v3002, %v3040
        %v3073 = vadd.f32 %v3003, %v3041
        %v3074 = vadd.f32 %v3004, %v3042
        %v3075 = vadd.f32 %v3005, %v3043
        %v3076 = vadd.f32 %v3006, %v3044
        %v3077 = vadd.f32 %v3007, %v3045
        %v3078 = vadd.f32 %v3008, %v3046
        %v3079 = vadd.f32 %v3009, %v3047
        %v3080 = vadd.f32 %v3010, %v3048
        %v3081 = vadd.f32 %v3011, %v3049
        %v3082 = vadd.f32 %v3012, %v3050
        %v3083 = vadd.f32 %v3013, %v3051
        %v3084 = vadd.f32 %v3014, %v3052
        %v3085 = vadd.f32 %v3015, %v3053
        %v3086 = vadd.f32 %v3016, %v3054
        %v3087 = vadd.f32 %v3017, %v3055
        %v3088 = vadd.f32 %v3018, %v3056
        %v3089 = vadd.f32 %v3019, %v3057
        %v3090 = vadd.f32 %v3020, %v3058
        %v3091 = vadd.f32 %v3021, %v3059
        %v3092 = vadd.f32 %v3022, %v3060
        %v3093 = vadd.f32 %v3023, %v3061
        %v3094 = vadd.f32 %v3024, %v3062
        %v3095 = vadd.f32 %v3025, %v3063
        %v3096 = vadd.f32 %v3026, %v3064
        %v3097 = vadd.f32 %v3027, %v3065
        %v3098 = vadd.f32 %v3028, %v3066
        %v3099 = vadd.f32 %v3029, %v3067
        %v3100 = vsel %vm2252, 0.0, %v3068
        %v3101 = vsel %vm2253, 0.0, %v3069
        %v3102 = vsel %vm2254, 0.0, %v3070
        %v3103 = vsel %vm2255, 0.0, %v3071
        %v3104 = vsel %vm2256, 0.0, %v3072
        %v3105 = vsel %vm2257, 0.0, %v3073
        %v3106 = vsel %vm2258, 0.0, %v3074
        %v3107 = vsel %vm2259, 0.0, %v3075
        %v3108 = vsel %vm2260, 0.0, %v3076
        %v3109 = vsel %vm2261, 0.0, %v3077
        %v3110 = vsel %vm2262, 0.0, %v3078
        %v3111 = vsel %vm2263, 0.0, %v3079
        %v3112 = vsel %vm2264, 0.0, %v3080
        %v3113 = vsel %vm2265, 0.0, %v3081
        %v3114 = vsel %vm2266, 0.0, %v3082
        %v3115 = vsel %vm2267, 0.0, %v3083
        %v3116 = vsel %vm2268, 0.0, %v3084
        %v3117 = vsel %vm2269, 0.0, %v3085
        %v3118 = vsel %vm2270, 0.0, %v3086
        %v3119 = vsel %vm2271, 0.0, %v3087
        %v3120 = vsel %vm2272, 0.0, %v3088
        %v3121 = vsel %vm2273, 0.0, %v3089
        %v3122 = vsel %vm2274, 0.0, %v3090
        %v3123 = vsel %vm2275, 0.0, %v3091
        %v3124 = vsel %vm2276, 0.0, %v3092
        %v3125 = vsel %vm2277, 0.0, %v3093
        %v3126 = vsel %vm2278, 0.0, %v3094
        %v3127 = vsel %vm2279, 0.0, %v3095
        %v3128 = vsel %vm2280, 0.0, %v3096
        %v3129 = vsel %vm2281, 0.0, %v3097
        %v3130 = vsel %vm2282, 0.0, %v3098
        %v3131 = vsel %vm2283, 0.0, %v3099
        %v3132 = vadd.f32 %v2828, %v3100
        %v3133 = vadd.f32 %v2829, %v3101
        %v3134 = vadd.f32 %v2830, %v3102
        %v3135 = vadd.f32 %v2831, %v3103
        %v3136 = vadd.f32 %v2832, %v3104
        %v3137 = vadd.f32 %v2833, %v3105
        %v3138 = vadd.f32 %v2834, %v3106
        %v3139 = vadd.f32 %v2835, %v3107
        %v3140 = vadd.f32 %v2836, %v3108
        %v3141 = vadd.f32 %v2837, %v3109
        %v3142 = vadd.f32 %v2838, %v3110
        %v3143 = vadd.f32 %v2839, %v3111
        %v3144 = vadd.f32 %v2840, %v3112
        %v3145 = vadd.f32 %v2841, %v3113
        %v3146 = vadd.f32 %v2842, %v3114
        %v3147 = vadd.f32 %v2843, %v3115
        %v3148 = vadd.f32 %v2844, %v3116
        %v3149 = vadd.f32 %v2845, %v3117
        %v3150 = vadd.f32 %v2846, %v3118
        %v3151 = vadd.f32 %v2847, %v3119
        %v3152 = vadd.f32 %v2848, %v3120
        %v3153 = vadd.f32 %v2849, %v3121
        %v3154 = vadd.f32 %v2850, %v3122
        %v3155 = vadd.f32 %v2851, %v3123
        %v3156 = vadd.f32 %v2852, %v3124
        %v3157 = vadd.f32 %v2853, %v3125
        %v3158 = vadd.f32 %v2854, %v3126
        %v3159 = vadd.f32 %v2855, %v3127
        %v3160 = vadd.f32 %v2856, %v3128
        %v3161 = vadd.f32 %v2857, %v3129
        %v3162 = vadd.f32 %v2858, %v3130
        %v3163 = vadd.f32 %v2859, %v3131
        %v3164 = vlaneseq
        %v3165 = vshrl.u32 %v3164, 7
        %v3166 = vsub.s32 0, %v3165
        %v3167 = vrot.slane %v1761, %v3166
        %v3168 = vmul.f32 %v3132, %v3167
        %v3169 = vmul.f32 %v3133, %v3167
        %v3170 = vmul.f32 %v3134, %v3167
        %v3171 = vmul.f32 %v3135, %v3167
        %v3172 = vmul.f32 %v3136, %v3167
        %v3173 = vmul.f32 %v3137, %v3167
        %v3174 = vmul.f32 %v3138, %v3167
        %v3175 = vmul.f32 %v3139, %v3167
        %v3176 = vmul.f32 %v3140, %v3167
        %v3177 = vmul.f32 %v3141, %v3167
        %v3178 = vmul.f32 %v3142, %v3167
        %v3179 = vmul.f32 %v3143, %v3167
        %v3180 = vmul.f32 %v3144, %v3167
        %v3181 = vmul.f32 %v3145, %v3167
        %v3182 = vmul.f32 %v3146, %v3167
        %v3183 = vmul.f32 %v3147, %v3167
        %v3184 = vmul.f32 %v3148, %v3167
        %v3185 = vmul.f32 %v3149, %v3167
        %v3186 = vmul.f32 %v3150, %v3167
        %v3187 = vmul.f32 %v3151, %v3167
        %v3188 = vmul.f32 %v3152, %v3167
        %v3189 = vmul.f32 %v3153, %v3167
        %v3190 = vmul.f32 %v3154, %v3167
        %v3191 = vmul.f32 %v3155, %v3167
        %v3192 = vmul.f32 %v3156, %v3167
        %v3193 = vmul.f32 %v3157, %v3167
        %v3194 = vmul.f32 %v3158, %v3167
        %v3195 = vmul.f32 %v3159, %v3167
        %v3196 = vmul.f32 %v3160, %v3167
        %v3197 = vmul.f32 %v3161, %v3167
        %v3198 = vmul.f32 %v3162, %v3167
        %v3199 = vmul.f32 %v3163, %v3167
        %v3200 = vlaneseq
        %v3201 = vshrl.u32 %v3200, 7
        %v3202 = vsub.s32 1, %v3201
        %v3203 = vrot.slane %v1761, %v3202
        %v3204 = vadd.f32 %v3168, %v3203
        %v3205 = vadd.f32 %v3169, %v3203
        %v3206 = vadd.f32 %v3170, %v3203
        %v3207 = vadd.f32 %v3171, %v3203
        %v3208 = vadd.f32 %v3172, %v3203
        %v3209 = vadd.f32 %v3173, %v3203
        %v3210 = vadd.f32 %v3174, %v3203
        %v3211 = vadd.f32 %v3175, %v3203
        %v3212 = vadd.f32 %v3176, %v3203
        %v3213 = vadd.f32 %v3177, %v3203
        %v3214 = vadd.f32 %v3178, %v3203
        %v3215 = vadd.f32 %v3179, %v3203
        %v3216 = vadd.f32 %v3180, %v3203
        %v3217 = vadd.f32 %v3181, %v3203
        %v3218 = vadd.f32 %v3182, %v3203
        %v3219 = vadd.f32 %v3183, %v3203
        %v3220 = vadd.f32 %v3184, %v3203
        %v3221 = vadd.f32 %v3185, %v3203
        %v3222 = vadd.f32 %v3186, %v3203
        %v3223 = vadd.f32 %v3187, %v3203
        %v3224 = vadd.f32 %v3188, %v3203
        %v3225 = vadd.f32 %v3189, %v3203
        %v3226 = vadd.f32 %v3190, %v3203
        %v3227 = vadd.f32 %v3191, %v3203
        %v3228 = vadd.f32 %v3192, %v3203
        %v3229 = vadd.f32 %v3193, %v3203
        %v3230 = vadd.f32 %v3194, %v3203
        %v3231 = vadd.f32 %v3195, %v3203
        %v3232 = vadd.f32 %v3196, %v3203
        %v3233 = vadd.f32 %v3197, %v3203
        %v3234 = vadd.f32 %v3198, %v3203
        %v3235 = vadd.f32 %v3199, %v3203
        %v3236 = vmax.f32 %v3204, 0.0
        %v3237 = vmax.f32 %v3205, 0.0
        %v3238 = vmax.f32 %v3206, 0.0
        %v3239 = vmax.f32 %v3207, 0.0
        %v3240 = vmax.f32 %v3208, 0.0
        %v3241 = vmax.f32 %v3209, 0.0
        %v3242 = vmax.f32 %v3210, 0.0
        %v3243 = vmax.f32 %v3211, 0.0
        %v3244 = vmax.f32 %v3212, 0.0
        %v3245 = vmax.f32 %v3213, 0.0
        %v3246 = vmax.f32 %v3214, 0.0
        %v3247 = vmax.f32 %v3215, 0.0
        %v3248 = vmax.f32 %v3216, 0.0
        %v3249 = vmax.f32 %v3217, 0.0
        %v3250 = vmax.f32 %v3218, 0.0
        %v3251 = vmax.f32 %v3219, 0.0
        %v3252 = vmax.f32 %v3220, 0.0
        %v3253 = vmax.f32 %v3221, 0.0
        %v3254 = vmax.f32 %v3222, 0.0
        %v3255 = vmax.f32 %v3223, 0.0
        %v3256 = vmax.f32 %v3224, 0.0
        %v3257 = vmax.f32 %v3225, 0.0
        %v3258 = vmax.f32 %v3226, 0.0
        %v3259 = vmax.f32 %v3227, 0.0
        %v3260 = vmax.f32 %v3228, 0.0
        %v3261 = vmax.f32 %v3229, 0.0
        %v3262 = vmax.f32 %v3230, 0.0
        %v3263 = vmax.f32 %v3231, 0.0
        %v3264 = vmax.f32 %v3232, 0.0
        %v3265 = vmax.f32 %v3233, 0.0
        %v3266 = vmax.f32 %v3234, 0.0
        %v3267 = vmax.f32 %v3235, 0.0
        %v3268 = vmin.f32 %v3236, 6.0
        %v3269 = vmin.f32 %v3237, 6.0
        %v3270 = vmin.f32 %v3238, 6.0
        %v3271 = vmin.f32 %v3239, 6.0
        %v3272 = vmin.f32 %v3240, 6.0
        %v3273 = vmin.f32 %v3241, 6.0
        %v3274 = vmin.f32 %v3242, 6.0
        %v3275 = vmin.f32 %v3243, 6.0
        %v3276 = vmin.f32 %v3244, 6.0
        %v3277 = vmin.f32 %v3245, 6.0
        %v3278 = vmin.f32 %v3246, 6.0
        %v3279 = vmin.f32 %v3247, 6.0
        %v3280 = vmin.f32 %v3248, 6.0
        %v3281 = vmin.f32 %v3249, 6.0
        %v3282 = vmin.f32 %v3250, 6.0
        %v3283 = vmin.f32 %v3251, 6.0
        %v3284 = vmin.f32 %v3252, 6.0
        %v3285 = vmin.f32 %v3253, 6.0
        %v3286 = vmin.f32 %v3254, 6.0
        %v3287 = vmin.f32 %v3255, 6.0
        %v3288 = vmin.f32 %v3256, 6.0
        %v3289 = vmin.f32 %v3257, 6.0
        %v3290 = vmin.f32 %v3258, 6.0
        %v3291 = vmin.f32 %v3259, 6.0
        %v3292 = vmin.f32 %v3260, 6.0
        %v3293 = vmin.f32 %v3261, 6.0
        %v3294 = vmin.f32 %v3262, 6.0
        %v3295 = vmin.f32 %v3263, 6.0
        %v3296 = vmin.f32 %v3264, 6.0
        %v3297 = vmin.f32 %v3265, 6.0
        %v3298 = vmin.f32 %v3266, 6.0
        %v3299 = vmin.f32 %v3267, 6.0
        %v3300 = vpack.c.bf16 %v3269, %v3268
        %v3301 = vpack.c.bf16 %v3271, %v3270
        %v3302 = vpack.c.bf16 %v3273, %v3272
        %v3303 = vpack.c.bf16 %v3275, %v3274
        %v3304 = vpack.c.bf16 %v3277, %v3276
        %v3305 = vpack.c.bf16 %v3279, %v3278
        %v3306 = vpack.c.bf16 %v3281, %v3280
        %v3307 = vpack.c.bf16 %v3283, %v3282
        %v3308 = vpack.c.bf16 %v3285, %v3284
        %v3309 = vpack.c.bf16 %v3287, %v3286
        %v3310 = vpack.c.bf16 %v3289, %v3288
        %v3311 = vpack.c.bf16 %v3291, %v3290
        %v3312 = vpack.c.bf16 %v3293, %v3292
        %v3313 = vpack.c.bf16 %v3295, %v3294
        %v3314 = vpack.c.bf16 %v3297, %v3296
        %v3315 = vpack.c.bf16 %v3299, %v3298
        %v3316 = vld [vmem:[%s11] sm:$0xf]
        %v3317 = vld [vmem:[%s11 + $0x4] sm:$0xf]
        %v3318 = vld [vmem:[%s11 + $0x8] sm:$0xf]
        %v3319 = vld [vmem:[%s11 + $0xc] sm:$0xf]
        %v3324 = vunpack.c.l.b16 %v3316
        %v3325 = vunpack.c.l.b16 %v3317
        %v3326 = vunpack.c.l.b16 %v3318
        %v3327 = vunpack.c.l.b16 %v3319
        %v3328 = vpack.c.b16 %v3325, %v3324
        %v3329 = vpack.c.b16 %v3327, %v3326
        %v3333 = vsel %vm1763, %v3300, 0
        %v3336 = vsel %vm1763, %v3301, 0
        %v3339 = vsel %vm1763, %v3302, 0
        %v3342 = vsel %vm1763, %v3303, 0
        %v3345 = vsel %vm1763, %v3304, 0
        %v3348 = vsel %vm1763, %v3305, 0
        %v3351 = vsel %vm1763, %v3306, 0
        %v3354 = vsel %vm1763, %v3307, 0
        %v3357 = vsel %vm1763, %v3308, 0
        %v3360 = vsel %vm1763, %v3309, 0
        %v3363 = vsel %vm1763, %v3310, 0
        %v3366 = vsel %vm1763, %v3311, 0
        %v3369 = vsel %vm1763, %v3312, 0
        %v3372 = vsel %vm1763, %v3313, 0
        %v3375 = vsel %vm1763, %v3314, 0
        %v3378 = vsel %vm1763, %v3315, 0
        %3380 = vmatprep.subr.bf16.mxu0 0
        %3381 = vmatpush1.bf16.msra.mxu0 0
        %3382 = vmatprep.subr.bf16.mxu0 0
        %3383 = vmatpush1.bf16.msra.mxu0 0
        %3384 = vmatprep.subr.bf16.mxu0 0
        %3385 = vmatpush1.bf16.msra.mxu0 0
        %3386 = vmatprep.subr.bf16.mxu0 0
        %3387 = vmatpush1.bf16.msra.mxu0 0
        %3388 = vmatprep.subr.bf16.mxu0 0
        %3389 = vmatpush1.bf16.msra.mxu0 0
        %3390 = vmatprep.subr.bf16.mxu0 0
        %3391 = vmatpush1.bf16.msra.mxu0 0
        %3392 = vmatprep.subr.bf16.mxu0 0
        %3393 = vmatpush1.bf16.msra.mxu0 %v3329
        %3394 = vmatprep.subr.bf16.mxu0 0
        %3395 = vmatpush1.bf16.msra.mxu0 %v3328
        %3396 = vmatprep.subr.bf16.mxu0 0
        %3397 = vmatpush2.bf16.msra.mxu0 0
        %3398 = vmatprep.subr.bf16.mxu0 0
        %3399 = vmatpush2.bf16.msra.mxu0 0
        %3400 = vmatprep.subr.bf16.mxu0 0
        %3401 = vmatpush2.bf16.msra.mxu0 0
        %3402 = vmatprep.subr.bf16.mxu0 0
        %3403 = vmatpush2.bf16.msra.mxu0 0
        %3404 = vmatprep.subr.bf16.mxu0 0
        %3405 = vmatpush2.bf16.msra.mxu0 0
        %3406 = vmatprep.subr.bf16.mxu0 0
        %3407 = vmatpush2.bf16.msra.mxu0 0
        %3408 = vmatprep.subr.bf16.mxu0 0
        %3409 = vmatpush2.bf16.msra.mxu0 0
        %3410 = vmatprep.subr.bf16.mxu0 0
        %3411 = vmatpush2.bf16.msra.mxu0 0
        %3412 = vmatprep.mubr.bf16.mxu0 0
        %3413 = vmatmul.mubr.bf16.gmra.mxu0 %v3333
        %v3414 = vpop.f32.mrf.mxu0
        %v3415 = vadd.f32 0.0, %v3414
        %v3416 = vpop.f32.mrf.mxu0
        %v3417 = vpop.f32.mrf.mxu0
        %v3418 = vadd.f32 0.0, %v3417
        %v3419 = vpop.f32.mrf.mxu0
        %3420 = vmatprep.mubr.bf16.mxu0 0
        %3421 = vmatmul.mubr.bf16.gmra.mxu0 %v3336
        %v3422 = vpop.f32.mrf.mxu0
        %v3423 = vadd.f32 0.0, %v3422
        %v3424 = vpop.f32.mrf.mxu0
        %v3425 = vpop.f32.mrf.mxu0
        %v3426 = vadd.f32 0.0, %v3425
        %v3427 = vpop.f32.mrf.mxu0
        %3428 = vmatprep.mubr.bf16.mxu0 0
        %3429 = vmatmul.mubr.bf16.gmra.mxu0 %v3339
        %v3430 = vpop.f32.mrf.mxu0
        %v3431 = vadd.f32 0.0, %v3430
        %v3432 = vpop.f32.mrf.mxu0
        %v3433 = vpop.f32.mrf.mxu0
        %v3434 = vadd.f32 0.0, %v3433
        %v3435 = vpop.f32.mrf.mxu0
        %3436 = vmatprep.mubr.bf16.mxu0 0
        %3437 = vmatmul.mubr.bf16.gmra.mxu0 %v3342
        %v3438 = vpop.f32.mrf.mxu0
        %v3439 = vadd.f32 0.0, %v3438
        %v3440 = vpop.f32.mrf.mxu0
        %v3441 = vpop.f32.mrf.mxu0
        %v3442 = vadd.f32 0.0, %v3441
        %v3443 = vpop.f32.mrf.mxu0
        %3444 = vmatprep.mubr.bf16.mxu0 0
        %3445 = vmatmul.mubr.bf16.gmra.mxu0 %v3345
        %v3446 = vpop.f32.mrf.mxu0
        %v3447 = vadd.f32 0.0, %v3446
        %v3448 = vpop.f32.mrf.mxu0
        %v3449 = vpop.f32.mrf.mxu0
        %v3450 = vadd.f32 0.0, %v3449
        %v3451 = vpop.f32.mrf.mxu0
        %3452 = vmatprep.mubr.bf16.mxu0 0
        %3453 = vmatmul.mubr.bf16.gmra.mxu0 %v3348
        %v3454 = vpop.f32.mrf.mxu0
        %v3455 = vadd.f32 0.0, %v3454
        %v3456 = vpop.f32.mrf.mxu0
        %v3457 = vpop.f32.mrf.mxu0
        %v3458 = vadd.f32 0.0, %v3457
        %v3459 = vpop.f32.mrf.mxu0
        %3460 = vmatprep.mubr.bf16.mxu0 0
        %3461 = vmatmul.mubr.bf16.gmra.mxu0 %v3351
        %v3462 = vpop.f32.mrf.mxu0
        %v3463 = vadd.f32 0.0, %v3462
        %v3464 = vpop.f32.mrf.mxu0
        %v3465 = vpop.f32.mrf.mxu0
        %v3466 = vadd.f32 0.0, %v3465
        %v3467 = vpop.f32.mrf.mxu0
        %3468 = vmatprep.mubr.bf16.mxu0 0
        %3469 = vmatmul.mubr.bf16.gmra.mxu0 %v3354
        %v3470 = vpop.f32.mrf.mxu0
        %v3471 = vadd.f32 0.0, %v3470
        %v3472 = vpop.f32.mrf.mxu0
        %v3473 = vpop.f32.mrf.mxu0
        %v3474 = vadd.f32 0.0, %v3473
        %v3475 = vpop.f32.mrf.mxu0
        %3476 = vmatprep.mubr.bf16.mxu0 0
        %3477 = vmatmul.mubr.bf16.gmra.mxu0 %v3357
        %v3478 = vpop.f32.mrf.mxu0
        %v3479 = vadd.f32 0.0, %v3478
        %v3480 = vpop.f32.mrf.mxu0
        %v3481 = vpop.f32.mrf.mxu0
        %v3482 = vadd.f32 0.0, %v3481
        %v3483 = vpop.f32.mrf.mxu0
        %3484 = vmatprep.mubr.bf16.mxu0 0
        %3485 = vmatmul.mubr.bf16.gmra.mxu0 %v3360
        %v3486 = vpop.f32.mrf.mxu0
        %v3487 = vadd.f32 0.0, %v3486
        %v3488 = vpop.f32.mrf.mxu0
        %v3489 = vpop.f32.mrf.mxu0
        %v3490 = vadd.f32 0.0, %v3489
        %v3491 = vpop.f32.mrf.mxu0
        %3492 = vmatprep.mubr.bf16.mxu0 0
        %3493 = vmatmul.mubr.bf16.gmra.mxu0 %v3363
        %v3494 = vpop.f32.mrf.mxu0
        %v3495 = vadd.f32 0.0, %v3494
        %v3496 = vpop.f32.mrf.mxu0
        %v3497 = vpop.f32.mrf.mxu0
        %v3498 = vadd.f32 0.0, %v3497
        %v3499 = vpop.f32.mrf.mxu0
        %3500 = vmatprep.mubr.bf16.mxu0 0
        %3501 = vmatmul.mubr.bf16.gmra.mxu0 %v3366
        %v3502 = vpop.f32.mrf.mxu0
        %v3503 = vadd.f32 0.0, %v3502
        %v3504 = vpop.f32.mrf.mxu0
        %v3505 = vpop.f32.mrf.mxu0
        %v3506 = vadd.f32 0.0, %v3505
        %v3507 = vpop.f32.mrf.mxu0
        %3508 = vmatprep.mubr.bf16.mxu0 0
        %3509 = vmatmul.mubr.bf16.gmra.mxu0 %v3369
        %v3510 = vpop.f32.mrf.mxu0
        %v3511 = vadd.f32 0.0, %v3510
        %v3512 = vpop.f32.mrf.mxu0
        %v3513 = vpop.f32.mrf.mxu0
        %v3514 = vadd.f32 0.0, %v3513
        %v3515 = vpop.f32.mrf.mxu0
        %3516 = vmatprep.mubr.bf16.mxu0 0
        %3517 = vmatmul.mubr.bf16.gmra.mxu0 %v3372
        %v3518 = vpop.f32.mrf.mxu0
        %v3519 = vadd.f32 0.0, %v3518
        %v3520 = vpop.f32.mrf.mxu0
        %v3521 = vpop.f32.mrf.mxu0
        %v3522 = vadd.f32 0.0, %v3521
        %v3523 = vpop.f32.mrf.mxu0
        %3524 = vmatprep.mubr.bf16.mxu0 0
        %3525 = vmatmul.mubr.bf16.gmra.mxu0 %v3375
        %v3526 = vpop.f32.mrf.mxu0
        %v3527 = vadd.f32 0.0, %v3526
        %v3528 = vpop.f32.mrf.mxu0
        %v3529 = vpop.f32.mrf.mxu0
        %v3530 = vadd.f32 0.0, %v3529
        %v3531 = vpop.f32.mrf.mxu0
        %3532 = vmatprep.mubr.bf16.mxu0 0
        %3533 = vmatmul.mubr.bf16.gmra.mxu0 %v3378
        %v3534 = vpop.f32.mrf.mxu0
        %v3535 = vadd.f32 0.0, %v3534
        %v3536 = vpop.f32.mrf.mxu0
        %v3537 = vpop.f32.mrf.mxu0
        %v3538 = vadd.f32 0.0, %v3537
        %v3539 = vpop.f32.mrf.mxu0
        %3540 = vdwg.mxu0
        %v3541 = vlaneseq
        %v3542 = vshrl.u32 %v3541, 7
        %v3543 = vsub.s32 0, %v3542
        %v3544 = vrot.slane %v1762, %v3543
        %v3545 = vmul.f32 %v3415, %v3544
        %v3546 = vmul.f32 %v3418, %v3544
        %v3547 = vmul.f32 %v3423, %v3544
        %v3548 = vmul.f32 %v3426, %v3544
        %v3549 = vmul.f32 %v3431, %v3544
        %v3550 = vmul.f32 %v3434, %v3544
        %v3551 = vmul.f32 %v3439, %v3544
        %v3552 = vmul.f32 %v3442, %v3544
        %v3553 = vmul.f32 %v3447, %v3544
        %v3554 = vmul.f32 %v3450, %v3544
        %v3555 = vmul.f32 %v3455, %v3544
        %v3556 = vmul.f32 %v3458, %v3544
        %v3557 = vmul.f32 %v3463, %v3544
        %v3558 = vmul.f32 %v3466, %v3544
        %v3559 = vmul.f32 %v3471, %v3544
        %v3560 = vmul.f32 %v3474, %v3544
        %v3561 = vmul.f32 %v3479, %v3544
        %v3562 = vmul.f32 %v3482, %v3544
        %v3563 = vmul.f32 %v3487, %v3544
        %v3564 = vmul.f32 %v3490, %v3544
        %v3565 = vmul.f32 %v3495, %v3544
        %v3566 = vmul.f32 %v3498, %v3544
        %v3567 = vmul.f32 %v3503, %v3544
        %v3568 = vmul.f32 %v3506, %v3544
        %v3569 = vmul.f32 %v3511, %v3544
        %v3570 = vmul.f32 %v3514, %v3544
        %v3571 = vmul.f32 %v3519, %v3544
        %v3572 = vmul.f32 %v3522, %v3544
        %v3573 = vmul.f32 %v3527, %v3544
        %v3574 = vmul.f32 %v3530, %v3544
        %v3575 = vmul.f32 %v3535, %v3544
        %v3576 = vmul.f32 %v3538, %v3544
        %v3577 = vlaneseq
        %v3578 = vshrl.u32 %v3577, 7
        %v3579 = vsub.s32 1, %v3578
        %v3580 = vrot.slane %v1762, %v3579
        %v3581 = vadd.f32 %v3545, %v3580
        %v3582 = vadd.f32 %v3546, %v3580
        %v3583 = vadd.f32 %v3547, %v3580
        %v3584 = vadd.f32 %v3548, %v3580
        %v3585 = vadd.f32 %v3549, %v3580
        %v3586 = vadd.f32 %v3550, %v3580
        %v3587 = vadd.f32 %v3551, %v3580
        %v3588 = vadd.f32 %v3552, %v3580
        %v3589 = vadd.f32 %v3553, %v3580
        %v3590 = vadd.f32 %v3554, %v3580
        %v3591 = vadd.f32 %v3555, %v3580
        %v3592 = vadd.f32 %v3556, %v3580
        %v3593 = vadd.f32 %v3557, %v3580
        %v3594 = vadd.f32 %v3558, %v3580
        %v3595 = vadd.f32 %v3559, %v3580
        %v3596 = vadd.f32 %v3560, %v3580
        %v3597 = vadd.f32 %v3561, %v3580
        %v3598 = vadd.f32 %v3562, %v3580
        %v3599 = vadd.f32 %v3563, %v3580
        %v3600 = vadd.f32 %v3564, %v3580
        %v3601 = vadd.f32 %v3565, %v3580
        %v3602 = vadd.f32 %v3566, %v3580
        %v3603 = vadd.f32 %v3567, %v3580
        %v3604 = vadd.f32 %v3568, %v3580
        %v3605 = vadd.f32 %v3569, %v3580
        %v3606 = vadd.f32 %v3570, %v3580
        %v3607 = vadd.f32 %v3571, %v3580
        %v3608 = vadd.f32 %v3572, %v3580
        %v3609 = vadd.f32 %v3573, %v3580
        %v3610 = vadd.f32 %v3574, %v3580
        %v3611 = vadd.f32 %v3575, %v3580
        %v3612 = vadd.f32 %v3576, %v3580
        %v3613 = vld [vmem:[%s15] sm:$0xff]
        %v3614 = vld [vmem:[%s15 + $0x8] sm:$0xff]
        %v3615 = vld [vmem:[%s15 + $0x10] sm:$0xff]
        %v3616 = vld [vmem:[%s15 + $0x18] sm:$0xff]
        %v3617 = vld [vmem:[%s15 + $0x20] sm:$0xff]
        %v3618 = vld [vmem:[%s15 + $0x28] sm:$0xff]
        %v3619 = vld [vmem:[%s15 + $0x30] sm:$0xff]
        %v3620 = vld [vmem:[%s15 + $0x38] sm:$0xff]
        %v3621 = vld [vmem:[%s15 + $0x40] sm:$0xff]
        %v3622 = vld [vmem:[%s15 + $0x48] sm:$0xff]
        %v3623 = vld [vmem:[%s15 + $0x50] sm:$0xff]
        %v3624 = vld [vmem:[%s15 + $0x58] sm:$0xff]
        %v3625 = vld [vmem:[%s15 + $0x60] sm:$0xff]
        %v3626 = vld [vmem:[%s15 + $0x68] sm:$0xff]
        %v3627 = vld [vmem:[%s15 + $0x70] sm:$0xff]
        %v3628 = vld [vmem:[%s15 + $0x78] sm:$0xff]
        %v3629 = vld [vmem:[%s15 + $0x80] sm:$0xff]
        %v3630 = vld [vmem:[%s15 + $0x88] sm:$0xff]
        %v3631 = vld [vmem:[%s15 + $0x90] sm:$0xff]
        %v3632 = vld [vmem:[%s15 + $0x98] sm:$0xff]
        %v3633 = vld [vmem:[%s15 + $0xa0] sm:$0xff]
        %v3634 = vld [vmem:[%s15 + $0xa8] sm:$0xff]
        %v3635 = vld [vmem:[%s15 + $0xb0] sm:$0xff]
        %v3636 = vld [vmem:[%s15 + $0xb8] sm:$0xff]
        %v3637 = vld [vmem:[%s15 + $0xc0] sm:$0xff]
        %v3638 = vld [vmem:[%s15 + $0xc8] sm:$0xff]
        %v3639 = vld [vmem:[%s15 + $0xd0] sm:$0xff]
        %v3640 = vld [vmem:[%s15 + $0xd8] sm:$0xff]
        %v3641 = vld [vmem:[%s15 + $0xe0] sm:$0xff]
        %v3642 = vld [vmem:[%s15 + $0xe8] sm:$0xff]
        %v3643 = vld [vmem:[%s15 + $0xf0] sm:$0xff]
        %v3644 = vld [vmem:[%s15 + $0xf8] sm:$0xff]
        %v3645 = vpack.c.bf16 %v3582, %v3581
        %v3646 = vpack.c.bf16 %v3584, %v3583
        %v3647 = vpack.c.bf16 %v3586, %v3585
        %v3648 = vpack.c.bf16 %v3588, %v3587
        %v3649 = vpack.c.bf16 %v3590, %v3589
        %v3650 = vpack.c.bf16 %v3592, %v3591
        %v3651 = vpack.c.bf16 %v3594, %v3593
        %v3652 = vpack.c.bf16 %v3596, %v3595
        %v3653 = vpack.c.bf16 %v3598, %v3597
        %v3654 = vpack.c.bf16 %v3600, %v3599
        %v3655 = vpack.c.bf16 %v3602, %v3601
        %v3656 = vpack.c.bf16 %v3604, %v3603
        %v3657 = vpack.c.bf16 %v3606, %v3605
        %v3658 = vpack.c.bf16 %v3608, %v3607
        %v3659 = vpack.c.bf16 %v3610, %v3609
        %v3660 = vpack.c.bf16 %v3612, %v3611
        %v3693 = vunpack.c.l.b16 %v3613
        %v3694 = vunpack.c.h.b16 %v3613
        %v3695 = vunpack.c.l.b16 %v3614
        %v3696 = vunpack.c.h.b16 %v3614
        %v3697 = vunpack.c.l.b16 %v3615
        %v3698 = vunpack.c.h.b16 %v3615
        %v3699 = vunpack.c.l.b16 %v3616
        %v3700 = vunpack.c.h.b16 %v3616
        %v3701 = vunpack.c.l.b16 %v3617
        %v3702 = vunpack.c.h.b16 %v3617
        %v3703 = vunpack.c.l.b16 %v3618
        %v3704 = vunpack.c.h.b16 %v3618
        %v3705 = vunpack.c.l.b16 %v3619
        %v3706 = vunpack.c.h.b16 %v3619
        %v3707 = vunpack.c.l.b16 %v3620
        %v3708 = vunpack.c.h.b16 %v3620
        %v3709 = vunpack.c.l.b16 %v3621
        %v3710 = vunpack.c.h.b16 %v3621
        %v3711 = vunpack.c.l.b16 %v3622
        %v3712 = vunpack.c.h.b16 %v3622
        %v3713 = vunpack.c.l.b16 %v3623
        %v3714 = vunpack.c.h.b16 %v3623
        %v3715 = vunpack.c.l.b16 %v3624
        %v3716 = vunpack.c.h.b16 %v3624
        %v3717 = vunpack.c.l.b16 %v3625
        %v3718 = vunpack.c.h.b16 %v3625
        %v3719 = vunpack.c.l.b16 %v3626
        %v3720 = vunpack.c.h.b16 %v3626
        %v3721 = vunpack.c.l.b16 %v3627
        %v3722 = vunpack.c.h.b16 %v3627
        %v3723 = vunpack.c.l.b16 %v3628
        %v3724 = vunpack.c.h.b16 %v3628
        %v3725 = vunpack.c.l.b16 %v3629
        %v3726 = vunpack.c.h.b16 %v3629
        %v3727 = vunpack.c.l.b16 %v3630
        %v3728 = vunpack.c.h.b16 %v3630
        %v3729 = vunpack.c.l.b16 %v3631
        %v3730 = vunpack.c.h.b16 %v3631
        %v3731 = vunpack.c.l.b16 %v3632
        %v3732 = vunpack.c.h.b16 %v3632
        %v3733 = vunpack.c.l.b16 %v3633
        %v3734 = vunpack.c.h.b16 %v3633
        %v3735 = vunpack.c.l.b16 %v3634
        %v3736 = vunpack.c.h.b16 %v3634
        %v3737 = vunpack.c.l.b16 %v3635
        %v3738 = vunpack.c.h.b16 %v3635
        %v3739 = vunpack.c.l.b16 %v3636
        %v3740 = vunpack.c.h.b16 %v3636
        %v3741 = vunpack.c.l.b16 %v3637
        %v3742 = vunpack.c.h.b16 %v3637
        %v3743 = vunpack.c.l.b16 %v3638
        %v3744 = vunpack.c.h.b16 %v3638
        %v3745 = vunpack.c.l.b16 %v3639
        %v3746 = vunpack.c.h.b16 %v3639
        %v3747 = vunpack.c.l.b16 %v3640
        %v3748 = vunpack.c.h.b16 %v3640
        %v3749 = vunpack.c.l.b16 %v3641
        %v3750 = vunpack.c.h.b16 %v3641
        %v3751 = vunpack.c.l.b16 %v3642
        %v3752 = vunpack.c.h.b16 %v3642
        %v3753 = vunpack.c.l.b16 %v3643
        %v3754 = vunpack.c.h.b16 %v3643
        %v3755 = vunpack.c.l.b16 %v3644
        %v3756 = vunpack.c.h.b16 %v3644
        %v3757 = vpack.c.b16 %v3695, %v3693
        %v3758 = vpack.c.b16 %v3696, %v3694
        %v3759 = vpack.c.b16 %v3699, %v3697
        %v3760 = vpack.c.b16 %v3700, %v3698
        %v3761 = vpack.c.b16 %v3703, %v3701
        %v3762 = vpack.c.b16 %v3704, %v3702
        %v3763 = vpack.c.b16 %v3707, %v3705
        %v3764 = vpack.c.b16 %v3708, %v3706
        %v3765 = vpack.c.b16 %v3711, %v3709
        %v3766 = vpack.c.b16 %v3712, %v3710
        %v3767 = vpack.c.b16 %v3715, %v3713
        %v3768 = vpack.c.b16 %v3716, %v3714
        %v3769 = vpack.c.b16 %v3719, %v3717
        %v3770 = vpack.c.b16 %v3720, %v3718
        %v3771 = vpack.c.b16 %v3723, %v3721
        %v3772 = vpack.c.b16 %v3724, %v3722
        %v3773 = vpack.c.b16 %v3727, %v3725
        %v3774 = vpack.c.b16 %v3728, %v3726
        %v3775 = vpack.c.b16 %v3731, %v3729
        %v3776 = vpack.c.b16 %v3732, %v3730
        %v3777 = vpack.c.b16 %v3735, %v3733
        %v3778 = vpack.c.b16 %v3736, %v3734
        %v3779 = vpack.c.b16 %v3739, %v3737
        %v3780 = vpack.c.b16 %v3740, %v3738
        %v3781 = vpack.c.b16 %v3743, %v3741
        %v3782 = vpack.c.b16 %v3744, %v3742
        %v3783 = vpack.c.b16 %v3747, %v3745
        %v3784 = vpack.c.b16 %v3748, %v3746
        %v3785 = vpack.c.b16 %v3751, %v3749
        %v3786 = vpack.c.b16 %v3752, %v3750
        %v3787 = vpack.c.b16 %v3755, %v3753
        %v3788 = vpack.c.b16 %v3756, %v3754
        %3821 = vmatprep.subr.bf16.mxu0 0
        %3822 = vmatpush1.bf16.msra.mxu0 %v3652
        %3823 = vmatprep.subr.bf16.mxu0 0
        %3824 = vmatpush1.bf16.msra.mxu0 %v3651
        %3825 = vmatprep.subr.bf16.mxu0 0
        %3826 = vmatpush1.bf16.msra.mxu0 %v3650
        %3827 = vmatprep.subr.bf16.mxu0 0
        %3828 = vmatpush1.bf16.msra.mxu0 %v3649
        %3829 = vmatprep.subr.bf16.mxu0 0
        %3830 = vmatpush1.bf16.msra.mxu0 %v3648
        %3831 = vmatprep.subr.bf16.mxu0 0
        %3832 = vmatpush1.bf16.msra.mxu0 %v3647
        %3833 = vmatprep.subr.bf16.mxu0 0
        %3834 = vmatpush1.bf16.msra.mxu0 %v3646
        %3835 = vmatprep.subr.bf16.mxu0 0
        %3836 = vmatpush1.bf16.msra.mxu0 %v3645
        %3837 = vmatprep.subr.bf16.mxu0 0
        %3838 = vmatpush2.bf16.msra.mxu0 %v3660
        %3839 = vmatprep.subr.bf16.mxu0 0
        %3840 = vmatpush2.bf16.msra.mxu0 %v3659
        %3841 = vmatprep.subr.bf16.mxu0 0
        %3842 = vmatpush2.bf16.msra.mxu0 %v3658
        %3843 = vmatprep.subr.bf16.mxu0 0
        %3844 = vmatpush2.bf16.msra.mxu0 %v3657
        %3845 = vmatprep.subr.bf16.mxu0 0
        %3846 = vmatpush2.bf16.msra.mxu0 %v3656
        %3847 = vmatprep.subr.bf16.mxu0 0
        %3848 = vmatpush2.bf16.msra.mxu0 %v3655
        %3849 = vmatprep.subr.bf16.mxu0 0
        %3850 = vmatpush2.bf16.msra.mxu0 %v3654
        %3851 = vmatprep.subr.bf16.mxu0 0
        %3852 = vmatpush2.bf16.msra.mxu0 %v3653
        %3853 = vmatprep.mubr.bf16.mxu0 %v3758
        %3854 = vmatmul.mubr.bf16.gmra.mxu0 %v3757
        %v3855 = vpop.f32.mrf.mxu0
        %v3856 = vadd.f32 0.0, %v3855
        %v3857 = vpop.f32.mrf.mxu0
        %v3858 = vpop.f32.mrf.mxu0
        %v3859 = vadd.f32 0.0, %v3858
        %v3860 = vpop.f32.mrf.mxu0
        %3861 = vmatprep.mubr.bf16.mxu0 %v3760
        %3862 = vmatmul.mubr.bf16.gmra.mxu0 %v3759
        %v3863 = vpop.f32.mrf.mxu0
        %v3864 = vadd.f32 0.0, %v3863
        %v3865 = vpop.f32.mrf.mxu0
        %v3866 = vpop.f32.mrf.mxu0
        %v3867 = vadd.f32 0.0, %v3866
        %v3868 = vpop.f32.mrf.mxu0
        %3869 = vmatprep.mubr.bf16.mxu0 %v3762
        %3870 = vmatmul.mubr.bf16.gmra.mxu0 %v3761
        %v3871 = vpop.f32.mrf.mxu0
        %v3872 = vadd.f32 0.0, %v3871
        %v3873 = vpop.f32.mrf.mxu0
        %v3874 = vpop.f32.mrf.mxu0
        %v3875 = vadd.f32 0.0, %v3874
        %v3876 = vpop.f32.mrf.mxu0
        %3877 = vmatprep.mubr.bf16.mxu0 %v3764
        %3878 = vmatmul.mubr.bf16.gmra.mxu0 %v3763
        %v3879 = vpop.f32.mrf.mxu0
        %v3880 = vadd.f32 0.0, %v3879
        %v3881 = vpop.f32.mrf.mxu0
        %v3882 = vpop.f32.mrf.mxu0
        %v3883 = vadd.f32 0.0, %v3882
        %v3884 = vpop.f32.mrf.mxu0
        %3885 = vmatprep.mubr.bf16.mxu0 %v3766
        %3886 = vmatmul.mubr.bf16.gmra.mxu0 %v3765
        %v3887 = vpop.f32.mrf.mxu0
        %v3888 = vadd.f32 0.0, %v3887
        %v3889 = vpop.f32.mrf.mxu0
        %v3890 = vpop.f32.mrf.mxu0
        %v3891 = vadd.f32 0.0, %v3890
        %v3892 = vpop.f32.mrf.mxu0
        %3893 = vmatprep.mubr.bf16.mxu0 %v3768
        %3894 = vmatmul.mubr.bf16.gmra.mxu0 %v3767
        %v3895 = vpop.f32.mrf.mxu0
        %v3896 = vadd.f32 0.0, %v3895
        %v3897 = vpop.f32.mrf.mxu0
        %v3898 = vpop.f32.mrf.mxu0
        %v3899 = vadd.f32 0.0, %v3898
        %v3900 = vpop.f32.mrf.mxu0
        %3901 = vmatprep.mubr.bf16.mxu0 %v3770
        %3902 = vmatmul.mubr.bf16.gmra.mxu0 %v3769
        %v3903 = vpop.f32.mrf.mxu0
        %v3904 = vadd.f32 0.0, %v3903
        %v3905 = vpop.f32.mrf.mxu0
        %v3906 = vpop.f32.mrf.mxu0
        %v3907 = vadd.f32 0.0, %v3906
        %v3908 = vpop.f32.mrf.mxu0
        %3909 = vmatprep.mubr.bf16.mxu0 %v3772
        %3910 = vmatmul.mubr.bf16.gmra.mxu0 %v3771
        %v3911 = vpop.f32.mrf.mxu0
        %v3912 = vadd.f32 0.0, %v3911
        %v3913 = vpop.f32.mrf.mxu0
        %v3914 = vpop.f32.mrf.mxu0
        %v3915 = vadd.f32 0.0, %v3914
        %v3916 = vpop.f32.mrf.mxu0
        %3917 = vmatprep.mubr.bf16.mxu0 %v3774
        %3918 = vmatmul.mubr.bf16.gmra.mxu0 %v3773
        %v3919 = vpop.f32.mrf.mxu0
        %v3920 = vadd.f32 0.0, %v3919
        %v3921 = vpop.f32.mrf.mxu0
        %v3922 = vpop.f32.mrf.mxu0
        %v3923 = vadd.f32 0.0, %v3922
        %v3924 = vpop.f32.mrf.mxu0
        %3925 = vmatprep.mubr.bf16.mxu0 %v3776
        %3926 = vmatmul.mubr.bf16.gmra.mxu0 %v3775
        %v3927 = vpop.f32.mrf.mxu0
        %v3928 = vadd.f32 0.0, %v3927
        %v3929 = vpop.f32.mrf.mxu0
        %v3930 = vpop.f32.mrf.mxu0
        %v3931 = vadd.f32 0.0, %v3930
        %v3932 = vpop.f32.mrf.mxu0
        %3933 = vmatprep.mubr.bf16.mxu0 %v3778
        %3934 = vmatmul.mubr.bf16.gmra.mxu0 %v3777
        %v3935 = vpop.f32.mrf.mxu0
        %v3936 = vadd.f32 0.0, %v3935
        %v3937 = vpop.f32.mrf.mxu0
        %v3938 = vpop.f32.mrf.mxu0
        %v3939 = vadd.f32 0.0, %v3938
        %v3940 = vpop.f32.mrf.mxu0
        %3941 = vmatprep.mubr.bf16.mxu0 %v3780
        %3942 = vmatmul.mubr.bf16.gmra.mxu0 %v3779
        %v3943 = vpop.f32.mrf.mxu0
        %v3944 = vadd.f32 0.0, %v3943
        %v3945 = vpop.f32.mrf.mxu0
        %v3946 = vpop.f32.mrf.mxu0
        %v3947 = vadd.f32 0.0, %v3946
        %v3948 = vpop.f32.mrf.mxu0
        %3949 = vmatprep.mubr.bf16.mxu0 %v3782
        %3950 = vmatmul.mubr.bf16.gmra.mxu0 %v3781
        %v3951 = vpop.f32.mrf.mxu0
        %v3952 = vadd.f32 0.0, %v3951
        %v3953 = vpop.f32.mrf.mxu0
        %v3954 = vpop.f32.mrf.mxu0
        %v3955 = vadd.f32 0.0, %v3954
        %v3956 = vpop.f32.mrf.mxu0
        %3957 = vmatprep.mubr.bf16.mxu0 %v3784
        %3958 = vmatmul.mubr.bf16.gmra.mxu0 %v3783
        %v3959 = vpop.f32.mrf.mxu0
        %v3960 = vadd.f32 0.0, %v3959
        %v3961 = vpop.f32.mrf.mxu0
        %v3962 = vpop.f32.mrf.mxu0
        %v3963 = vadd.f32 0.0, %v3962
        %v3964 = vpop.f32.mrf.mxu0
        %3965 = vmatprep.mubr.bf16.mxu0 %v3786
        %3966 = vmatmul.mubr.bf16.gmra.mxu0 %v3785
        %v3967 = vpop.f32.mrf.mxu0
        %v3968 = vadd.f32 0.0, %v3967
        %v3969 = vpop.f32.mrf.mxu0
        %v3970 = vpop.f32.mrf.mxu0
        %v3971 = vadd.f32 0.0, %v3970
        %v3972 = vpop.f32.mrf.mxu0
        %3973 = vmatprep.mubr.bf16.mxu0 %v3788
        %3974 = vmatmul.mubr.bf16.gmra.mxu0 %v3787
        %v3975 = vpop.f32.mrf.mxu0
        %v3976 = vadd.f32 0.0, %v3975
        %v3977 = vpop.f32.mrf.mxu0
        %v3978 = vpop.f32.mrf.mxu0
        %v3979 = vadd.f32 0.0, %v3978
        %v3980 = vpop.f32.mrf.mxu0
        %3981 = vdwg.mxu0
        %v3982 = vpack.c.bf16 %v3859, %v3856
        %v3983 = vpack.c.bf16 %v3867, %v3864
        %v3984 = vpack.c.bf16 %v3875, %v3872
        %v3985 = vpack.c.bf16 %v3883, %v3880
        %v3986 = vpack.c.bf16 %v3891, %v3888
        %v3987 = vpack.c.bf16 %v3899, %v3896
        %v3988 = vpack.c.bf16 %v3907, %v3904
        %v3989 = vpack.c.bf16 %v3915, %v3912
        %v3990 = vpack.c.bf16 %v3923, %v3920
        %v3991 = vpack.c.bf16 %v3931, %v3928
        %v3992 = vpack.c.bf16 %v3939, %v3936
        %v3993 = vpack.c.bf16 %v3947, %v3944
        %v3994 = vpack.c.bf16 %v3955, %v3952
        %v3995 = vpack.c.bf16 %v3963, %v3960
        %v3996 = vpack.c.bf16 %v3971, %v3968
        %v3997 = vpack.c.bf16 %v3979, %v3976
        %v3998 = vld [vmem:[%s17] sm:$0xf]
        %v3999 = vld [vmem:[%s17 + $0x4] sm:$0xf]
        %v4002 = vunpack.c.l.b16 %v3998
        %v4003 = vunpack.c.l.b16 %v3999
        %v4004 = vpack.c.b16 %v4003, %v4002
        %vm4006 = vcmask 130048
        %v4008 = vsel %vm4006, %v3982, 0
        %v4011 = vsel %vm4006, %v3983, 0
        %v4014 = vsel %vm4006, %v3984, 0
        %v4017 = vsel %vm4006, %v3985, 0
        %v4020 = vsel %vm4006, %v3986, 0
        %v4023 = vsel %vm4006, %v3987, 0
        %v4026 = vsel %vm4006, %v3988, 0
        %v4029 = vsel %vm4006, %v3989, 0
        %v4032 = vsel %vm4006, %v3990, 0
        %v4035 = vsel %vm4006, %v3991, 0
        %v4038 = vsel %vm4006, %v3992, 0
        %v4041 = vsel %vm4006, %v3993, 0
        %v4044 = vsel %vm4006, %v3994, 0
        %v4047 = vsel %vm4006, %v3995, 0
        %v4050 = vsel %vm4006, %v3996, 0
        %v4053 = vsel %vm4006, %v3997, 0
        %4055 = vmatprep.subr.bf16.mxu0 0
        %4056 = vmatpush1.bf16.msra.mxu0 0
        %4057 = vmatprep.subr.bf16.mxu0 0
        %4058 = vmatpush1.bf16.msra.mxu0 0
        %4059 = vmatprep.subr.bf16.mxu0 0
        %4060 = vmatpush1.bf16.msra.mxu0 0
        %4061 = vmatprep.subr.bf16.mxu0 0
        %4062 = vmatpush1.bf16.msra.mxu0 0
        %4063 = vmatprep.subr.bf16.mxu0 0
        %4064 = vmatpush1.bf16.msra.mxu0 0
        %4065 = vmatprep.subr.bf16.mxu0 0
        %4066 = vmatpush1.bf16.msra.mxu0 0
        %4067 = vmatprep.subr.bf16.mxu0 0
        %4068 = vmatpush1.bf16.msra.mxu0 0
        %4069 = vmatprep.subr.bf16.mxu0 0
        %4070 = vmatpush1.bf16.msra.mxu0 %v4004
        %4071 = vmatprep.subr.bf16.mxu0 0
        %4072 = vmatpush2.bf16.msra.mxu0 0
        %4073 = vmatprep.subr.bf16.mxu0 0
        %4074 = vmatpush2.bf16.msra.mxu0 0
        %4075 = vmatprep.subr.bf16.mxu0 0
        %4076 = vmatpush2.bf16.msra.mxu0 0
        %4077 = vmatprep.subr.bf16.mxu0 0
        %4078 = vmatpush2.bf16.msra.mxu0 0
        %4079 = vmatprep.subr.bf16.mxu0 0
        %4080 = vmatpush2.bf16.msra.mxu0 0
        %4081 = vmatprep.subr.bf16.mxu0 0
        %4082 = vmatpush2.bf16.msra.mxu0 0
        %4083 = vmatprep.subr.bf16.mxu0 0
        %4084 = vmatpush2.bf16.msra.mxu0 0
        %4085 = vmatprep.subr.bf16.mxu0 0
        %4086 = vmatpush2.bf16.msra.mxu0 0
        %4087 = vmatprep.mubr.bf16.mxu0 0
        %4088 = vmatmul.mubr.bf16.gmra.mxu0 %v4008
        %v4089 = vpop.f32.mrf.mxu0
        %v4090 = vadd.f32 0.0, %v4089
        %v4091 = vpop.f32.mrf.mxu0
        %v4092 = vpop.f32.mrf.mxu0
        %v4093 = vadd.f32 0.0, %v4092
        %v4094 = vpop.f32.mrf.mxu0
        %4095 = vmatprep.mubr.bf16.mxu0 0
        %4096 = vmatmul.mubr.bf16.gmra.mxu0 %v4011
        %v4097 = vpop.f32.mrf.mxu0
        %v4098 = vadd.f32 0.0, %v4097
        %v4099 = vpop.f32.mrf.mxu0
        %v4100 = vpop.f32.mrf.mxu0
        %v4101 = vadd.f32 0.0, %v4100
        %v4102 = vpop.f32.mrf.mxu0
        %4103 = vmatprep.mubr.bf16.mxu0 0
        %4104 = vmatmul.mubr.bf16.gmra.mxu0 %v4014
        %v4105 = vpop.f32.mrf.mxu0
        %v4106 = vadd.f32 0.0, %v4105
        %v4107 = vpop.f32.mrf.mxu0
        %v4108 = vpop.f32.mrf.mxu0
        %v4109 = vadd.f32 0.0, %v4108
        %v4110 = vpop.f32.mrf.mxu0
        %4111 = vmatprep.mubr.bf16.mxu0 0
        %4112 = vmatmul.mubr.bf16.gmra.mxu0 %v4017
        %v4113 = vpop.f32.mrf.mxu0
        %v4114 = vadd.f32 0.0, %v4113
        %v4115 = vpop.f32.mrf.mxu0
        %v4116 = vpop.f32.mrf.mxu0
        %v4117 = vadd.f32 0.0, %v4116
        %v4118 = vpop.f32.mrf.mxu0
        %4119 = vmatprep.mubr.bf16.mxu0 0
        %4120 = vmatmul.mubr.bf16.gmra.mxu0 %v4020
        %v4121 = vpop.f32.mrf.mxu0
        %v4122 = vadd.f32 0.0, %v4121
        %v4123 = vpop.f32.mrf.mxu0
        %v4124 = vpop.f32.mrf.mxu0
        %v4125 = vadd.f32 0.0, %v4124
        %v4126 = vpop.f32.mrf.mxu0
        %4127 = vmatprep.mubr.bf16.mxu0 0
        %4128 = vmatmul.mubr.bf16.gmra.mxu0 %v4023
        %v4129 = vpop.f32.mrf.mxu0
        %v4130 = vadd.f32 0.0, %v4129
        %v4131 = vpop.f32.mrf.mxu0
        %v4132 = vpop.f32.mrf.mxu0
        %v4133 = vadd.f32 0.0, %v4132
        %v4134 = vpop.f32.mrf.mxu0
        %4135 = vmatprep.mubr.bf16.mxu0 0
        %4136 = vmatmul.mubr.bf16.gmra.mxu0 %v4026
        %v4137 = vpop.f32.mrf.mxu0
        %v4138 = vadd.f32 0.0, %v4137
        %v4139 = vpop.f32.mrf.mxu0
        %v4140 = vpop.f32.mrf.mxu0
        %v4141 = vadd.f32 0.0, %v4140
        %v4142 = vpop.f32.mrf.mxu0
        %4143 = vmatprep.mubr.bf16.mxu0 0
        %4144 = vmatmul.mubr.bf16.gmra.mxu0 %v4029
        %v4145 = vpop.f32.mrf.mxu0
        %v4146 = vadd.f32 0.0, %v4145
        %v4147 = vpop.f32.mrf.mxu0
        %v4148 = vpop.f32.mrf.mxu0
        %v4149 = vadd.f32 0.0, %v4148
        %v4150 = vpop.f32.mrf.mxu0
        %4151 = vmatprep.mubr.bf16.mxu0 0
        %4152 = vmatmul.mubr.bf16.gmra.mxu0 %v4032
        %v4153 = vpop.f32.mrf.mxu0
        %v4154 = vadd.f32 0.0, %v4153
        %v4155 = vpop.f32.mrf.mxu0
        %v4156 = vpop.f32.mrf.mxu0
        %v4157 = vadd.f32 0.0, %v4156
        %v4158 = vpop.f32.mrf.mxu0
        %4159 = vmatprep.mubr.bf16.mxu0 0
        %4160 = vmatmul.mubr.bf16.gmra.mxu0 %v4035
        %v4161 = vpop.f32.mrf.mxu0
        %v4162 = vadd.f32 0.0, %v4161
        %v4163 = vpop.f32.mrf.mxu0
        %v4164 = vpop.f32.mrf.mxu0
        %v4165 = vadd.f32 0.0, %v4164
        %v4166 = vpop.f32.mrf.mxu0
        %4167 = vmatprep.mubr.bf16.mxu0 0
        %4168 = vmatmul.mubr.bf16.gmra.mxu0 %v4038
        %v4169 = vpop.f32.mrf.mxu0
        %v4170 = vadd.f32 0.0, %v4169
        %v4171 = vpop.f32.mrf.mxu0
        %v4172 = vpop.f32.mrf.mxu0
        %v4173 = vadd.f32 0.0, %v4172
        %v4174 = vpop.f32.mrf.mxu0
        %4175 = vmatprep.mubr.bf16.mxu0 0
        %4176 = vmatmul.mubr.bf16.gmra.mxu0 %v4041
        %v4177 = vpop.f32.mrf.mxu0
        %v4178 = vadd.f32 0.0, %v4177
        %v4179 = vpop.f32.mrf.mxu0
        %v4180 = vpop.f32.mrf.mxu0
        %v4181 = vadd.f32 0.0, %v4180
        %v4182 = vpop.f32.mrf.mxu0
        %4183 = vmatprep.mubr.bf16.mxu0 0
        %4184 = vmatmul.mubr.bf16.gmra.mxu0 %v4044
        %v4185 = vpop.f32.mrf.mxu0
        %v4186 = vadd.f32 0.0, %v4185
        %v4187 = vpop.f32.mrf.mxu0
        %v4188 = vpop.f32.mrf.mxu0
        %v4189 = vadd.f32 0.0, %v4188
        %v4190 = vpop.f32.mrf.mxu0
        %4191 = vmatprep.mubr.bf16.mxu0 0
        %4192 = vmatmul.mubr.bf16.gmra.mxu0 %v4047
        %v4193 = vpop.f32.mrf.mxu0
        %v4194 = vadd.f32 0.0, %v4193
        %v4195 = vpop.f32.mrf.mxu0
        %v4196 = vpop.f32.mrf.mxu0
        %v4197 = vadd.f32 0.0, %v4196
        %v4198 = vpop.f32.mrf.mxu0
        %4199 = vmatprep.mubr.bf16.mxu0 0
        %4200 = vmatmul.mubr.bf16.gmra.mxu0 %v4050
        %v4201 = vpop.f32.mrf.mxu0
        %v4202 = vadd.f32 0.0, %v4201
        %v4203 = vpop.f32.mrf.mxu0
        %v4204 = vpop.f32.mrf.mxu0
        %v4205 = vadd.f32 0.0, %v4204
        %v4206 = vpop.f32.mrf.mxu0
        %4207 = vmatprep.mubr.bf16.mxu0 0
        %4208 = vmatmul.mubr.bf16.gmra.mxu0 %v4053
        %v4209 = vpop.f32.mrf.mxu0
        %v4210 = vadd.f32 0.0, %v4209
        %v4211 = vpop.f32.mrf.mxu0
        %v4212 = vpop.f32.mrf.mxu0
        %v4213 = vadd.f32 0.0, %v4212
        %v4214 = vpop.f32.mrf.mxu0
        %4215 = vdwg.mxu0
        %v4216 = vld [vmem:[%s19] sm:$0x3]
        %v4217 = vlaneseq
        %v4218 = vshrl.u32 %v4217, 7
        %v4219 = vsub.s32 0, %v4218
        %v4220 = vrot.slane %v4216, %v4219
        %v4221 = vmul.f32 %v4090, %v4220
        %v4222 = vmul.f32 %v4093, %v4220
        %v4223 = vmul.f32 %v4098, %v4220
        %v4224 = vmul.f32 %v4101, %v4220
        %v4225 = vmul.f32 %v4106, %v4220
        %v4226 = vmul.f32 %v4109, %v4220
        %v4227 = vmul.f32 %v4114, %v4220
        %v4228 = vmul.f32 %v4117, %v4220
        %v4229 = vmul.f32 %v4122, %v4220
        %v4230 = vmul.f32 %v4125, %v4220
        %v4231 = vmul.f32 %v4130, %v4220
        %v4232 = vmul.f32 %v4133, %v4220
        %v4233 = vmul.f32 %v4138, %v4220
        %v4234 = vmul.f32 %v4141, %v4220
        %v4235 = vmul.f32 %v4146, %v4220
        %v4236 = vmul.f32 %v4149, %v4220
        %v4237 = vmul.f32 %v4154, %v4220
        %v4238 = vmul.f32 %v4157, %v4220
        %v4239 = vmul.f32 %v4162, %v4220
        %v4240 = vmul.f32 %v4165, %v4220
        %v4241 = vmul.f32 %v4170, %v4220
        %v4242 = vmul.f32 %v4173, %v4220
        %v4243 = vmul.f32 %v4178, %v4220
        %v4244 = vmul.f32 %v4181, %v4220
        %v4245 = vmul.f32 %v4186, %v4220
        %v4246 = vmul.f32 %v4189, %v4220
        %v4247 = vmul.f32 %v4194, %v4220
        %v4248 = vmul.f32 %v4197, %v4220
        %v4249 = vmul.f32 %v4202, %v4220
        %v4250 = vmul.f32 %v4205, %v4220
        %v4251 = vmul.f32 %v4210, %v4220
        %v4252 = vmul.f32 %v4213, %v4220
        %v4253 = vlaneseq
        %v4254 = vshrl.u32 %v4253, 7
        %v4255 = vsub.s32 1, %v4254
        %v4256 = vrot.slane %v4216, %v4255
        %v4257 = vadd.f32 %v4221, %v4256
        %v4258 = vadd.f32 %v4222, %v4256
        %v4259 = vadd.f32 %v4223, %v4256
        %v4260 = vadd.f32 %v4224, %v4256
        %v4261 = vadd.f32 %v4225, %v4256
        %v4262 = vadd.f32 %v4226, %v4256
        %v4263 = vadd.f32 %v4227, %v4256
        %v4264 = vadd.f32 %v4228, %v4256
        %v4265 = vadd.f32 %v4229, %v4256
        %v4266 = vadd.f32 %v4230, %v4256
        %v4267 = vadd.f32 %v4231, %v4256
        %v4268 = vadd.f32 %v4232, %v4256
        %v4269 = vadd.f32 %v4233, %v4256
        %v4270 = vadd.f32 %v4234, %v4256
        %v4271 = vadd.f32 %v4235, %v4256
        %v4272 = vadd.f32 %v4236, %v4256
        %v4273 = vadd.f32 %v4237, %v4256
        %v4274 = vadd.f32 %v4238, %v4256
        %v4275 = vadd.f32 %v4239, %v4256
        %v4276 = vadd.f32 %v4240, %v4256
        %v4277 = vadd.f32 %v4241, %v4256
        %v4278 = vadd.f32 %v4242, %v4256
        %v4279 = vadd.f32 %v4243, %v4256
        %v4280 = vadd.f32 %v4244, %v4256
        %v4281 = vadd.f32 %v4245, %v4256
        %v4282 = vadd.f32 %v4246, %v4256
        %v4283 = vadd.f32 %v4247, %v4256
        %v4284 = vadd.f32 %v4248, %v4256
        %v4285 = vadd.f32 %v4249, %v4256
        %v4286 = vadd.f32 %v4250, %v4256
        %v4287 = vadd.f32 %v4251, %v4256
        %v4288 = vadd.f32 %v4252, %v4256
        %v4289 = vmax.f32 %v4257, 0.0
        %v4290 = vmax.f32 %v4258, 0.0
        %v4291 = vmax.f32 %v4259, 0.0
        %v4292 = vmax.f32 %v4260, 0.0
        %v4293 = vmax.f32 %v4261, 0.0
        %v4294 = vmax.f32 %v4262, 0.0
        %v4295 = vmax.f32 %v4263, 0.0
        %v4296 = vmax.f32 %v4264, 0.0
        %v4297 = vmax.f32 %v4265, 0.0
        %v4298 = vmax.f32 %v4266, 0.0
        %v4299 = vmax.f32 %v4267, 0.0
        %v4300 = vmax.f32 %v4268, 0.0
        %v4301 = vmax.f32 %v4269, 0.0
        %v4302 = vmax.f32 %v4270, 0.0
        %v4303 = vmax.f32 %v4271, 0.0
        %v4304 = vmax.f32 %v4272, 0.0
        %v4305 = vmax.f32 %v4273, 0.0
        %v4306 = vmax.f32 %v4274, 0.0
        %v4307 = vmax.f32 %v4275, 0.0
        %v4308 = vmax.f32 %v4276, 0.0
        %v4309 = vmax.f32 %v4277, 0.0
        %v4310 = vmax.f32 %v4278, 0.0
        %v4311 = vmax.f32 %v4279, 0.0
        %v4312 = vmax.f32 %v4280, 0.0
        %v4313 = vmax.f32 %v4281, 0.0
        %v4314 = vmax.f32 %v4282, 0.0
        %v4315 = vmax.f32 %v4283, 0.0
        %v4316 = vmax.f32 %v4284, 0.0
        %v4317 = vmax.f32 %v4285, 0.0
        %v4318 = vmax.f32 %v4286, 0.0
        %v4319 = vmax.f32 %v4287, 0.0
        %v4320 = vmax.f32 %v4288, 0.0
        %v4321 = vmin.f32 %v4289, 6.0
        %v4322 = vmin.f32 %v4290, 6.0
        %v4323 = vmin.f32 %v4291, 6.0
        %v4324 = vmin.f32 %v4292, 6.0
        %v4325 = vmin.f32 %v4293, 6.0
        %v4326 = vmin.f32 %v4294, 6.0
        %v4327 = vmin.f32 %v4295, 6.0
        %v4328 = vmin.f32 %v4296, 6.0
        %v4329 = vmin.f32 %v4297, 6.0
        %v4330 = vmin.f32 %v4298, 6.0
        %v4331 = vmin.f32 %v4299, 6.0
        %v4332 = vmin.f32 %v4300, 6.0
        %v4333 = vmin.f32 %v4301, 6.0
        %v4334 = vmin.f32 %v4302, 6.0
        %v4335 = vmin.f32 %v4303, 6.0
        %v4336 = vmin.f32 %v4304, 6.0
        %v4337 = vmin.f32 %v4305, 6.0
        %v4338 = vmin.f32 %v4306, 6.0
        %v4339 = vmin.f32 %v4307, 6.0
        %v4340 = vmin.f32 %v4308, 6.0
        %v4341 = vmin.f32 %v4309, 6.0
        %v4342 = vmin.f32 %v4310, 6.0
        %v4343 = vmin.f32 %v4311, 6.0
        %v4344 = vmin.f32 %v4312, 6.0
        %v4345 = vmin.f32 %v4313, 6.0
        %v4346 = vmin.f32 %v4314, 6.0
        %v4347 = vmin.f32 %v4315, 6.0
        %v4348 = vmin.f32 %v4316, 6.0
        %v4349 = vmin.f32 %v4317, 6.0
        %v4350 = vmin.f32 %v4318, 6.0
        %v4351 = vmin.f32 %v4319, 6.0
        %v4352 = vmin.f32 %v4320, 6.0
        %v4353 = vld [vmem:[%s21] sm:$0xff]
        %v4354 = vld [vmem:[%s21 + $0x8] sm:$0x1]
        %v4355 = vld [vmem:[%s23] sm:$0x3]
        %v4356 = vld [vmem:[%s27] sm:$0x3]
        %vm4357 = vcmask 785408
        %4358 = vst.msk [vmem:[#allocation3] sm:$0xff] %vm4357, 0.0
        %vm4359 = vcmask 778240
        %4360 = vst.msk [vmem:[#allocation3 + $0x8] sm:$0x1] %vm4359, 0.0
        %4361 = vst.msk [vmem:[#allocation3 + $0x9] sm:$0xff] %vm4357, %v4321
        %4362 = vst.msk [vmem:[#allocation3 + $0x11] sm:$0xff] %vm4357, %v4322
        %4363 = vst.msk [vmem:[#allocation3 + $0x19] sm:$0xff] %vm4357, %v4323
        %4364 = vst.msk [vmem:[#allocation3 + $0x21] sm:$0xff] %vm4357, %v4324
        %4365 = vst.msk [vmem:[#allocation3 + $0x29] sm:$0xff] %vm4357, %v4325
        %4366 = vst.msk [vmem:[#allocation3 + $0x31] sm:$0xff] %vm4357, %v4326
        %4367 = vst.msk [vmem:[#allocation3 + $0x39] sm:$0xff] %vm4357, %v4327
        %4368 = vst.msk [vmem:[#allocation3 + $0x41] sm:$0xff] %vm4357, %v4328
        %4369 = vst.msk [vmem:[#allocation3 + $0x49] sm:$0xff] %vm4357, 0.0
        %4370 = vst.msk [vmem:[#allocation3 + $0x51] sm:$0x1] %vm4359, 0.0
        %4371 = vst.msk [vmem:[#allocation3 + $0x52] sm:$0xff] %vm4357, %v4329
        %4372 = vst.msk [vmem:[#allocation3 + $0x5a] sm:$0xff] %vm4357, %v4330
        %4373 = vst.msk [vmem:[#allocation3 + $0x62] sm:$0xff] %vm4357, %v4331
        %4374 = vst.msk [vmem:[#allocation3 + $0x6a] sm:$0xff] %vm4357, %v4332
        %4375 = vst.msk [vmem:[#allocation3 + $0x72] sm:$0xff] %vm4357, %v4333
        %4376 = vst.msk [vmem:[#allocation3 + $0x7a] sm:$0xff] %vm4357, %v4334
        %4377 = vst.msk [vmem:[#allocation3 + $0x82] sm:$0xff] %vm4357, %v4335
        %4378 = vst.msk [vmem:[#allocation3 + $0x8a] sm:$0xff] %vm4357, %v4336
        %4379 = vst.msk [vmem:[#allocation3 + $0x92] sm:$0xff] %vm4357, 0.0
        %4380 = vst.msk [vmem:[#allocation3 + $0x9a] sm:$0x1] %vm4359, 0.0
        %4381 = vst.msk [vmem:[#allocation3 + $0x9b] sm:$0xff] %vm4357, %v4337
        %4382 = vst.msk [vmem:[#allocation3 + $0xa3] sm:$0xff] %vm4357, %v4338
        %4383 = vst.msk [vmem:[#allocation3 + $0xab] sm:$0xff] %vm4357, %v4339
        %4384 = vst.msk [vmem:[#allocation3 + $0xb3] sm:$0xff] %vm4357, %v4340
        %4385 = vst.msk [vmem:[#allocation3 + $0xbb] sm:$0xff] %vm4357, %v4341
        %4386 = vst.msk [vmem:[#allocation3 + $0xc3] sm:$0xff] %vm4357, %v4342
        %4387 = vst.msk [vmem:[#allocation3 + $0xcb] sm:$0xff] %vm4357, %v4343
        %4388 = vst.msk [vmem:[#allocation3 + $0xd3] sm:$0xff] %vm4357, %v4344
        %4389 = vst.msk [vmem:[#allocation3 + $0xdb] sm:$0xff] %vm4357, 0.0
        %4390 = vst.msk [vmem:[#allocation3 + $0xe3] sm:$0x1] %vm4359, 0.0
        %4391 = vst.msk [vmem:[#allocation3 + $0xe4] sm:$0xff] %vm4357, %v4345
        %4392 = vst.msk [vmem:[#allocation3 + $0xec] sm:$0xff] %vm4357, %v4346
        %4393 = vst.msk [vmem:[#allocation3 + $0xf4] sm:$0xff] %vm4357, %v4347
        %4394 = vst.msk [vmem:[#allocation3 + $0xfc] sm:$0xff] %vm4357, %v4348
        %4395 = vst.msk [vmem:[#allocation3 + $0x104] sm:$0xff] %vm4357, %v4349
        %4396 = vst.msk [vmem:[#allocation3 + $0x10c] sm:$0xff] %vm4357, %v4350
        %4397 = vst.msk [vmem:[#allocation3 + $0x114] sm:$0xff] %vm4357, %v4351
        %4398 = vst.msk [vmem:[#allocation3 + $0x11c] sm:$0xff] %vm4357, %v4352
        %vm4399 = vcmp.lt.s32.totalorder %v1804, 0
        %v4400 = vsub.s32 0, %v1804
        %v4401 = vsel %vm4399, %v4400, %v1804
        %v4402 = vshrl.u32 %v4401, 3
        %v4403 = vand.u32 %v4401, 7
        %v4404 = vsub.s32 0, %v4403
        %v4405 = vsel %vm4399, %v4404, %v4403
        %vm4406 = vcmp.lt.s32.totalorder %v1805, 0
        %v4407 = vsub.s32 0, %v1805
        %v4408 = vsel %vm4406, %v4407, %v1805
        %v4409 = vshrl.u32 %v4408, 3
        %v4410 = vand.u32 %v4408, 7
        %v4411 = vsub.s32 0, %v4410
        %v4412 = vsel %vm4406, %v4411, %v4410
        %vm4413 = vcmp.lt.s32.totalorder %v1806, 0
        %v4414 = vsub.s32 0, %v1806
        %v4415 = vsel %vm4413, %v4414, %v1806
        %v4416 = vshrl.u32 %v4415, 3
        %v4417 = vand.u32 %v4415, 7
        %v4418 = vsub.s32 0, %v4417
        %v4419 = vsel %vm4413, %v4418, %v4417
        %vm4420 = vcmp.lt.s32.totalorder %v1807, 0
        %v4421 = vsub.s32 0, %v1807
        %v4422 = vsel %vm4420, %v4421, %v1807
        %v4423 = vshrl.u32 %v4422, 3
        %v4424 = vand.u32 %v4422, 7
        %v4425 = vsub.s32 0, %v4424
        %v4426 = vsel %vm4420, %v4425, %v4424
        %vm4427 = vcmp.lt.s32.totalorder %v1808, 0
        %v4428 = vsub.s32 0, %v1808
        %v4429 = vsel %vm4427, %v4428, %v1808
        %v4430 = vshrl.u32 %v4429, 3
        %v4431 = vand.u32 %v4429, 7
        %v4432 = vsub.s32 0, %v4431
        %v4433 = vsel %vm4427, %v4432, %v4431
        %vm4434 = vcmp.lt.s32.totalorder %v1809, 0
        %v4435 = vsub.s32 0, %v1809
        %v4436 = vsel %vm4434, %v4435, %v1809
        %v4437 = vshrl.u32 %v4436, 3
        %v4438 = vand.u32 %v4436, 7
        %v4439 = vsub.s32 0, %v4438
        %v4440 = vsel %vm4434, %v4439, %v4438
        %vm4441 = vcmp.lt.s32.totalorder %v1810, 0
        %v4442 = vsub.s32 0, %v1810
        %v4443 = vsel %vm4441, %v4442, %v1810
        %v4444 = vshrl.u32 %v4443, 3
        %v4445 = vand.u32 %v4443, 7
        %v4446 = vsub.s32 0, %v4445
        %v4447 = vsel %vm4441, %v4446, %v4445
        %vm4448 = vcmp.lt.s32.totalorder %v1811, 0
        %v4449 = vsub.s32 0, %v1811
        %v4450 = vsel %vm4448, %v4449, %v1811
        %v4451 = vshrl.u32 %v4450, 3
        %v4452 = vand.u32 %v4450, 7
        %v4453 = vsub.s32 0, %v4452
        %v4454 = vsel %vm4448, %v4453, %v4452
        %vm4455 = vcmp.ne.s32.totalorder %v4405, 0
        %vm4456 = vcmp.ne.s32.totalorder %v4412, 0
        %vm4457 = vcmp.ne.s32.totalorder %v4419, 0
        %vm4458 = vcmp.ne.s32.totalorder %v4426, 0
        %vm4459 = vcmp.ne.s32.totalorder %v4433, 0
        %vm4460 = vcmp.ne.s32.totalorder %v4440, 0
        %vm4461 = vcmp.ne.s32.totalorder %v4447, 0
        %vm4462 = vcmp.ne.s32.totalorder %v4454, 0
        %vm4463 = vcmp.lt.s32.totalorder %v4405, 0
        %vm4464 = vcmp.lt.s32.totalorder %v4412, 0
        %vm4465 = vcmp.lt.s32.totalorder %v4419, 0
        %vm4466 = vcmp.lt.s32.totalorder %v4426, 0
        %vm4467 = vcmp.lt.s32.totalorder %v4433, 0
        %vm4468 = vcmp.lt.s32.totalorder %v4440, 0
        %vm4469 = vcmp.lt.s32.totalorder %v4447, 0
        %vm4470 = vcmp.lt.s32.totalorder %v4454, 0
        %vm4471 = vmand %vm4463, %vm4455
        %vm4472 = vmand %vm4464, %vm4456
        %vm4473 = vmand %vm4465, %vm4457
        %vm4474 = vmand %vm4466, %vm4458
        %vm4475 = vmand %vm4467, %vm4459
        %vm4476 = vmand %vm4468, %vm4460
        %vm4477 = vmand %vm4469, %vm4461
        %vm4478 = vmand %vm4470, %vm4462
        %v4479 = vadd.s32 %v4405, 8
        %v4480 = vadd.s32 %v4412, 8
        %v4481 = vadd.s32 %v4419, 8
        %v4482 = vadd.s32 %v4426, 8
        %v4483 = vadd.s32 %v4433, 8
        %v4484 = vadd.s32 %v4440, 8
        %v4485 = vadd.s32 %v4447, 8
        %v4486 = vadd.s32 %v4454, 8
        %v4487 = vsel %vm4471, %v4479, %v4405
        %v4488 = vsel %vm4472, %v4480, %v4412
        %v4489 = vsel %vm4473, %v4481, %v4419
        %v4490 = vsel %vm4474, %v4482, %v4426
        %v4491 = vsel %vm4475, %v4483, %v4433
        %v4492 = vsel %vm4476, %v4484, %v4440
        %v4493 = vsel %vm4477, %v4485, %v4447
        %v4494 = vsel %vm4478, %v4486, %v4454
        %vm4495 = vcmp.eq.s32.totalorder %v4487, 0
        %vm4496 = vcmp.eq.s32.totalorder %v4488, 0
        %vm4497 = vcmp.eq.s32.totalorder %v4489, 0
        %vm4498 = vcmp.eq.s32.totalorder %v4490, 0
        %vm4499 = vcmp.eq.s32.totalorder %v4491, 0
        %vm4500 = vcmp.eq.s32.totalorder %v4492, 0
        %vm4501 = vcmp.eq.s32.totalorder %v4493, 0
        %vm4502 = vcmp.eq.s32.totalorder %v4494, 0
        %v4503 = vld [vmem:[#allocation3 + $0xdb] sm:$0xff]
        %v4504 = vld [vmem:[#allocation3 + $0xe3] sm:$0xff]
        %v4505 = vld [vmem:[#allocation3 + $0xeb] sm:$0xff]
        %v4506 = vld [vmem:[#allocation3 + $0xf3] sm:$0xff]
        %v4507 = vld [vmem:[#allocation3 + $0xfb] sm:$0xff]
        %v4508 = vld [vmem:[#allocation3 + $0x103] sm:$0xff]
        %v4509 = vld [vmem:[#allocation3 + $0x10b] sm:$0xff]
        %v4510 = vld [vmem:[#allocation3 + $0x113] sm:$0xff]
        %v4511 = vlaneseq
        %v4512 = vshrl.u32 %v4511, 7
        %v4513 = vsub.s32 0, %v4512
        %v4514 = vrot.slane %v4353, %v4513
        %v4515 = vmul.f32 %v4503, %v4514
        %v4516 = vmul.f32 %v4504, %v4514
        %v4517 = vmul.f32 %v4505, %v4514
        %v4518 = vmul.f32 %v4506, %v4514
        %v4519 = vmul.f32 %v4507, %v4514
        %v4520 = vmul.f32 %v4508, %v4514
        %v4521 = vmul.f32 %v4509, %v4514
        %v4522 = vmul.f32 %v4510, %v4514
        %v4523 = vadd.f32 %v4515, 0.0
        %v4524 = vadd.f32 %v4516, 0.0
        %v4525 = vadd.f32 %v4517, 0.0
        %v4526 = vadd.f32 %v4518, 0.0
        %v4527 = vadd.f32 %v4519, 0.0
        %v4528 = vadd.f32 %v4520, 0.0
        %v4529 = vadd.f32 %v4521, 0.0
        %v4530 = vadd.f32 %v4522, 0.0
        %v4531 = vld [vmem:[#allocation3 + $0x51] sm:$0xff]
        %v4532 = vld [vmem:[#allocation3 + $0x59] sm:$0xff]
        %v4533 = vld [vmem:[#allocation3 + $0x61] sm:$0xff]
        %v4534 = vld [vmem:[#allocation3 + $0x69] sm:$0xff]
        %v4535 = vld [vmem:[#allocation3 + $0x71] sm:$0xff]
        %v4536 = vld [vmem:[#allocation3 + $0x79] sm:$0xff]
        %v4537 = vld [vmem:[#allocation3 + $0x81] sm:$0xff]
        %v4538 = vld [vmem:[#allocation3 + $0x89] sm:$0xff]
        %v4539 = vlaneseq
        %v4540 = vshrl.u32 %v4539, 7
        %v4541 = vsub.s32 3, %v4540
        %v4542 = vrot.slane %v4353, %v4541
        %v4543 = vmul.f32 %v4531, %v4542
        %v4544 = vmul.f32 %v4532, %v4542
        %v4545 = vmul.f32 %v4533, %v4542
        %v4546 = vmul.f32 %v4534, %v4542
        %v4547 = vmul.f32 %v4535, %v4542
        %v4548 = vmul.f32 %v4536, %v4542
        %v4549 = vmul.f32 %v4537, %v4542
        %v4550 = vmul.f32 %v4538, %v4542
        %v4551 = vadd.f32 %v4523, %v4543
        %v4552 = vadd.f32 %v4524, %v4544
        %v4553 = vadd.f32 %v4525, %v4545
        %v4554 = vadd.f32 %v4526, %v4546
        %v4555 = vadd.f32 %v4527, %v4547
        %v4556 = vadd.f32 %v4528, %v4548
        %v4557 = vadd.f32 %v4529, %v4549
        %v4558 = vadd.f32 %v4530, %v4550
        %v4559 = vld [vmem:[#allocation3 + $0x11b] sm:$0xff]
        %v4560 = vlaneseq
        %v4561 = vshrl.u32 %v4560, 7
        %v4562 = vsub.s32 6, %v4561
        %v4563 = vrot.slane %v4353, %v4562
        %v4564 = vmul.f32 %v4504, %v4563
        %v4565 = vmul.f32 %v4505, %v4563
        %v4566 = vmul.f32 %v4506, %v4563
        %v4567 = vmul.f32 %v4507, %v4563
        %v4568 = vmul.f32 %v4508, %v4563
        %v4569 = vmul.f32 %v4509, %v4563
        %v4570 = vmul.f32 %v4510, %v4563
        %v4571 = vmul.f32 %v4559, %v4563
        %v4572 = vadd.f32 %v4551, %v4564
        %v4573 = vadd.f32 %v4552, %v4565
        %v4574 = vadd.f32 %v4553, %v4566
        %v4575 = vadd.f32 %v4554, %v4567
        %v4576 = vadd.f32 %v4555, %v4568
        %v4577 = vadd.f32 %v4556, %v4569
        %v4578 = vadd.f32 %v4557, %v4570
        %v4579 = vadd.f32 %v4558, %v4571
        %v4580 = vsel %vm4495, 0.0, %v4572
        %v4581 = vsel %vm4496, 0.0, %v4573
        %v4582 = vsel %vm4497, 0.0, %v4574
        %v4583 = vsel %vm4498, 0.0, %v4575
        %v4584 = vsel %vm4499, 0.0, %v4576
        %v4585 = vsel %vm4500, 0.0, %v4577
        %v4586 = vsel %vm4501, 0.0, %v4578
        %v4587 = vsel %vm4502, 0.0, %v4579
        %v4588 = vadd.f32 %v4580, 0.0
        %v4589 = vadd.f32 %v4581, 0.0
        %v4590 = vadd.f32 %v4582, 0.0
        %v4591 = vadd.f32 %v4583, 0.0
        %v4592 = vadd.f32 %v4584, 0.0
        %v4593 = vadd.f32 %v4585, 0.0
        %v4594 = vadd.f32 %v4586, 0.0
        %v4595 = vadd.f32 %v4587, 0.0
        %v4596 = vld [vmem:[#allocation3 + $0x93] sm:$0xff]
        %v4597 = vld [vmem:[#allocation3 + $0x9b] sm:$0xff]
        %v4598 = vld [vmem:[#allocation3 + $0xa3] sm:$0xff]
        %v4599 = vld [vmem:[#allocation3 + $0xab] sm:$0xff]
        %v4600 = vld [vmem:[#allocation3 + $0xb3] sm:$0xff]
        %v4601 = vld [vmem:[#allocation3 + $0xbb] sm:$0xff]
        %v4602 = vld [vmem:[#allocation3 + $0xc3] sm:$0xff]
        %v4603 = vld [vmem:[#allocation3 + $0xcb] sm:$0xff]
        %v4604 = vlaneseq
        %v4605 = vshrl.u32 %v4604, 7
        %v4606 = vsub.s32 1, %v4605
        %v4607 = vrot.slane %v4353, %v4606
        %v4608 = vmul.f32 %v4596, %v4607
        %v4609 = vmul.f32 %v4597, %v4607
        %v4610 = vmul.f32 %v4598, %v4607
        %v4611 = vmul.f32 %v4599, %v4607
        %v4612 = vmul.f32 %v4600, %v4607
        %v4613 = vmul.f32 %v4601, %v4607
        %v4614 = vmul.f32 %v4602, %v4607
        %v4615 = vmul.f32 %v4603, %v4607
        %v4616 = vadd.f32 %v4608, 0.0
        %v4617 = vadd.f32 %v4609, 0.0
        %v4618 = vadd.f32 %v4610, 0.0
        %v4619 = vadd.f32 %v4611, 0.0
        %v4620 = vadd.f32 %v4612, 0.0
        %v4621 = vadd.f32 %v4613, 0.0
        %v4622 = vadd.f32 %v4614, 0.0
        %v4623 = vadd.f32 %v4615, 0.0
        %v4624 = vld [vmem:[#allocation3 + $0x9] sm:$0xff]
        %v4625 = vld [vmem:[#allocation3 + $0x11] sm:$0xff]
        %v4626 = vld [vmem:[#allocation3 + $0x19] sm:$0xff]
        %v4627 = vld [vmem:[#allocation3 + $0x21] sm:$0xff]
        %v4628 = vld [vmem:[#allocation3 + $0x29] sm:$0xff]
        %v4629 = vld [vmem:[#allocation3 + $0x31] sm:$0xff]
        %v4630 = vld [vmem:[#allocation3 + $0x39] sm:$0xff]
        %v4631 = vld [vmem:[#allocation3 + $0x41] sm:$0xff]
        %v4632 = vlaneseq
        %v4633 = vshrl.u32 %v4632, 7
        %v4634 = vsub.s32 4, %v4633
        %v4635 = vrot.slane %v4353, %v4634
        %v4636 = vmul.f32 %v4624, %v4635
        %v4637 = vmul.f32 %v4625, %v4635
        %v4638 = vmul.f32 %v4626, %v4635
        %v4639 = vmul.f32 %v4627, %v4635
        %v4640 = vmul.f32 %v4628, %v4635
        %v4641 = vmul.f32 %v4629, %v4635
        %v4642 = vmul.f32 %v4630, %v4635
        %v4643 = vmul.f32 %v4631, %v4635
        %v4644 = vadd.f32 %v4616, %v4636
        %v4645 = vadd.f32 %v4617, %v4637
        %v4646 = vadd.f32 %v4618, %v4638
        %v4647 = vadd.f32 %v4619, %v4639
        %v4648 = vadd.f32 %v4620, %v4640
        %v4649 = vadd.f32 %v4621, %v4641
        %v4650 = vadd.f32 %v4622, %v4642
        %v4651 = vadd.f32 %v4623, %v4643
        %v4652 = vld [vmem:[#allocation3 + $0xd3] sm:$0xff]
        %v4653 = vlaneseq
        %v4654 = vshrl.u32 %v4653, 7
        %v4655 = vsub.s32 7, %v4654
        %v4656 = vrot.slane %v4353, %v4655
        %v4657 = vmul.f32 %v4597, %v4656
        %v4658 = vmul.f32 %v4598, %v4656
        %v4659 = vmul.f32 %v4599, %v4656
        %v4660 = vmul.f32 %v4600, %v4656
        %v4661 = vmul.f32 %v4601, %v4656
        %v4662 = vmul.f32 %v4602, %v4656
        %v4663 = vmul.f32 %v4603, %v4656
        %v4664 = vmul.f32 %v4652, %v4656
        %v4665 = vadd.f32 %v4644, %v4657
        %v4666 = vadd.f32 %v4645, %v4658
        %v4667 = vadd.f32 %v4646, %v4659
        %v4668 = vadd.f32 %v4647, %v4660
        %v4669 = vadd.f32 %v4648, %v4661
        %v4670 = vadd.f32 %v4649, %v4662
        %v4671 = vadd.f32 %v4650, %v4663
        %v4672 = vadd.f32 %v4651, %v4664
        %v4673 = vadd.f32 %v4588, %v4665
        %v4674 = vadd.f32 %v4589, %v4666
        %v4675 = vadd.f32 %v4590, %v4667
        %v4676 = vadd.f32 %v4591, %v4668
        %v4677 = vadd.f32 %v4592, %v4669
        %v4678 = vadd.f32 %v4593, %v4670
        %v4679 = vadd.f32 %v4594, %v4671
        %v4680 = vadd.f32 %v4595, %v4672
        %v4681 = vld [vmem:[#allocation3 + $0xdc] sm:$0xff]
        %v4682 = vld [vmem:[#allocation3 + $0xe4] sm:$0xff]
        %v4683 = vld [vmem:[#allocation3 + $0xec] sm:$0xff]
        %v4684 = vld [vmem:[#allocation3 + $0xf4] sm:$0xff]
        %v4685 = vld [vmem:[#allocation3 + $0xfc] sm:$0xff]
        %v4686 = vld [vmem:[#allocation3 + $0x104] sm:$0xff]
        %v4687 = vld [vmem:[#allocation3 + $0x10c] sm:$0xff]
        %v4688 = vld [vmem:[#allocation3 + $0x114] sm:$0xff]
        %v4689 = vlaneseq
        %v4690 = vshrl.u32 %v4689, 7
        %v4691 = vsub.s32 2, %v4690
        %v4692 = vrot.slane %v4353, %v4691
        %v4693 = vmul.f32 %v4681, %v4692
        %v4694 = vmul.f32 %v4682, %v4692
        %v4695 = vmul.f32 %v4683, %v4692
        %v4696 = vmul.f32 %v4684, %v4692
        %v4697 = vmul.f32 %v4685, %v4692
        %v4698 = vmul.f32 %v4686, %v4692
        %v4699 = vmul.f32 %v4687, %v4692
        %v4700 = vmul.f32 %v4688, %v4692
        %v4701 = vadd.f32 %v4693, 0.0
        %v4702 = vadd.f32 %v4694, 0.0
        %v4703 = vadd.f32 %v4695, 0.0
        %v4704 = vadd.f32 %v4696, 0.0
        %v4705 = vadd.f32 %v4697, 0.0
        %v4706 = vadd.f32 %v4698, 0.0
        %v4707 = vadd.f32 %v4699, 0.0
        %v4708 = vadd.f32 %v4700, 0.0
        %v4709 = vld [vmem:[#allocation3 + $0x52] sm:$0xff]
        %v4710 = vld [vmem:[#allocation3 + $0x5a] sm:$0xff]
        %v4711 = vld [vmem:[#allocation3 + $0x62] sm:$0xff]
        %v4712 = vld [vmem:[#allocation3 + $0x6a] sm:$0xff]
        %v4713 = vld [vmem:[#allocation3 + $0x72] sm:$0xff]
        %v4714 = vld [vmem:[#allocation3 + $0x7a] sm:$0xff]
        %v4715 = vld [vmem:[#allocation3 + $0x82] sm:$0xff]
        %v4716 = vld [vmem:[#allocation3 + $0x8a] sm:$0xff]
        %v4717 = vlaneseq
        %v4718 = vshrl.u32 %v4717, 7
        %v4719 = vsub.s32 5, %v4718
        %v4720 = vrot.slane %v4353, %v4719
        %v4721 = vmul.f32 %v4709, %v4720
        %v4722 = vmul.f32 %v4710, %v4720
        %v4723 = vmul.f32 %v4711, %v4720
        %v4724 = vmul.f32 %v4712, %v4720
        %v4725 = vmul.f32 %v4713, %v4720
        %v4726 = vmul.f32 %v4714, %v4720
        %v4727 = vmul.f32 %v4715, %v4720
        %v4728 = vmul.f32 %v4716, %v4720
        %v4729 = vadd.f32 %v4701, %v4721
        %v4730 = vadd.f32 %v4702, %v4722
        %v4731 = vadd.f32 %v4703, %v4723
        %v4732 = vadd.f32 %v4704, %v4724
        %v4733 = vadd.f32 %v4705, %v4725
        %v4734 = vadd.f32 %v4706, %v4726
        %v4735 = vadd.f32 %v4707, %v4727
        %v4736 = vadd.f32 %v4708, %v4728
        %v4737 = vld [vmem:[#allocation3 + $0x11c] sm:$0xff]
        %v4738 = vlaneseq
        %v4739 = vshrl.u32 %v4738, 7
        %v4740 = vsub.s32 0, %v4739
        %v4741 = vrot.slane %v4354, %v4740
        %v4742 = vmul.f32 %v4682, %v4741
        %v4743 = vmul.f32 %v4683, %v4741
        %v4744 = vmul.f32 %v4684, %v4741
        %v4745 = vmul.f32 %v4685, %v4741
        %v4746 = vmul.f32 %v4686, %v4741
        %v4747 = vmul.f32 %v4687, %v4741
        %v4748 = vmul.f32 %v4688, %v4741
        %v4749 = vmul.f32 %v4737, %v4741
        %v4750 = vadd.f32 %v4729, %v4742
        %v4751 = vadd.f32 %v4730, %v4743
        %v4752 = vadd.f32 %v4731, %v4744
        %v4753 = vadd.f32 %v4732, %v4745
        %v4754 = vadd.f32 %v4733, %v4746
        %v4755 = vadd.f32 %v4734, %v4747
        %v4756 = vadd.f32 %v4735, %v4748
        %v4757 = vadd.f32 %v4736, %v4749
        %v4758 = vadd.f32 %v4673, %v4750
        %v4759 = vadd.f32 %v4674, %v4751
        %v4760 = vadd.f32 %v4675, %v4752
        %v4761 = vadd.f32 %v4676, %v4753
        %v4762 = vadd.f32 %v4677, %v4754
        %v4763 = vadd.f32 %v4678, %v4755
        %v4764 = vadd.f32 %v4679, %v4756
        %v4765 = vadd.f32 %v4680, %v4757
        %v4766 = vlaneseq
        %v4767 = vshrl.u32 %v4766, 7
        %v4768 = vsub.s32 0, %v4767
        %v4769 = vrot.slane %v4355, %v4768
        %v4770 = vmul.f32 %v4758, %v4769
        %v4771 = vmul.f32 %v4759, %v4769
        %v4772 = vmul.f32 %v4760, %v4769
        %v4773 = vmul.f32 %v4761, %v4769
        %v4774 = vmul.f32 %v4762, %v4769
        %v4775 = vmul.f32 %v4763, %v4769
        %v4776 = vmul.f32 %v4764, %v4769
        %v4777 = vmul.f32 %v4765, %v4769
        %v4778 = vlaneseq
        %v4779 = vshrl.u32 %v4778, 7
        %v4780 = vsub.s32 1, %v4779
        %v4781 = vrot.slane %v4355, %v4780
        %v4782 = vadd.f32 %v4770, %v4781
        %v4783 = vadd.f32 %v4771, %v4781
        %v4784 = vadd.f32 %v4772, %v4781
        %v4785 = vadd.f32 %v4773, %v4781
        %v4786 = vadd.f32 %v4774, %v4781
        %v4787 = vadd.f32 %v4775, %v4781
        %v4788 = vadd.f32 %v4776, %v4781
        %v4789 = vadd.f32 %v4777, %v4781
        %v4790 = vmax.f32 %v4782, 0.0
        %v4791 = vmax.f32 %v4783, 0.0
        %v4792 = vmax.f32 %v4784, 0.0
        %v4793 = vmax.f32 %v4785, 0.0
        %v4794 = vmax.f32 %v4786, 0.0
        %v4795 = vmax.f32 %v4787, 0.0
        %v4796 = vmax.f32 %v4788, 0.0
        %v4797 = vmax.f32 %v4789, 0.0
        %v4798 = vmin.f32 %v4790, 6.0
        %v4799 = vmin.f32 %v4791, 6.0
        %v4800 = vmin.f32 %v4792, 6.0
        %v4801 = vmin.f32 %v4793, 6.0
        %v4802 = vmin.f32 %v4794, 6.0
        %v4803 = vmin.f32 %v4795, 6.0
        %v4804 = vmin.f32 %v4796, 6.0
        %v4805 = vmin.f32 %v4797, 6.0
        %v4806 = vpack.c.bf16 %v4799, %v4798
        %v4807 = vpack.c.bf16 %v4801, %v4800
        %v4808 = vpack.c.bf16 %v4803, %v4802
        %v4809 = vpack.c.bf16 %v4805, %v4804
        %v4810 = vld [vmem:[%s25] sm:$0xf]
        %v4811 = vld [vmem:[%s25 + $0x4] sm:$0xf]
        %v4812 = vld [vmem:[%s25 + $0x8] sm:$0xf]
        %v4813 = vld [vmem:[%s25 + $0xc] sm:$0xf]
        %v4814 = vld [vmem:[%s25 + $0x10] sm:$0xf]
        %v4815 = vld [vmem:[%s25 + $0x14] sm:$0xf]
        %v4816 = vld [vmem:[%s25 + $0x18] sm:$0xf]
        %v4817 = vld [vmem:[%s25 + $0x1c] sm:$0xf]
        %v4818 = vld [vmem:[%s25 + $0x20] sm:$0xf]
        %v4819 = vld [vmem:[%s25 + $0x24] sm:$0xf]
        %v4820 = vld [vmem:[%s25 + $0x28] sm:$0xf]
        %v4821 = vld [vmem:[%s25 + $0x2c] sm:$0xf]
        %v4834 = vunpack.c.l.b16 %v4810
        %v4835 = vunpack.c.l.b16 %v4811
        %v4836 = vunpack.c.l.b16 %v4812
        %v4837 = vunpack.c.l.b16 %v4813
        %v4838 = vunpack.c.l.b16 %v4814
        %v4839 = vunpack.c.l.b16 %v4815
        %v4840 = vunpack.c.l.b16 %v4816
        %v4841 = vunpack.c.l.b16 %v4817
        %v4842 = vunpack.c.l.b16 %v4818
        %v4843 = vunpack.c.l.b16 %v4819
        %v4844 = vunpack.c.l.b16 %v4820
        %v4845 = vunpack.c.l.b16 %v4821
        %v4846 = vpack.c.b16 %v4835, %v4834
        %v4847 = vpack.c.b16 %v4837, %v4836
        %v4848 = vpack.c.b16 %v4839, %v4838
        %v4849 = vpack.c.b16 %v4841, %v4840
        %v4850 = vpack.c.b16 %v4843, %v4842
        %v4851 = vpack.c.b16 %v4845, %v4844
        %v4859 = vsel %vm4357, %v4806, 0
        %v4862 = vsel %vm4357, %v4807, 0
        %v4865 = vsel %vm4357, %v4808, 0
        %v4868 = vsel %vm4357, %v4809, 0
        %4870 = vmatprep.subr.bf16.mxu0 0
        %4871 = vmatpush1.bf16.msra.mxu0 0
        %4872 = vmatprep.subr.bf16.mxu0 0
        %4873 = vmatpush1.bf16.msra.mxu0 0
        %4874 = vmatprep.subr.bf16.mxu0 0
        %4875 = vmatpush1.bf16.msra.mxu0 %v4851
        %4876 = vmatprep.subr.bf16.mxu0 0
        %4877 = vmatpush1.bf16.msra.mxu0 %v4850
        %4878 = vmatprep.subr.bf16.mxu0 0
        %4879 = vmatpush1.bf16.msra.mxu0 %v4849
        %4880 = vmatprep.subr.bf16.mxu0 0
        %4881 = vmatpush1.bf16.msra.mxu0 %v4848
        %4882 = vmatprep.subr.bf16.mxu0 0
        %4883 = vmatpush1.bf16.msra.mxu0 %v4847
        %4884 = vmatprep.subr.bf16.mxu0 0
        %4885 = vmatpush1.bf16.msra.mxu0 %v4846
        %4886 = vmatprep.subr.bf16.mxu0 0
        %4887 = vmatpush2.bf16.msra.mxu0 0
        %4888 = vmatprep.subr.bf16.mxu0 0
        %4889 = vmatpush2.bf16.msra.mxu0 0
        %4890 = vmatprep.subr.bf16.mxu0 0
        %4891 = vmatpush2.bf16.msra.mxu0 0
        %4892 = vmatprep.subr.bf16.mxu0 0
        %4893 = vmatpush2.bf16.msra.mxu0 0
        %4894 = vmatprep.subr.bf16.mxu0 0
        %4895 = vmatpush2.bf16.msra.mxu0 0
        %4896 = vmatprep.subr.bf16.mxu0 0
        %4897 = vmatpush2.bf16.msra.mxu0 0
        %4898 = vmatprep.subr.bf16.mxu0 0
        %4899 = vmatpush2.bf16.msra.mxu0 0
        %4900 = vmatprep.subr.bf16.mxu0 0
        %4901 = vmatpush2.bf16.msra.mxu0 0
        %4902 = vmatprep.mubr.bf16.mxu0 0
        %4903 = vmatmul.mubr.bf16.gmra.mxu0 %v4859
        %v4904 = vpop.f32.mrf.mxu0
        %v4905 = vadd.f32 0.0, %v4904
        %v4906 = vpop.f32.mrf.mxu0
        %v4907 = vpop.f32.mrf.mxu0
        %v4908 = vadd.f32 0.0, %v4907
        %v4909 = vpop.f32.mrf.mxu0
        %4910 = vmatprep.mubr.bf16.mxu0 0
        %4911 = vmatmul.mubr.bf16.gmra.mxu0 %v4862
        %v4912 = vpop.f32.mrf.mxu0
        %v4913 = vadd.f32 0.0, %v4912
        %v4914 = vpop.f32.mrf.mxu0
        %v4915 = vpop.f32.mrf.mxu0
        %v4916 = vadd.f32 0.0, %v4915
        %v4917 = vpop.f32.mrf.mxu0
        %4918 = vmatprep.mubr.bf16.mxu0 0
        %4919 = vmatmul.mubr.bf16.gmra.mxu0 %v4865
        %v4920 = vpop.f32.mrf.mxu0
        %v4921 = vadd.f32 0.0, %v4920
        %v4922 = vpop.f32.mrf.mxu0
        %v4923 = vpop.f32.mrf.mxu0
        %v4924 = vadd.f32 0.0, %v4923
        %v4925 = vpop.f32.mrf.mxu0
        %4926 = vmatprep.mubr.bf16.mxu0 0
        %4927 = vmatmul.mubr.bf16.gmra.mxu0 %v4868
        %v4928 = vpop.f32.mrf.mxu0
        %v4929 = vadd.f32 0.0, %v4928
        %v4930 = vpop.f32.mrf.mxu0
        %v4931 = vpop.f32.mrf.mxu0
        %v4932 = vadd.f32 0.0, %v4931
        %v4933 = vpop.f32.mrf.mxu0
        %4934 = vdwg.mxu0
        %v4935 = vlaneseq
        %v4936 = vshrl.u32 %v4935, 7
        %v4937 = vsub.s32 0, %v4936
        %v4938 = vrot.slane %v4356, %v4937
        %v4939 = vmul.f32 %v4905, %v4938
        %v4940 = vmul.f32 %v4908, %v4938
        %v4941 = vmul.f32 %v4913, %v4938
        %v4942 = vmul.f32 %v4916, %v4938
        %v4943 = vmul.f32 %v4921, %v4938
        %v4944 = vmul.f32 %v4924, %v4938
        %v4945 = vmul.f32 %v4929, %v4938
        %v4946 = vmul.f32 %v4932, %v4938
        %v4947 = vlaneseq
        %v4948 = vshrl.u32 %v4947, 7
        %v4949 = vsub.s32 1, %v4948
        %v4950 = vrot.slane %v4356, %v4949
        %v4951 = vadd.f32 %v4939, %v4950
        %v4952 = vadd.f32 %v4940, %v4950
        %v4953 = vadd.f32 %v4941, %v4950
        %v4954 = vadd.f32 %v4942, %v4950
        %v4955 = vadd.f32 %v4943, %v4950
        %v4956 = vadd.f32 %v4944, %v4950
        %v4957 = vadd.f32 %v4945, %v4950
        %v4958 = vadd.f32 %v4946, %v4950
        %v4959 = vpack.c.bf16 %v4952, %v4951
        %v4960 = vpack.c.bf16 %v4954, %v4953
        %v4961 = vpack.c.bf16 %v4956, %v4955
        %v4962 = vpack.c.bf16 %v4958, %v4957
        %v4963 = vld [vmem:[%s29] sm:$0xff]
        %v4964 = vld [vmem:[%s29 + $0x8] sm:$0xff]
        %v4965 = vld [vmem:[%s29 + $0x10] sm:$0xff]
        %v4969 = vunpack.c.l.b16 %v4963
        %v4970 = vunpack.c.h.b16 %v4963
        %v4971 = vunpack.c.l.b16 %v4964
        %v4972 = vunpack.c.h.b16 %v4964
        %v4973 = vunpack.c.l.b16 %v4965
        %v4974 = vunpack.c.h.b16 %v4965
        %v4975 = vpack.c.b16 %v4971, %v4969
        %v4976 = vpack.c.b16 %v4972, %v4970
        %v4977 = vpack.c.b16 %v4973, %v4973
        %v4978 = vpack.c.b16 %v4974, %v4974
        %vm4981 = vcmask 195584
        %v4983 = vsel %vm4981, %v4959, 0
        %v4986 = vsel %vm4981, %v4960, 0
        %v4989 = vsel %vm4981, %v4961, 0
        %v4992 = vsel %vm4981, %v4962, 0
        %vm4994 = vcmask 1043456
        %v4996 = vsel %vm4994, %v4977, 0
        %v4999 = vsel %vm4994, %v4978, 0
        %5001 = vmatprep.subr.bf16.mxu0 0
        %5002 = vmatpush1.bf16.msra.mxu0 0
        %5003 = vmatprep.subr.bf16.mxu0 0
        %5004 = vmatpush1.bf16.msra.mxu0 0
        %5005 = vmatprep.subr.bf16.mxu0 0
        %5006 = vmatpush1.bf16.msra.mxu0 0
        %5007 = vmatprep.subr.bf16.mxu0 0
        %5008 = vmatpush1.bf16.msra.mxu0 0
        %5009 = vmatprep.subr.bf16.mxu0 0
        %5010 = vmatpush1.bf16.msra.mxu0 0
        %5011 = vmatprep.subr.bf16.mxu0 0
        %5012 = vmatpush1.bf16.msra.mxu0 0
        %5013 = vmatprep.subr.bf16.mxu0 %v4999
        %5014 = vmatpush1.bf16.msra.mxu0 %v4996
        %5015 = vmatprep.subr.bf16.mxu0 %v4976
        %5016 = vmatpush1.bf16.msra.mxu0 %v4975
        %5017 = vmatprep.subr.bf16.mxu0 0
        %5018 = vmatpush2.bf16.msra.mxu0 0
        %5019 = vmatprep.subr.bf16.mxu0 0
        %5020 = vmatpush2.bf16.msra.mxu0 0
        %5021 = vmatprep.subr.bf16.mxu0 0
        %5022 = vmatpush2.bf16.msra.mxu0 0
        %5023 = vmatprep.subr.bf16.mxu0 0
        %5024 = vmatpush2.bf16.msra.mxu0 0
        %5025 = vmatprep.subr.bf16.mxu0 0
        %5026 = vmatpush2.bf16.msra.mxu0 0
        %5027 = vmatprep.subr.bf16.mxu0 0
        %5028 = vmatpush2.bf16.msra.mxu0 0
        %5029 = vmatprep.subr.bf16.mxu0 0
        %5030 = vmatpush2.bf16.msra.mxu0 0
        %5031 = vmatprep.subr.bf16.mxu0 0
        %5032 = vmatpush2.bf16.msra.mxu0 0
        %5033 = vmatprep.mubr.bf16.mxu0 0
        %5034 = vmatmul.mubr.bf16.gmra.mxu0 %v4983
        %v5035 = vpop.f32.mrf.mxu0
        %v5036 = vadd.f32 0.0, %v5035
        %v5037 = vpop.f32.mrf.mxu0
        %v5038 = vadd.f32 0.0, %v5037
        %v5039 = vpop.f32.mrf.mxu0
        %v5040 = vadd.f32 0.0, %v5039
        %v5041 = vpop.f32.mrf.mxu0
        %v5042 = vadd.f32 0.0, %v5041
        %5043 = vmatprep.mubr.bf16.mxu0 0
        %5044 = vmatmul.mubr.bf16.gmra.mxu0 %v4986
        %v5045 = vpop.f32.mrf.mxu0
        %v5046 = vadd.f32 0.0, %v5045
        %v5047 = vpop.f32.mrf.mxu0
        %v5048 = vadd.f32 0.0, %v5047
        %v5049 = vpop.f32.mrf.mxu0
        %v5050 = vadd.f32 0.0, %v5049
        %v5051 = vpop.f32.mrf.mxu0
        %v5052 = vadd.f32 0.0, %v5051
        %5053 = vmatprep.mubr.bf16.mxu0 0
        %5054 = vmatmul.mubr.bf16.gmra.mxu0 %v4989
        %v5055 = vpop.f32.mrf.mxu0
        %v5056 = vadd.f32 0.0, %v5055
        %v5057 = vpop.f32.mrf.mxu0
        %v5058 = vadd.f32 0.0, %v5057
        %v5059 = vpop.f32.mrf.mxu0
        %v5060 = vadd.f32 0.0, %v5059
        %v5061 = vpop.f32.mrf.mxu0
        %v5062 = vadd.f32 0.0, %v5061
        %5063 = vmatprep.mubr.bf16.mxu0 0
        %5064 = vmatmul.mubr.bf16.gmra.mxu0 %v4992
        %v5065 = vpop.f32.mrf.mxu0
        %v5066 = vadd.f32 0.0, %v5065
        %v5067 = vpop.f32.mrf.mxu0
        %v5068 = vadd.f32 0.0, %v5067
        %v5069 = vpop.f32.mrf.mxu0
        %v5070 = vadd.f32 0.0, %v5069
        %v5071 = vpop.f32.mrf.mxu0
        %v5072 = vadd.f32 0.0, %v5071
        %5073 = vdwg.mxu0
        %v5074 = vld [vmem:[%s31] sm:$0xf]
        %v5076 = vlaneseq
        %v5077 = vshrl.u32 %v5076, 7
        %v5078 = vsub.s32 0, %v5077
        %v5079 = vrot.slane %v5074, %v5078
        %v5080 = vlaneseq
        %v5081 = vshrl.u32 %v5080, 7
        %v5082 = vsub.s32 2, %v5081
        %v5083 = vrot.slane %v5074, %v5082
        %v5086 = vlaneseq
        %v5087 = vshrl.u32 %v5086, 7
        %v5088 = vsub.s32 0, %v5087
        %v5089 = vrot.slane %v5079, %v5088
        %v5090 = vlaneseq
        %v5091 = vshrl.u32 %v5090, 7
        %v5092 = vsub.s32 0, %v5091
        %v5093 = vrot.slane %v5083, %v5092
        %v5094 = vmul.f32 %v5036, %v5089
        %v5095 = vmul.f32 %v5038, %v5093
        %v5096 = vmul.f32 %v5040, %v5089
        %v5097 = vmul.f32 %v5042, %v5093
        %v5098 = vmul.f32 %v5046, %v5089
        %v5099 = vmul.f32 %v5048, %v5093
        %v5100 = vmul.f32 %v5050, %v5089
        %v5101 = vmul.f32 %v5052, %v5093
        %v5102 = vmul.f32 %v5056, %v5089
        %v5103 = vmul.f32 %v5058, %v5093
        %v5104 = vmul.f32 %v5060, %v5089
        %v5105 = vmul.f32 %v5062, %v5093
        %v5106 = vmul.f32 %v5066, %v5089
        %v5107 = vmul.f32 %v5068, %v5093
        %v5108 = vmul.f32 %v5070, %v5089
        %v5109 = vmul.f32 %v5072, %v5093
        %v5110 = vlaneseq
        %v5111 = vshrl.u32 %v5110, 7
        %v5112 = vsub.s32 1, %v5111
        %v5113 = vrot.slane %v5074, %v5112
        %v5114 = vlaneseq
        %v5115 = vshrl.u32 %v5114, 7
        %v5116 = vsub.s32 3, %v5115
        %v5117 = vrot.slane %v5074, %v5116
        %v5120 = vlaneseq
        %v5121 = vshrl.u32 %v5120, 7
        %v5122 = vsub.s32 1, %v5121
        %v5123 = vrot.slane %v5113, %v5122
        %v5124 = vlaneseq
        %v5125 = vshrl.u32 %v5124, 7
        %v5126 = vsub.s32 1, %v5125
        %v5127 = vrot.slane %v5117, %v5126
        %v5128 = vadd.f32 %v5094, %v5123
        %v5129 = vadd.f32 %v5095, %v5127
        %v5130 = vadd.f32 %v5096, %v5123
        %v5131 = vadd.f32 %v5097, %v5127
        %v5132 = vadd.f32 %v5098, %v5123
        %v5133 = vadd.f32 %v5099, %v5127
        %v5134 = vadd.f32 %v5100, %v5123
        %v5135 = vadd.f32 %v5101, %v5127
        %v5136 = vadd.f32 %v5102, %v5123
        %v5137 = vadd.f32 %v5103, %v5127
        %v5138 = vadd.f32 %v5104, %v5123
        %v5139 = vadd.f32 %v5105, %v5127
        %v5140 = vadd.f32 %v5106, %v5123
        %v5141 = vadd.f32 %v5107, %v5127
        %v5142 = vadd.f32 %v5108, %v5123
        %v5143 = vadd.f32 %v5109, %v5127
        %v5144 = vmax.f32 %v5128, 0.0
        %v5145 = vmax.f32 %v5129, 0.0
        %v5146 = vmax.f32 %v5130, 0.0
        %v5147 = vmax.f32 %v5131, 0.0
        %v5148 = vmax.f32 %v5132, 0.0
        %v5149 = vmax.f32 %v5133, 0.0
        %v5150 = vmax.f32 %v5134, 0.0
        %v5151 = vmax.f32 %v5135, 0.0
        %v5152 = vmax.f32 %v5136, 0.0
        %v5153 = vmax.f32 %v5137, 0.0
        %v5154 = vmax.f32 %v5138, 0.0
        %v5155 = vmax.f32 %v5139, 0.0
        %v5156 = vmax.f32 %v5140, 0.0
        %v5157 = vmax.f32 %v5141, 0.0
        %v5158 = vmax.f32 %v5142, 0.0
        %v5159 = vmax.f32 %v5143, 0.0
        %v5160 = vmin.f32 %v5144, 6.0
        %v5161 = vmin.f32 %v5145, 6.0
        %v5162 = vmin.f32 %v5146, 6.0
        %v5163 = vmin.f32 %v5147, 6.0
        %v5164 = vmin.f32 %v5148, 6.0
        %v5165 = vmin.f32 %v5149, 6.0
        %v5166 = vmin.f32 %v5150, 6.0
        %v5167 = vmin.f32 %v5151, 6.0
        %v5168 = vmin.f32 %v5152, 6.0
        %v5169 = vmin.f32 %v5153, 6.0
        %v5170 = vmin.f32 %v5154, 6.0
        %v5171 = vmin.f32 %v5155, 6.0
        %v5172 = vmin.f32 %v5156, 6.0
        %v5173 = vmin.f32 %v5157, 6.0
        %v5174 = vmin.f32 %v5158, 6.0
        %v5175 = vmin.f32 %v5159, 6.0
        %v5176 = vld [vmem:[%s33] sm:$0xff]
        %v5177 = vld [vmem:[%s33 + $0x8] sm:$0xff]
        %v5178 = vld [vmem:[%s33 + $0x10] sm:$0x1]
        %v5179 = vld [vmem:[%s33 + $0x18] sm:$0x1]
        %v5180 = vld [vmem:[%s35] sm:$0xf]
        %v5181 = vld [vmem:[%s39] sm:$0x3]
        %5182 = vst [vmem:[#allocation4] sm:$0xff] 0.0
        %5183 = vst.msk [vmem:[#allocation4 + $0x8] sm:$0xff] %vm4006, 0.0
        %5184 = vst [vmem:[#allocation4 + $0x10] sm:$0x1] 0.0
        %vm5185 = vcmask 122880
        %5186 = vst.msk [vmem:[#allocation4 + $0x18] sm:$0x1] %vm5185, 0.0
        %vm5203 = vcmask 1040384
        %v5204 = vrot.slane %v5160, 7
        %v5205 = vrot.slane %v5161, 7
        %v5206 = vrot.slane %v5162, 7
        %v5207 = vsel %vm5203, %v5204, %v5206
        %v5208 = vrot.slane %v5163, 7
        %v5209 = vsel %vm5203, %v5205, %v5208
        %v5210 = vrot.slane %v5164, 7
        %v5211 = vsel %vm5203, %v5206, %v5210
        %v5212 = vrot.slane %v5165, 7
        %v5213 = vsel %vm5203, %v5208, %v5212
        %v5214 = vrot.slane %v5166, 7
        %v5215 = vsel %vm5203, %v5210, %v5214
        %v5216 = vrot.slane %v5167, 7
        %v5217 = vsel %vm5203, %v5212, %v5216
        %v5218 = vrot.slane %v5168, 7
        %v5219 = vsel %vm5203, %v5214, %v5218
        %v5220 = vrot.slane %v5169, 7
        %v5221 = vsel %vm5203, %v5216, %v5220
        %v5222 = vrot.slane %v5170, 7
        %v5223 = vsel %vm5203, %v5218, %v5222
        %v5224 = vrot.slane %v5171, 7
        %v5225 = vsel %vm5203, %v5220, %v5224
        %v5226 = vrot.slane %v5172, 7
        %v5227 = vsel %vm5203, %v5222, %v5226
        %v5228 = vrot.slane %v5173, 7
        %v5229 = vsel %vm5203, %v5224, %v5228
        %v5230 = vrot.slane %v5174, 7
        %v5231 = vsel %vm5203, %v5226, %v5230
        %v5232 = vrot.slane %v5175, 7
        %v5233 = vsel %vm5203, %v5228, %v5232
        %5252 = vst [vmem:[#allocation4 + $0x10] sm:$0xfe] %v5204
        %vm5253 = vcmask 130049
        %5254 = vst.msk [vmem:[#allocation4 + $0x18] sm:$0xfe] %vm5253, %v5205
        %5255 = vst [vmem:[#allocation4 + $0x20] sm:$0xff] %v5207
        %5256 = vst.msk [vmem:[#allocation4 + $0x28] sm:$0xff] %vm4006, %v5209
        %5257 = vst [vmem:[#allocation4 + $0x30] sm:$0xff] %v5211
        %5258 = vst.msk [vmem:[#allocation4 + $0x38] sm:$0xff] %vm4006, %v5213
        %5259 = vst [vmem:[#allocation4 + $0x40] sm:$0xff] %v5215
        %5260 = vst.msk [vmem:[#allocation4 + $0x48] sm:$0xff] %vm4006, %v5217
        %5261 = vst [vmem:[#allocation4 + $0x50] sm:$0xff] %v5219
        %5262 = vst.msk [vmem:[#allocation4 + $0x58] sm:$0xff] %vm4006, %v5221
        %5263 = vst [vmem:[#allocation4 + $0x60] sm:$0xff] %v5223
        %5264 = vst.msk [vmem:[#allocation4 + $0x68] sm:$0xff] %vm4006, %v5225
        %5265 = vst [vmem:[#allocation4 + $0x70] sm:$0xff] %v5227
        %5266 = vst.msk [vmem:[#allocation4 + $0x78] sm:$0xff] %vm4006, %v5229
        %5267 = vst [vmem:[#allocation4 + $0x80] sm:$0xff] %v5231
        %5268 = vst.msk [vmem:[#allocation4 + $0x88] sm:$0xff] %vm4006, %v5233
        %5269 = vst [vmem:[#allocation4 + $0x90] sm:$0x1] %v5230
        %5270 = vst.msk [vmem:[#allocation4 + $0x98] sm:$0x1] %vm5185, %v5232
        %5271 = vst [vmem:[#allocation4 + $0x90] sm:$0xfe] 0.0
        %5272 = vst.msk [vmem:[#allocation4 + $0x98] sm:$0xfe] %vm5253, 0.0
        %5273 = vst [vmem:[#allocation4 + $0xa0] sm:$0x3] 0.0
        %vm5274 = vcmask 123904
        %5275 = vst.msk [vmem:[#allocation4 + $0xa8] sm:$0x3] %vm5274, 0.0
        %vm5276 = vcmp.eq.s32.totalorder %v4487, 7
        %vm5277 = vcmp.eq.s32.totalorder %v4488, 7
        %vm5278 = vcmp.eq.s32.totalorder %v4489, 7
        %vm5279 = vcmp.eq.s32.totalorder %v4490, 7
        %vm5280 = vcmp.eq.s32.totalorder %v4491, 7
        %vm5281 = vcmp.eq.s32.totalorder %v4492, 7
        %vm5282 = vcmp.eq.s32.totalorder %v4493, 7
        %vm5283 = vcmp.eq.s32.totalorder %v4494, 7
        %v5284 = vld [vmem:[#allocation4] sm:$0xff]
        %v5285 = vld [vmem:[#allocation4 + $0x8] sm:$0xff]
        %v5286 = vld [vmem:[#allocation4 + $0x10] sm:$0xff]
        %v5287 = vld [vmem:[#allocation4 + $0x18] sm:$0xff]
        %v5288 = vld [vmem:[#allocation4 + $0x20] sm:$0xff]
        %v5289 = vld [vmem:[#allocation4 + $0x28] sm:$0xff]
        %v5290 = vld [vmem:[#allocation4 + $0x30] sm:$0xff]
        %v5291 = vld [vmem:[#allocation4 + $0x38] sm:$0xff]
        %v5292 = vld [vmem:[#allocation4 + $0x40] sm:$0xff]
        %v5293 = vld [vmem:[#allocation4 + $0x48] sm:$0xff]
        %v5294 = vld [vmem:[#allocation4 + $0x50] sm:$0xff]
        %v5295 = vld [vmem:[#allocation4 + $0x58] sm:$0xff]
        %v5296 = vld [vmem:[#allocation4 + $0x60] sm:$0xff]
        %v5297 = vld [vmem:[#allocation4 + $0x68] sm:$0xff]
        %v5298 = vld [vmem:[#allocation4 + $0x70] sm:$0xff]
        %v5299 = vld [vmem:[#allocation4 + $0x78] sm:$0xff]
        %v5300 = vlaneseq
        %v5301 = vshrl.u32 %v5300, 7
        %v5302 = vsub.s32 0, %v5301
        %v5303 = vrot.slane %v5176, %v5302
        %v5304 = vlaneseq
        %v5305 = vshrl.u32 %v5304, 7
        %v5306 = vsub.s32 0, %v5305
        %v5307 = vrot.slane %v5177, %v5306
        %v5308 = vmul.f32 %v5284, %v5303
        %v5309 = vmul.f32 %v5285, %v5307
        %v5310 = vmul.f32 %v5286, %v5303
        %v5311 = vmul.f32 %v5287, %v5307
        %v5312 = vmul.f32 %v5288, %v5303
        %v5313 = vmul.f32 %v5289, %v5307
        %v5314 = vmul.f32 %v5290, %v5303
        %v5315 = vmul.f32 %v5291, %v5307
        %v5316 = vmul.f32 %v5292, %v5303
        %v5317 = vmul.f32 %v5293, %v5307
        %v5318 = vmul.f32 %v5294, %v5303
        %v5319 = vmul.f32 %v5295, %v5307
        %v5320 = vmul.f32 %v5296, %v5303
        %v5321 = vmul.f32 %v5297, %v5307
        %v5322 = vmul.f32 %v5298, %v5303
        %v5323 = vmul.f32 %v5299, %v5307
        %v5324 = vadd.f32 %v5308, 0.0
        %v5325 = vadd.f32 %v5309, 0.0
        %v5326 = vadd.f32 %v5310, 0.0
        %v5327 = vadd.f32 %v5311, 0.0
        %v5328 = vadd.f32 %v5312, 0.0
        %v5329 = vadd.f32 %v5313, 0.0
        %v5330 = vadd.f32 %v5314, 0.0
        %v5331 = vadd.f32 %v5315, 0.0
        %v5332 = vadd.f32 %v5316, 0.0
        %v5333 = vadd.f32 %v5317, 0.0
        %v5334 = vadd.f32 %v5318, 0.0
        %v5335 = vadd.f32 %v5319, 0.0
        %v5336 = vadd.f32 %v5320, 0.0
        %v5337 = vadd.f32 %v5321, 0.0
        %v5338 = vadd.f32 %v5322, 0.0
        %v5339 = vadd.f32 %v5323, 0.0
        %v5340 = vld [vmem:[#allocation4 + $0x80] sm:$0xff]
        %v5341 = vld [vmem:[#allocation4 + $0x88] sm:$0xff]
        %v5342 = vlaneseq
        %v5343 = vshrl.u32 %v5342, 7
        %v5344 = vsub.s32 3, %v5343
        %v5345 = vrot.slane %v5176, %v5344
        %v5346 = vlaneseq
        %v5347 = vshrl.u32 %v5346, 7
        %v5348 = vsub.s32 3, %v5347
        %v5349 = vrot.slane %v5177, %v5348
        %v5350 = vmul.f32 %v5286, %v5345
        %v5351 = vmul.f32 %v5287, %v5349
        %v5352 = vmul.f32 %v5288, %v5345
        %v5353 = vmul.f32 %v5289, %v5349
        %v5354 = vmul.f32 %v5290, %v5345
        %v5355 = vmul.f32 %v5291, %v5349
        %v5356 = vmul.f32 %v5292, %v5345
        %v5357 = vmul.f32 %v5293, %v5349
        %v5358 = vmul.f32 %v5294, %v5345
        %v5359 = vmul.f32 %v5295, %v5349
        %v5360 = vmul.f32 %v5296, %v5345
        %v5361 = vmul.f32 %v5297, %v5349
        %v5362 = vmul.f32 %v5298, %v5345
        %v5363 = vmul.f32 %v5299, %v5349
        %v5364 = vmul.f32 %v5340, %v5345
        %v5365 = vmul.f32 %v5341, %v5349
        %v5366 = vadd.f32 %v5324, %v5350
        %v5367 = vadd.f32 %v5325, %v5351
        %v5368 = vadd.f32 %v5326, %v5352
        %v5369 = vadd.f32 %v5327, %v5353
        %v5370 = vadd.f32 %v5328, %v5354
        %v5371 = vadd.f32 %v5329, %v5355
        %v5372 = vadd.f32 %v5330, %v5356
        %v5373 = vadd.f32 %v5331, %v5357
        %v5374 = vadd.f32 %v5332, %v5358
        %v5375 = vadd.f32 %v5333, %v5359
        %v5376 = vadd.f32 %v5334, %v5360
        %v5377 = vadd.f32 %v5335, %v5361
        %v5378 = vadd.f32 %v5336, %v5362
        %v5379 = vadd.f32 %v5337, %v5363
        %v5380 = vadd.f32 %v5338, %v5364
        %v5381 = vadd.f32 %v5339, %v5365
        %v5382 = vld [vmem:[#allocation4 + $0x90] sm:$0xff]
        %v5383 = vld [vmem:[#allocation4 + $0x98] sm:$0xff]
        %v5384 = vlaneseq
        %v5385 = vshrl.u32 %v5384, 7
        %v5386 = vsub.s32 6, %v5385
        %v5387 = vrot.slane %v5176, %v5386
        %v5388 = vlaneseq
        %v5389 = vshrl.u32 %v5388, 7
        %v5390 = vsub.s32 6, %v5389
        %v5391 = vrot.slane %v5177, %v5390
        %v5392 = vmul.f32 %v5288, %v5387
        %v5393 = vmul.f32 %v5289, %v5391
        %v5394 = vmul.f32 %v5290, %v5387
        %v5395 = vmul.f32 %v5291, %v5391
        %v5396 = vmul.f32 %v5292, %v5387
        %v5397 = vmul.f32 %v5293, %v5391
        %v5398 = vmul.f32 %v5294, %v5387
        %v5399 = vmul.f32 %v5295, %v5391
        %v5400 = vmul.f32 %v5296, %v5387
        %v5401 = vmul.f32 %v5297, %v5391
        %v5402 = vmul.f32 %v5298, %v5387
        %v5403 = vmul.f32 %v5299, %v5391
        %v5404 = vmul.f32 %v5340, %v5387
        %v5405 = vmul.f32 %v5341, %v5391
        %v5406 = vmul.f32 %v5382, %v5387
        %v5407 = vmul.f32 %v5383, %v5391
        %v5408 = vadd.f32 %v5366, %v5392
        %v5409 = vadd.f32 %v5367, %v5393
        %v5410 = vadd.f32 %v5368, %v5394
        %v5411 = vadd.f32 %v5369, %v5395
        %v5412 = vadd.f32 %v5370, %v5396
        %v5413 = vadd.f32 %v5371, %v5397
        %v5414 = vadd.f32 %v5372, %v5398
        %v5415 = vadd.f32 %v5373, %v5399
        %v5416 = vadd.f32 %v5374, %v5400
        %v5417 = vadd.f32 %v5375, %v5401
        %v5418 = vadd.f32 %v5376, %v5402
        %v5419 = vadd.f32 %v5377, %v5403
        %v5420 = vadd.f32 %v5378, %v5404
        %v5421 = vadd.f32 %v5379, %v5405
        %v5422 = vadd.f32 %v5380, %v5406
        %v5423 = vadd.f32 %v5381, %v5407
        %v5424 = vsel %vm4495, 0.0, %v5408
        %v5425 = vsel %vm4495, 0.0, %v5409
        %v5426 = vsel %vm4496, 0.0, %v5410
        %v5427 = vsel %vm4496, 0.0, %v5411
        %v5428 = vsel %vm4497, 0.0, %v5412
        %v5429 = vsel %vm4497, 0.0, %v5413
        %v5430 = vsel %vm4498, 0.0, %v5414
        %v5431 = vsel %vm4498, 0.0, %v5415
        %v5432 = vsel %vm4499, 0.0, %v5416
        %v5433 = vsel %vm4499, 0.0, %v5417
        %v5434 = vsel %vm4500, 0.0, %v5418
        %v5435 = vsel %vm4500, 0.0, %v5419
        %v5436 = vsel %vm4501, 0.0, %v5420
        %v5437 = vsel %vm4501, 0.0, %v5421
        %v5438 = vsel %vm4502, 0.0, %v5422
        %v5439 = vsel %vm4502, 0.0, %v5423
        %v5440 = vadd.f32 %v5424, 0.0
        %v5441 = vadd.f32 %v5425, 0.0
        %v5442 = vadd.f32 %v5426, 0.0
        %v5443 = vadd.f32 %v5427, 0.0
        %v5444 = vadd.f32 %v5428, 0.0
        %v5445 = vadd.f32 %v5429, 0.0
        %v5446 = vadd.f32 %v5430, 0.0
        %v5447 = vadd.f32 %v5431, 0.0
        %v5448 = vadd.f32 %v5432, 0.0
        %v5449 = vadd.f32 %v5433, 0.0
        %v5450 = vadd.f32 %v5434, 0.0
        %v5451 = vadd.f32 %v5435, 0.0
        %v5452 = vadd.f32 %v5436, 0.0
        %v5453 = vadd.f32 %v5437, 0.0
        %v5454 = vadd.f32 %v5438, 0.0
        %v5455 = vadd.f32 %v5439, 0.0
        %v5456 = vld [vmem:[#allocation4] sm:$0xfe]
        %v5457 = vld [vmem:[#allocation4 + $0x8] sm:$0xfe]
        %v5458 = vld [vmem:[#allocation4 + $0x80] sm:$0x1]
        %v5459 = vld [vmem:[#allocation4 + $0x88] sm:$0x1]
        %v5460 = vlaneseq
        %v5461 = vshrl.u32 %v5460, 7
        %v5462 = vsub.s32 1, %v5461
        %v5463 = vrot.slane %v5176, %v5462
        %v5464 = vlaneseq
        %v5465 = vshrl.u32 %v5464, 7
        %v5466 = vsub.s32 1, %v5465
        %v5467 = vrot.slane %v5177, %v5466
        %v5468 = vmul.f32 %v5456, %v5463
        %v5469 = vmul.f32 %v5457, %v5467
        %v5470 = vmul.f32 %v5286, %v5463
        %v5471 = vmul.f32 %v5287, %v5467
        %v5472 = vmul.f32 %v5288, %v5463
        %v5473 = vmul.f32 %v5289, %v5467
        %v5474 = vmul.f32 %v5290, %v5463
        %v5475 = vmul.f32 %v5291, %v5467
        %v5476 = vmul.f32 %v5292, %v5463
        %v5477 = vmul.f32 %v5293, %v5467
        %v5478 = vmul.f32 %v5294, %v5463
        %v5479 = vmul.f32 %v5295, %v5467
        %v5480 = vmul.f32 %v5296, %v5463
        %v5481 = vmul.f32 %v5297, %v5467
        %v5482 = vmul.f32 %v5298, %v5463
        %v5483 = vmul.f32 %v5299, %v5467
        %v5484 = vmul.f32 %v5458, %v5463
        %v5485 = vmul.f32 %v5459, %v5467
        %v5486 = vadd.f32 %v5468, 0.0
        %v5487 = vadd.f32 %v5469, 0.0
        %v5488 = vadd.f32 %v5470, 0.0
        %v5489 = vadd.f32 %v5471, 0.0
        %v5490 = vadd.f32 %v5472, 0.0
        %v5491 = vadd.f32 %v5473, 0.0
        %v5492 = vadd.f32 %v5474, 0.0
        %v5493 = vadd.f32 %v5475, 0.0
        %v5494 = vadd.f32 %v5476, 0.0
        %v5495 = vadd.f32 %v5477, 0.0
        %v5496 = vadd.f32 %v5478, 0.0
        %v5497 = vadd.f32 %v5479, 0.0
        %v5498 = vadd.f32 %v5480, 0.0
        %v5499 = vadd.f32 %v5481, 0.0
        %v5500 = vadd.f32 %v5482, 0.0
        %v5501 = vadd.f32 %v5483, 0.0
        %v5502 = vadd.f32 %v5484, 0.0
        %v5503 = vadd.f32 %v5485, 0.0
        %v5504 = vld [vmem:[#allocation4 + $0x10] sm:$0xfe]
        %v5505 = vld [vmem:[#allocation4 + $0x18] sm:$0xfe]
        %v5506 = vld [vmem:[#allocation4 + $0x90] sm:$0x1]
        %v5507 = vld [vmem:[#allocation4 + $0x98] sm:$0x1]
        %v5508 = vlaneseq
        %v5509 = vshrl.u32 %v5508, 7
        %v5510 = vsub.s32 4, %v5509
        %v5511 = vrot.slane %v5176, %v5510
        %v5512 = vlaneseq
        %v5513 = vshrl.u32 %v5512, 7
        %v5514 = vsub.s32 4, %v5513
        %v5515 = vrot.slane %v5177, %v5514
        %v5516 = vmul.f32 %v5504, %v5511
        %v5517 = vmul.f32 %v5505, %v5515
        %v5518 = vmul.f32 %v5288, %v5511
        %v5519 = vmul.f32 %v5289, %v5515
        %v5520 = vmul.f32 %v5290, %v5511
        %v5521 = vmul.f32 %v5291, %v5515
        %v5522 = vmul.f32 %v5292, %v5511
        %v5523 = vmul.f32 %v5293, %v5515
        %v5524 = vmul.f32 %v5294, %v5511
        %v5525 = vmul.f32 %v5295, %v5515
        %v5526 = vmul.f32 %v5296, %v5511
        %v5527 = vmul.f32 %v5297, %v5515
        %v5528 = vmul.f32 %v5298, %v5511
        %v5529 = vmul.f32 %v5299, %v5515
        %v5530 = vmul.f32 %v5340, %v5511
        %v5531 = vmul.f32 %v5341, %v5515
        %v5532 = vmul.f32 %v5506, %v5511
        %v5533 = vmul.f32 %v5507, %v5515
        %v5534 = vadd.f32 %v5486, %v5516
        %v5535 = vadd.f32 %v5487, %v5517
        %v5536 = vadd.f32 %v5488, %v5518
        %v5537 = vadd.f32 %v5489, %v5519
        %v5538 = vadd.f32 %v5490, %v5520
        %v5539 = vadd.f32 %v5491, %v5521
        %v5540 = vadd.f32 %v5492, %v5522
        %v5541 = vadd.f32 %v5493, %v5523
        %v5542 = vadd.f32 %v5494, %v5524
        %v5543 = vadd.f32 %v5495, %v5525
        %v5544 = vadd.f32 %v5496, %v5526
        %v5545 = vadd.f32 %v5497, %v5527
        %v5546 = vadd.f32 %v5498, %v5528
        %v5547 = vadd.f32 %v5499, %v5529
        %v5548 = vadd.f32 %v5500, %v5530
        %v5549 = vadd.f32 %v5501, %v5531
        %v5550 = vadd.f32 %v5502, %v5532
        %v5551 = vadd.f32 %v5503, %v5533
        %v5552 = vld [vmem:[#allocation4 + $0x20] sm:$0xfe]
        %v5553 = vld [vmem:[#allocation4 + $0x28] sm:$0xfe]
        %v5554 = vld [vmem:[#allocation4 + $0xa0] sm:$0x1]
        %v5555 = vld [vmem:[#allocation4 + $0xa8] sm:$0x1]
        %v5556 = vlaneseq
        %v5557 = vshrl.u32 %v5556, 7
        %v5558 = vsub.s32 7, %v5557
        %v5559 = vrot.slane %v5176, %v5558
        %v5560 = vlaneseq
        %v5561 = vshrl.u32 %v5560, 7
        %v5562 = vsub.s32 7, %v5561
        %v5563 = vrot.slane %v5177, %v5562
        %v5564 = vmul.f32 %v5552, %v5559
        %v5565 = vmul.f32 %v5553, %v5563
        %v5566 = vmul.f32 %v5290, %v5559
        %v5567 = vmul.f32 %v5291, %v5563
        %v5568 = vmul.f32 %v5292, %v5559
        %v5569 = vmul.f32 %v5293, %v5563
        %v5570 = vmul.f32 %v5294, %v5559
        %v5571 = vmul.f32 %v5295, %v5563
        %v5572 = vmul.f32 %v5296, %v5559
        %v5573 = vmul.f32 %v5297, %v5563
        %v5574 = vmul.f32 %v5298, %v5559
        %v5575 = vmul.f32 %v5299, %v5563
        %v5576 = vmul.f32 %v5340, %v5559
        %v5577 = vmul.f32 %v5341, %v5563
        %v5578 = vmul.f32 %v5382, %v5559
        %v5579 = vmul.f32 %v5383, %v5563
        %v5580 = vmul.f32 %v5554, %v5559
        %v5581 = vmul.f32 %v5555, %v5563
        %v5582 = vadd.f32 %v5534, %v5564
        %v5583 = vadd.f32 %v5535, %v5565
        %v5584 = vadd.f32 %v5536, %v5566
        %v5585 = vadd.f32 %v5537, %v5567
        %v5586 = vadd.f32 %v5538, %v5568
        %v5587 = vadd.f32 %v5539, %v5569
        %v5588 = vadd.f32 %v5540, %v5570
        %v5589 = vadd.f32 %v5541, %v5571
        %v5590 = vadd.f32 %v5542, %v5572
        %v5591 = vadd.f32 %v5543, %v5573
        %v5592 = vadd.f32 %v5544, %v5574
        %v5593 = vadd.f32 %v5545, %v5575
        %v5594 = vadd.f32 %v5546, %v5576
        %v5595 = vadd.f32 %v5547, %v5577
        %v5596 = vadd.f32 %v5548, %v5578
        %v5597 = vadd.f32 %v5549, %v5579
        %v5598 = vadd.f32 %v5550, %v5580
        %v5599 = vadd.f32 %v5551, %v5581
        %vm5618 = vcmask 1046528
        %v5619 = vrot.slane %v5582, 1
        %v5620 = vrot.slane %v5584, 1
        %v5621 = vsel %vm5618, %v5619, %v5620
        %v5622 = vrot.slane %v5583, 1
        %v5623 = vrot.slane %v5585, 1
        %v5624 = vsel %vm5618, %v5622, %v5623
        %v5625 = vrot.slane %v5586, 1
        %v5626 = vsel %vm5618, %v5620, %v5625
        %v5627 = vrot.slane %v5587, 1
        %v5628 = vsel %vm5618, %v5623, %v5627
        %v5629 = vrot.slane %v5588, 1
        %v5630 = vsel %vm5618, %v5625, %v5629
        %v5631 = vrot.slane %v5589, 1
        %v5632 = vsel %vm5618, %v5627, %v5631
        %v5633 = vrot.slane %v5590, 1
        %v5634 = vsel %vm5618, %v5629, %v5633
        %v5635 = vrot.slane %v5591, 1
        %v5636 = vsel %vm5618, %v5631, %v5635
        %v5637 = vrot.slane %v5592, 1
        %v5638 = vsel %vm5618, %v5633, %v5637
        %v5639 = vrot.slane %v5593, 1
        %v5640 = vsel %vm5618, %v5635, %v5639
        %v5641 = vrot.slane %v5594, 1
        %v5642 = vsel %vm5618, %v5637, %v5641
        %v5643 = vrot.slane %v5595, 1
        %v5644 = vsel %vm5618, %v5639, %v5643
        %v5645 = vrot.slane %v5596, 1
        %v5646 = vsel %vm5618, %v5641, %v5645
        %v5647 = vrot.slane %v5597, 1
        %v5648 = vsel %vm5618, %v5643, %v5647
        %v5649 = vrot.slane %v5598, 1
        %v5650 = vsel %vm5618, %v5645, %v5649
        %v5651 = vrot.slane %v5599, 1
        %v5652 = vsel %vm5618, %v5647, %v5651
        %v5669 = vadd.f32 %v5440, %v5621
        %v5670 = vadd.f32 %v5441, %v5624
        %v5671 = vadd.f32 %v5442, %v5626
        %v5672 = vadd.f32 %v5443, %v5628
        %v5673 = vadd.f32 %v5444, %v5630
        %v5674 = vadd.f32 %v5445, %v5632
        %v5675 = vadd.f32 %v5446, %v5634
        %v5676 = vadd.f32 %v5447, %v5636
        %v5677 = vadd.f32 %v5448, %v5638
        %v5678 = vadd.f32 %v5449, %v5640
        %v5679 = vadd.f32 %v5450, %v5642
        %v5680 = vadd.f32 %v5451, %v5644
        %v5681 = vadd.f32 %v5452, %v5646
        %v5682 = vadd.f32 %v5453, %v5648
        %v5683 = vadd.f32 %v5454, %v5650
        %v5684 = vadd.f32 %v5455, %v5652
        %v5685 = vld [vmem:[#allocation4] sm:$0xfc]
        %v5686 = vld [vmem:[#allocation4 + $0x8] sm:$0xfc]
        %v5687 = vld [vmem:[#allocation4 + $0x80] sm:$0x3]
        %v5688 = vld [vmem:[#allocation4 + $0x88] sm:$0x3]
        %v5689 = vlaneseq
        %v5690 = vshrl.u32 %v5689, 7
        %v5691 = vsub.s32 2, %v5690
        %v5692 = vrot.slane %v5176, %v5691
        %v5693 = vlaneseq
        %v5694 = vshrl.u32 %v5693, 7
        %v5695 = vsub.s32 2, %v5694
        %v5696 = vrot.slane %v5177, %v5695
        %v5697 = vmul.f32 %v5685, %v5692
        %v5698 = vmul.f32 %v5686, %v5696
        %v5699 = vmul.f32 %v5286, %v5692
        %v5700 = vmul.f32 %v5287, %v5696
        %v5701 = vmul.f32 %v5288, %v5692
        %v5702 = vmul.f32 %v5289, %v5696
        %v5703 = vmul.f32 %v5290, %v5692
        %v5704 = vmul.f32 %v5291, %v5696
        %v5705 = vmul.f32 %v5292, %v5692
        %v5706 = vmul.f32 %v5293, %v5696
        %v5707 = vmul.f32 %v5294, %v5692
        %v5708 = vmul.f32 %v5295, %v5696
        %v5709 = vmul.f32 %v5296, %v5692
        %v5710 = vmul.f32 %v5297, %v5696
        %v5711 = vmul.f32 %v5298, %v5692
        %v5712 = vmul.f32 %v5299, %v5696
        %v5713 = vmul.f32 %v5687, %v5692
        %v5714 = vmul.f32 %v5688, %v5696
        %v5715 = vadd.f32 %v5697, 0.0
        %v5716 = vadd.f32 %v5698, 0.0
        %v5717 = vadd.f32 %v5699, 0.0
        %v5718 = vadd.f32 %v5700, 0.0
        %v5719 = vadd.f32 %v5701, 0.0
        %v5720 = vadd.f32 %v5702, 0.0
        %v5721 = vadd.f32 %v5703, 0.0
        %v5722 = vadd.f32 %v5704, 0.0
        %v5723 = vadd.f32 %v5705, 0.0
        %v5724 = vadd.f32 %v5706, 0.0
        %v5725 = vadd.f32 %v5707, 0.0
        %v5726 = vadd.f32 %v5708, 0.0
        %v5727 = vadd.f32 %v5709, 0.0
        %v5728 = vadd.f32 %v5710, 0.0
        %v5729 = vadd.f32 %v5711, 0.0
        %v5730 = vadd.f32 %v5712, 0.0
        %v5731 = vadd.f32 %v5713, 0.0
        %v5732 = vadd.f32 %v5714, 0.0
        %v5733 = vld [vmem:[#allocation4 + $0x10] sm:$0xfc]
        %v5734 = vld [vmem:[#allocation4 + $0x18] sm:$0xfc]
        %v5735 = vld [vmem:[#allocation4 + $0x90] sm:$0x3]
        %v5736 = vld [vmem:[#allocation4 + $0x98] sm:$0x3]
        %v5737 = vlaneseq
        %v5738 = vshrl.u32 %v5737, 7
        %v5739 = vsub.s32 5, %v5738
        %v5740 = vrot.slane %v5176, %v5739
        %v5741 = vlaneseq
        %v5742 = vshrl.u32 %v5741, 7
        %v5743 = vsub.s32 5, %v5742
        %v5744 = vrot.slane %v5177, %v5743
        %v5745 = vmul.f32 %v5733, %v5740
        %v5746 = vmul.f32 %v5734, %v5744
        %v5747 = vmul.f32 %v5288, %v5740
        %v5748 = vmul.f32 %v5289, %v5744
        %v5749 = vmul.f32 %v5290, %v5740
        %v5750 = vmul.f32 %v5291, %v5744
        %v5751 = vmul.f32 %v5292, %v5740
        %v5752 = vmul.f32 %v5293, %v5744
        %v5753 = vmul.f32 %v5294, %v5740
        %v5754 = vmul.f32 %v5295, %v5744
        %v5755 = vmul.f32 %v5296, %v5740
        %v5756 = vmul.f32 %v5297, %v5744
        %v5757 = vmul.f32 %v5298, %v5740
        %v5758 = vmul.f32 %v5299, %v5744
        %v5759 = vmul.f32 %v5340, %v5740
        %v5760 = vmul.f32 %v5341, %v5744
        %v5761 = vmul.f32 %v5735, %v5740
        %v5762 = vmul.f32 %v5736, %v5744
        %v5763 = vadd.f32 %v5715, %v5745
        %v5764 = vadd.f32 %v5716, %v5746
        %v5765 = vadd.f32 %v5717, %v5747
        %v5766 = vadd.f32 %v5718, %v5748
        %v5767 = vadd.f32 %v5719, %v5749
        %v5768 = vadd.f32 %v5720, %v5750
        %v5769 = vadd.f32 %v5721, %v5751
        %v5770 = vadd.f32 %v5722, %v5752
        %v5771 = vadd.f32 %v5723, %v5753
        %v5772 = vadd.f32 %v5724, %v5754
        %v5773 = vadd.f32 %v5725, %v5755
        %v5774 = vadd.f32 %v5726, %v5756
        %v5775 = vadd.f32 %v5727, %v5757
        %v5776 = vadd.f32 %v5728, %v5758
        %v5777 = vadd.f32 %v5729, %v5759
        %v5778 = vadd.f32 %v5730, %v5760
        %v5779 = vadd.f32 %v5731, %v5761
        %v5780 = vadd.f32 %v5732, %v5762
        %v5781 = vld [vmem:[#allocation4 + $0x20] sm:$0xfc]
        %v5782 = vld [vmem:[#allocation4 + $0x28] sm:$0xfc]
        %v5783 = vld [vmem:[#allocation4 + $0xa0] sm:$0x3]
        %v5784 = vld [vmem:[#allocation4 + $0xa8] sm:$0x3]
        %v5785 = vlaneseq
        %v5786 = vshrl.u32 %v5785, 7
        %v5787 = vsub.s32 0, %v5786
        %v5788 = vrot.slane %v5178, %v5787
        %v5789 = vlaneseq
        %v5790 = vshrl.u32 %v5789, 7
        %v5791 = vsub.s32 0, %v5790
        %v5792 = vrot.slane %v5179, %v5791
        %v5793 = vmul.f32 %v5781, %v5788
        %v5794 = vmul.f32 %v5782, %v5792
        %v5795 = vmul.f32 %v5290, %v5788
        %v5796 = vmul.f32 %v5291, %v5792
        %v5797 = vmul.f32 %v5292, %v5788
        %v5798 = vmul.f32 %v5293, %v5792
        %v5799 = vmul.f32 %v5294, %v5788
        %v5800 = vmul.f32 %v5295, %v5792
        %v5801 = vmul.f32 %v5296, %v5788
        %v5802 = vmul.f32 %v5297, %v5792
        %v5803 = vmul.f32 %v5298, %v5788
        %v5804 = vmul.f32 %v5299, %v5792
        %v5805 = vmul.f32 %v5340, %v5788
        %v5806 = vmul.f32 %v5341, %v5792
        %v5807 = vmul.f32 %v5382, %v5788
        %v5808 = vmul.f32 %v5383, %v5792
        %v5809 = vmul.f32 %v5783, %v5788
        %v5810 = vmul.f32 %v5784, %v5792
        %v5811 = vadd.f32 %v5763, %v5793
        %v5812 = vadd.f32 %v5764, %v5794
        %v5813 = vadd.f32 %v5765, %v5795
        %v5814 = vadd.f32 %v5766, %v5796
        %v5815 = vadd.f32 %v5767, %v5797
        %v5816 = vadd.f32 %v5768, %v5798
        %v5817 = vadd.f32 %v5769, %v5799
        %v5818 = vadd.f32 %v5770, %v5800
        %v5819 = vadd.f32 %v5771, %v5801
        %v5820 = vadd.f32 %v5772, %v5802
        %v5821 = vadd.f32 %v5773, %v5803
        %v5822 = vadd.f32 %v5774, %v5804
        %v5823 = vadd.f32 %v5775, %v5805
        %v5824 = vadd.f32 %v5776, %v5806
        %v5825 = vadd.f32 %v5777, %v5807
        %v5826 = vadd.f32 %v5778, %v5808
        %v5827 = vadd.f32 %v5779, %v5809
        %v5828 = vadd.f32 %v5780, %v5810
        %v5847 = vrot.slane %v5811, 2
        %v5848 = vrot.slane %v5813, 2
        %v5849 = vsel %vm1455, %v5847, %v5848
        %v5850 = vrot.slane %v5812, 2
        %v5851 = vrot.slane %v5814, 2
        %v5852 = vsel %vm1455, %v5850, %v5851
        %v5853 = vrot.slane %v5815, 2
        %v5854 = vsel %vm1455, %v5848, %v5853
        %v5855 = vrot.slane %v5816, 2
        %v5856 = vsel %vm1455, %v5851, %v5855
        %v5857 = vrot.slane %v5817, 2
        %v5858 = vsel %vm1455, %v5853, %v5857
        %v5859 = vrot.slane %v5818, 2
        %v5860 = vsel %vm1455, %v5855, %v5859
        %v5861 = vrot.slane %v5819, 2
        %v5862 = vsel %vm1455, %v5857, %v5861
        %v5863 = vrot.slane %v5820, 2
        %v5864 = vsel %vm1455, %v5859, %v5863
        %v5865 = vrot.slane %v5821, 2
        %v5866 = vsel %vm1455, %v5861, %v5865
        %v5867 = vrot.slane %v5822, 2
        %v5868 = vsel %vm1455, %v5863, %v5867
        %v5869 = vrot.slane %v5823, 2
        %v5870 = vsel %vm1455, %v5865, %v5869
        %v5871 = vrot.slane %v5824, 2
        %v5872 = vsel %vm1455, %v5867, %v5871
        %v5873 = vrot.slane %v5825, 2
        %v5874 = vsel %vm1455, %v5869, %v5873
        %v5875 = vrot.slane %v5826, 2
        %v5876 = vsel %vm1455, %v5871, %v5875
        %v5877 = vrot.slane %v5827, 2
        %v5878 = vsel %vm1455, %v5873, %v5877
        %v5879 = vrot.slane %v5828, 2
        %v5880 = vsel %vm1455, %v5875, %v5879
        %v5897 = vsel %vm5276, 0.0, %v5849
        %v5898 = vsel %vm5276, 0.0, %v5852
        %v5899 = vsel %vm5277, 0.0, %v5854
        %v5900 = vsel %vm5277, 0.0, %v5856
        %v5901 = vsel %vm5278, 0.0, %v5858
        %v5902 = vsel %vm5278, 0.0, %v5860
        %v5903 = vsel %vm5279, 0.0, %v5862
        %v5904 = vsel %vm5279, 0.0, %v5864
        %v5905 = vsel %vm5280, 0.0, %v5866
        %v5906 = vsel %vm5280, 0.0, %v5868
        %v5907 = vsel %vm5281, 0.0, %v5870
        %v5908 = vsel %vm5281, 0.0, %v5872
        %v5909 = vsel %vm5282, 0.0, %v5874
        %v5910 = vsel %vm5282, 0.0, %v5876
        %v5911 = vsel %vm5283, 0.0, %v5878
        %v5912 = vsel %vm5283, 0.0, %v5880
        %v5913 = vadd.f32 %v5669, %v5897
        %v5914 = vadd.f32 %v5670, %v5898
        %v5915 = vadd.f32 %v5671, %v5899
        %v5916 = vadd.f32 %v5672, %v5900
        %v5917 = vadd.f32 %v5673, %v5901
        %v5918 = vadd.f32 %v5674, %v5902
        %v5919 = vadd.f32 %v5675, %v5903
        %v5920 = vadd.f32 %v5676, %v5904
        %v5921 = vadd.f32 %v5677, %v5905
        %v5922 = vadd.f32 %v5678, %v5906
        %v5923 = vadd.f32 %v5679, %v5907
        %v5924 = vadd.f32 %v5680, %v5908
        %v5925 = vadd.f32 %v5681, %v5909
        %v5926 = vadd.f32 %v5682, %v5910
        %v5927 = vadd.f32 %v5683, %v5911
        %v5928 = vadd.f32 %v5684, %v5912
        %v5930 = vlaneseq
        %v5931 = vshrl.u32 %v5930, 7
        %v5932 = vsub.s32 0, %v5931
        %v5933 = vrot.slane %v5180, %v5932
        %v5934 = vlaneseq
        %v5935 = vshrl.u32 %v5934, 7
        %v5936 = vsub.s32 2, %v5935
        %v5937 = vrot.slane %v5180, %v5936
        %v5940 = vlaneseq
        %v5941 = vshrl.u32 %v5940, 7
        %v5942 = vsub.s32 0, %v5941
        %v5943 = vrot.slane %v5933, %v5942
        %v5944 = vlaneseq
        %v5945 = vshrl.u32 %v5944, 7
        %v5946 = vsub.s32 0, %v5945
        %v5947 = vrot.slane %v5937, %v5946
        %v5948 = vmul.f32 %v5913, %v5943
        %v5949 = vmul.f32 %v5914, %v5947
        %v5950 = vmul.f32 %v5915, %v5943
        %v5951 = vmul.f32 %v5916, %v5947
        %v5952 = vmul.f32 %v5917, %v5943
        %v5953 = vmul.f32 %v5918, %v5947
        %v5954 = vmul.f32 %v5919, %v5943
        %v5955 = vmul.f32 %v5920, %v5947
        %v5956 = vmul.f32 %v5921, %v5943
        %v5957 = vmul.f32 %v5922, %v5947
        %v5958 = vmul.f32 %v5923, %v5943
        %v5959 = vmul.f32 %v5924, %v5947
        %v5960 = vmul.f32 %v5925, %v5943
        %v5961 = vmul.f32 %v5926, %v5947
        %v5962 = vmul.f32 %v5927, %v5943
        %v5963 = vmul.f32 %v5928, %v5947
        %v5964 = vlaneseq
        %v5965 = vshrl.u32 %v5964, 7
        %v5966 = vsub.s32 1, %v5965
        %v5967 = vrot.slane %v5180, %v5966
        %v5968 = vlaneseq
        %v5969 = vshrl.u32 %v5968, 7
        %v5970 = vsub.s32 3, %v5969
        %v5971 = vrot.slane %v5180, %v5970
        %v5974 = vlaneseq
        %v5975 = vshrl.u32 %v5974, 7
        %v5976 = vsub.s32 1, %v5975
        %v5977 = vrot.slane %v5967, %v5976
        %v5978 = vlaneseq
        %v5979 = vshrl.u32 %v5978, 7
        %v5980 = vsub.s32 1, %v5979
        %v5981 = vrot.slane %v5971, %v5980
        %v5982 = vadd.f32 %v5948, %v5977
        %v5983 = vadd.f32 %v5949, %v5981
        %v5984 = vadd.f32 %v5950, %v5977
        %v5985 = vadd.f32 %v5951, %v5981
        %v5986 = vadd.f32 %v5952, %v5977
        %v5987 = vadd.f32 %v5953, %v5981
        %v5988 = vadd.f32 %v5954, %v5977
        %v5989 = vadd.f32 %v5955, %v5981
        %v5990 = vadd.f32 %v5956, %v5977
        %v5991 = vadd.f32 %v5957, %v5981
        %v5992 = vadd.f32 %v5958, %v5977
        %v5993 = vadd.f32 %v5959, %v5981
        %v5994 = vadd.f32 %v5960, %v5977
        %v5995 = vadd.f32 %v5961, %v5981
        %v5996 = vadd.f32 %v5962, %v5977
        %v5997 = vadd.f32 %v5963, %v5981
        %v5998 = vmax.f32 %v5982, 0.0
        %v5999 = vmax.f32 %v5983, 0.0
        %v6000 = vmax.f32 %v5984, 0.0
        %v6001 = vmax.f32 %v5985, 0.0
        %v6002 = vmax.f32 %v5986, 0.0
        %v6003 = vmax.f32 %v5987, 0.0
        %v6004 = vmax.f32 %v5988, 0.0
        %v6005 = vmax.f32 %v5989, 0.0
        %v6006 = vmax.f32 %v5990, 0.0
        %v6007 = vmax.f32 %v5991, 0.0
        %v6008 = vmax.f32 %v5992, 0.0
        %v6009 = vmax.f32 %v5993, 0.0
        %v6010 = vmax.f32 %v5994, 0.0
        %v6011 = vmax.f32 %v5995, 0.0
        %v6012 = vmax.f32 %v5996, 0.0
        %v6013 = vmax.f32 %v5997, 0.0
        %v6014 = vmin.f32 %v5998, 6.0
        %v6015 = vmin.f32 %v5999, 6.0
        %v6016 = vmin.f32 %v6000, 6.0
        %v6017 = vmin.f32 %v6001, 6.0
        %v6018 = vmin.f32 %v6002, 6.0
        %v6019 = vmin.f32 %v6003, 6.0
        %v6020 = vmin.f32 %v6004, 6.0
        %v6021 = vmin.f32 %v6005, 6.0
        %v6022 = vmin.f32 %v6006, 6.0
        %v6023 = vmin.f32 %v6007, 6.0
        %v6024 = vmin.f32 %v6008, 6.0
        %v6025 = vmin.f32 %v6009, 6.0
        %v6026 = vmin.f32 %v6010, 6.0
        %v6027 = vmin.f32 %v6011, 6.0
        %v6028 = vmin.f32 %v6012, 6.0
        %v6029 = vmin.f32 %v6013, 6.0
        %v6030 = vpack.c.bf16 %v6016, %v6014
        %v6031 = vpack.c.bf16 %v6017, %v6015
        %v6032 = vpack.c.bf16 %v6020, %v6018
        %v6033 = vpack.c.bf16 %v6021, %v6019
        %v6034 = vpack.c.bf16 %v6024, %v6022
        %v6035 = vpack.c.bf16 %v6025, %v6023
        %v6036 = vpack.c.bf16 %v6028, %v6026
        %v6037 = vpack.c.bf16 %v6029, %v6027
        %v6038 = vld [vmem:[%s37] sm:$0xf]
        %v6039 = vld [vmem:[%s37 + $0x4] sm:$0xf]
        %v6040 = vld [vmem:[%s37 + $0x8] sm:$0xf]
        %v6041 = vld [vmem:[%s37 + $0xc] sm:$0xf]
        %v6042 = vld [vmem:[%s37 + $0x10] sm:$0xf]
        %v6043 = vld [vmem:[%s37 + $0x14] sm:$0xf]
        %v6044 = vld [vmem:[%s37 + $0x18] sm:$0xf]
        %v6045 = vld [vmem:[%s37 + $0x1c] sm:$0xf]
        %v6046 = vld [vmem:[%s37 + $0x20] sm:$0xf]
        %v6047 = vld [vmem:[%s37 + $0x24] sm:$0xf]
        %v6048 = vld [vmem:[%s37 + $0x28] sm:$0xf]
        %v6049 = vld [vmem:[%s37 + $0x2c] sm:$0xf]
        %v6050 = vld [vmem:[%s37 + $0x30] sm:$0xf]
        %v6051 = vld [vmem:[%s37 + $0x34] sm:$0xf]
        %v6052 = vld [vmem:[%s37 + $0x38] sm:$0xf]
        %v6053 = vld [vmem:[%s37 + $0x3c] sm:$0xf]
        %v6054 = vld [vmem:[%s37 + $0x40] sm:$0xf]
        %v6055 = vld [vmem:[%s37 + $0x44] sm:$0xf]
        %v6074 = vunpack.c.l.b16 %v6038
        %v6075 = vunpack.c.l.b16 %v6039
        %v6076 = vunpack.c.l.b16 %v6040
        %v6077 = vunpack.c.l.b16 %v6041
        %v6078 = vunpack.c.l.b16 %v6042
        %v6079 = vunpack.c.l.b16 %v6043
        %v6080 = vunpack.c.l.b16 %v6044
        %v6081 = vunpack.c.l.b16 %v6045
        %v6082 = vunpack.c.l.b16 %v6046
        %v6083 = vunpack.c.l.b16 %v6047
        %v6084 = vunpack.c.l.b16 %v6048
        %v6085 = vunpack.c.l.b16 %v6049
        %v6086 = vunpack.c.l.b16 %v6050
        %v6087 = vunpack.c.l.b16 %v6051
        %v6088 = vunpack.c.l.b16 %v6052
        %v6089 = vunpack.c.l.b16 %v6053
        %v6090 = vunpack.c.l.b16 %v6054
        %v6091 = vunpack.c.l.b16 %v6055
        %v6092 = vpack.c.b16 %v6075, %v6074
        %v6093 = vpack.c.b16 %v6077, %v6076
        %v6094 = vpack.c.b16 %v6079, %v6078
        %v6095 = vpack.c.b16 %v6081, %v6080
        %v6096 = vpack.c.b16 %v6083, %v6082
        %v6097 = vpack.c.b16 %v6085, %v6084
        %v6098 = vpack.c.b16 %v6087, %v6086
        %v6099 = vpack.c.b16 %v6089, %v6088
        %v6100 = vpack.c.b16 %v6091, %v6090
        %v6111 = vsel %vm4006, %v6031, 0
        %v6114 = vsel %vm4006, %v6033, 0
        %v6117 = vsel %vm4006, %v6035, 0
        %v6120 = vsel %vm4006, %v6037, 0
        %6122 = vmatprep.subr.bf16.mxu0 0
        %6123 = vmatpush1.bf16.msra.mxu0 %v6099
        %6124 = vmatprep.subr.bf16.mxu0 0
        %6125 = vmatpush1.bf16.msra.mxu0 %v6098
        %6126 = vmatprep.subr.bf16.mxu0 0
        %6127 = vmatpush1.bf16.msra.mxu0 %v6097
        %6128 = vmatprep.subr.bf16.mxu0 0
        %6129 = vmatpush1.bf16.msra.mxu0 %v6096
        %6130 = vmatprep.subr.bf16.mxu0 0
        %6131 = vmatpush1.bf16.msra.mxu0 %v6095
        %6132 = vmatprep.subr.bf16.mxu0 0
        %6133 = vmatpush1.bf16.msra.mxu0 %v6094
        %6134 = vmatprep.subr.bf16.mxu0 0
        %6135 = vmatpush1.bf16.msra.mxu0 %v6093
        %6136 = vmatprep.subr.bf16.mxu0 0
        %6137 = vmatpush1.bf16.msra.mxu0 %v6092
        %6138 = vmatprep.subr.bf16.mxu0 0
        %6139 = vmatpush2.bf16.msra.mxu0 0
        %6140 = vmatprep.subr.bf16.mxu0 0
        %6141 = vmatpush2.bf16.msra.mxu0 0
        %6142 = vmatprep.subr.bf16.mxu0 0
        %6143 = vmatpush2.bf16.msra.mxu0 0
        %6144 = vmatprep.subr.bf16.mxu0 0
        %6145 = vmatpush2.bf16.msra.mxu0 0
        %6146 = vmatprep.subr.bf16.mxu0 0
        %6147 = vmatpush2.bf16.msra.mxu0 0
        %6148 = vmatprep.subr.bf16.mxu0 0
        %6149 = vmatpush2.bf16.msra.mxu0 0
        %6150 = vmatprep.subr.bf16.mxu0 0
        %6151 = vmatpush2.bf16.msra.mxu0 0
        %6152 = vmatprep.subr.bf16.mxu0 0
        %6153 = vmatpush2.bf16.msra.mxu0 %v6100
        %6154 = vmatprep.mubr.bf16.mxu0 %v6111
        %6155 = vmatmul.mubr.bf16.gmra.mxu0 %v6030
        %v6156 = vpop.f32.mrf.mxu0
        %v6157 = vadd.f32 0.0, %v6156
        %v6158 = vpop.f32.mrf.mxu0
        %v6159 = vpop.f32.mrf.mxu0
        %v6160 = vadd.f32 0.0, %v6159
        %v6161 = vpop.f32.mrf.mxu0
        %6162 = vmatprep.mubr.bf16.mxu0 %v6114
        %6163 = vmatmul.mubr.bf16.gmra.mxu0 %v6032
        %v6164 = vpop.f32.mrf.mxu0
        %v6165 = vadd.f32 0.0, %v6164
        %v6166 = vpop.f32.mrf.mxu0
        %v6167 = vpop.f32.mrf.mxu0
        %v6168 = vadd.f32 0.0, %v6167
        %v6169 = vpop.f32.mrf.mxu0
        %6170 = vmatprep.mubr.bf16.mxu0 %v6117
        %6171 = vmatmul.mubr.bf16.gmra.mxu0 %v6034
        %v6172 = vpop.f32.mrf.mxu0
        %v6173 = vadd.f32 0.0, %v6172
        %v6174 = vpop.f32.mrf.mxu0
        %v6175 = vpop.f32.mrf.mxu0
        %v6176 = vadd.f32 0.0, %v6175
        %v6177 = vpop.f32.mrf.mxu0
        %6178 = vmatprep.mubr.bf16.mxu0 %v6120
        %6179 = vmatmul.mubr.bf16.gmra.mxu0 %v6036
        %v6180 = vpop.f32.mrf.mxu0
        %v6181 = vadd.f32 0.0, %v6180
        %v6182 = vpop.f32.mrf.mxu0
        %v6183 = vpop.f32.mrf.mxu0
        %v6184 = vadd.f32 0.0, %v6183
        %v6185 = vpop.f32.mrf.mxu0
        %6186 = vdwg.mxu0
        %v6187 = vlaneseq
        %v6188 = vshrl.u32 %v6187, 7
        %v6189 = vsub.s32 0, %v6188
        %v6190 = vrot.slane %v5181, %v6189
        %v6191 = vmul.f32 %v6157, %v6190
        %v6192 = vmul.f32 %v6160, %v6190
        %v6193 = vmul.f32 %v6165, %v6190
        %v6194 = vmul.f32 %v6168, %v6190
        %v6195 = vmul.f32 %v6173, %v6190
        %v6196 = vmul.f32 %v6176, %v6190
        %v6197 = vmul.f32 %v6181, %v6190
        %v6198 = vmul.f32 %v6184, %v6190
        %v6199 = vlaneseq
        %v6200 = vshrl.u32 %v6199, 7
        %v6201 = vsub.s32 1, %v6200
        %v6202 = vrot.slane %v5181, %v6201
        %v6203 = vadd.f32 %v6191, %v6202
        %v6204 = vadd.f32 %v6192, %v6202
        %v6205 = vadd.f32 %v6193, %v6202
        %v6206 = vadd.f32 %v6194, %v6202
        %v6207 = vadd.f32 %v6195, %v6202
        %v6208 = vadd.f32 %v6196, %v6202
        %v6209 = vadd.f32 %v6197, %v6202
        %v6210 = vadd.f32 %v6198, %v6202
        %v6211 = vadd.f32 %v6203, %v4951
        %v6212 = vadd.f32 %v6204, %v4952
        %v6213 = vadd.f32 %v6205, %v4953
        %v6214 = vadd.f32 %v6206, %v4954
        %v6215 = vadd.f32 %v6207, %v4955
        %v6216 = vadd.f32 %v6208, %v4956
        %v6217 = vadd.f32 %v6209, %v4957
        %v6218 = vadd.f32 %v6210, %v4958
        %v6219 = vld [vmem:[%s41] sm:$0xf]
        %v6220 = vld [vmem:[%s41 + $0x4] sm:$0xf]
        %v6221 = vld [vmem:[%s41 + $0x8] sm:$0xf]
        %v6222 = vld [vmem:[%s41 + $0xc] sm:$0xf]
        %v6223 = vld [vmem:[%s41 + $0x10] sm:$0xf]
        %v6224 = vld [vmem:[%s41 + $0x14] sm:$0xf]
        %v6225 = vld [vmem:[%s41 + $0x18] sm:$0xf]
        %v6226 = vld [vmem:[%s41 + $0x1c] sm:$0xf]
        %v6227 = vpack.c.bf16 %v6212, %v6211
        %v6228 = vpack.c.bf16 %v6214, %v6213
        %v6229 = vpack.c.bf16 %v6216, %v6215
        %v6230 = vpack.c.bf16 %v6218, %v6217
        %v6239 = vunpack.c.l.b16 %v6219
        %v6240 = vunpack.c.l.b16 %v6220
        %v6241 = vunpack.c.l.b16 %v6221
        %v6242 = vunpack.c.l.b16 %v6222
        %v6243 = vunpack.c.l.b16 %v6223
        %v6244 = vunpack.c.l.b16 %v6224
        %v6245 = vunpack.c.l.b16 %v6225
        %v6246 = vunpack.c.l.b16 %v6226
        %v6247 = vpack.c.b16 %v6240, %v6239
        %v6248 = vpack.c.b16 %v6242, %v6241
        %v6249 = vpack.c.b16 %v6244, %v6243
        %v6250 = vpack.c.b16 %v6246, %v6245
        %vm6251 = vcmask 523264
        %v6253 = vsel %vm6251, %v6247, 0
        %v6256 = vsel %vm6251, %v6248, 0
        %v6259 = vsel %vm6251, %v6249, 0
        %v6262 = vsel %vm6251, %v6250, 0
        %6264 = vmatprep.subr.bf16.mxu0 0
        %6265 = vmatpush1.bf16.msra.mxu0 0
        %6266 = vmatprep.subr.bf16.mxu0 0
        %6267 = vmatpush1.bf16.msra.mxu0 0
        %6268 = vmatprep.subr.bf16.mxu0 0
        %6269 = vmatpush1.bf16.msra.mxu0 0
        %6270 = vmatprep.subr.bf16.mxu0 0
        %6271 = vmatpush1.bf16.msra.mxu0 0
        %6272 = vmatprep.subr.bf16.mxu0 0
        %6273 = vmatpush1.bf16.msra.mxu0 %v6230
        %6274 = vmatprep.subr.bf16.mxu0 0
        %6275 = vmatpush1.bf16.msra.mxu0 %v6229
        %6276 = vmatprep.subr.bf16.mxu0 0
        %6277 = vmatpush1.bf16.msra.mxu0 %v6228
        %6278 = vmatprep.subr.bf16.mxu0 0
        %6279 = vmatpush1.bf16.msra.mxu0 %v6227
        %6280 = vmatprep.subr.bf16.mxu0 0
        %6281 = vmatpush2.bf16.msra.mxu0 0
        %6282 = vmatprep.subr.bf16.mxu0 0
        %6283 = vmatpush2.bf16.msra.mxu0 0
        %6284 = vmatprep.subr.bf16.mxu0 0
        %6285 = vmatpush2.bf16.msra.mxu0 0
        %6286 = vmatprep.subr.bf16.mxu0 0
        %6287 = vmatpush2.bf16.msra.mxu0 0
        %6288 = vmatprep.subr.bf16.mxu0 0
        %6289 = vmatpush2.bf16.msra.mxu0 0
        %6290 = vmatprep.subr.bf16.mxu0 0
        %6291 = vmatpush2.bf16.msra.mxu0 0
        %6292 = vmatprep.subr.bf16.mxu0 0
        %6293 = vmatpush2.bf16.msra.mxu0 0
        %6294 = vmatprep.subr.bf16.mxu0 0
        %6295 = vmatpush2.bf16.msra.mxu0 0
        %6296 = vmatprep.mubr.bf16.mxu0 0
        %6297 = vmatmul.mubr.bf16.gmra.mxu0 %v6253
        %v6298 = vpop.f32.mrf.mxu0
        %v6299 = vadd.f32 0.0, %v6298
        %v6300 = vpop.f32.mrf.mxu0
        %v6301 = vpop.f32.mrf.mxu0
        %v6302 = vadd.f32 0.0, %v6301
        %v6303 = vpop.f32.mrf.mxu0
        %6304 = vmatprep.mubr.bf16.mxu0 0
        %6305 = vmatmul.mubr.bf16.gmra.mxu0 %v6256
        %v6306 = vpop.f32.mrf.mxu0
        %v6307 = vadd.f32 0.0, %v6306
        %v6308 = vpop.f32.mrf.mxu0
        %v6309 = vpop.f32.mrf.mxu0
        %v6310 = vadd.f32 0.0, %v6309
        %v6311 = vpop.f32.mrf.mxu0
        %6312 = vmatprep.mubr.bf16.mxu0 0
        %6313 = vmatmul.mubr.bf16.gmra.mxu0 %v6259
        %v6314 = vpop.f32.mrf.mxu0
        %v6315 = vadd.f32 0.0, %v6314
        %v6316 = vpop.f32.mrf.mxu0
        %v6317 = vpop.f32.mrf.mxu0
        %v6318 = vadd.f32 0.0, %v6317
        %v6319 = vpop.f32.mrf.mxu0
        %6320 = vmatprep.mubr.bf16.mxu0 0
        %6321 = vmatmul.mubr.bf16.gmra.mxu0 %v6262
        %v6322 = vpop.f32.mrf.mxu0
        %v6323 = vadd.f32 0.0, %v6322
        %v6324 = vpop.f32.mrf.mxu0
        %v6325 = vpop.f32.mrf.mxu0
        %v6326 = vadd.f32 0.0, %v6325
        %v6327 = vpop.f32.mrf.mxu0
        %6328 = vdwg.mxu0
        %v6329 = vpack.c.bf16 %v6302, %v6299
        %v6330 = vpack.c.bf16 %v6310, %v6307
        %v6331 = vpack.c.bf16 %v6318, %v6315
        %v6332 = vpack.c.bf16 %v6326, %v6323
        %v6333 = vld [vmem:[%s43] sm:$0xff]
        %v6334 = vld [vmem:[%s43 + $0x8] sm:$0xff]
        %v6335 = vld [vmem:[%s43 + $0x10] sm:$0xff]
        %v6339 = vunpack.c.l.b16 %v6333
        %v6340 = vunpack.c.h.b16 %v6333
        %v6341 = vunpack.c.l.b16 %v6334
        %v6342 = vunpack.c.h.b16 %v6334
        %v6343 = vunpack.c.l.b16 %v6335
        %v6344 = vunpack.c.h.b16 %v6335
        %v6345 = vpack.c.b16 %v6341, %v6339
        %v6346 = vpack.c.b16 %v6342, %v6340
        %v6347 = vpack.c.b16 %v6343, %v6343
        %v6348 = vpack.c.b16 %v6344, %v6344
        %v6352 = vsel %vm4981, %v6329, 0
        %v6355 = vsel %vm4981, %v6330, 0
        %v6358 = vsel %vm4981, %v6331, 0
        %v6361 = vsel %vm4981, %v6332, 0
        %v6364 = vsel %vm4994, %v6347, 0
        %v6367 = vsel %vm4994, %v6348, 0
        %6369 = vmatprep.subr.bf16.mxu0 0
        %6370 = vmatpush1.bf16.msra.mxu0 0
        %6371 = vmatprep.subr.bf16.mxu0 0
        %6372 = vmatpush1.bf16.msra.mxu0 0
        %6373 = vmatprep.subr.bf16.mxu0 0
        %6374 = vmatpush1.bf16.msra.mxu0 0
        %6375 = vmatprep.subr.bf16.mxu0 0
        %6376 = vmatpush1.bf16.msra.mxu0 0
        %6377 = vmatprep.subr.bf16.mxu0 0
        %6378 = vmatpush1.bf16.msra.mxu0 0
        %6379 = vmatprep.subr.bf16.mxu0 0
        %6380 = vmatpush1.bf16.msra.mxu0 0
        %6381 = vmatprep.subr.bf16.mxu0 %v6367
        %6382 = vmatpush1.bf16.msra.mxu0 %v6364
        %6383 = vmatprep.subr.bf16.mxu0 %v6346
        %6384 = vmatpush1.bf16.msra.mxu0 %v6345
        %6385 = vmatprep.subr.bf16.mxu0 0
        %6386 = vmatpush2.bf16.msra.mxu0 0
        %6387 = vmatprep.subr.bf16.mxu0 0
        %6388 = vmatpush2.bf16.msra.mxu0 0
        %6389 = vmatprep.subr.bf16.mxu0 0
        %6390 = vmatpush2.bf16.msra.mxu0 0
        %6391 = vmatprep.subr.bf16.mxu0 0
        %6392 = vmatpush2.bf16.msra.mxu0 0
        %6393 = vmatprep.subr.bf16.mxu0 0
        %6394 = vmatpush2.bf16.msra.mxu0 0
        %6395 = vmatprep.subr.bf16.mxu0 0
        %6396 = vmatpush2.bf16.msra.mxu0 0
        %6397 = vmatprep.subr.bf16.mxu0 0
        %6398 = vmatpush2.bf16.msra.mxu0 0
        %6399 = vmatprep.subr.bf16.mxu0 0
        %6400 = vmatpush2.bf16.msra.mxu0 0
        %6401 = vmatprep.mubr.bf16.mxu0 0
        %6402 = vmatmul.mubr.bf16.gmra.mxu0 %v6352
        %v6403 = vpop.f32.mrf.mxu0
        %v6404 = vadd.f32 0.0, %v6403
        %v6405 = vpop.f32.mrf.mxu0
        %v6406 = vadd.f32 0.0, %v6405
        %v6407 = vpop.f32.mrf.mxu0
        %v6408 = vadd.f32 0.0, %v6407
        %v6409 = vpop.f32.mrf.mxu0
        %v6410 = vadd.f32 0.0, %v6409
        %6411 = vmatprep.mubr.bf16.mxu0 0
        %6412 = vmatmul.mubr.bf16.gmra.mxu0 %v6355
        %v6413 = vpop.f32.mrf.mxu0
        %v6414 = vadd.f32 0.0, %v6413
        %v6415 = vpop.f32.mrf.mxu0
        %v6416 = vadd.f32 0.0, %v6415
        %v6417 = vpop.f32.mrf.mxu0
        %v6418 = vadd.f32 0.0, %v6417
        %v6419 = vpop.f32.mrf.mxu0
        %v6420 = vadd.f32 0.0, %v6419
        %6421 = vmatprep.mubr.bf16.mxu0 0
        %6422 = vmatmul.mubr.bf16.gmra.mxu0 %v6358
        %v6423 = vpop.f32.mrf.mxu0
        %v6424 = vadd.f32 0.0, %v6423
        %v6425 = vpop.f32.mrf.mxu0
        %v6426 = vadd.f32 0.0, %v6425
        %v6427 = vpop.f32.mrf.mxu0
        %v6428 = vadd.f32 0.0, %v6427
        %v6429 = vpop.f32.mrf.mxu0
        %v6430 = vadd.f32 0.0, %v6429
        %6431 = vmatprep.mubr.bf16.mxu0 0
        %6432 = vmatmul.mubr.bf16.gmra.mxu0 %v6361
        %v6433 = vpop.f32.mrf.mxu0
        %v6434 = vadd.f32 0.0, %v6433
        %v6435 = vpop.f32.mrf.mxu0
        %v6436 = vadd.f32 0.0, %v6435
        %v6437 = vpop.f32.mrf.mxu0
        %v6438 = vadd.f32 0.0, %v6437
        %v6439 = vpop.f32.mrf.mxu0
        %v6440 = vadd.f32 0.0, %v6439
        %6441 = vdwg.mxu0
        %v6442 = vld [vmem:[%s45] sm:$0xf]
        %v6444 = vlaneseq
        %v6445 = vshrl.u32 %v6444, 7
        %v6446 = vsub.s32 0, %v6445
        %v6447 = vrot.slane %v6442, %v6446
        %v6448 = vlaneseq
        %v6449 = vshrl.u32 %v6448, 7
        %v6450 = vsub.s32 2, %v6449
        %v6451 = vrot.slane %v6442, %v6450
        %v6454 = vlaneseq
        %v6455 = vshrl.u32 %v6454, 7
        %v6456 = vsub.s32 0, %v6455
        %v6457 = vrot.slane %v6447, %v6456
        %v6458 = vlaneseq
        %v6459 = vshrl.u32 %v6458, 7
        %v6460 = vsub.s32 0, %v6459
        %v6461 = vrot.slane %v6451, %v6460
        %v6462 = vmul.f32 %v6404, %v6457
        %v6463 = vmul.f32 %v6406, %v6461
        %v6464 = vmul.f32 %v6408, %v6457
        %v6465 = vmul.f32 %v6410, %v6461
        %v6466 = vmul.f32 %v6414, %v6457
        %v6467 = vmul.f32 %v6416, %v6461
        %v6468 = vmul.f32 %v6418, %v6457
        %v6469 = vmul.f32 %v6420, %v6461
        %v6470 = vmul.f32 %v6424, %v6457
        %v6471 = vmul.f32 %v6426, %v6461
        %v6472 = vmul.f32 %v6428, %v6457
        %v6473 = vmul.f32 %v6430, %v6461
        %v6474 = vmul.f32 %v6434, %v6457
        %v6475 = vmul.f32 %v6436, %v6461
        %v6476 = vmul.f32 %v6438, %v6457
        %v6477 = vmul.f32 %v6440, %v6461
        %v6478 = vlaneseq
        %v6479 = vshrl.u32 %v6478, 7
        %v6480 = vsub.s32 1, %v6479
        %v6481 = vrot.slane %v6442, %v6480
        %v6482 = vlaneseq
        %v6483 = vshrl.u32 %v6482, 7
        %v6484 = vsub.s32 3, %v6483
        %v6485 = vrot.slane %v6442, %v6484
        %v6488 = vlaneseq
        %v6489 = vshrl.u32 %v6488, 7
        %v6490 = vsub.s32 1, %v6489
        %v6491 = vrot.slane %v6481, %v6490
        %v6492 = vlaneseq
        %v6493 = vshrl.u32 %v6492, 7
        %v6494 = vsub.s32 1, %v6493
        %v6495 = vrot.slane %v6485, %v6494
        %v6496 = vadd.f32 %v6462, %v6491
        %v6497 = vadd.f32 %v6463, %v6495
        %v6498 = vadd.f32 %v6464, %v6491
        %v6499 = vadd.f32 %v6465, %v6495
        %v6500 = vadd.f32 %v6466, %v6491
        %v6501 = vadd.f32 %v6467, %v6495
        %v6502 = vadd.f32 %v6468, %v6491
        %v6503 = vadd.f32 %v6469, %v6495
        %v6504 = vadd.f32 %v6470, %v6491
        %v6505 = vadd.f32 %v6471, %v6495
        %v6506 = vadd.f32 %v6472, %v6491
        %v6507 = vadd.f32 %v6473, %v6495
        %v6508 = vadd.f32 %v6474, %v6491
        %v6509 = vadd.f32 %v6475, %v6495
        %v6510 = vadd.f32 %v6476, %v6491
        %v6511 = vadd.f32 %v6477, %v6495
        %v6512 = vmax.f32 %v6496, 0.0
        %v6513 = vmax.f32 %v6497, 0.0
        %v6514 = vmax.f32 %v6498, 0.0
        %v6515 = vmax.f32 %v6499, 0.0
        %v6516 = vmax.f32 %v6500, 0.0
        %v6517 = vmax.f32 %v6501, 0.0
        %v6518 = vmax.f32 %v6502, 0.0
        %v6519 = vmax.f32 %v6503, 0.0
        %v6520 = vmax.f32 %v6504, 0.0
        %v6521 = vmax.f32 %v6505, 0.0
        %v6522 = vmax.f32 %v6506, 0.0
        %v6523 = vmax.f32 %v6507, 0.0
        %v6524 = vmax.f32 %v6508, 0.0
        %v6525 = vmax.f32 %v6509, 0.0
        %v6526 = vmax.f32 %v6510, 0.0
        %v6527 = vmax.f32 %v6511, 0.0
        %v6528 = vmin.f32 %v6512, 6.0
        %v6529 = vmin.f32 %v6513, 6.0
        %v6530 = vmin.f32 %v6514, 6.0
        %v6531 = vmin.f32 %v6515, 6.0
        %v6532 = vmin.f32 %v6516, 6.0
        %v6533 = vmin.f32 %v6517, 6.0
        %v6534 = vmin.f32 %v6518, 6.0
        %v6535 = vmin.f32 %v6519, 6.0
        %v6536 = vmin.f32 %v6520, 6.0
        %v6537 = vmin.f32 %v6521, 6.0
        %v6538 = vmin.f32 %v6522, 6.0
        %v6539 = vmin.f32 %v6523, 6.0
        %v6540 = vmin.f32 %v6524, 6.0
        %v6541 = vmin.f32 %v6525, 6.0
        %v6542 = vmin.f32 %v6526, 6.0
        %v6543 = vmin.f32 %v6527, 6.0
        %v6544 = vld [vmem:[%s47] sm:$0xff]
        %v6545 = vld [vmem:[%s47 + $0x8] sm:$0xff]
        %v6546 = vld [vmem:[%s47 + $0x10] sm:$0x1]
        %v6547 = vld [vmem:[%s47 + $0x18] sm:$0x1]
        %v6548 = vld [vmem:[%s49] sm:$0xf]
        %v6549 = vld [vmem:[%s53] sm:$0x3]
        %6550 = vst [vmem:[#allocation5] sm:$0x1f] 0.0
        %vm6551 = vcmask 126976
        %6552 = vst.msk [vmem:[#allocation5 + $0x8] sm:$0x1f] %vm6551, 0.0
        %v6557 = vrot.slane %v6528, 3
        %v6558 = vrot.slane %v6529, 3
        %v6559 = vrot.slane %v6530, 3
        %v6560 = vsel %vm1454, %v6557, %v6559
        %v6561 = vrot.slane %v6531, 3
        %v6562 = vsel %vm1454, %v6558, %v6561
        %6569 = vst [vmem:[#allocation5] sm:$0xe0] %v6557
        %vm6570 = vcmask 130053
        %6571 = vst.msk [vmem:[#allocation5 + $0x8] sm:$0xe0] %vm6570, %v6558
        %6572 = vst [vmem:[#allocation5 + $0x10] sm:$0xff] %v6560
        %6573 = vst.msk [vmem:[#allocation5 + $0x18] sm:$0xff] %vm4006, %v6562
        %6574 = vst [vmem:[#allocation5 + $0x20] sm:$0x1f] %v6559
        %6575 = vst.msk [vmem:[#allocation5 + $0x28] sm:$0x1f] %vm6551, %v6561
        %6576 = vst [vmem:[#allocation5 + $0x20] sm:$0xe0] 0.0
        %6577 = vst.msk [vmem:[#allocation5 + $0x28] sm:$0xe0] %vm6570, 0.0
        %6578 = vst [vmem:[#allocation5 + $0x30] sm:$0x3] 0.0
        %6579 = vst.msk [vmem:[#allocation5 + $0x38] sm:$0x3] %vm5274, 0.0
        %vm6584 = vcmask 1041408
        %v6585 = vrot.slane %v6532, 6
        %v6586 = vrot.slane %v6533, 6
        %v6587 = vrot.slane %v6534, 6
        %v6588 = vsel %vm6584, %v6585, %v6587
        %v6589 = vrot.slane %v6535, 6
        %v6590 = vsel %vm6584, %v6586, %v6589
        %6597 = vst [vmem:[#allocation5 + $0x30] sm:$0xfc] %v6585
        %vm6598 = vcmask 130050
        %6599 = vst.msk [vmem:[#allocation5 + $0x38] sm:$0xfc] %vm6598, %v6586
        %6600 = vst [vmem:[#allocation5 + $0x40] sm:$0xff] %v6588
        %6601 = vst.msk [vmem:[#allocation5 + $0x48] sm:$0xff] %vm4006, %v6590
        %6602 = vst [vmem:[#allocation5 + $0x50] sm:$0x3] %v6587
        %6603 = vst.msk [vmem:[#allocation5 + $0x58] sm:$0x3] %vm5274, %v6589
        %6604 = vst [vmem:[#allocation5 + $0x50] sm:$0x7c] 0.0
        %vm6605 = vcmask 129026
        %6606 = vst.msk [vmem:[#allocation5 + $0x58] sm:$0x7c] %vm6605, 0.0
        %v6611 = vrot.slane %v6536, 1
        %v6612 = vrot.slane %v6537, 1
        %v6613 = vrot.slane %v6538, 1
        %v6614 = vsel %vm5618, %v6611, %v6613
        %v6615 = vrot.slane %v6539, 1
        %v6616 = vsel %vm5618, %v6612, %v6615
        %6623 = vst [vmem:[#allocation5 + $0x50] sm:$0x80] %v6611
        %vm6624 = vcmask 130055
        %6625 = vst.msk [vmem:[#allocation5 + $0x58] sm:$0x80] %vm6624, %v6612
        %6626 = vst [vmem:[#allocation5 + $0x60] sm:$0xff] %v6614
        %6627 = vst.msk [vmem:[#allocation5 + $0x68] sm:$0xff] %vm4006, %v6616
        %6628 = vst [vmem:[#allocation5 + $0x70] sm:$0x7f] %v6613
        %vm6629 = vcmask 129024
        %6630 = vst.msk [vmem:[#allocation5 + $0x78] sm:$0x7f] %vm6629, %v6615
        %6631 = vst [vmem:[#allocation5 + $0x70] sm:$0x80] 0.0
        %6632 = vst.msk [vmem:[#allocation5 + $0x78] sm:$0x80] %vm6624, 0.0
        %6633 = vst [vmem:[#allocation5 + $0x80] sm:$0xf] 0.0
        %vm6634 = vcmask 125952
        %6635 = vst.msk [vmem:[#allocation5 + $0x88] sm:$0xf] %vm6634, 0.0
        %v6640 = vrot.slane %v6540, 4
        %v6641 = vrot.slane %v6541, 4
        %v6642 = vrot.slane %v6542, 4
        %v6643 = vsel %vm4994, %v6640, %v6642
        %v6644 = vrot.slane %v6543, 4
        %v6645 = vsel %vm4994, %v6641, %v6644
        %6652 = vst [vmem:[#allocation5 + $0x80] sm:$0xf0] %v6640
        %vm6653 = vcmask 130052
        %6654 = vst.msk [vmem:[#allocation5 + $0x88] sm:$0xf0] %vm6653, %v6641
        %6655 = vst [vmem:[#allocation5 + $0x90] sm:$0xff] %v6643
        %6656 = vst.msk [vmem:[#allocation5 + $0x98] sm:$0xff] %vm4006, %v6645
        %6657 = vst [vmem:[#allocation5 + $0xa0] sm:$0xf] %v6642
        %6658 = vst.msk [vmem:[#allocation5 + $0xa8] sm:$0xf] %vm6634, %v6644
        %vm6659 = vcmp.lt.s32.totalorder %v1804, 0
        %v6660 = vsub.s32 0, %v1804
        %v6661 = vsel %vm6659, %v6660, %v1804
        %v6662 = vshrl.u32 %v6661, 2
        %v6663 = vand.u32 %v6661, 3
        %v6664 = vsub.s32 0, %v6663
        %v6665 = vsel %vm6659, %v6664, %v6663
        %vm6666 = vcmp.lt.s32.totalorder %v1805, 0
        %v6667 = vsub.s32 0, %v1805
        %v6668 = vsel %vm6666, %v6667, %v1805
        %v6669 = vshrl.u32 %v6668, 2
        %v6670 = vand.u32 %v6668, 3
        %v6671 = vsub.s32 0, %v6670
        %v6672 = vsel %vm6666, %v6671, %v6670
        %vm6673 = vcmp.ne.s32.totalorder %v6665, 0
        %vm6674 = vcmp.ne.s32.totalorder %v6672, 0
        %vm6675 = vcmp.lt.s32.totalorder %v6665, 0
        %vm6676 = vcmp.lt.s32.totalorder %v6672, 0
        %vm6677 = vmand %vm6675, %vm6673
        %vm6678 = vmand %vm6676, %vm6674
        %v6679 = vadd.s32 %v6665, 4
        %v6680 = vadd.s32 %v6672, 4
        %v6681 = vsel %vm6677, %v6679, %v6665
        %v6682 = vsel %vm6678, %v6680, %v6672
        %vm6683 = vcmp.eq.s32.totalorder %v6681, 0
        %vm6684 = vcmp.eq.s32.totalorder %v6682, 0
        %v6685 = vld [vmem:[#allocation5 + $0x70] sm:$0x80]
        %v6686 = vld [vmem:[#allocation5 + $0x78] sm:$0x80]
        %v6687 = vld [vmem:[#allocation5 + $0x80] sm:$0xff]
        %v6688 = vld [vmem:[#allocation5 + $0x88] sm:$0xff]
        %v6689 = vld [vmem:[#allocation5 + $0x90] sm:$0x7f]
        %v6690 = vld [vmem:[#allocation5 + $0x98] sm:$0x7f]
        %v6691 = vlaneseq
        %v6692 = vshrl.u32 %v6691, 7
        %v6693 = vsub.s32 0, %v6692
        %v6694 = vrot.slane %v6544, %v6693
        %v6695 = vlaneseq
        %v6696 = vshrl.u32 %v6695, 7
        %v6697 = vsub.s32 0, %v6696
        %v6698 = vrot.slane %v6545, %v6697
        %v6699 = vmul.f32 %v6685, %v6694
        %v6700 = vmul.f32 %v6686, %v6698
        %v6701 = vmul.f32 %v6687, %v6694
        %v6702 = vmul.f32 %v6688, %v6698
        %v6703 = vmul.f32 %v6689, %v6694
        %v6704 = vmul.f32 %v6690, %v6698
        %v6705 = vadd.f32 %v6699, 0.0
        %v6706 = vadd.f32 %v6700, 0.0
        %v6707 = vadd.f32 %v6701, 0.0
        %v6708 = vadd.f32 %v6702, 0.0
        %v6709 = vadd.f32 %v6703, 0.0
        %v6710 = vadd.f32 %v6704, 0.0
        %v6711 = vld [vmem:[#allocation5 + $0x30] sm:$0xfe]
        %v6712 = vld [vmem:[#allocation5 + $0x38] sm:$0xfe]
        %v6713 = vld [vmem:[#allocation5 + $0x40] sm:$0xff]
        %v6714 = vld [vmem:[#allocation5 + $0x48] sm:$0xff]
        %v6715 = vld [vmem:[#allocation5 + $0x50] sm:$0x1]
        %v6716 = vld [vmem:[#allocation5 + $0x58] sm:$0x1]
        %v6717 = vlaneseq
        %v6718 = vshrl.u32 %v6717, 7
        %v6719 = vsub.s32 3, %v6718
        %v6720 = vrot.slane %v6544, %v6719
        %v6721 = vlaneseq
        %v6722 = vshrl.u32 %v6721, 7
        %v6723 = vsub.s32 3, %v6722
        %v6724 = vrot.slane %v6545, %v6723
        %v6725 = vmul.f32 %v6711, %v6720
        %v6726 = vmul.f32 %v6712, %v6724
        %v6727 = vmul.f32 %v6713, %v6720
        %v6728 = vmul.f32 %v6714, %v6724
        %v6729 = vmul.f32 %v6715, %v6720
        %v6730 = vmul.f32 %v6716, %v6724
        %v6737 = vrot.slane %v6725, 2
        %v6738 = vrot.slane %v6726, 2
        %v6739 = vrot.slane %v6727, 2
        %v6740 = vsel %vm1455, %v6737, %v6739
        %v6741 = vrot.slane %v6728, 2
        %v6742 = vsel %vm1455, %v6738, %v6741
        %v6743 = vrot.slane %v6729, 2
        %v6744 = vsel %vm1455, %v6739, %v6743
        %v6745 = vrot.slane %v6730, 2
        %v6746 = vsel %vm1455, %v6741, %v6745
        %v6753 = vadd.f32 %v6705, %v6737
        %v6754 = vadd.f32 %v6706, %v6738
        %v6755 = vadd.f32 %v6707, %v6740
        %v6756 = vadd.f32 %v6708, %v6742
        %v6757 = vadd.f32 %v6709, %v6744
        %v6758 = vadd.f32 %v6710, %v6746
        %v6759 = vld [vmem:[#allocation5 + $0x80] sm:$0xf8]
        %v6760 = vld [vmem:[#allocation5 + $0x88] sm:$0xf8]
        %v6761 = vld [vmem:[#allocation5 + $0x90] sm:$0xff]
        %v6762 = vld [vmem:[#allocation5 + $0x98] sm:$0xff]
        %v6763 = vld [vmem:[#allocation5 + $0xa0] sm:$0x7]
        %v6764 = vld [vmem:[#allocation5 + $0xa8] sm:$0x7]
        %v6765 = vlaneseq
        %v6766 = vshrl.u32 %v6765, 7
        %v6767 = vsub.s32 6, %v6766
        %v6768 = vrot.slane %v6544, %v6767
        %v6769 = vlaneseq
        %v6770 = vshrl.u32 %v6769, 7
        %v6771 = vsub.s32 6, %v6770
        %v6772 = vrot.slane %v6545, %v6771
        %v6773 = vmul.f32 %v6759, %v6768
        %v6774 = vmul.f32 %v6760, %v6772
        %v6775 = vmul.f32 %v6761, %v6768
        %v6776 = vmul.f32 %v6762, %v6772
        %v6777 = vmul.f32 %v6763, %v6768
        %v6778 = vmul.f32 %v6764, %v6772
        %v6785 = vrot.slane %v6773, 4
        %v6786 = vrot.slane %v6774, 4
        %v6787 = vrot.slane %v6775, 4
        %v6788 = vsel %vm4994, %v6785, %v6787
        %v6789 = vrot.slane %v6776, 4
        %v6790 = vsel %vm4994, %v6786, %v6789
        %v6791 = vrot.slane %v6777, 4
        %v6792 = vsel %vm4994, %v6787, %v6791
        %v6793 = vrot.slane %v6778, 4
        %v6794 = vsel %vm4994, %v6789, %v6793
        %v6801 = vadd.f32 %v6753, %v6785
        %v6802 = vadd.f32 %v6754, %v6786
        %v6803 = vadd.f32 %v6755, %v6788
        %v6804 = vadd.f32 %v6756, %v6790
        %v6805 = vadd.f32 %v6757, %v6792
        %v6806 = vadd.f32 %v6758, %v6794
        %v6813 = vrot.slane %v6801, 7
        %v6814 = vrot.slane %v6803, 7
        %v6815 = vsel %vm5203, %v6813, %v6814
        %v6816 = vrot.slane %v6802, 7
        %v6817 = vrot.slane %v6804, 7
        %v6818 = vsel %vm5203, %v6816, %v6817
        %v6819 = vrot.slane %v6805, 7
        %v6820 = vsel %vm5203, %v6814, %v6819
        %v6821 = vrot.slane %v6806, 7
        %v6822 = vsel %vm5203, %v6817, %v6821
        %v6827 = vsel %vm6683, 0.0, %v6815
        %v6828 = vsel %vm6683, 0.0, %v6818
        %v6829 = vsel %vm6684, 0.0, %v6820
        %v6830 = vsel %vm6684, 0.0, %v6822
        %v6831 = vadd.f32 %v6827, 0.0
        %v6832 = vadd.f32 %v6828, 0.0
        %v6833 = vadd.f32 %v6829, 0.0
        %v6834 = vadd.f32 %v6830, 0.0
        %v6835 = vld [vmem:[#allocation5 + $0x50] sm:$0xf8]
        %v6836 = vld [vmem:[#allocation5 + $0x58] sm:$0xf8]
        %v6837 = vld [vmem:[#allocation5 + $0x60] sm:$0xff]
        %v6838 = vld [vmem:[#allocation5 + $0x68] sm:$0xff]
        %v6839 = vld [vmem:[#allocation5 + $0x70] sm:$0x7]
        %v6840 = vld [vmem:[#allocation5 + $0x78] sm:$0x7]
        %v6841 = vlaneseq
        %v6842 = vshrl.u32 %v6841, 7
        %v6843 = vsub.s32 1, %v6842
        %v6844 = vrot.slane %v6544, %v6843
        %v6845 = vlaneseq
        %v6846 = vshrl.u32 %v6845, 7
        %v6847 = vsub.s32 1, %v6846
        %v6848 = vrot.slane %v6545, %v6847
        %v6849 = vmul.f32 %v6835, %v6844
        %v6850 = vmul.f32 %v6836, %v6848
        %v6851 = vmul.f32 %v6837, %v6844
        %v6852 = vmul.f32 %v6838, %v6848
        %v6853 = vmul.f32 %v6839, %v6844
        %v6854 = vmul.f32 %v6840, %v6848
        %v6855 = vadd.f32 %v6849, 0.0
        %v6856 = vadd.f32 %v6850, 0.0
        %v6857 = vadd.f32 %v6851, 0.0
        %v6858 = vadd.f32 %v6852, 0.0
        %v6859 = vadd.f32 %v6853, 0.0
        %v6860 = vadd.f32 %v6854, 0.0
        %v6861 = vld [vmem:[#allocation5] sm:$0xe0]
        %v6862 = vld [vmem:[#allocation5 + $0x8] sm:$0xe0]
        %v6863 = vld [vmem:[#allocation5 + $0x10] sm:$0xff]
        %v6864 = vld [vmem:[#allocation5 + $0x18] sm:$0xff]
        %v6865 = vld [vmem:[#allocation5 + $0x20] sm:$0x1f]
        %v6866 = vld [vmem:[#allocation5 + $0x28] sm:$0x1f]
        %v6867 = vlaneseq
        %v6868 = vshrl.u32 %v6867, 7
        %v6869 = vsub.s32 4, %v6868
        %v6870 = vrot.slane %v6544, %v6869
        %v6871 = vlaneseq
        %v6872 = vshrl.u32 %v6871, 7
        %v6873 = vsub.s32 4, %v6872
        %v6874 = vrot.slane %v6545, %v6873
        %v6875 = vmul.f32 %v6861, %v6870
        %v6876 = vmul.f32 %v6862, %v6874
        %v6877 = vmul.f32 %v6863, %v6870
        %v6878 = vmul.f32 %v6864, %v6874
        %v6879 = vmul.f32 %v6865, %v6870
        %v6880 = vmul.f32 %v6866, %v6874
        %v6887 = vrot.slane %v6875, 2
        %v6888 = vrot.slane %v6877, 2
        %v6889 = vsel %vm1455, %v6887, %v6888
        %v6890 = vrot.slane %v6876, 2
        %v6891 = vrot.slane %v6878, 2
        %v6892 = vsel %vm1455, %v6890, %v6891
        %v6893 = vrot.slane %v6879, 2
        %v6894 = vsel %vm1455, %v6888, %v6893
        %v6895 = vrot.slane %v6880, 2
        %v6896 = vsel %vm1455, %v6891, %v6895
        %v6903 = vadd.f32 %v6855, %v6889
        %v6904 = vadd.f32 %v6856, %v6892
        %v6905 = vadd.f32 %v6857, %v6894
        %v6906 = vadd.f32 %v6858, %v6896
        %v6907 = vadd.f32 %v6859, %v6893
        %v6908 = vadd.f32 %v6860, %v6895
        %v6909 = vld [vmem:[#allocation5 + $0x50] sm:$0x80]
        %v6910 = vld [vmem:[#allocation5 + $0x58] sm:$0x80]
        %v6911 = vld [vmem:[#allocation5 + $0x70] sm:$0x7f]
        %v6912 = vld [vmem:[#allocation5 + $0x78] sm:$0x7f]
        %v6913 = vlaneseq
        %v6914 = vshrl.u32 %v6913, 7
        %v6915 = vsub.s32 7, %v6914
        %v6916 = vrot.slane %v6544, %v6915
        %v6917 = vlaneseq
        %v6918 = vshrl.u32 %v6917, 7
        %v6919 = vsub.s32 7, %v6918
        %v6920 = vrot.slane %v6545, %v6919
        %v6921 = vmul.f32 %v6909, %v6916
        %v6922 = vmul.f32 %v6910, %v6920
        %v6923 = vmul.f32 %v6837, %v6916
        %v6924 = vmul.f32 %v6838, %v6920
        %v6925 = vmul.f32 %v6911, %v6916
        %v6926 = vmul.f32 %v6912, %v6920
        %v6933 = vrot.slane %v6921, 4
        %v6934 = vrot.slane %v6923, 4
        %v6935 = vsel %vm4994, %v6933, %v6934
        %v6936 = vrot.slane %v6922, 4
        %v6937 = vrot.slane %v6924, 4
        %v6938 = vsel %vm4994, %v6936, %v6937
        %v6939 = vrot.slane %v6925, 4
        %v6940 = vsel %vm4994, %v6934, %v6939
        %v6941 = vrot.slane %v6926, 4
        %v6942 = vsel %vm4994, %v6937, %v6941
        %v6949 = vadd.f32 %v6903, %v6935
        %v6950 = vadd.f32 %v6904, %v6938
        %v6951 = vadd.f32 %v6905, %v6940
        %v6952 = vadd.f32 %v6906, %v6942
        %v6953 = vadd.f32 %v6907, %v6939
        %v6954 = vadd.f32 %v6908, %v6941
        %v6961 = vrot.slane %v6949, 3
        %v6962 = vrot.slane %v6951, 3
        %v6963 = vsel %vm1454, %v6961, %v6962
        %v6964 = vrot.slane %v6950, 3
        %v6965 = vrot.slane %v6952, 3
        %v6966 = vsel %vm1454, %v6964, %v6965
        %v6967 = vrot.slane %v6953, 3
        %v6968 = vsel %vm1454, %v6962, %v6967
        %v6969 = vrot.slane %v6954, 3
        %v6970 = vsel %vm1454, %v6965, %v6969
        %v6975 = vadd.f32 %v6831, %v6963
        %v6976 = vadd.f32 %v6832, %v6966
        %v6977 = vadd.f32 %v6833, %v6968
        %v6978 = vadd.f32 %v6834, %v6970
        %v6979 = vlaneseq
        %v6980 = vshrl.u32 %v6979, 7
        %v6981 = vsub.s32 2, %v6980
        %v6982 = vrot.slane %v6544, %v6981
        %v6983 = vlaneseq
        %v6984 = vshrl.u32 %v6983, 7
        %v6985 = vsub.s32 2, %v6984
        %v6986 = vrot.slane %v6545, %v6985
        %v6987 = vmul.f32 %v6687, %v6982
        %v6988 = vmul.f32 %v6688, %v6986
        %v6989 = vmul.f32 %v6761, %v6982
        %v6990 = vmul.f32 %v6762, %v6986
        %v6991 = vadd.f32 %v6987, 0.0
        %v6992 = vadd.f32 %v6988, 0.0
        %v6993 = vadd.f32 %v6989, 0.0
        %v6994 = vadd.f32 %v6990, 0.0
        %v6995 = vld [vmem:[#allocation5 + $0x30] sm:$0xfc]
        %v6996 = vld [vmem:[#allocation5 + $0x38] sm:$0xfc]
        %v6997 = vld [vmem:[#allocation5 + $0x50] sm:$0x3]
        %v6998 = vld [vmem:[#allocation5 + $0x58] sm:$0x3]
        %v6999 = vlaneseq
        %v7000 = vshrl.u32 %v6999, 7
        %v7001 = vsub.s32 5, %v7000
        %v7002 = vrot.slane %v6544, %v7001
        %v7003 = vlaneseq
        %v7004 = vshrl.u32 %v7003, 7
        %v7005 = vsub.s32 5, %v7004
        %v7006 = vrot.slane %v6545, %v7005
        %v7007 = vmul.f32 %v6995, %v7002
        %v7008 = vmul.f32 %v6996, %v7006
        %v7009 = vmul.f32 %v6713, %v7002
        %v7010 = vmul.f32 %v6714, %v7006
        %v7011 = vmul.f32 %v6997, %v7002
        %v7012 = vmul.f32 %v6998, %v7006
        %v7019 = vrot.slane %v7007, 2
        %v7020 = vrot.slane %v7009, 2
        %v7021 = vsel %vm1455, %v7019, %v7020
        %v7022 = vrot.slane %v7008, 2
        %v7023 = vrot.slane %v7010, 2
        %v7024 = vsel %vm1455, %v7022, %v7023
        %v7025 = vrot.slane %v7011, 2
        %v7026 = vsel %vm1455, %v7020, %v7025
        %v7027 = vrot.slane %v7012, 2
        %v7028 = vsel %vm1455, %v7023, %v7027
        %v7033 = vadd.f32 %v6991, %v7021
        %v7034 = vadd.f32 %v6992, %v7024
        %v7035 = vadd.f32 %v6993, %v7026
        %v7036 = vadd.f32 %v6994, %v7028
        %v7037 = vld [vmem:[#allocation5 + $0x80] sm:$0xf0]
        %v7038 = vld [vmem:[#allocation5 + $0x88] sm:$0xf0]
        %v7039 = vld [vmem:[#allocation5 + $0xa0] sm:$0xf]
        %v7040 = vld [vmem:[#allocation5 + $0xa8] sm:$0xf]
        %v7041 = vlaneseq
        %v7042 = vshrl.u32 %v7041, 7
        %v7043 = vsub.s32 0, %v7042
        %v7044 = vrot.slane %v6546, %v7043
        %v7045 = vlaneseq
        %v7046 = vshrl.u32 %v7045, 7
        %v7047 = vsub.s32 0, %v7046
        %v7048 = vrot.slane %v6547, %v7047
        %v7049 = vmul.f32 %v7037, %v7044
        %v7050 = vmul.f32 %v7038, %v7048
        %v7051 = vmul.f32 %v6761, %v7044
        %v7052 = vmul.f32 %v6762, %v7048
        %v7053 = vmul.f32 %v7039, %v7044
        %v7054 = vmul.f32 %v7040, %v7048
        %v7061 = vrot.slane %v7049, 4
        %v7062 = vrot.slane %v7051, 4
        %v7063 = vsel %vm4994, %v7061, %v7062
        %v7064 = vrot.slane %v7050, 4
        %v7065 = vrot.slane %v7052, 4
        %v7066 = vsel %vm4994, %v7064, %v7065
        %v7067 = vrot.slane %v7053, 4
        %v7068 = vsel %vm4994, %v7062, %v7067
        %v7069 = vrot.slane %v7054, 4
        %v7070 = vsel %vm4994, %v7065, %v7069
        %v7075 = vadd.f32 %v7033, %v7063
        %v7076 = vadd.f32 %v7034, %v7066
        %v7077 = vadd.f32 %v7035, %v7068
        %v7078 = vadd.f32 %v7036, %v7070
        %v7079 = vadd.f32 %v6975, %v7075
        %v7080 = vadd.f32 %v6976, %v7076
        %v7081 = vadd.f32 %v6977, %v7077
        %v7082 = vadd.f32 %v6978, %v7078
        %v7084 = vlaneseq
        %v7085 = vshrl.u32 %v7084, 7
        %v7086 = vsub.s32 0, %v7085
        %v7087 = vrot.slane %v6548, %v7086
        %v7088 = vlaneseq
        %v7089 = vshrl.u32 %v7088, 7
        %v7090 = vsub.s32 2, %v7089
        %v7091 = vrot.slane %v6548, %v7090
        %v7094 = vlaneseq
        %v7095 = vshrl.u32 %v7094, 7
        %v7096 = vsub.s32 0, %v7095
        %v7097 = vrot.slane %v7087, %v7096
        %v7098 = vlaneseq
        %v7099 = vshrl.u32 %v7098, 7
        %v7100 = vsub.s32 0, %v7099
        %v7101 = vrot.slane %v7091, %v7100
        %v7102 = vmul.f32 %v7079, %v7097
        %v7103 = vmul.f32 %v7080, %v7101
        %v7104 = vmul.f32 %v7081, %v7097
        %v7105 = vmul.f32 %v7082, %v7101
        %v7106 = vlaneseq
        %v7107 = vshrl.u32 %v7106, 7
        %v7108 = vsub.s32 1, %v7107
        %v7109 = vrot.slane %v6548, %v7108
        %v7110 = vlaneseq
        %v7111 = vshrl.u32 %v7110, 7
        %v7112 = vsub.s32 3, %v7111
        %v7113 = vrot.slane %v6548, %v7112
        %v7116 = vlaneseq
        %v7117 = vshrl.u32 %v7116, 7
        %v7118 = vsub.s32 1, %v7117
        %v7119 = vrot.slane %v7109, %v7118
        %v7120 = vlaneseq
        %v7121 = vshrl.u32 %v7120, 7
        %v7122 = vsub.s32 1, %v7121
        %v7123 = vrot.slane %v7113, %v7122
        %v7124 = vadd.f32 %v7102, %v7119
        %v7125 = vadd.f32 %v7103, %v7123
        %v7126 = vadd.f32 %v7104, %v7119
        %v7127 = vadd.f32 %v7105, %v7123
        %v7128 = vmax.f32 %v7124, 0.0
        %v7129 = vmax.f32 %v7125, 0.0
        %v7130 = vmax.f32 %v7126, 0.0
        %v7131 = vmax.f32 %v7127, 0.0
        %v7132 = vmin.f32 %v7128, 6.0
        %v7133 = vmin.f32 %v7129, 6.0
        %v7134 = vmin.f32 %v7130, 6.0
        %v7135 = vmin.f32 %v7131, 6.0
        %v7136 = vpack.c.bf16 %v7134, %v7132
        %v7137 = vpack.c.bf16 %v7135, %v7133
        %v7138 = vld [vmem:[%s51] sm:$0xf]
        %v7139 = vld [vmem:[%s51 + $0x4] sm:$0xf]
        %v7140 = vld [vmem:[%s51 + $0x8] sm:$0xf]
        %v7141 = vld [vmem:[%s51 + $0xc] sm:$0xf]
        %v7142 = vld [vmem:[%s51 + $0x10] sm:$0xf]
        %v7143 = vld [vmem:[%s51 + $0x14] sm:$0xf]
        %v7144 = vld [vmem:[%s51 + $0x18] sm:$0xf]
        %v7145 = vld [vmem:[%s51 + $0x1c] sm:$0xf]
        %v7146 = vld [vmem:[%s51 + $0x20] sm:$0xf]
        %v7147 = vld [vmem:[%s51 + $0x24] sm:$0xf]
        %v7148 = vld [vmem:[%s51 + $0x28] sm:$0xf]
        %v7149 = vld [vmem:[%s51 + $0x2c] sm:$0xf]
        %v7150 = vld [vmem:[%s51 + $0x30] sm:$0xf]
        %v7151 = vld [vmem:[%s51 + $0x34] sm:$0xf]
        %v7152 = vld [vmem:[%s51 + $0x38] sm:$0xf]
        %v7153 = vld [vmem:[%s51 + $0x3c] sm:$0xf]
        %v7154 = vld [vmem:[%s51 + $0x40] sm:$0xf]
        %v7155 = vld [vmem:[%s51 + $0x44] sm:$0xf]
        %v7174 = vunpack.c.l.b16 %v7138
        %v7175 = vunpack.c.l.b16 %v7139
        %v7176 = vunpack.c.l.b16 %v7140
        %v7177 = vunpack.c.l.b16 %v7141
        %v7178 = vunpack.c.l.b16 %v7142
        %v7179 = vunpack.c.l.b16 %v7143
        %v7180 = vunpack.c.l.b16 %v7144
        %v7181 = vunpack.c.l.b16 %v7145
        %v7182 = vunpack.c.l.b16 %v7146
        %v7183 = vunpack.c.l.b16 %v7147
        %v7184 = vunpack.c.l.b16 %v7148
        %v7185 = vunpack.c.l.b16 %v7149
        %v7186 = vunpack.c.l.b16 %v7150
        %v7187 = vunpack.c.l.b16 %v7151
        %v7188 = vunpack.c.l.b16 %v7152
        %v7189 = vunpack.c.l.b16 %v7153
        %v7190 = vunpack.c.l.b16 %v7154
        %v7191 = vunpack.c.l.b16 %v7155
        %v7192 = vpack.c.b16 %v7175, %v7174
        %v7193 = vpack.c.b16 %v7177, %v7176
        %v7194 = vpack.c.b16 %v7179, %v7178
        %v7195 = vpack.c.b16 %v7181, %v7180
        %v7196 = vpack.c.b16 %v7183, %v7182
        %v7197 = vpack.c.b16 %v7185, %v7184
        %v7198 = vpack.c.b16 %v7187, %v7186
        %v7199 = vpack.c.b16 %v7189, %v7188
        %v7200 = vpack.c.b16 %v7191, %v7190
        %v7211 = vsel %vm4006, %v7137, 0
        %7213 = vmatprep.subr.bf16.mxu0 0
        %7214 = vmatpush1.bf16.msra.mxu0 %v7199
        %7215 = vmatprep.subr.bf16.mxu0 0
        %7216 = vmatpush1.bf16.msra.mxu0 %v7198
        %7217 = vmatprep.subr.bf16.mxu0 0
        %7218 = vmatpush1.bf16.msra.mxu0 %v7197
        %7219 = vmatprep.subr.bf16.mxu0 0
        %7220 = vmatpush1.bf16.msra.mxu0 %v7196
        %7221 = vmatprep.subr.bf16.mxu0 0
        %7222 = vmatpush1.bf16.msra.mxu0 %v7195
        %7223 = vmatprep.subr.bf16.mxu0 0
        %7224 = vmatpush1.bf16.msra.mxu0 %v7194
        %7225 = vmatprep.subr.bf16.mxu0 0
        %7226 = vmatpush1.bf16.msra.mxu0 %v7193
        %7227 = vmatprep.subr.bf16.mxu0 0
        %7228 = vmatpush1.bf16.msra.mxu0 %v7192
        %7229 = vmatprep.subr.bf16.mxu0 0
        %7230 = vmatpush2.bf16.msra.mxu0 0
        %7231 = vmatprep.subr.bf16.mxu0 0
        %7232 = vmatpush2.bf16.msra.mxu0 0
        %7233 = vmatprep.subr.bf16.mxu0 0
        %7234 = vmatpush2.bf16.msra.mxu0 0
        %7235 = vmatprep.subr.bf16.mxu0 0
        %7236 = vmatpush2.bf16.msra.mxu0 0
        %7237 = vmatprep.subr.bf16.mxu0 0
        %7238 = vmatpush2.bf16.msra.mxu0 0
        %7239 = vmatprep.subr.bf16.mxu0 0
        %7240 = vmatpush2.bf16.msra.mxu0 0
        %7241 = vmatprep.subr.bf16.mxu0 0
        %7242 = vmatpush2.bf16.msra.mxu0 0
        %7243 = vmatprep.subr.bf16.mxu0 0
        %7244 = vmatpush2.bf16.msra.mxu0 %v7200
        %7245 = vmatprep.mubr.bf16.mxu0 %v7211
        %7246 = vmatmul.mubr.bf16.gmra.mxu0 %v7136
        %v7247 = vpop.f32.mrf.mxu0
        %v7248 = vadd.f32 0.0, %v7247
        %v7249 = vpop.f32.mrf.mxu0
        %v7250 = vpop.f32.mrf.mxu0
        %v7251 = vadd.f32 0.0, %v7250
        %v7252 = vpop.f32.mrf.mxu0
        %7253 = vdwg.mxu0
        %v7254 = vlaneseq
        %v7255 = vshrl.u32 %v7254, 7
        %v7256 = vsub.s32 0, %v7255
        %v7257 = vrot.slane %v6549, %v7256
        %v7258 = vmul.f32 %v7248, %v7257
        %v7259 = vmul.f32 %v7251, %v7257
        %v7260 = vlaneseq
        %v7261 = vshrl.u32 %v7260, 7
        %v7262 = vsub.s32 1, %v7261
        %v7263 = vrot.slane %v6549, %v7262
        %v7264 = vadd.f32 %v7258, %v7263
        %v7265 = vadd.f32 %v7259, %v7263
        %v7266 = vpack.c.bf16 %v7265, %v7264
        %v7267 = vld [vmem:[%s55] sm:$0xff]
        %v7268 = vld [vmem:[%s55 + $0x8] sm:$0xff]
        %v7269 = vld [vmem:[%s55 + $0x10] sm:$0xff]
        %v7270 = vld [vmem:[%s55 + $0x18] sm:$0xff]
        %v7275 = vunpack.c.l.b16 %v7267
        %v7276 = vunpack.c.h.b16 %v7267
        %v7277 = vunpack.c.l.b16 %v7268
        %v7278 = vunpack.c.h.b16 %v7268
        %v7279 = vunpack.c.l.b16 %v7269
        %v7280 = vunpack.c.h.b16 %v7269
        %v7281 = vunpack.c.l.b16 %v7270
        %v7282 = vunpack.c.h.b16 %v7270
        %v7283 = vpack.c.b16 %v7277, %v7275
        %v7284 = vpack.c.b16 %v7278, %v7276
        %v7285 = vpack.c.b16 %v7281, %v7279
        %v7286 = vpack.c.b16 %v7282, %v7280
        %v7292 = vsel %vm1763, %v7266, 0
        %7294 = vmatprep.subr.bf16.mxu0 0
        %7295 = vmatpush1.bf16.msra.mxu0 0
        %7296 = vmatprep.subr.bf16.mxu0 0
        %7297 = vmatpush1.bf16.msra.mxu0 0
        %7298 = vmatprep.subr.bf16.mxu0 0
        %7299 = vmatpush1.bf16.msra.mxu0 0
        %7300 = vmatprep.subr.bf16.mxu0 0
        %7301 = vmatpush1.bf16.msra.mxu0 0
        %7302 = vmatprep.subr.bf16.mxu0 0
        %7303 = vmatpush1.bf16.msra.mxu0 0
        %7304 = vmatprep.subr.bf16.mxu0 0
        %7305 = vmatpush1.bf16.msra.mxu0 0
        %7306 = vmatprep.subr.bf16.mxu0 %v7286
        %7307 = vmatpush1.bf16.msra.mxu0 %v7285
        %7308 = vmatprep.subr.bf16.mxu0 %v7284
        %7309 = vmatpush1.bf16.msra.mxu0 %v7283
        %7310 = vmatprep.subr.bf16.mxu0 0
        %7311 = vmatpush2.bf16.msra.mxu0 0
        %7312 = vmatprep.subr.bf16.mxu0 0
        %7313 = vmatpush2.bf16.msra.mxu0 0
        %7314 = vmatprep.subr.bf16.mxu0 0
        %7315 = vmatpush2.bf16.msra.mxu0 0
        %7316 = vmatprep.subr.bf16.mxu0 0
        %7317 = vmatpush2.bf16.msra.mxu0 0
        %7318 = vmatprep.subr.bf16.mxu0 0
        %7319 = vmatpush2.bf16.msra.mxu0 0
        %7320 = vmatprep.subr.bf16.mxu0 0
        %7321 = vmatpush2.bf16.msra.mxu0 0
        %7322 = vmatprep.subr.bf16.mxu0 0
        %7323 = vmatpush2.bf16.msra.mxu0 0
        %7324 = vmatprep.subr.bf16.mxu0 0
        %7325 = vmatpush2.bf16.msra.mxu0 0
        %7326 = vmatprep.mubr.bf16.mxu0 0
        %7327 = vmatmul.mubr.bf16.gmra.mxu0 %v7292
        %v7328 = vpop.f32.mrf.mxu0
        %v7329 = vadd.f32 0.0, %v7328
        %v7330 = vpop.f32.mrf.mxu0
        %v7331 = vadd.f32 0.0, %v7330
        %v7332 = vpop.f32.mrf.mxu0
        %v7333 = vadd.f32 0.0, %v7332
        %v7334 = vpop.f32.mrf.mxu0
        %v7335 = vadd.f32 0.0, %v7334
        %7336 = vdwg.mxu0
        %v7337 = vld [vmem:[%s57] sm:$0xf]
        %v7339 = vlaneseq
        %v7340 = vshrl.u32 %v7339, 7
        %v7341 = vsub.s32 0, %v7340
        %v7342 = vrot.slane %v7337, %v7341
        %v7343 = vlaneseq
        %v7344 = vshrl.u32 %v7343, 7
        %v7345 = vsub.s32 2, %v7344
        %v7346 = vrot.slane %v7337, %v7345
        %v7349 = vlaneseq
        %v7350 = vshrl.u32 %v7349, 7
        %v7351 = vsub.s32 0, %v7350
        %v7352 = vrot.slane %v7342, %v7351
        %v7353 = vlaneseq
        %v7354 = vshrl.u32 %v7353, 7
        %v7355 = vsub.s32 0, %v7354
        %v7356 = vrot.slane %v7346, %v7355
        %v7357 = vmul.f32 %v7329, %v7352
        %v7358 = vmul.f32 %v7331, %v7356
        %v7359 = vmul.f32 %v7333, %v7352
        %v7360 = vmul.f32 %v7335, %v7356
        %v7361 = vlaneseq
        %v7362 = vshrl.u32 %v7361, 7
        %v7363 = vsub.s32 1, %v7362
        %v7364 = vrot.slane %v7337, %v7363
        %v7365 = vlaneseq
        %v7366 = vshrl.u32 %v7365, 7
        %v7367 = vsub.s32 3, %v7366
        %v7368 = vrot.slane %v7337, %v7367
        %v7371 = vlaneseq
        %v7372 = vshrl.u32 %v7371, 7
        %v7373 = vsub.s32 1, %v7372
        %v7374 = vrot.slane %v7364, %v7373
        %v7375 = vlaneseq
        %v7376 = vshrl.u32 %v7375, 7
        %v7377 = vsub.s32 1, %v7376
        %v7378 = vrot.slane %v7368, %v7377
        %v7379 = vadd.f32 %v7357, %v7374
        %v7380 = vadd.f32 %v7358, %v7378
        %v7381 = vadd.f32 %v7359, %v7374
        %v7382 = vadd.f32 %v7360, %v7378
        %v7383 = vmax.f32 %v7379, 0.0
        %v7384 = vmax.f32 %v7380, 0.0
        %v7385 = vmax.f32 %v7381, 0.0
        %v7386 = vmax.f32 %v7382, 0.0
        %v7387 = vmin.f32 %v7383, 6.0
        %v7388 = vmin.f32 %v7384, 6.0
        %v7389 = vmin.f32 %v7385, 6.0
        %v7390 = vmin.f32 %v7386, 6.0
        %v7391 = vld [vmem:[%s59] sm:$0xff]
        %v7392 = vld [vmem:[%s59 + $0x8] sm:$0xff]
        %v7393 = vld [vmem:[%s59 + $0x10] sm:$0x1]
        %v7394 = vld [vmem:[%s59 + $0x18] sm:$0x1]
        %v7395 = vld [vmem:[%s61] sm:$0xf]
        %v7396 = vld [vmem:[%s65] sm:$0x3]
        %7397 = vst [vmem:[#allocation6] sm:$0x1f] 0.0
        %vm7398 = vcmask 520192
        %7399 = vst.msk [vmem:[#allocation6 + $0x8] sm:$0x1f] %vm7398, 0.0
        %v7404 = vrot.slane %v7387, 3
        %v7405 = vrot.slane %v7388, 3
        %v7406 = vrot.slane %v7389, 3
        %v7407 = vsel %vm1454, %v7404, %v7406
        %v7408 = vrot.slane %v7390, 3
        %v7409 = vsel %vm1454, %v7405, %v7408
        %7416 = vst [vmem:[#allocation6] sm:$0xe0] %v7404
        %vm7417 = vcmask 523269
        %7418 = vst.msk [vmem:[#allocation6 + $0x8] sm:$0xe0] %vm7417, %v7405
        %7419 = vst [vmem:[#allocation6 + $0x10] sm:$0xff] %v7407
        %7420 = vst.msk [vmem:[#allocation6 + $0x18] sm:$0xff] %vm6251, %v7409
        %7421 = vst [vmem:[#allocation6 + $0x20] sm:$0x1f] %v7406
        %7422 = vst.msk [vmem:[#allocation6 + $0x28] sm:$0x1f] %vm7398, %v7408
        %7423 = vst [vmem:[#allocation6 + $0x20] sm:$0xe0] 0.0
        %7424 = vst.msk [vmem:[#allocation6 + $0x28] sm:$0xe0] %vm7417, 0.0
        %7425 = vst [vmem:[#allocation6 + $0x30] sm:$0x3] 0.0
        %vm7426 = vcmask 517120
        %7427 = vst.msk [vmem:[#allocation6 + $0x38] sm:$0x3] %vm7426, 0.0
        %vm7428 = vcmp.eq.s32.totalorder %v6681, 3
        %vm7429 = vcmp.eq.s32.totalorder %v6682, 3
        %v7430 = vld [vmem:[#allocation6] sm:$0xff]
        %v7431 = vld [vmem:[#allocation6 + $0x8] sm:$0xff]
        %v7432 = vld [vmem:[#allocation6 + $0x10] sm:$0xff]
        %v7433 = vld [vmem:[#allocation6 + $0x18] sm:$0xff]
        %v7434 = vlaneseq
        %v7435 = vshrl.u32 %v7434, 7
        %v7436 = vsub.s32 0, %v7435
        %v7437 = vrot.slane %v7391, %v7436
        %v7438 = vlaneseq
        %v7439 = vshrl.u32 %v7438, 7
        %v7440 = vsub.s32 0, %v7439
        %v7441 = vrot.slane %v7392, %v7440
        %v7442 = vmul.f32 %v7430, %v7437
        %v7443 = vmul.f32 %v7431, %v7441
        %v7444 = vmul.f32 %v7432, %v7437
        %v7445 = vmul.f32 %v7433, %v7441
        %v7446 = vadd.f32 %v7442, 0.0
        %v7447 = vadd.f32 %v7443, 0.0
        %v7448 = vadd.f32 %v7444, 0.0
        %v7449 = vadd.f32 %v7445, 0.0
        %v7450 = vld [vmem:[#allocation6] sm:$0xf0]
        %v7451 = vld [vmem:[#allocation6 + $0x8] sm:$0xf0]
        %v7452 = vld [vmem:[#allocation6 + $0x20] sm:$0xf]
        %v7453 = vld [vmem:[#allocation6 + $0x28] sm:$0xf]
        %v7454 = vlaneseq
        %v7455 = vshrl.u32 %v7454, 7
        %v7456 = vsub.s32 3, %v7455
        %v7457 = vrot.slane %v7391, %v7456
        %v7458 = vlaneseq
        %v7459 = vshrl.u32 %v7458, 7
        %v7460 = vsub.s32 3, %v7459
        %v7461 = vrot.slane %v7392, %v7460
        %v7462 = vmul.f32 %v7450, %v7457
        %v7463 = vmul.f32 %v7451, %v7461
        %v7464 = vmul.f32 %v7432, %v7457
        %v7465 = vmul.f32 %v7433, %v7461
        %v7466 = vmul.f32 %v7452, %v7457
        %v7467 = vmul.f32 %v7453, %v7461
        %v7474 = vrot.slane %v7462, 4
        %v7475 = vrot.slane %v7464, 4
        %v7476 = vsel %vm4994, %v7474, %v7475
        %v7477 = vrot.slane %v7463, 4
        %v7478 = vrot.slane %v7465, 4
        %v7479 = vsel %vm4994, %v7477, %v7478
        %v7480 = vrot.slane %v7466, 4
        %v7481 = vsel %vm4994, %v7475, %v7480
        %v7482 = vrot.slane %v7467, 4
        %v7483 = vsel %vm4994, %v7478, %v7482
        %v7488 = vadd.f32 %v7446, %v7476
        %v7489 = vadd.f32 %v7447, %v7479
        %v7490 = vadd.f32 %v7448, %v7481
        %v7491 = vadd.f32 %v7449, %v7483
        %v7492 = vld [vmem:[#allocation6 + $0x20] sm:$0xff]
        %v7493 = vld [vmem:[#allocation6 + $0x28] sm:$0xff]
        %v7494 = vlaneseq
        %v7495 = vshrl.u32 %v7494, 7
        %v7496 = vsub.s32 6, %v7495
        %v7497 = vrot.slane %v7391, %v7496
        %v7498 = vlaneseq
        %v7499 = vshrl.u32 %v7498, 7
        %v7500 = vsub.s32 6, %v7499
        %v7501 = vrot.slane %v7392, %v7500
        %v7502 = vmul.f32 %v7432, %v7497
        %v7503 = vmul.f32 %v7433, %v7501
        %v7504 = vmul.f32 %v7492, %v7497
        %v7505 = vmul.f32 %v7493, %v7501
        %v7506 = vadd.f32 %v7488, %v7502
        %v7507 = vadd.f32 %v7489, %v7503
        %v7508 = vadd.f32 %v7490, %v7504
        %v7509 = vadd.f32 %v7491, %v7505
        %v7510 = vsel %vm6683, 0.0, %v7506
        %v7511 = vsel %vm6683, 0.0, %v7507
        %v7512 = vsel %vm6684, 0.0, %v7508
        %v7513 = vsel %vm6684, 0.0, %v7509
        %v7514 = vadd.f32 %v7510, 0.0
        %v7515 = vadd.f32 %v7511, 0.0
        %v7516 = vadd.f32 %v7512, 0.0
        %v7517 = vadd.f32 %v7513, 0.0
        %v7518 = vld [vmem:[#allocation6] sm:$0xfe]
        %v7519 = vld [vmem:[#allocation6 + $0x8] sm:$0xfe]
        %v7520 = vld [vmem:[#allocation6 + $0x20] sm:$0x1]
        %v7521 = vld [vmem:[#allocation6 + $0x28] sm:$0x1]
        %v7522 = vlaneseq
        %v7523 = vshrl.u32 %v7522, 7
        %v7524 = vsub.s32 1, %v7523
        %v7525 = vrot.slane %v7391, %v7524
        %v7526 = vlaneseq
        %v7527 = vshrl.u32 %v7526, 7
        %v7528 = vsub.s32 1, %v7527
        %v7529 = vrot.slane %v7392, %v7528
        %v7530 = vmul.f32 %v7518, %v7525
        %v7531 = vmul.f32 %v7519, %v7529
        %v7532 = vmul.f32 %v7432, %v7525
        %v7533 = vmul.f32 %v7433, %v7529
        %v7534 = vmul.f32 %v7520, %v7525
        %v7535 = vmul.f32 %v7521, %v7529
        %v7536 = vadd.f32 %v7530, 0.0
        %v7537 = vadd.f32 %v7531, 0.0
        %v7538 = vadd.f32 %v7532, 0.0
        %v7539 = vadd.f32 %v7533, 0.0
        %v7540 = vadd.f32 %v7534, 0.0
        %v7541 = vadd.f32 %v7535, 0.0
        %v7542 = vld [vmem:[#allocation6] sm:$0xe0]
        %v7543 = vld [vmem:[#allocation6 + $0x8] sm:$0xe0]
        %v7544 = vld [vmem:[#allocation6 + $0x20] sm:$0x1f]
        %v7545 = vld [vmem:[#allocation6 + $0x28] sm:$0x1f]
        %v7546 = vlaneseq
        %v7547 = vshrl.u32 %v7546, 7
        %v7548 = vsub.s32 4, %v7547
        %v7549 = vrot.slane %v7391, %v7548
        %v7550 = vlaneseq
        %v7551 = vshrl.u32 %v7550, 7
        %v7552 = vsub.s32 4, %v7551
        %v7553 = vrot.slane %v7392, %v7552
        %v7554 = vmul.f32 %v7542, %v7549
        %v7555 = vmul.f32 %v7543, %v7553
        %v7556 = vmul.f32 %v7432, %v7549
        %v7557 = vmul.f32 %v7433, %v7553
        %v7558 = vmul.f32 %v7544, %v7549
        %v7559 = vmul.f32 %v7545, %v7553
        %v7566 = vrot.slane %v7554, 4
        %v7567 = vrot.slane %v7556, 4
        %v7568 = vsel %vm4994, %v7566, %v7567
        %v7569 = vrot.slane %v7555, 4
        %v7570 = vrot.slane %v7557, 4
        %v7571 = vsel %vm4994, %v7569, %v7570
        %v7572 = vrot.slane %v7558, 4
        %v7573 = vsel %vm4994, %v7567, %v7572
        %v7574 = vrot.slane %v7559, 4
        %v7575 = vsel %vm4994, %v7570, %v7574
        %v7582 = vadd.f32 %v7536, %v7568
        %v7583 = vadd.f32 %v7537, %v7571
        %v7584 = vadd.f32 %v7538, %v7573
        %v7585 = vadd.f32 %v7539, %v7575
        %v7586 = vadd.f32 %v7540, %v7572
        %v7587 = vadd.f32 %v7541, %v7574
        %v7588 = vld [vmem:[#allocation6 + $0x10] sm:$0xfe]
        %v7589 = vld [vmem:[#allocation6 + $0x18] sm:$0xfe]
        %v7590 = vld [vmem:[#allocation6 + $0x30] sm:$0x1]
        %v7591 = vld [vmem:[#allocation6 + $0x38] sm:$0x1]
        %v7592 = vlaneseq
        %v7593 = vshrl.u32 %v7592, 7
        %v7594 = vsub.s32 7, %v7593
        %v7595 = vrot.slane %v7391, %v7594
        %v7596 = vlaneseq
        %v7597 = vshrl.u32 %v7596, 7
        %v7598 = vsub.s32 7, %v7597
        %v7599 = vrot.slane %v7392, %v7598
        %v7600 = vmul.f32 %v7588, %v7595
        %v7601 = vmul.f32 %v7589, %v7599
        %v7602 = vmul.f32 %v7492, %v7595
        %v7603 = vmul.f32 %v7493, %v7599
        %v7604 = vmul.f32 %v7590, %v7595
        %v7605 = vmul.f32 %v7591, %v7599
        %v7606 = vadd.f32 %v7582, %v7600
        %v7607 = vadd.f32 %v7583, %v7601
        %v7608 = vadd.f32 %v7584, %v7602
        %v7609 = vadd.f32 %v7585, %v7603
        %v7610 = vadd.f32 %v7586, %v7604
        %v7611 = vadd.f32 %v7587, %v7605
        %v7618 = vrot.slane %v7606, 1
        %v7619 = vrot.slane %v7608, 1
        %v7620 = vsel %vm5618, %v7618, %v7619
        %v7621 = vrot.slane %v7607, 1
        %v7622 = vrot.slane %v7609, 1
        %v7623 = vsel %vm5618, %v7621, %v7622
        %v7624 = vrot.slane %v7610, 1
        %v7625 = vsel %vm5618, %v7619, %v7624
        %v7626 = vrot.slane %v7611, 1
        %v7627 = vsel %vm5618, %v7622, %v7626
        %v7632 = vadd.f32 %v7514, %v7620
        %v7633 = vadd.f32 %v7515, %v7623
        %v7634 = vadd.f32 %v7516, %v7625
        %v7635 = vadd.f32 %v7517, %v7627
        %v7636 = vld [vmem:[#allocation6] sm:$0xfc]
        %v7637 = vld [vmem:[#allocation6 + $0x8] sm:$0xfc]
        %v7638 = vld [vmem:[#allocation6 + $0x20] sm:$0x3]
        %v7639 = vld [vmem:[#allocation6 + $0x28] sm:$0x3]
        %v7640 = vlaneseq
        %v7641 = vshrl.u32 %v7640, 7
        %v7642 = vsub.s32 2, %v7641
        %v7643 = vrot.slane %v7391, %v7642
        %v7644 = vlaneseq
        %v7645 = vshrl.u32 %v7644, 7
        %v7646 = vsub.s32 2, %v7645
        %v7647 = vrot.slane %v7392, %v7646
        %v7648 = vmul.f32 %v7636, %v7643
        %v7649 = vmul.f32 %v7637, %v7647
        %v7650 = vmul.f32 %v7432, %v7643
        %v7651 = vmul.f32 %v7433, %v7647
        %v7652 = vmul.f32 %v7638, %v7643
        %v7653 = vmul.f32 %v7639, %v7647
        %v7654 = vadd.f32 %v7648, 0.0
        %v7655 = vadd.f32 %v7649, 0.0
        %v7656 = vadd.f32 %v7650, 0.0
        %v7657 = vadd.f32 %v7651, 0.0
        %v7658 = vadd.f32 %v7652, 0.0
        %v7659 = vadd.f32 %v7653, 0.0
        %v7660 = vld [vmem:[#allocation6] sm:$0xc0]
        %v7661 = vld [vmem:[#allocation6 + $0x8] sm:$0xc0]
        %v7662 = vld [vmem:[#allocation6 + $0x20] sm:$0x3f]
        %v7663 = vld [vmem:[#allocation6 + $0x28] sm:$0x3f]
        %v7664 = vlaneseq
        %v7665 = vshrl.u32 %v7664, 7
        %v7666 = vsub.s32 5, %v7665
        %v7667 = vrot.slane %v7391, %v7666
        %v7668 = vlaneseq
        %v7669 = vshrl.u32 %v7668, 7
        %v7670 = vsub.s32 5, %v7669
        %v7671 = vrot.slane %v7392, %v7670
        %v7672 = vmul.f32 %v7660, %v7667
        %v7673 = vmul.f32 %v7661, %v7671
        %v7674 = vmul.f32 %v7432, %v7667
        %v7675 = vmul.f32 %v7433, %v7671
        %v7676 = vmul.f32 %v7662, %v7667
        %v7677 = vmul.f32 %v7663, %v7671
        %v7684 = vrot.slane %v7672, 4
        %v7685 = vrot.slane %v7674, 4
        %v7686 = vsel %vm4994, %v7684, %v7685
        %v7687 = vrot.slane %v7673, 4
        %v7688 = vrot.slane %v7675, 4
        %v7689 = vsel %vm4994, %v7687, %v7688
        %v7690 = vrot.slane %v7676, 4
        %v7691 = vsel %vm4994, %v7685, %v7690
        %v7692 = vrot.slane %v7677, 4
        %v7693 = vsel %vm4994, %v7688, %v7692
        %v7700 = vadd.f32 %v7654, %v7686
        %v7701 = vadd.f32 %v7655, %v7689
        %v7702 = vadd.f32 %v7656, %v7691
        %v7703 = vadd.f32 %v7657, %v7693
        %v7704 = vadd.f32 %v7658, %v7690
        %v7705 = vadd.f32 %v7659, %v7692
        %v7706 = vld [vmem:[#allocation6 + $0x10] sm:$0xfc]
        %v7707 = vld [vmem:[#allocation6 + $0x18] sm:$0xfc]
        %v7708 = vld [vmem:[#allocation6 + $0x30] sm:$0x3]
        %v7709 = vld [vmem:[#allocation6 + $0x38] sm:$0x3]
        %v7710 = vlaneseq
        %v7711 = vshrl.u32 %v7710, 7
        %v7712 = vsub.s32 0, %v7711
        %v7713 = vrot.slane %v7393, %v7712
        %v7714 = vlaneseq
        %v7715 = vshrl.u32 %v7714, 7
        %v7716 = vsub.s32 0, %v7715
        %v7717 = vrot.slane %v7394, %v7716
        %v7718 = vmul.f32 %v7706, %v7713
        %v7719 = vmul.f32 %v7707, %v7717
        %v7720 = vmul.f32 %v7492, %v7713
        %v7721 = vmul.f32 %v7493, %v7717
        %v7722 = vmul.f32 %v7708, %v7713
        %v7723 = vmul.f32 %v7709, %v7717
        %v7724 = vadd.f32 %v7700, %v7718
        %v7725 = vadd.f32 %v7701, %v7719
        %v7726 = vadd.f32 %v7702, %v7720
        %v7727 = vadd.f32 %v7703, %v7721
        %v7728 = vadd.f32 %v7704, %v7722
        %v7729 = vadd.f32 %v7705, %v7723
        %v7736 = vrot.slane %v7724, 2
        %v7737 = vrot.slane %v7726, 2
        %v7738 = vsel %vm1455, %v7736, %v7737
        %v7739 = vrot.slane %v7725, 2
        %v7740 = vrot.slane %v7727, 2
        %v7741 = vsel %vm1455, %v7739, %v7740
        %v7742 = vrot.slane %v7728, 2
        %v7743 = vsel %vm1455, %v7737, %v7742
        %v7744 = vrot.slane %v7729, 2
        %v7745 = vsel %vm1455, %v7740, %v7744
        %v7750 = vsel %vm7428, 0.0, %v7738
        %v7751 = vsel %vm7428, 0.0, %v7741
        %v7752 = vsel %vm7429, 0.0, %v7743
        %v7753 = vsel %vm7429, 0.0, %v7745
        %v7754 = vadd.f32 %v7632, %v7750
        %v7755 = vadd.f32 %v7633, %v7751
        %v7756 = vadd.f32 %v7634, %v7752
        %v7757 = vadd.f32 %v7635, %v7753
        %v7759 = vlaneseq
        %v7760 = vshrl.u32 %v7759, 7
        %v7761 = vsub.s32 0, %v7760
        %v7762 = vrot.slane %v7395, %v7761
        %v7763 = vlaneseq
        %v7764 = vshrl.u32 %v7763, 7
        %v7765 = vsub.s32 2, %v7764
        %v7766 = vrot.slane %v7395, %v7765
        %v7769 = vlaneseq
        %v7770 = vshrl.u32 %v7769, 7
        %v7771 = vsub.s32 0, %v7770
        %v7772 = vrot.slane %v7762, %v7771
        %v7773 = vlaneseq
        %v7774 = vshrl.u32 %v7773, 7
        %v7775 = vsub.s32 0, %v7774
        %v7776 = vrot.slane %v7766, %v7775
        %v7777 = vmul.f32 %v7754, %v7772
        %v7778 = vmul.f32 %v7755, %v7776
        %v7779 = vmul.f32 %v7756, %v7772
        %v7780 = vmul.f32 %v7757, %v7776
        %v7781 = vlaneseq
        %v7782 = vshrl.u32 %v7781, 7
        %v7783 = vsub.s32 1, %v7782
        %v7784 = vrot.slane %v7395, %v7783
        %v7785 = vlaneseq
        %v7786 = vshrl.u32 %v7785, 7
        %v7787 = vsub.s32 3, %v7786
        %v7788 = vrot.slane %v7395, %v7787
        %v7791 = vlaneseq
        %v7792 = vshrl.u32 %v7791, 7
        %v7793 = vsub.s32 1, %v7792
        %v7794 = vrot.slane %v7784, %v7793
        %v7795 = vlaneseq
        %v7796 = vshrl.u32 %v7795, 7
        %v7797 = vsub.s32 1, %v7796
        %v7798 = vrot.slane %v7788, %v7797
        %v7799 = vadd.f32 %v7777, %v7794
        %v7800 = vadd.f32 %v7778, %v7798
        %v7801 = vadd.f32 %v7779, %v7794
        %v7802 = vadd.f32 %v7780, %v7798
        %v7803 = vmax.f32 %v7799, 0.0
        %v7804 = vmax.f32 %v7800, 0.0
        %v7805 = vmax.f32 %v7801, 0.0
        %v7806 = vmax.f32 %v7802, 0.0
        %v7807 = vmin.f32 %v7803, 6.0
        %v7808 = vmin.f32 %v7804, 6.0
        %v7809 = vmin.f32 %v7805, 6.0
        %v7810 = vmin.f32 %v7806, 6.0
        %v7811 = vpack.c.bf16 %v7809, %v7807
        %v7812 = vpack.c.bf16 %v7810, %v7808
        %v7813 = vld [vmem:[%s63] sm:$0xf]
        %v7814 = vld [vmem:[%s63 + $0x4] sm:$0xf]
        %v7815 = vld [vmem:[%s63 + $0x8] sm:$0xf]
        %v7816 = vld [vmem:[%s63 + $0xc] sm:$0xf]
        %v7817 = vld [vmem:[%s63 + $0x10] sm:$0xf]
        %v7818 = vld [vmem:[%s63 + $0x14] sm:$0xf]
        %v7819 = vld [vmem:[%s63 + $0x18] sm:$0xf]
        %v7820 = vld [vmem:[%s63 + $0x1c] sm:$0xf]
        %v7821 = vld [vmem:[%s63 + $0x20] sm:$0xf]
        %v7822 = vld [vmem:[%s63 + $0x24] sm:$0xf]
        %v7823 = vld [vmem:[%s63 + $0x28] sm:$0xf]
        %v7824 = vld [vmem:[%s63 + $0x2c] sm:$0xf]
        %v7825 = vld [vmem:[%s63 + $0x30] sm:$0xf]
        %v7826 = vld [vmem:[%s63 + $0x34] sm:$0xf]
        %v7827 = vld [vmem:[%s63 + $0x38] sm:$0xf]
        %v7828 = vld [vmem:[%s63 + $0x3c] sm:$0xf]
        %v7829 = vld [vmem:[%s63 + $0x40] sm:$0xf]
        %v7830 = vld [vmem:[%s63 + $0x44] sm:$0xf]
        %v7831 = vld [vmem:[%s63 + $0x48] sm:$0xf]
        %v7832 = vld [vmem:[%s63 + $0x4c] sm:$0xf]
        %v7833 = vld [vmem:[%s63 + $0x50] sm:$0xf]
        %v7834 = vld [vmem:[%s63 + $0x54] sm:$0xf]
        %v7835 = vld [vmem:[%s63 + $0x58] sm:$0xf]
        %v7836 = vld [vmem:[%s63 + $0x5c] sm:$0xf]
        %v7861 = vunpack.c.l.b16 %v7813
        %v7862 = vunpack.c.l.b16 %v7814
        %v7863 = vunpack.c.l.b16 %v7815
        %v7864 = vunpack.c.l.b16 %v7816
        %v7865 = vunpack.c.l.b16 %v7817
        %v7866 = vunpack.c.l.b16 %v7818
        %v7867 = vunpack.c.l.b16 %v7819
        %v7868 = vunpack.c.l.b16 %v7820
        %v7869 = vunpack.c.l.b16 %v7821
        %v7870 = vunpack.c.l.b16 %v7822
        %v7871 = vunpack.c.l.b16 %v7823
        %v7872 = vunpack.c.l.b16 %v7824
        %v7873 = vunpack.c.l.b16 %v7825
        %v7874 = vunpack.c.l.b16 %v7826
        %v7875 = vunpack.c.l.b16 %v7827
        %v7876 = vunpack.c.l.b16 %v7828
        %v7877 = vunpack.c.l.b16 %v7829
        %v7878 = vunpack.c.l.b16 %v7830
        %v7879 = vunpack.c.l.b16 %v7831
        %v7880 = vunpack.c.l.b16 %v7832
        %v7881 = vunpack.c.l.b16 %v7833
        %v7882 = vunpack.c.l.b16 %v7834
        %v7883 = vunpack.c.l.b16 %v7835
        %v7884 = vunpack.c.l.b16 %v7836
        %v7885 = vpack.c.b16 %v7862, %v7861
        %v7886 = vpack.c.b16 %v7864, %v7863
        %v7887 = vpack.c.b16 %v7866, %v7865
        %v7888 = vpack.c.b16 %v7868, %v7867
        %v7889 = vpack.c.b16 %v7870, %v7869
        %v7890 = vpack.c.b16 %v7872, %v7871
        %v7891 = vpack.c.b16 %v7874, %v7873
        %v7892 = vpack.c.b16 %v7876, %v7875
        %v7893 = vpack.c.b16 %v7878, %v7877
        %v7894 = vpack.c.b16 %v7880, %v7879
        %v7895 = vpack.c.b16 %v7882, %v7881
        %v7896 = vpack.c.b16 %v7884, %v7883
        %v7910 = vsel %vm6251, %v7812, 0
        %7912 = vmatprep.subr.bf16.mxu0 0
        %7913 = vmatpush1.bf16.msra.mxu0 %v7892
        %7914 = vmatprep.subr.bf16.mxu0 0
        %7915 = vmatpush1.bf16.msra.mxu0 %v7891
        %7916 = vmatprep.subr.bf16.mxu0 0
        %7917 = vmatpush1.bf16.msra.mxu0 %v7890
        %7918 = vmatprep.subr.bf16.mxu0 0
        %7919 = vmatpush1.bf16.msra.mxu0 %v7889
        %7920 = vmatprep.subr.bf16.mxu0 0
        %7921 = vmatpush1.bf16.msra.mxu0 %v7888
        %7922 = vmatprep.subr.bf16.mxu0 0
        %7923 = vmatpush1.bf16.msra.mxu0 %v7887
        %7924 = vmatprep.subr.bf16.mxu0 0
        %7925 = vmatpush1.bf16.msra.mxu0 %v7886
        %7926 = vmatprep.subr.bf16.mxu0 0
        %7927 = vmatpush1.bf16.msra.mxu0 %v7885
        %7928 = vmatprep.subr.bf16.mxu0 0
        %7929 = vmatpush2.bf16.msra.mxu0 0
        %7930 = vmatprep.subr.bf16.mxu0 0
        %7931 = vmatpush2.bf16.msra.mxu0 0
        %7932 = vmatprep.subr.bf16.mxu0 0
        %7933 = vmatpush2.bf16.msra.mxu0 0
        %7934 = vmatprep.subr.bf16.mxu0 0
        %7935 = vmatpush2.bf16.msra.mxu0 0
        %7936 = vmatprep.subr.bf16.mxu0 0
        %7937 = vmatpush2.bf16.msra.mxu0 %v7896
        %7938 = vmatprep.subr.bf16.mxu0 0
        %7939 = vmatpush2.bf16.msra.mxu0 %v7895
        %7940 = vmatprep.subr.bf16.mxu0 0
        %7941 = vmatpush2.bf16.msra.mxu0 %v7894
        %7942 = vmatprep.subr.bf16.mxu0 0
        %7943 = vmatpush2.bf16.msra.mxu0 %v7893
        %7944 = vmatprep.mubr.bf16.mxu0 %v7910
        %7945 = vmatmul.mubr.bf16.gmra.mxu0 %v7811
        %v7946 = vpop.f32.mrf.mxu0
        %v7947 = vadd.f32 0.0, %v7946
        %v7948 = vpop.f32.mrf.mxu0
        %v7949 = vpop.f32.mrf.mxu0
        %v7950 = vadd.f32 0.0, %v7949
        %v7951 = vpop.f32.mrf.mxu0
        %7952 = vdwg.mxu0
        %v7953 = vlaneseq
        %v7954 = vshrl.u32 %v7953, 7
        %v7955 = vsub.s32 0, %v7954
        %v7956 = vrot.slane %v7396, %v7955
        %v7957 = vmul.f32 %v7947, %v7956
        %v7958 = vmul.f32 %v7950, %v7956
        %v7959 = vlaneseq
        %v7960 = vshrl.u32 %v7959, 7
        %v7961 = vsub.s32 1, %v7960
        %v7962 = vrot.slane %v7396, %v7961
        %v7963 = vadd.f32 %v7957, %v7962
        %v7964 = vadd.f32 %v7958, %v7962
        %v7965 = vadd.f32 %v7963, %v7264
        %v7966 = vadd.f32 %v7964, %v7265
        %v7967 = vld [vmem:[%s67] sm:$0xf]
        %v7968 = vld [vmem:[%s67 + $0x4] sm:$0xf]
        %v7969 = vpack.c.bf16 %v7966, %v7965
        %v7972 = vunpack.c.l.b16 %v7967
        %v7973 = vunpack.c.l.b16 %v7968
        %v7974 = vpack.c.b16 %v7973, %v7972
        %v7976 = vsel %vm4006, %v7974, 0
        %7978 = vmatprep.subr.bf16.mxu0 0
        %7979 = vmatpush1.bf16.msra.mxu0 0
        %7980 = vmatprep.subr.bf16.mxu0 0
        %7981 = vmatpush1.bf16.msra.mxu0 0
        %7982 = vmatprep.subr.bf16.mxu0 0
        %7983 = vmatpush1.bf16.msra.mxu0 0
        %7984 = vmatprep.subr.bf16.mxu0 0
        %7985 = vmatpush1.bf16.msra.mxu0 0
        %7986 = vmatprep.subr.bf16.mxu0 0
        %7987 = vmatpush1.bf16.msra.mxu0 0
        %7988 = vmatprep.subr.bf16.mxu0 0
        %7989 = vmatpush1.bf16.msra.mxu0 0
        %7990 = vmatprep.subr.bf16.mxu0 0
        %7991 = vmatpush1.bf16.msra.mxu0 0
        %7992 = vmatprep.subr.bf16.mxu0 0
        %7993 = vmatpush1.bf16.msra.mxu0 %v7969
        %7994 = vmatprep.subr.bf16.mxu0 0
        %7995 = vmatpush2.bf16.msra.mxu0 0
        %7996 = vmatprep.subr.bf16.mxu0 0
        %7997 = vmatpush2.bf16.msra.mxu0 0
        %7998 = vmatprep.subr.bf16.mxu0 0
        %7999 = vmatpush2.bf16.msra.mxu0 0
        %8000 = vmatprep.subr.bf16.mxu0 0
        %8001 = vmatpush2.bf16.msra.mxu0 0
        %8002 = vmatprep.subr.bf16.mxu0 0
        %8003 = vmatpush2.bf16.msra.mxu0 0
        %8004 = vmatprep.subr.bf16.mxu0 0
        %8005 = vmatpush2.bf16.msra.mxu0 0
        %8006 = vmatprep.subr.bf16.mxu0 0
        %8007 = vmatpush2.bf16.msra.mxu0 0
        %8008 = vmatprep.subr.bf16.mxu0 0
        %8009 = vmatpush2.bf16.msra.mxu0 0
        %8010 = vmatprep.mubr.bf16.mxu0 0
        %8011 = vmatmul.mubr.bf16.gmra.mxu0 %v7976
        %v8012 = vpop.f32.mrf.mxu0
        %v8013 = vadd.f32 0.0, %v8012
        %v8014 = vpop.f32.mrf.mxu0
        %v8015 = vpop.f32.mrf.mxu0
        %v8016 = vadd.f32 0.0, %v8015
        %v8017 = vpop.f32.mrf.mxu0
        %8018 = vdwg.mxu0
        %v8019 = vpack.c.bf16 %v8016, %v8013
        %v8020 = vld [vmem:[%s69] sm:$0xff]
        %v8021 = vld [vmem:[%s69 + $0x8] sm:$0xff]
        %v8022 = vld [vmem:[%s69 + $0x10] sm:$0xff]
        %v8023 = vld [vmem:[%s69 + $0x18] sm:$0xff]
        %v8028 = vunpack.c.l.b16 %v8020
        %v8029 = vunpack.c.h.b16 %v8020
        %v8030 = vunpack.c.l.b16 %v8021
        %v8031 = vunpack.c.h.b16 %v8021
        %v8032 = vunpack.c.l.b16 %v8022
        %v8033 = vunpack.c.h.b16 %v8022
        %v8034 = vunpack.c.l.b16 %v8023
        %v8035 = vunpack.c.h.b16 %v8023
        %v8036 = vpack.c.b16 %v8030, %v8028
        %v8037 = vpack.c.b16 %v8031, %v8029
        %v8038 = vpack.c.b16 %v8034, %v8032
        %v8039 = vpack.c.b16 %v8035, %v8033
        %v8045 = vsel %vm1763, %v8019, 0
        %8047 = vmatprep.subr.bf16.mxu0 0
        %8048 = vmatpush1.bf16.msra.mxu0 0
        %8049 = vmatprep.subr.bf16.mxu0 0
        %8050 = vmatpush1.bf16.msra.mxu0 0
        %8051 = vmatprep.subr.bf16.mxu0 0
        %8052 = vmatpush1.bf16.msra.mxu0 0
        %8053 = vmatprep.subr.bf16.mxu0 0
        %8054 = vmatpush1.bf16.msra.mxu0 0
        %8055 = vmatprep.subr.bf16.mxu0 0
        %8056 = vmatpush1.bf16.msra.mxu0 0
        %8057 = vmatprep.subr.bf16.mxu0 0
        %8058 = vmatpush1.bf16.msra.mxu0 0
        %8059 = vmatprep.subr.bf16.mxu0 %v8039
        %8060 = vmatpush1.bf16.msra.mxu0 %v8038
        %8061 = vmatprep.subr.bf16.mxu0 %v8037
        %8062 = vmatpush1.bf16.msra.mxu0 %v8036
        %8063 = vmatprep.subr.bf16.mxu0 0
        %8064 = vmatpush2.bf16.msra.mxu0 0
        %8065 = vmatprep.subr.bf16.mxu0 0
        %8066 = vmatpush2.bf16.msra.mxu0 0
        %8067 = vmatprep.subr.bf16.mxu0 0
        %8068 = vmatpush2.bf16.msra.mxu0 0
        %8069 = vmatprep.subr.bf16.mxu0 0
        %8070 = vmatpush2.bf16.msra.mxu0 0
        %8071 = vmatprep.subr.bf16.mxu0 0
        %8072 = vmatpush2.bf16.msra.mxu0 0
        %8073 = vmatprep.subr.bf16.mxu0 0
        %8074 = vmatpush2.bf16.msra.mxu0 0
        %8075 = vmatprep.subr.bf16.mxu0 0
        %8076 = vmatpush2.bf16.msra.mxu0 0
        %8077 = vmatprep.subr.bf16.mxu0 0
        %8078 = vmatpush2.bf16.msra.mxu0 0
        %8079 = vmatprep.mubr.bf16.mxu0 0
        %8080 = vmatmul.mubr.bf16.gmra.mxu0 %v8045
        %v8081 = vpop.f32.mrf.mxu0
        %v8082 = vadd.f32 0.0, %v8081
        %v8083 = vpop.f32.mrf.mxu0
        %v8084 = vadd.f32 0.0, %v8083
        %v8085 = vpop.f32.mrf.mxu0
        %v8086 = vadd.f32 0.0, %v8085
        %v8087 = vpop.f32.mrf.mxu0
        %v8088 = vadd.f32 0.0, %v8087
        %8089 = vdwg.mxu0
        %v8090 = vld [vmem:[%s71] sm:$0xf]
        %v8092 = vlaneseq
        %v8093 = vshrl.u32 %v8092, 7
        %v8094 = vsub.s32 0, %v8093
        %v8095 = vrot.slane %v8090, %v8094
        %v8096 = vlaneseq
        %v8097 = vshrl.u32 %v8096, 7
        %v8098 = vsub.s32 2, %v8097
        %v8099 = vrot.slane %v8090, %v8098
        %v8102 = vlaneseq
        %v8103 = vshrl.u32 %v8102, 7
        %v8104 = vsub.s32 0, %v8103
        %v8105 = vrot.slane %v8095, %v8104
        %v8106 = vlaneseq
        %v8107 = vshrl.u32 %v8106, 7
        %v8108 = vsub.s32 0, %v8107
        %v8109 = vrot.slane %v8099, %v8108
        %v8110 = vmul.f32 %v8082, %v8105
        %v8111 = vmul.f32 %v8084, %v8109
        %v8112 = vmul.f32 %v8086, %v8105
        %v8113 = vmul.f32 %v8088, %v8109
        %v8114 = vlaneseq
        %v8115 = vshrl.u32 %v8114, 7
        %v8116 = vsub.s32 1, %v8115
        %v8117 = vrot.slane %v8090, %v8116
        %v8118 = vlaneseq
        %v8119 = vshrl.u32 %v8118, 7
        %v8120 = vsub.s32 3, %v8119
        %v8121 = vrot.slane %v8090, %v8120
        %v8124 = vlaneseq
        %v8125 = vshrl.u32 %v8124, 7
        %v8126 = vsub.s32 1, %v8125
        %v8127 = vrot.slane %v8117, %v8126
        %v8128 = vlaneseq
        %v8129 = vshrl.u32 %v8128, 7
        %v8130 = vsub.s32 1, %v8129
        %v8131 = vrot.slane %v8121, %v8130
        %v8132 = vadd.f32 %v8110, %v8127
        %v8133 = vadd.f32 %v8111, %v8131
        %v8134 = vadd.f32 %v8112, %v8127
        %v8135 = vadd.f32 %v8113, %v8131
        %v8136 = vmax.f32 %v8132, 0.0
        %v8137 = vmax.f32 %v8133, 0.0
        %v8138 = vmax.f32 %v8134, 0.0
        %v8139 = vmax.f32 %v8135, 0.0
        %v8140 = vmin.f32 %v8136, 6.0
        %v8141 = vmin.f32 %v8137, 6.0
        %v8142 = vmin.f32 %v8138, 6.0
        %v8143 = vmin.f32 %v8139, 6.0
        %v8144 = vld [vmem:[%s73] sm:$0xff]
        %v8145 = vld [vmem:[%s73 + $0x8] sm:$0xff]
        %v8146 = vld [vmem:[%s73 + $0x10] sm:$0x1]
        %v8147 = vld [vmem:[%s73 + $0x18] sm:$0x1]
        %v8148 = vld [vmem:[%s75] sm:$0xf]
        %v8149 = vld [vmem:[%s79] sm:$0x3]
        %8150 = vst [vmem:[#allocation7] sm:$0x7] 0.0
        %vm8151 = vcmask 518144
        %8152 = vst.msk [vmem:[#allocation7 + $0x8] sm:$0x7] %vm8151, 0.0
        %v8155 = vrot.slane %v8140, 5
        %v8156 = vrot.slane %v8141, 5
        %8159 = vst [vmem:[#allocation7] sm:$0x78] %v8155
        %vm8160 = vcmask 522243
        %8161 = vst.msk [vmem:[#allocation7 + $0x8] sm:$0x78] %vm8160, %v8156
        %8162 = vst [vmem:[#allocation7] sm:$0x80] 0.0
        %vm8163 = vcmask 523271
        %8164 = vst.msk [vmem:[#allocation7 + $0x8] sm:$0x80] %vm8163, 0.0
        %8165 = vst [vmem:[#allocation7 + $0x10] sm:$0x3] 0.0
        %8166 = vst.msk [vmem:[#allocation7 + $0x18] sm:$0x3] %vm7426, 0.0
        %v8167 = vrot.slane %v8140, 2
        %v8168 = vrot.slane %v8141, 2
        %8171 = vst [vmem:[#allocation7 + $0x10] sm:$0x3c] %v8167
        %vm8172 = vcmask 521218
        %8173 = vst.msk [vmem:[#allocation7 + $0x18] sm:$0x3c] %vm8172, %v8168
        %8174 = vst [vmem:[#allocation7 + $0x10] sm:$0xc0] 0.0
        %vm8175 = vcmask 523270
        %8176 = vst.msk [vmem:[#allocation7 + $0x18] sm:$0xc0] %vm8175, 0.0
        %8177 = vst [vmem:[#allocation7 + $0x20] sm:$0x1] 0.0
        %vm8178 = vcmask 516096
        %8179 = vst.msk [vmem:[#allocation7 + $0x28] sm:$0x1] %vm8178, 0.0
        %v8182 = vrot.slane %v8142, 7
        %v8183 = vrot.slane %v8143, 7
        %8186 = vst [vmem:[#allocation7 + $0x20] sm:$0x1e] %v8182
        %vm8187 = vcmask 520193
        %8188 = vst.msk [vmem:[#allocation7 + $0x28] sm:$0x1e] %vm8187, %v8183
        %8189 = vst [vmem:[#allocation7 + $0x20] sm:$0xe0] 0.0
        %8190 = vst.msk [vmem:[#allocation7 + $0x28] sm:$0xe0] %vm7417, 0.0
        %v8191 = vrot.slane %v8142, 4
        %v8192 = vrot.slane %v8143, 4
        %8195 = vst [vmem:[#allocation7 + $0x30] sm:$0xf] %v8191
        %vm8196 = vcmask 519168
        %8197 = vst.msk [vmem:[#allocation7 + $0x38] sm:$0xf] %vm8196, %v8192
        %vm8198 = vcmp.lt.s32.totalorder %v1804, 0
        %v8199 = vsub.s32 0, %v1804
        %v8200 = vsel %vm8198, %v8199, %v1804
        %v8201 = vshrl.u32 %v8200, 1
        %v8202 = vand.u32 %v8200, 1
        %v8203 = vsub.s32 0, %v8202
        %v8204 = vsel %vm8198, %v8203, %v8202
        %vm8205 = vcmp.ne.s32.totalorder %v8204, 0
        %vm8206 = vcmp.lt.s32.totalorder %v8204, 0
        %vm8207 = vmand %vm8206, %vm8205
        %v8208 = vadd.s32 %v8204, 2
        %v8209 = vsel %vm8207, %v8208, %v8204
        %vm8210 = vcmp.eq.s32.totalorder %v8209, 0
        %v8211 = vld [vmem:[#allocation7 + $0x20] sm:$0xe0]
        %v8212 = vld [vmem:[#allocation7 + $0x28] sm:$0xe0]
        %v8213 = vld [vmem:[#allocation7 + $0x30] sm:$0x1]
        %v8214 = vld [vmem:[#allocation7 + $0x38] sm:$0x1]
        %v8215 = vlaneseq
        %v8216 = vshrl.u32 %v8215, 7
        %v8217 = vsub.s32 0, %v8216
        %v8218 = vrot.slane %v8144, %v8217
        %v8219 = vlaneseq
        %v8220 = vshrl.u32 %v8219, 7
        %v8221 = vsub.s32 0, %v8220
        %v8222 = vrot.slane %v8145, %v8221
        %v8223 = vmul.f32 %v8211, %v8218
        %v8224 = vmul.f32 %v8212, %v8222
        %v8225 = vmul.f32 %v8213, %v8218
        %v8226 = vmul.f32 %v8214, %v8222
        %v8227 = vadd.f32 %v8223, 0.0
        %v8228 = vadd.f32 %v8224, 0.0
        %v8229 = vadd.f32 %v8225, 0.0
        %v8230 = vadd.f32 %v8226, 0.0
        %v8231 = vld [vmem:[#allocation7 + $0x10] sm:$0x1e]
        %v8232 = vld [vmem:[#allocation7 + $0x18] sm:$0x1e]
        %v8233 = vlaneseq
        %v8234 = vshrl.u32 %v8233, 7
        %v8235 = vsub.s32 3, %v8234
        %v8236 = vrot.slane %v8144, %v8235
        %v8237 = vlaneseq
        %v8238 = vshrl.u32 %v8237, 7
        %v8239 = vsub.s32 3, %v8238
        %v8240 = vrot.slane %v8145, %v8239
        %v8241 = vmul.f32 %v8231, %v8236
        %v8242 = vmul.f32 %v8232, %v8240
        %v8245 = vrot.slane %v8241, 4
        %v8246 = vrot.slane %v8242, 4
        %v8249 = vadd.f32 %v8227, %v8245
        %v8250 = vadd.f32 %v8228, %v8246
        %v8251 = vadd.f32 %v8229, %v8245
        %v8252 = vadd.f32 %v8230, %v8246
        %v8253 = vld [vmem:[#allocation7 + $0x20] sm:$0x80]
        %v8254 = vld [vmem:[#allocation7 + $0x28] sm:$0x80]
        %v8255 = vld [vmem:[#allocation7 + $0x30] sm:$0x7]
        %v8256 = vld [vmem:[#allocation7 + $0x38] sm:$0x7]
        %v8257 = vlaneseq
        %v8258 = vshrl.u32 %v8257, 7
        %v8259 = vsub.s32 6, %v8258
        %v8260 = vrot.slane %v8144, %v8259
        %v8261 = vlaneseq
        %v8262 = vshrl.u32 %v8261, 7
        %v8263 = vsub.s32 6, %v8262
        %v8264 = vrot.slane %v8145, %v8263
        %v8265 = vmul.f32 %v8253, %v8260
        %v8266 = vmul.f32 %v8254, %v8264
        %v8267 = vmul.f32 %v8255, %v8260
        %v8268 = vmul.f32 %v8256, %v8264
        %v8273 = vrot.slane %v8265, 2
        %v8274 = vrot.slane %v8267, 2
        %v8275 = vsel %vm1455, %v8273, %v8274
        %v8276 = vrot.slane %v8266, 2
        %v8277 = vrot.slane %v8268, 2
        %v8278 = vsel %vm1455, %v8276, %v8277
        %v8283 = vadd.f32 %v8249, %v8275
        %v8284 = vadd.f32 %v8250, %v8278
        %v8285 = vadd.f32 %v8251, %v8274
        %v8286 = vadd.f32 %v8252, %v8277
        %vm8291 = vcmask 1042432
        %v8292 = vrot.slane %v8283, 5
        %v8293 = vrot.slane %v8285, 5
        %v8294 = vsel %vm8291, %v8292, %v8293
        %v8295 = vrot.slane %v8284, 5
        %v8296 = vrot.slane %v8286, 5
        %v8297 = vsel %vm8291, %v8295, %v8296
        %v8300 = vsel %vm8210, 0.0, %v8294
        %v8301 = vsel %vm8210, 0.0, %v8297
        %v8302 = vadd.f32 %v8300, 0.0
        %v8303 = vadd.f32 %v8301, 0.0
        %v8304 = vld [vmem:[#allocation7 + $0x10] sm:$0x80]
        %v8305 = vld [vmem:[#allocation7 + $0x18] sm:$0x80]
        %v8306 = vld [vmem:[#allocation7 + $0x20] sm:$0x7]
        %v8307 = vld [vmem:[#allocation7 + $0x28] sm:$0x7]
        %v8308 = vlaneseq
        %v8309 = vshrl.u32 %v8308, 7
        %v8310 = vsub.s32 1, %v8309
        %v8311 = vrot.slane %v8144, %v8310
        %v8312 = vlaneseq
        %v8313 = vshrl.u32 %v8312, 7
        %v8314 = vsub.s32 1, %v8313
        %v8315 = vrot.slane %v8145, %v8314
        %v8316 = vmul.f32 %v8304, %v8311
        %v8317 = vmul.f32 %v8305, %v8315
        %v8318 = vmul.f32 %v8306, %v8311
        %v8319 = vmul.f32 %v8307, %v8315
        %v8320 = vadd.f32 %v8316, 0.0
        %v8321 = vadd.f32 %v8317, 0.0
        %v8322 = vadd.f32 %v8318, 0.0
        %v8323 = vadd.f32 %v8319, 0.0
        %v8324 = vld [vmem:[#allocation7] sm:$0x78]
        %v8325 = vld [vmem:[#allocation7 + $0x8] sm:$0x78]
        %v8326 = vlaneseq
        %v8327 = vshrl.u32 %v8326, 7
        %v8328 = vsub.s32 4, %v8327
        %v8329 = vrot.slane %v8144, %v8328
        %v8330 = vlaneseq
        %v8331 = vshrl.u32 %v8330, 7
        %v8332 = vsub.s32 4, %v8331
        %v8333 = vrot.slane %v8145, %v8332
        %v8334 = vmul.f32 %v8324, %v8329
        %v8335 = vmul.f32 %v8325, %v8333
        %v8338 = vrot.slane %v8334, 4
        %v8339 = vrot.slane %v8335, 4
        %v8342 = vadd.f32 %v8320, %v8338
        %v8343 = vadd.f32 %v8321, %v8339
        %v8344 = vadd.f32 %v8322, %v8338
        %v8345 = vadd.f32 %v8323, %v8339
        %v8346 = vld [vmem:[#allocation7 + $0x20] sm:$0x1e]
        %v8347 = vld [vmem:[#allocation7 + $0x28] sm:$0x1e]
        %v8348 = vlaneseq
        %v8349 = vshrl.u32 %v8348, 7
        %v8350 = vsub.s32 7, %v8349
        %v8351 = vrot.slane %v8144, %v8350
        %v8352 = vlaneseq
        %v8353 = vshrl.u32 %v8352, 7
        %v8354 = vsub.s32 7, %v8353
        %v8355 = vrot.slane %v8145, %v8354
        %v8356 = vmul.f32 %v8346, %v8351
        %v8357 = vmul.f32 %v8347, %v8355
        %v8360 = vrot.slane %v8356, 2
        %v8361 = vrot.slane %v8357, 2
        %v8364 = vadd.f32 %v8342, %v8360
        %v8365 = vadd.f32 %v8343, %v8361
        %v8366 = vadd.f32 %v8344, %v8360
        %v8367 = vadd.f32 %v8345, %v8361
        %v8372 = vrot.slane %v8364, 7
        %v8373 = vrot.slane %v8366, 7
        %v8374 = vsel %vm5203, %v8372, %v8373
        %v8375 = vrot.slane %v8365, 7
        %v8376 = vrot.slane %v8367, 7
        %v8377 = vsel %vm5203, %v8375, %v8376
        %v8380 = vadd.f32 %v8302, %v8374
        %v8381 = vadd.f32 %v8303, %v8377
        %v8382 = vld [vmem:[#allocation7 + $0x20] sm:$0xc0]
        %v8383 = vld [vmem:[#allocation7 + $0x28] sm:$0xc0]
        %v8384 = vld [vmem:[#allocation7 + $0x30] sm:$0x3]
        %v8385 = vld [vmem:[#allocation7 + $0x38] sm:$0x3]
        %v8386 = vlaneseq
        %v8387 = vshrl.u32 %v8386, 7
        %v8388 = vsub.s32 2, %v8387
        %v8389 = vrot.slane %v8144, %v8388
        %v8390 = vlaneseq
        %v8391 = vshrl.u32 %v8390, 7
        %v8392 = vsub.s32 2, %v8391
        %v8393 = vrot.slane %v8145, %v8392
        %v8394 = vmul.f32 %v8382, %v8389
        %v8395 = vmul.f32 %v8383, %v8393
        %v8396 = vmul.f32 %v8384, %v8389
        %v8397 = vmul.f32 %v8385, %v8393
        %v8398 = vadd.f32 %v8394, 0.0
        %v8399 = vadd.f32 %v8395, 0.0
        %v8400 = vadd.f32 %v8396, 0.0
        %v8401 = vadd.f32 %v8397, 0.0
        %v8402 = vld [vmem:[#allocation7 + $0x10] sm:$0x3c]
        %v8403 = vld [vmem:[#allocation7 + $0x18] sm:$0x3c]
        %v8404 = vlaneseq
        %v8405 = vshrl.u32 %v8404, 7
        %v8406 = vsub.s32 5, %v8405
        %v8407 = vrot.slane %v8144, %v8406
        %v8408 = vlaneseq
        %v8409 = vshrl.u32 %v8408, 7
        %v8410 = vsub.s32 5, %v8409
        %v8411 = vrot.slane %v8145, %v8410
        %v8412 = vmul.f32 %v8402, %v8407
        %v8413 = vmul.f32 %v8403, %v8411
        %v8416 = vrot.slane %v8412, 4
        %v8417 = vrot.slane %v8413, 4
        %v8420 = vadd.f32 %v8398, %v8416
        %v8421 = vadd.f32 %v8399, %v8417
        %v8422 = vadd.f32 %v8400, %v8416
        %v8423 = vadd.f32 %v8401, %v8417
        %v8424 = vld [vmem:[#allocation7 + $0x30] sm:$0xf]
        %v8425 = vld [vmem:[#allocation7 + $0x38] sm:$0xf]
        %v8426 = vlaneseq
        %v8427 = vshrl.u32 %v8426, 7
        %v8428 = vsub.s32 0, %v8427
        %v8429 = vrot.slane %v8146, %v8428
        %v8430 = vlaneseq
        %v8431 = vshrl.u32 %v8430, 7
        %v8432 = vsub.s32 0, %v8431
        %v8433 = vrot.slane %v8147, %v8432
        %v8434 = vmul.f32 %v8424, %v8429
        %v8435 = vmul.f32 %v8425, %v8433
        %v8438 = vrot.slane %v8434, 2
        %v8439 = vrot.slane %v8435, 2
        %v8442 = vadd.f32 %v8420, %v8438
        %v8443 = vadd.f32 %v8421, %v8439
        %v8444 = vadd.f32 %v8422, %v8438
        %v8445 = vadd.f32 %v8423, %v8439
        %v8450 = vrot.slane %v8442, 6
        %v8451 = vrot.slane %v8444, 6
        %v8452 = vsel %vm6584, %v8450, %v8451
        %v8453 = vrot.slane %v8443, 6
        %v8454 = vrot.slane %v8445, 6
        %v8455 = vsel %vm6584, %v8453, %v8454
        %v8458 = vadd.f32 %v8380, %v8452
        %v8459 = vadd.f32 %v8381, %v8455
        %v8461 = vlaneseq
        %v8462 = vshrl.u32 %v8461, 7
        %v8463 = vsub.s32 0, %v8462
        %v8464 = vrot.slane %v8148, %v8463
        %v8465 = vlaneseq
        %v8466 = vshrl.u32 %v8465, 7
        %v8467 = vsub.s32 2, %v8466
        %v8468 = vrot.slane %v8148, %v8467
        %v8471 = vlaneseq
        %v8472 = vshrl.u32 %v8471, 7
        %v8473 = vsub.s32 0, %v8472
        %v8474 = vrot.slane %v8464, %v8473
        %v8475 = vlaneseq
        %v8476 = vshrl.u32 %v8475, 7
        %v8477 = vsub.s32 0, %v8476
        %v8478 = vrot.slane %v8468, %v8477
        %v8479 = vmul.f32 %v8458, %v8474
        %v8480 = vmul.f32 %v8459, %v8478
        %v8481 = vlaneseq
        %v8482 = vshrl.u32 %v8481, 7
        %v8483 = vsub.s32 1, %v8482
        %v8484 = vrot.slane %v8148, %v8483
        %v8485 = vlaneseq
        %v8486 = vshrl.u32 %v8485, 7
        %v8487 = vsub.s32 3, %v8486
        %v8488 = vrot.slane %v8148, %v8487
        %v8491 = vlaneseq
        %v8492 = vshrl.u32 %v8491, 7
        %v8493 = vsub.s32 1, %v8492
        %v8494 = vrot.slane %v8484, %v8493
        %v8495 = vlaneseq
        %v8496 = vshrl.u32 %v8495, 7
        %v8497 = vsub.s32 1, %v8496
        %v8498 = vrot.slane %v8488, %v8497
        %v8499 = vadd.f32 %v8479, %v8494
        %v8500 = vadd.f32 %v8480, %v8498
        %v8501 = vmax.f32 %v8499, 0.0
        %v8502 = vmax.f32 %v8500, 0.0
        %v8503 = vmin.f32 %v8501, 6.0
        %v8504 = vmin.f32 %v8502, 6.0
        %v8505 = vpack.c.bf16 %v8503, %v8503
        %v8506 = vpack.c.bf16 %v8504, %v8504
        %v8507 = vld [vmem:[%s77] sm:$0xf]
        %v8508 = vld [vmem:[%s77 + $0x4] sm:$0xf]
        %v8509 = vld [vmem:[%s77 + $0x8] sm:$0xf]
        %v8510 = vld [vmem:[%s77 + $0xc] sm:$0xf]
        %v8511 = vld [vmem:[%s77 + $0x10] sm:$0xf]
        %v8512 = vld [vmem:[%s77 + $0x14] sm:$0xf]
        %v8513 = vld [vmem:[%s77 + $0x18] sm:$0xf]
        %v8514 = vld [vmem:[%s77 + $0x1c] sm:$0xf]
        %v8515 = vld [vmem:[%s77 + $0x20] sm:$0xf]
        %v8516 = vld [vmem:[%s77 + $0x24] sm:$0xf]
        %v8517 = vld [vmem:[%s77 + $0x28] sm:$0xf]
        %v8518 = vld [vmem:[%s77 + $0x2c] sm:$0xf]
        %v8519 = vld [vmem:[%s77 + $0x30] sm:$0xf]
        %v8520 = vld [vmem:[%s77 + $0x34] sm:$0xf]
        %v8521 = vld [vmem:[%s77 + $0x38] sm:$0xf]
        %v8522 = vld [vmem:[%s77 + $0x3c] sm:$0xf]
        %v8523 = vld [vmem:[%s77 + $0x40] sm:$0xf]
        %v8524 = vld [vmem:[%s77 + $0x44] sm:$0xf]
        %v8525 = vld [vmem:[%s77 + $0x48] sm:$0xf]
        %v8526 = vld [vmem:[%s77 + $0x4c] sm:$0xf]
        %v8527 = vld [vmem:[%s77 + $0x50] sm:$0xf]
        %v8528 = vld [vmem:[%s77 + $0x54] sm:$0xf]
        %v8529 = vld [vmem:[%s77 + $0x58] sm:$0xf]
        %v8530 = vld [vmem:[%s77 + $0x5c] sm:$0xf]
        %v8555 = vunpack.c.l.b16 %v8507
        %v8556 = vunpack.c.l.b16 %v8508
        %v8557 = vunpack.c.l.b16 %v8509
        %v8558 = vunpack.c.l.b16 %v8510
        %v8559 = vunpack.c.l.b16 %v8511
        %v8560 = vunpack.c.l.b16 %v8512
        %v8561 = vunpack.c.l.b16 %v8513
        %v8562 = vunpack.c.l.b16 %v8514
        %v8563 = vunpack.c.l.b16 %v8515
        %v8564 = vunpack.c.l.b16 %v8516
        %v8565 = vunpack.c.l.b16 %v8517
        %v8566 = vunpack.c.l.b16 %v8518
        %v8567 = vunpack.c.l.b16 %v8519
        %v8568 = vunpack.c.l.b16 %v8520
        %v8569 = vunpack.c.l.b16 %v8521
        %v8570 = vunpack.c.l.b16 %v8522
        %v8571 = vunpack.c.l.b16 %v8523
        %v8572 = vunpack.c.l.b16 %v8524
        %v8573 = vunpack.c.l.b16 %v8525
        %v8574 = vunpack.c.l.b16 %v8526
        %v8575 = vunpack.c.l.b16 %v8527
        %v8576 = vunpack.c.l.b16 %v8528
        %v8577 = vunpack.c.l.b16 %v8529
        %v8578 = vunpack.c.l.b16 %v8530
        %v8579 = vpack.c.b16 %v8556, %v8555
        %v8580 = vpack.c.b16 %v8558, %v8557
        %v8581 = vpack.c.b16 %v8560, %v8559
        %v8582 = vpack.c.b16 %v8562, %v8561
        %v8583 = vpack.c.b16 %v8564, %v8563
        %v8584 = vpack.c.b16 %v8566, %v8565
        %v8585 = vpack.c.b16 %v8568, %v8567
        %v8586 = vpack.c.b16 %v8570, %v8569
        %v8587 = vpack.c.b16 %v8572, %v8571
        %v8588 = vpack.c.b16 %v8574, %v8573
        %v8589 = vpack.c.b16 %v8576, %v8575
        %v8590 = vpack.c.b16 %v8578, %v8577
        %v8604 = vsel %vm6251, %v8506, 0
        %8606 = vmatprep.subr.bf16.mxu0 0
        %8607 = vmatpush1.bf16.msra.mxu0 %v8586
        %8608 = vmatprep.subr.bf16.mxu0 0
        %8609 = vmatpush1.bf16.msra.mxu0 %v8585
        %8610 = vmatprep.subr.bf16.mxu0 0
        %8611 = vmatpush1.bf16.msra.mxu0 %v8584
        %8612 = vmatprep.subr.bf16.mxu0 0
        %8613 = vmatpush1.bf16.msra.mxu0 %v8583
        %8614 = vmatprep.subr.bf16.mxu0 0
        %8615 = vmatpush1.bf16.msra.mxu0 %v8582
        %8616 = vmatprep.subr.bf16.mxu0 0
        %8617 = vmatpush1.bf16.msra.mxu0 %v8581
        %8618 = vmatprep.subr.bf16.mxu0 0
        %8619 = vmatpush1.bf16.msra.mxu0 %v8580
        %8620 = vmatprep.subr.bf16.mxu0 0
        %8621 = vmatpush1.bf16.msra.mxu0 %v8579
        %8622 = vmatprep.subr.bf16.mxu0 0
        %8623 = vmatpush2.bf16.msra.mxu0 0
        %8624 = vmatprep.subr.bf16.mxu0 0
        %8625 = vmatpush2.bf16.msra.mxu0 0
        %8626 = vmatprep.subr.bf16.mxu0 0
        %8627 = vmatpush2.bf16.msra.mxu0 0
        %8628 = vmatprep.subr.bf16.mxu0 0
        %8629 = vmatpush2.bf16.msra.mxu0 0
        %8630 = vmatprep.subr.bf16.mxu0 0
        %8631 = vmatpush2.bf16.msra.mxu0 %v8590
        %8632 = vmatprep.subr.bf16.mxu0 0
        %8633 = vmatpush2.bf16.msra.mxu0 %v8589
        %8634 = vmatprep.subr.bf16.mxu0 0
        %8635 = vmatpush2.bf16.msra.mxu0 %v8588
        %8636 = vmatprep.subr.bf16.mxu0 0
        %8637 = vmatpush2.bf16.msra.mxu0 %v8587
        %8638 = vmatprep.mubr.bf16.mxu0 %v8604
        %8639 = vmatmul.mubr.bf16.gmra.mxu0 %v8505
        %v8640 = vpop.f32.mrf.mxu0
        %v8641 = vadd.f32 0.0, %v8640
        %v8642 = vpop.f32.mrf.mxu0
        %v8643 = vpop.f32.mrf.mxu0
        %v8644 = vpop.f32.mrf.mxu0
        %8645 = vdwg.mxu0
        %v8646 = vlaneseq
        %v8647 = vshrl.u32 %v8646, 7
        %v8648 = vsub.s32 0, %v8647
        %v8649 = vrot.slane %v8149, %v8648
        %v8650 = vmul.f32 %v8641, %v8649
        %v8651 = vlaneseq
        %v8652 = vshrl.u32 %v8651, 7
        %v8653 = vsub.s32 1, %v8652
        %v8654 = vrot.slane %v8149, %v8653
        %v8655 = vadd.f32 %v8650, %v8654
        %v8656 = vpack.c.bf16 %v8655, %v8655
        %v8657 = vld [vmem:[%s81] sm:$0xf]
        %v8658 = vld [vmem:[%s81 + $0x4] sm:$0xf]
        %v8659 = vld [vmem:[%s81 + $0x8] sm:$0xf]
        %v8660 = vld [vmem:[%s81 + $0xc] sm:$0xf]
        %v8661 = vld [vmem:[%s81 + $0x10] sm:$0xf]
        %v8662 = vld [vmem:[%s81 + $0x14] sm:$0xf]
        %v8663 = vld [vmem:[%s81 + $0x18] sm:$0xf]
        %v8664 = vld [vmem:[%s81 + $0x1c] sm:$0xf]
        %v8673 = vunpack.c.l.b16 %v8657
        %v8674 = vunpack.c.l.b16 %v8658
        %v8675 = vunpack.c.l.b16 %v8659
        %v8676 = vunpack.c.l.b16 %v8660
        %v8677 = vunpack.c.l.b16 %v8661
        %v8678 = vunpack.c.l.b16 %v8662
        %v8679 = vunpack.c.l.b16 %v8663
        %v8680 = vunpack.c.l.b16 %v8664
        %v8681 = vpack.c.b16 %v8674, %v8673
        %v8682 = vpack.c.b16 %v8676, %v8675
        %v8683 = vpack.c.b16 %v8678, %v8677
        %v8684 = vpack.c.b16 %v8680, %v8679
        %v8690 = vsel %vm6251, %v8656, 0
        %8692 = vmatprep.subr.bf16.mxu0 0
        %8693 = vmatpush1.bf16.msra.mxu0 0
        %8694 = vmatprep.subr.bf16.mxu0 0
        %8695 = vmatpush1.bf16.msra.mxu0 0
        %8696 = vmatprep.subr.bf16.mxu0 0
        %8697 = vmatpush1.bf16.msra.mxu0 0
        %8698 = vmatprep.subr.bf16.mxu0 0
        %8699 = vmatpush1.bf16.msra.mxu0 0
        %8700 = vmatprep.subr.bf16.mxu0 0
        %8701 = vmatpush1.bf16.msra.mxu0 %v8684
        %8702 = vmatprep.subr.bf16.mxu0 0
        %8703 = vmatpush1.bf16.msra.mxu0 %v8683
        %8704 = vmatprep.subr.bf16.mxu0 0
        %8705 = vmatpush1.bf16.msra.mxu0 %v8682
        %8706 = vmatprep.subr.bf16.mxu0 0
        %8707 = vmatpush1.bf16.msra.mxu0 %v8681
        %8708 = vmatprep.subr.bf16.mxu0 0
        %8709 = vmatpush2.bf16.msra.mxu0 0
        %8710 = vmatprep.subr.bf16.mxu0 0
        %8711 = vmatpush2.bf16.msra.mxu0 0
        %8712 = vmatprep.subr.bf16.mxu0 0
        %8713 = vmatpush2.bf16.msra.mxu0 0
        %8714 = vmatprep.subr.bf16.mxu0 0
        %8715 = vmatpush2.bf16.msra.mxu0 0
        %8716 = vmatprep.subr.bf16.mxu0 0
        %8717 = vmatpush2.bf16.msra.mxu0 0
        %8718 = vmatprep.subr.bf16.mxu0 0
        %8719 = vmatpush2.bf16.msra.mxu0 0
        %8720 = vmatprep.subr.bf16.mxu0 0
        %8721 = vmatpush2.bf16.msra.mxu0 0
        %8722 = vmatprep.subr.bf16.mxu0 0
        %8723 = vmatpush2.bf16.msra.mxu0 0
        %8724 = vmatprep.mubr.bf16.mxu0 0
        %8725 = vmatmul.mubr.bf16.gmra.mxu0 %v8690
        %v8726 = vpop.f32.mrf.mxu0
        %v8727 = vadd.f32 0.0, %v8726
        %v8728 = vpop.f32.mrf.mxu0
        %v8729 = vpop.f32.mrf.mxu0
        %v8730 = vpop.f32.mrf.mxu0
        %8731 = vdwg.mxu0
        %v8732 = vld [vmem:[#allocation8] sm:$0x3]
        %v8733 = vlaneseq
        %v8734 = vshrl.u32 %v8733, 7
        %v8735 = vsub.s32 0, %v8734
        %v8736 = vrot.slane %v8732, %v8735
        %v8737 = vmul.f32 %v8727, %v8736
        %v8738 = vlaneseq
        %v8739 = vshrl.u32 %v8738, 7
        %v8740 = vsub.s32 1, %v8739
        %v8741 = vrot.slane %v8732, %v8740
        %v8742 = vadd.f32 %v8737, %v8741
        %v8743 = vmax.f32 %v8742, 0.0
        %v8744 = vmin.f32 %v8743, 6.0
        %v8745 = vsel %vm4994, %v8744, 0.0
        %v8746 = vrot.slane %v8745, 4
        %v8747 = vadd.f32 %v8745, %v8746
        %v8748 = vrot.slane %v8747, 2
        %v8749 = vadd.f32 %v8747, %v8748
        %v8750 = vrot.slane %v8749, 1
        %v8751 = vadd.f32 %v8749, %v8750
        %v8752 = vrcp.pop 4.0
        %v8753 = vmul.f32 %v8751, %v8752
        %8754 = vst [vmem:[%s1271] sm:$0x1] %v8753
        %s8755 = sand.u32 %s995, 1
        %s8756 = scalar_lea.sflag [#allocation10], %s8755
        %s8757 = sand.u32 %s995, 1
        %s8758 = scalar_lea.vmem [#allocation11], %s8757
        // Predicated region
        $region193: #{_lambda_.1} parent=187 // pred_check
          %p8759 = pneg %p1005
        $region194: #{_lambda_.1} parent=187 // pred_check_branch
          %8761 = sbr.rel (%p8759) target = $region196
        $region195: #{_lambda_.1} parent=187 // pred_region
          %s8763 = ssub.s32 16, 16
          %8764 = vsyncadd %s8756, %s8763
          %s8765 = smul.addr %s100, 16
          %s8766 = scalar_lea.hbm %s85, %s8765
          %s8768 = sshll.u32 %s8758, 4
          %s8769 = int_to_ptr.vmem [resolvable:$true] %s8768
          %8771 = dma.vmem_to_hbm [thread:$0]  %s8769, 16, %s8766, %s8756
        $region196: #{_lambda_.1} parent=187 // pred_fallthru
          _
      $region188: #{_lambda_.1} parent=5 // pred_fallthru
        _
      %p8772 = scmp.le.s32.totalorder 2, %s95
      // Predicated region
      $region197: #{_lambda_.1} parent=5 // pred_check
        %p8773 = pneg %p8772
      $region198: #{_lambda_.1} parent=5 // pred_check_branch
        %8775 = sbr.rel (%p8773) target = $region200
      $region199: #{_lambda_.1} parent=5 // pred_region
        %s8776 = ssub.s32 %s95, 2
        // Predicated region
        $region201: #{_lambda_.1} parent=199 // pred_check
          %p8777 = pneg %p1011
        $region202: #{_lambda_.1} parent=199 // pred_check_branch
          %8779 = sbr.rel (%p8777) target = $region204
        $region203: #{_lambda_.1} parent=199 // pred_region
          %s8780 = sand.u32 %s996, 1
          %s8781 = scalar_lea.sflag [#allocation10], %s8780
          %s8782 = sand.u32 %s996, 1
          %s8783 = scalar_lea.vmem [#allocation11], %s8782
          %8784 = dma.done %s8781, 16
        $region204: #{_lambda_.1} parent=199 // pred_fallthru
          _
      $region200: #{_lambda_.1} parent=5 // pred_fallthru
        _
    $region6: #{_lambda_.1} parent=1 // loop_footer
      %s99 = sadd.s32 1, %s95
    $region7: #{_lambda_.1} parent=1 // loop_footer_branch
      %94 = sbr.rel target = $region3
    $region8: #{_lambda_.1} parent=1 // loop_exit
      _
    %8785 = vsyncpa [#allocation9], 1
    %s8786 = scalar_lea.sflag [#allocation9], 1
    %8787 = vsyncpa %s8786, 1
    %8788 = vsyncpa [#allocation10], 1
    %s8789 = scalar_lea.sflag [#allocation10], 1
    %8790 = vsyncpa %s8789, 1

</llo_original>
